<compile_context>
chip_gen: v7x
topology: tpu7x:2x2x1
jax: 0.10.0
libtpu: 0.0.40
codegen_flags: <defaults>
</compile_context>

<pallas_src>
import jax
import jax.numpy as jnp
from jax import lax
from jax.experimental import pallas as pl
from jax.experimental.pallas import tpu as pltpu

NEG_SLOPE = 0.2          # nn.LeakyReLU(0.2)
BN_EPS = 1e-5            # nn.BatchNorm1d default
COS_EPS = 1e-8           # torch.cosine_similarity default eps
NUM_CLASSES = 14

_VMEM_LIMIT = 32 * 1024 * 1024


def _leaky(x):
    return jnp.where(x > 0, x, NEG_SLOPE * x)


# ----------------------------------------------------------------------------
# Kernel 1: fused backbone stand-in (patch conv + 1x1 conv, both ReLU).
# bf16 MXU operands, f32 accumulation, intermediate stays in VMEM.
# ----------------------------------------------------------------------------
def _backbone_kernel(p_ref, w1_ref, w2_ref, o_ref):
    f1 = jnp.dot(p_ref[...], w1_ref[...], preferred_element_type=jnp.float32)
    f1 = jnp.maximum(f1, 0.0).astype(jnp.bfloat16)          # stays in VMEM
    f2 = jnp.dot(f1, w2_ref[...], preferred_element_type=jnp.float32)
    o_ref[...] = jnp.maximum(f2, 0.0)


def backbone_features(patches, w1, w2, tm=256):
    """patches: [M, Kin] f32 -> [M, C] f32 (two fused matmul+ReLU layers)."""
    M, Kin = patches.shape
    Hid = w1.shape[1]
    C = w2.shape[1]
    Mp = pl.cdiv(M, tm) * tm
    p = jnp.pad(patches.astype(jnp.bfloat16), ((0, Mp - M), (0, 0)))
    out = pl.pallas_call(
        _backbone_kernel,
        grid=(Mp // tm,),
        in_specs=[
            pl.BlockSpec((tm, Kin), lambda i: (i, 0)),
            pl.BlockSpec((Kin, Hid), lambda i: (0, 0)),
            pl.BlockSpec((Hid, C), lambda i: (0, 0)),
        ],
        out_specs=pl.BlockSpec((tm, C), lambda i: (i, 0)),
        out_shape=jax.ShapeDtypeStruct((Mp, C), jnp.float32),
        compiler_params=pltpu.CompilerParams(
            dimension_semantics=("parallel",),
            vmem_limit_bytes=_VMEM_LIMIT),
    )(p, w1.astype(jnp.bfloat16), w2.astype(jnp.bfloat16))
    return out[:M]


# ----------------------------------------------------------------------------
# Kernel 2: fused GCN head.
#   forward_sam + gcn.fc + cosine corr + gcnn(corr1/corr2) + gcnn2(corr)
#   + all BatchNorm1d/LeakyReLU + classifier, whole batch in one invocation
#   (BatchNorm needs cross-batch statistics anyway).
# ----------------------------------------------------------------------------
def _head_kernel(x_ref, fcw_ref, fcb_ref, gfw_ref, gfb_ref,
                 g1w_ref, g1b_ref, g2w_ref, g2b_ref, a1_ref, a2_ref,
                 out1_ref, out2_ref, corr_ref):
    B, P, C = x_ref.shape            # (batch, 49, 2048)
    K = fcw_ref.shape[0]             # 14 classes / graph nodes
    Fg = gfw_ref.shape[1]            # 2048 (gcn.fc out)
    F1 = g1w_ref.shape[1]            # 1024 (gcnn out)
    F2 = g2w_ref.shape[1]            # 2048 (gcnn2 out)

    x = x_ref[...]                                                     # [B,P,C]

    # ---------------- forward_sam -------------------------------------------
    gap = jnp.mean(x, axis=1)                                          # [B,C]
    fcw_b = jnp.broadcast_to(fcw_ref[...][None], (B, K, C))            # [B,K,C]
    cam = jnp.einsum('bkc,bpc->bkp', fcw_b, x,
                     preferred_element_type=jnp.float32)               # [B,K,P]
    # fc(gap) == mean_p(cam) exactly (linear map commutes with the mean)
    logits = jnp.mean(cam, axis=2) + fcb_ref[...]                      # [B,K]
    out1_ref[...] = jax.nn.sigmoid(logits)
    v = _leaky(cam)                                                    # [B,K,P]

    # ---------------- gcn.fc + cosine-similarity correlation ----------------
    gfw_b = jnp.broadcast_to(gfw_ref[...][None], (B, P, Fg))
    h = _leaky(jnp.einsum('bkp,bpf->bkf', v, gfw_b,
                          preferred_element_type=jnp.float32)
               + gfb_ref[...][None])                                   # [B,K,Fg]
    dot_hh = jnp.einsum('bnf,bmf->bnm', h, h,
                        preferred_element_type=jnp.float32)            # [B,K,K]
    sq = h * h
    nrm_r = jnp.sqrt(jnp.sum(sq, axis=-1, keepdims=True))              # [B,K,1]
    nrm_c = jnp.sqrt(jnp.sum(sq, axis=-1))[:, None, :]                 # [B,1,K]
    # torch.cosine_similarity clamps the *product* of the norms with eps
    corr = jnp.abs(dot_hh) / jnp.maximum(nrm_r * nrm_c, COS_EPS)
    eye = (lax.broadcasted_iota(jnp.int32, (K, K), 0)
           == lax.broadcasted_iota(jnp.int32, (K, K), 1))
    corr = jnp.where(eye[None], jnp.float32(1.0), corr)                # diag == 1
    corr_ref[...] = corr

    # ---------------- BatchNorm1d(K) (training stats) + LeakyReLU -----------
    def _bn_leaky(t):
        m = jnp.mean(jnp.mean(t, axis=2, keepdims=True), axis=0, keepdims=True)
        d = t - m
        var = jnp.mean(jnp.mean(d * d, axis=2, keepdims=True), axis=0,
                       keepdims=True)
        return _leaky(d * lax.rsqrt(var + BN_EPS))

    # ---------------- DenseGCNConv #1 (shared corr1 / corr2 adjacency) ------
    g1w_b = jnp.broadcast_to(g1w_ref[...][None], (B, P, F1))
    xw = jnp.einsum('bkp,bpf->bkf', v, g1w_b,
                    preferred_element_type=jnp.float32)                # reused

    def _gcn_shared(a_ref):
        a = jnp.where(eye, jnp.float32(1.0), a_ref[...])               # add loop
        deg = jnp.sum(a, axis=-1, keepdims=True)                        # [K,1]
        dis = lax.rsqrt(jnp.maximum(deg, 1.0))                          # clamp(1)^-.5
        a_b = jnp.broadcast_to(a[None], (B, K, K))
        # D^-1/2 A D^-1/2 (X W) == dis * (A @ (dis * XW))
        pre = dis[None] * jnp.einsum('bnm,bmf->bnf', a_b, dis[None] * xw,
                                     preferred_element_type=jnp.float32)
        return _bn_leaky(pre + g1b_ref[...][None])

    out_c1 = _gcn_shared(a1_ref)          # "out"  = relu(norm (gcnn(v, corr1)))
    out_c2 = _gcn_shared(a2_ref)          # "out3" = relu(norm3(gcnn(v, corr2)))

    # ---------------- DenseGCNConv #2 (per-sample corr adjacency) -----------
    g2w_b = jnp.broadcast_to(g2w_ref[...][None], (B, F1, F2))          # bf16
    deg_c = jnp.sum(corr, axis=-1, keepdims=True)                       # diag already 1
    dis_c = lax.rsqrt(jnp.maximum(deg_c, 1.0))

    def _gcn_corr(node_feat):
        ow = jnp.einsum('bkf,bfg->bkg', node_feat.astype(jnp.bfloat16), g2w_b,
                        preferred_element_type=jnp.float32)            # [B,K,F2]
        pre = dis_c * jnp.einsum('bnm,bmf->bnf', corr, dis_c * ow,
                                 preferred_element_type=jnp.float32)
        return _bn_leaky(pre + g2b_ref[...][None])

    z = _gcn_corr(out_c1) + _gcn_corr(out_c2)                           # [B,K,F2]

    # ---------------- classifier (gap(x) . z, z_norm BN, sigmoid) -----------
    raw = jnp.sum(gap[:, None, :] * z, axis=-1)                         # [B,K]
    m = jnp.mean(raw, axis=0, keepdims=True)
    d = raw - m
    var = jnp.mean(d * d, axis=0, keepdims=True)
    out2_ref[...] = jax.nn.sigmoid(d * lax.rsqrt(var + BN_EPS))


def gcn_head(x_feat, params):
    B, P, C = x_feat.shape
    K = NUM_CLASSES
    out1, out2, corr = pl.pallas_call(
        _head_kernel,
        out_shape=[
            jax.ShapeDtypeStruct((B, K), jnp.float32),
            jax.ShapeDtypeStruct((B, K), jnp.float32),
            jax.ShapeDtypeStruct((B, K, K), jnp.float32),
        ],
        compiler_params=pltpu.CompilerParams(vmem_limit_bytes=_VMEM_LIMIT),
    )(x_feat,
      params["fc_w"], params["fc_b"],
      params["gcn_fc_w_t"], params["gcn_fc_b"],
      params["gcnn_w"], params["gcnn_b"],
      params["gcnn2_w"].astype(jnp.bfloat16), params["gcnn2_b"],
      params["corr1"], params["corr2"])
    return out1, out2, corr


# ----------------------------------------------------------------------------
# Full MyGCN forward.
# ----------------------------------------------------------------------------
def my_gcn_forward(x_img, params):
    B, Cin, H, W = x_img.shape
    ph, pw = H // 4, W // 4
    P = ph * pw

    # --- backbone stand-in (features1 / features2), glue reshapes are XLA ----
    patches = x_img.reshape(B, Cin, ph, 4, pw, 4)
    patches = patches.transpose(0, 2, 4, 1, 3, 5).reshape(B * P, Cin * 16)
    feat_flat = backbone_features(patches, params["backbone_w1"],
                                  params["backbone_w2"])               # [B*P, 2048]
    C = feat_flat.shape[-1]
    x_feat = feat_flat.reshape(B, P, C)                                 # [B, HW, C]
    x_feat_nchw = feat_flat.reshape(B, ph, pw, C).transpose(0, 3, 1, 2)  # [B,C,H,W]

    # --- fused GCN head (forward_sam + forward_dgcn + classifier) -----------
    out1, out2, corr = gcn_head(x_feat, params)
    return out1, out2, corr, x_feat_nchw


# ----------------------------------------------------------------------------
# Deterministic parameter init (shapes dictated by the module __init__).
# ----------------------------------------------------------------------------
def init_params(key):
    ks = jax.random.split(key, 9)
    feat_c = 2048
    p = {}
    # backbone stand-in
    p["backbone_w1"] = jax.random.normal(ks[0], (48, 512), jnp.float32) * (2.0 / 48) ** 0.5
    p["backbone_w2"] = jax.random.normal(ks[1], (512, feat_c), jnp.float32) * (2.0 / 512) ** 0.5
    # model.fc : Linear(2048, 14)  (PyTorch layout [out, in])
    p["fc_w"] = jax.random.normal(ks[2], (NUM_CLASSES, feat_c), jnp.float32) * (1.0 / feat_c) ** 0.5
    p["fc_b"] = jax.random.normal(ks[3], (1, NUM_CLASSES), jnp.float32) * 0.01
    # gcn.fc : Linear(49, 2048)  (stored transposed [in, out])
    p["gcn_fc_w_t"] = jax.random.normal(ks[4], (49, 2048), jnp.float32) * (1.0 / 49) ** 0.5
    p["gcn_fc_b"] = jax.random.normal(ks[5], (1, 2048), jnp.float32) * 0.01
    # gcn.gcnn : DenseGCNConv(49, 1024), bias init 0
    p["gcnn_w"] = jax.random.normal(ks[6], (49, 1024), jnp.float32) * (2.0 / (49 + 1024)) ** 0.5
    p["gcnn_b"] = jnp.zeros((1, 1024), jnp.float32)
    # gcn.gcnn2 : DenseGCNConv(1024, 2048), bias init 0
    p["gcnn2_w"] = jax.random.normal(ks[7], (1024, 2048), jnp.float32) * (2.0 / (1024 + 2048)) ** 0.5
    p["gcnn2_b"] = jnp.zeros((1, 2048), jnp.float32)
    # TODO(synk): corr1/corr2 come from a pickled co-occurrence adjacency
    # (gen_A0 + second_order); synthesized here as deterministic symmetric
    # non-negative matrices with zero diagonal.
    a = jax.random.uniform(ks[8], (NUM_CLASSES, NUM_CLASSES), jnp.float32)
    a = 0.5 * (a + a.T)
    eye = jnp.eye(NUM_CLASSES, dtype=jnp.float32)
    a = a * (1.0 - eye)
    p["corr1"] = a
    p["corr2"] = jnp.clip(a @ a, 0.0, 1.0) * (1.0 - eye)
    return p


if __name__ == "__main__":
    key = jax.random.PRNGKey(0)
    pkey, xkey = jax.random.split(key)
    params = init_params(pkey)
    # small input: batch=2, 3-channel 28x28 image -> 7x7 feature map (49 = gcn in_features)
    x_img = jax.random.normal(xkey, (2, 3, 28, 28), jnp.float32)

    out1, out2, corr, feats = my_gcn_forward(x_img, params)
    jax.block_until_ready((out1, out2, corr, feats))

    assert out1.shape == (2, NUM_CLASSES)
    assert out2.shape == (2, NUM_CLASSES)
    assert corr.shape == (2, NUM_CLASSES, NUM_CLASSES)
    assert feats.shape == (2, 2048, 7, 7)
    assert bool(jnp.all(jnp.isfinite(out1))) and bool(jnp.all(jnp.isfinite(out2)))
    assert bool(jnp.all(jnp.isfinite(corr))) and bool(jnp.all(jnp.isfinite(feats)))
    print("KERNEL_OK")
</pallas_src>

<mosaic_0001>
module attributes {stable_mosaic.version = 11 : i64} {
  func.func @_backbone_kernel(%arg0: i32, %arg1: memref<256x48xbf16, #tpu.memory_space<vmem>>, %arg2: memref<48x512xbf16, #tpu.memory_space<vmem>>, %arg3: memref<512x2048xbf16, #tpu.memory_space<vmem>>, %arg4: memref<256x2048xf32, #tpu.memory_space<vmem>>) attributes {dimension_semantics = [#tpu.dimension_semantics<parallel>], iteration_bounds = array<i64: 1>, scalar_prefetch = 0 : i64, scratch_operands = 0 : i64, tpu.core_type = #tpu.core_type<tc>, window_params = [{transform_indices = @transform_0, window_bounds = array<i64: 256, 48>}, {pipeline_mode = #tpu.pipeline_mode<synchronous>, transform_indices = @transform_1, window_bounds = array<i64: 48, 512>}, {pipeline_mode = #tpu.pipeline_mode<synchronous>, transform_indices = @transform_2, window_bounds = array<i64: 512, 2048>}, {transform_indices = @transform_3, window_bounds = array<i64: 256, 2048>}]} {
    %c0 = arith.constant 0 : index
    %c0_0 = arith.constant 0 : index
    %0 = vector.load %arg1[%c0, %c0_0] : memref<256x48xbf16, #tpu.memory_space<vmem>>, vector<256x48xbf16>
    %c0_1 = arith.constant 0 : index
    %c0_2 = arith.constant 0 : index
    %1 = vector.load %arg2[%c0_1, %c0_2] : memref<48x512xbf16, #tpu.memory_space<vmem>>, vector<48x512xbf16>
    %cst = arith.constant dense<0.000000e+00> : vector<256x512xf32>
    %2 = tpu.matmul %0, %1, %cst {dimension_numbers = #tpu.dot_dimension_numbers<[1], [0], [0], [1], [0, 0, 1, 1], [], []>} : vector<256x48xbf16>, vector<48x512xbf16>, vector<256x512xf32> -> vector<256x512xf32>
    %cst_3 = arith.constant 0.000000e+00 : f32
    %3 = vector.broadcast %cst_3 : f32 to vector<256x512xf32>
    %4 = arith.maximumf %2, %3 : vector<256x512xf32>
    %5 = arith.truncf %4 : vector<256x512xf32> to vector<256x512xbf16>
    %c0_4 = arith.constant 0 : index
    %c0_5 = arith.constant 0 : index
    %6 = vector.load %arg3[%c0_4, %c0_5] : memref<512x2048xbf16, #tpu.memory_space<vmem>>, vector<512x2048xbf16>
    %cst_6 = arith.constant dense<0.000000e+00> : vector<256x2048xf32>
    %7 = tpu.matmul %5, %6, %cst_6 {dimension_numbers = #tpu.dot_dimension_numbers<[1], [0], [0], [1], [0, 0, 1, 1], [], []>} : vector<256x512xbf16>, vector<512x2048xbf16>, vector<256x2048xf32> -> vector<256x2048xf32>
    %cst_7 = arith.constant 0.000000e+00 : f32
    %8 = vector.broadcast %cst_7 : f32 to vector<256x2048xf32>
    %9 = arith.maximumf %7, %8 : vector<256x2048xf32>
    %c0_8 = arith.constant 0 : index
    %c0_9 = arith.constant 0 : index
    %10 = vector.load %arg4[%c0_8, %c0_9] : memref<256x2048xf32, #tpu.memory_space<vmem>>, vector<256x2048xf32>
    tpu.vector_store %arg4[%c0_8, %c0_9], %9 {strides = array<i32>} : memref<256x2048xf32, #tpu.memory_space<vmem>>, vector<256x2048xf32>,
    return
  }
  func.func @transform_0(%arg0: i32) -> (i32, i32) {
    %c0_i32 = arith.constant 0 : i32
    %c0_i32_0 = arith.constant 0 : i32
    return %arg0, %c0_i32 : i32, i32
  }
  func.func @transform_1(%arg0: i32) -> (i32, i32) {
    %c0_i32 = arith.constant 0 : i32
    %c0_i32_0 = arith.constant 0 : i32
    %c0_i32_1 = arith.constant 0 : i32
    return %c0_i32, %c0_i32_0 : i32, i32
  }
  func.func @transform_2(%arg0: i32) -> (i32, i32) {
    %c0_i32 = arith.constant 0 : i32
    %c0_i32_0 = arith.constant 0 : i32
    %c0_i32_1 = arith.constant 0 : i32
    return %c0_i32, %c0_i32_0 : i32, i32
  }
  func.func @transform_3(%arg0: i32) -> (i32, i32) {
    %c0_i32 = arith.constant 0 : i32
    %c0_i32_0 = arith.constant 0 : i32
    return %arg0, %c0_i32 : i32, i32
  }
}

</mosaic_0001>

<llo_original>
// kernel: tpu_custom_call.1
$region0: #{tpu_custom_call.1}
  #allocation0 [shape = 'u32[]', space=smem, size = 0x4, offset = 0x4, fixed_abs, tag = 'smem constant byte address 0x4 - core index']
  #allocation1 [shape = 'u32[144,128]{1,0:T(1,128)}', space=vmem, size = 0x12000, scoped, tag = 'internal scratch']
  %s0 = inlined_call_operand.vmem [shape: bf16[256,48], index: 0, kind: input, shape index: {}]
  %s1 = inlined_call_operand.hbm [shape: bf16[48,512], index: 1, kind: input, shape index: {}]
  %s2 = inlined_call_operand.hbm [shape: bf16[512,2048], index: 2, kind: input, shape index: {}]
  %s3 = inlined_call_operand.hbm [shape: f32[256,2048], index: 3, kind: output, shape index: {}]
  %s4 = sld [smem:[#allocation0]]
  $region30: #{tpu_custom_call.1} parent=0
    _
  %s6 = ssub.s32 1, %s4
  %s7 = scalar_select 0, %s6, %s4
  $region1: #{tpu_custom_call.1} parent=0
    #allocation2 [shape = 'u8[49152]{0}', space=vmem, size = 0xc000, scoped, tag = 'input window, operand 1, single buffered']
    #allocation3 [shape = 's32[1]{0}', space=sflag, size = 0x4, scoped, tag = 'scoped memory for tpu_custom_call.1']
    #allocation4 [shape = 's32[1]{0}', space=sflag, size = 0x4, scoped, tag = 'scoped memory for tpu_custom_call.1']
    #allocation5 [shape = 'u8[2097152]{0}', space=vmem, size = 0x200000, scoped, tag = 'input window, operand 2, single buffered']
    #allocation6 [shape = 's32[1]{0}', space=sflag, size = 0x4, scoped, tag = 'scoped memory for tpu_custom_call.1']
    #allocation7 [shape = 'u8[2097152]{0}', space=vmem, size = 0x200000, scoped, tag = 'output window, operand 0, single buffered']
    %8 = vsyncpa [#allocation3], 0
    %9 = vsyncpa [#allocation6], 0
    %10 = vsyncpa [#allocation4], 0
    // Predicated region
    $region2: #{tpu_custom_call.1} parent=1 // pred_check
      _
    $region3: #{tpu_custom_call.1} parent=1 // pred_check_branch
      %12 = sbr.rel (0) target = $region5
    $region4: #{tpu_custom_call.1} parent=1 // pred_region
      _
    $region5: #{tpu_custom_call.1} parent=1 // pred_fallthru
      _
    // Predicated region
    $region6: #{tpu_custom_call.1} parent=1 // pred_check
      _
    $region7: #{tpu_custom_call.1} parent=1 // pred_check_branch
      %14 = sbr.rel (0) target = $region9
    $region8: #{tpu_custom_call.1} parent=1 // pred_region
      %s16 = ssub.s32 1536, 1536
      %17 = vsyncadd [#allocation3], %s16
      %s18 = sshll.u32 [#allocation2], 4
      %s19 = int_to_ptr.vmem [resolvable:$true] %s18
      %24 = dma.hbm_to_vmem [thread:$0]  %s1, 1536, %s19, [#allocation3], 256, 256, 16
    $region9: #{tpu_custom_call.1} parent=1 // pred_fallthru
      _
    // Predicated region
    $region10: #{tpu_custom_call.1} parent=1 // pred_check
      _
    $region11: #{tpu_custom_call.1} parent=1 // pred_check_branch
      %26 = sbr.rel (0) target = $region13
    $region12: #{tpu_custom_call.1} parent=1 // pred_region
      %s28 = ssub.s32 65536, 65536
      %29 = vsyncadd [#allocation6], %s28
      %s30 = sshll.u32 [#allocation5], 4
      %s31 = int_to_ptr.vmem [resolvable:$true] %s30
      %36 = dma.hbm_to_vmem [thread:$0]  %s2, 65536, %s31, [#allocation6], 1024, 1024, 64
    $region13: #{tpu_custom_call.1} parent=1 // pred_fallthru
      _
    // Predicated region
    $region14: #{tpu_custom_call.1} parent=1 // pred_check
      _
    $region15: #{tpu_custom_call.1} parent=1 // pred_check_branch
      %38 = sbr.rel (0) target = $region17
    $region16: #{tpu_custom_call.1} parent=1 // pred_region
      %39 = dma.done [#allocation3], 1536
    $region17: #{tpu_custom_call.1} parent=1 // pred_fallthru
      _
    // Predicated region
    $region18: #{tpu_custom_call.1} parent=1 // pred_check
      _
    $region19: #{tpu_custom_call.1} parent=1 // pred_check_branch
      %41 = sbr.rel (0) target = $region21
    $region20: #{tpu_custom_call.1} parent=1 // pred_region
      %42 = dma.done [#allocation6], 65536
    $region21: #{tpu_custom_call.1} parent=1 // pred_fallthru
      _
    %v44 = vld [vmem:[%s0] sm:$0xf]
    %v45 = vld [vmem:[%s0 + $0x4] sm:$0xf]
    %v46 = vld [vmem:[%s0 + $0x8] sm:$0xf]
    %v47 = vld [vmem:[%s0 + $0xc] sm:$0xf]
    %v48 = vld [vmem:[%s0 + $0x10] sm:$0xf]
    %v49 = vld [vmem:[%s0 + $0x14] sm:$0xf]
    %v50 = vld [vmem:[%s0 + $0x18] sm:$0xf]
    %v51 = vld [vmem:[%s0 + $0x1c] sm:$0xf]
    %v52 = vld [vmem:[%s0 + $0x20] sm:$0xf]
    %v53 = vld [vmem:[%s0 + $0x24] sm:$0xf]
    %v54 = vld [vmem:[%s0 + $0x28] sm:$0xf]
    %v55 = vld [vmem:[%s0 + $0x2c] sm:$0xf]
    %v56 = vld [vmem:[%s0 + $0x30] sm:$0xf]
    %v57 = vld [vmem:[%s0 + $0x34] sm:$0xf]
    %v58 = vld [vmem:[%s0 + $0x38] sm:$0xf]
    %v59 = vld [vmem:[%s0 + $0x3c] sm:$0xf]
    %v60 = vld [vmem:[%s0 + $0x40] sm:$0xf]
    %v61 = vld [vmem:[%s0 + $0x44] sm:$0xf]
    %v62 = vld [vmem:[%s0 + $0x48] sm:$0xf]
    %v63 = vld [vmem:[%s0 + $0x4c] sm:$0xf]
    %v64 = vld [vmem:[%s0 + $0x50] sm:$0xf]
    %v65 = vld [vmem:[%s0 + $0x54] sm:$0xf]
    %v66 = vld [vmem:[%s0 + $0x58] sm:$0xf]
    %v67 = vld [vmem:[%s0 + $0x5c] sm:$0xf]
    %v68 = vld [vmem:[%s0 + $0x60] sm:$0xf]
    %v69 = vld [vmem:[%s0 + $0x64] sm:$0xf]
    %v70 = vld [vmem:[%s0 + $0x68] sm:$0xf]
    %v71 = vld [vmem:[%s0 + $0x6c] sm:$0xf]
    %v72 = vld [vmem:[%s0 + $0x70] sm:$0xf]
    %v73 = vld [vmem:[%s0 + $0x74] sm:$0xf]
    %v74 = vld [vmem:[%s0 + $0x78] sm:$0xf]
    %v75 = vld [vmem:[%s0 + $0x7c] sm:$0xf]
    %v76 = vld [vmem:[#allocation2] sm:$0xff]
    %v77 = vld [vmem:[#allocation2 + $0x8] sm:$0xff]
    %v78 = vld [vmem:[#allocation2 + $0x10] sm:$0xff]
    %v79 = vld [vmem:[#allocation2 + $0x18] sm:$0xff]
    %v80 = vld [vmem:[#allocation2 + $0x20] sm:$0xff]
    %v81 = vld [vmem:[#allocation2 + $0x28] sm:$0xff]
    %v82 = vld [vmem:[#allocation2 + $0x30] sm:$0xff]
    %v83 = vld [vmem:[#allocation2 + $0x38] sm:$0xff]
    %v84 = vld [vmem:[#allocation2 + $0x40] sm:$0xff]
    %v85 = vld [vmem:[#allocation2 + $0x48] sm:$0xff]
    %v86 = vld [vmem:[#allocation2 + $0x50] sm:$0xff]
    %v87 = vld [vmem:[#allocation2 + $0x58] sm:$0xff]
    %v120 = vunpack.c.l.b16 %v44
    %v121 = vunpack.c.l.b16 %v45
    %v122 = vunpack.c.l.b16 %v46
    %v123 = vunpack.c.l.b16 %v47
    %v124 = vunpack.c.l.b16 %v48
    %v125 = vunpack.c.l.b16 %v49
    %v126 = vunpack.c.l.b16 %v50
    %v127 = vunpack.c.l.b16 %v51
    %v128 = vunpack.c.l.b16 %v52
    %v129 = vunpack.c.l.b16 %v53
    %v130 = vunpack.c.l.b16 %v54
    %v131 = vunpack.c.l.b16 %v55
    %v132 = vunpack.c.l.b16 %v56
    %v133 = vunpack.c.l.b16 %v57
    %v134 = vunpack.c.l.b16 %v58
    %v135 = vunpack.c.l.b16 %v59
    %v136 = vunpack.c.l.b16 %v60
    %v137 = vunpack.c.l.b16 %v61
    %v138 = vunpack.c.l.b16 %v62
    %v139 = vunpack.c.l.b16 %v63
    %v140 = vunpack.c.l.b16 %v64
    %v141 = vunpack.c.l.b16 %v65
    %v142 = vunpack.c.l.b16 %v66
    %v143 = vunpack.c.l.b16 %v67
    %v144 = vunpack.c.l.b16 %v68
    %v145 = vunpack.c.l.b16 %v69
    %v146 = vunpack.c.l.b16 %v70
    %v147 = vunpack.c.l.b16 %v71
    %v148 = vunpack.c.l.b16 %v72
    %v149 = vunpack.c.l.b16 %v73
    %v150 = vunpack.c.l.b16 %v74
    %v151 = vunpack.c.l.b16 %v75
    %v152 = vpack.c.b16 %v121, %v120
    %v153 = vpack.c.b16 %v123, %v122
    %v154 = vpack.c.b16 %v125, %v124
    %v155 = vpack.c.b16 %v127, %v126
    %v156 = vpack.c.b16 %v129, %v128
    %v157 = vpack.c.b16 %v131, %v130
    %v158 = vpack.c.b16 %v133, %v132
    %v159 = vpack.c.b16 %v135, %v134
    %v160 = vpack.c.b16 %v137, %v136
    %v161 = vpack.c.b16 %v139, %v138
    %v162 = vpack.c.b16 %v141, %v140
    %v163 = vpack.c.b16 %v143, %v142
    %v164 = vpack.c.b16 %v145, %v144
    %v165 = vpack.c.b16 %v147, %v146
    %v166 = vpack.c.b16 %v149, %v148
    %v167 = vpack.c.b16 %v151, %v150
    %v180 = vunpack.c.l.b16 %v76
    %v181 = vunpack.c.h.b16 %v76
    %v182 = vunpack.c.l.b16 %v77
    %v183 = vunpack.c.h.b16 %v77
    %v184 = vunpack.c.l.b16 %v78
    %v185 = vunpack.c.h.b16 %v78
    %v186 = vunpack.c.l.b16 %v79
    %v187 = vunpack.c.h.b16 %v79
    %v188 = vunpack.c.l.b16 %v80
    %v189 = vunpack.c.h.b16 %v80
    %v190 = vunpack.c.l.b16 %v81
    %v191 = vunpack.c.h.b16 %v81
    %v192 = vunpack.c.l.b16 %v82
    %v193 = vunpack.c.h.b16 %v82
    %v194 = vunpack.c.l.b16 %v83
    %v195 = vunpack.c.h.b16 %v83
    %v196 = vunpack.c.l.b16 %v84
    %v197 = vunpack.c.h.b16 %v84
    %v198 = vunpack.c.l.b16 %v85
    %v199 = vunpack.c.h.b16 %v85
    %v200 = vunpack.c.l.b16 %v86
    %v201 = vunpack.c.h.b16 %v86
    %v202 = vunpack.c.l.b16 %v87
    %v203 = vunpack.c.h.b16 %v87
    %v204 = vpack.c.b16 %v184, %v180
    %v205 = vpack.c.b16 %v185, %v181
    %v206 = vpack.c.b16 %v186, %v182
    %v207 = vpack.c.b16 %v187, %v183
    %v208 = vpack.c.b16 %v192, %v188
    %v209 = vpack.c.b16 %v193, %v189
    %v210 = vpack.c.b16 %v194, %v190
    %v211 = vpack.c.b16 %v195, %v191
    %v212 = vpack.c.b16 %v200, %v196
    %v213 = vpack.c.b16 %v201, %v197
    %v214 = vpack.c.b16 %v202, %v198
    %v215 = vpack.c.b16 %v203, %v199
    %vm228 = vcmask 392192
    %v230 = vsel %vm228, %v152, 0
    %v233 = vsel %vm228, %v153, 0
    %v236 = vsel %vm228, %v154, 0
    %v239 = vsel %vm228, %v155, 0
    %v242 = vsel %vm228, %v156, 0
    %v245 = vsel %vm228, %v157, 0
    %v248 = vsel %vm228, %v158, 0
    %v251 = vsel %vm228, %v159, 0
    %v254 = vsel %vm228, %v160, 0
    %v257 = vsel %vm228, %v161, 0
    %v260 = vsel %vm228, %v162, 0
    %v263 = vsel %vm228, %v163, 0
    %v266 = vsel %vm228, %v164, 0
    %v269 = vsel %vm228, %v165, 0
    %v272 = vsel %vm228, %v166, 0
    %v275 = vsel %vm228, %v167, 0
    %277 = vmatprep.subr.bf16.mxu0 %v205
    %278 = vmatpush1.bf16.msra.mxu0 %v204
    %279 = vmatprep.subr.bf16.mxu0 %v209
    %280 = vmatpush1.bf16.msra.mxu0 %v208
    %281 = vmatprep.subr.bf16.mxu0 %v213
    %282 = vmatpush1.bf16.msra.mxu0 %v212
    %283 = vmatprep.subr.bf16.mxu0 0
    %284 = vmatpush1.bf16.msra.mxu0 0
    %285 = vmatprep.subr.bf16.mxu0 0
    %286 = vmatpush1.bf16.msra.mxu0 0
    %287 = vmatprep.subr.bf16.mxu0 0
    %288 = vmatpush1.bf16.msra.mxu0 0
    %289 = vmatprep.subr.bf16.mxu0 0
    %290 = vmatpush1.bf16.msra.mxu0 0
    %291 = vmatprep.subr.bf16.mxu0 0
    %292 = vmatpush1.bf16.msra.mxu0 0
    %293 = vmatprep.subr.bf16.mxu0 0
    %294 = vmatpush1.bf16.msra.mxu0 0
    %295 = vmatprep.subr.bf16.mxu0 0
    %296 = vmatpush1.bf16.msra.mxu0 0
    %297 = vmatprep.subr.bf16.mxu0 0
    %298 = vmatpush1.bf16.msra.mxu0 0
    %299 = vmatprep.subr.bf16.mxu0 0
    %300 = vmatpush1.bf16.msra.mxu0 0
    %301 = vmatprep.subr.bf16.mxu0 0
    %302 = vmatpush1.bf16.msra.mxu0 0
    %303 = vmatprep.subr.bf16.mxu0 0
    %304 = vmatpush1.bf16.msra.mxu0 0
    %305 = vmatprep.subr.bf16.mxu0 0
    %306 = vmatpush1.bf16.msra.mxu0 0
    %307 = vmatprep.subr.bf16.mxu0 0
    %308 = vmatpush1.bf16.msra.mxu0 0
    %309 = vmatprep.mubr.bf16.mxu0 0
    %310 = vmatmul.mubr.bf16.gmra.mrb[0].mxu0 %v230
    %v311 = vpop.f32.mrb[0].mxu0
    %v312 = vadd.f32 0.0, %v311
    %v313 = vpop.f32.mrb[0].mxu0
    %v314 = vadd.f32 0.0, %v313
    %v315 = vpop.f32.mrb[0].mxu0
    %v316 = vadd.f32 0.0, %v315
    %v317 = vpop.f32.mrb[0].mxu0
    %v318 = vadd.f32 0.0, %v317
    %319 = vmatprep.mubr.bf16.mxu0 0
    %320 = vmatmul.mubr.bf16.gmra.mrb[0].mxu0 %v233
    %v321 = vpop.f32.mrb[0].mxu0
    %v322 = vadd.f32 0.0, %v321
    %v323 = vpop.f32.mrb[0].mxu0
    %v324 = vadd.f32 0.0, %v323
    %v325 = vpop.f32.mrb[0].mxu0
    %v326 = vadd.f32 0.0, %v325
    %v327 = vpop.f32.mrb[0].mxu0
    %v328 = vadd.f32 0.0, %v327
    %329 = vmatprep.mubr.bf16.mxu0 0
    %330 = vmatmul.mubr.bf16.gmra.mrb[0].mxu0 %v236
    %v331 = vpop.f32.mrb[0].mxu0
    %v332 = vadd.f32 0.0, %v331
    %v333 = vpop.f32.mrb[0].mxu0
    %v334 = vadd.f32 0.0, %v333
    %v335 = vpop.f32.mrb[0].mxu0
    %v336 = vadd.f32 0.0, %v335
    %v337 = vpop.f32.mrb[0].mxu0
    %v338 = vadd.f32 0.0, %v337
    %339 = vmatprep.mubr.bf16.mxu0 0
    %340 = vmatmul.mubr.bf16.gmra.mrb[0].mxu0 %v239
    %v341 = vpop.f32.mrb[0].mxu0
    %v342 = vadd.f32 0.0, %v341
    %v343 = vpop.f32.mrb[0].mxu0
    %v344 = vadd.f32 0.0, %v343
    %v345 = vpop.f32.mrb[0].mxu0
    %v346 = vadd.f32 0.0, %v345
    %v347 = vpop.f32.mrb[0].mxu0
    %v348 = vadd.f32 0.0, %v347
    %349 = vmatprep.mubr.bf16.mxu0 0
    %350 = vmatmul.mubr.bf16.gmra.mrb[0].mxu0 %v242
    %v351 = vpop.f32.mrb[0].mxu0
    %v352 = vadd.f32 0.0, %v351
    %v353 = vpop.f32.mrb[0].mxu0
    %v354 = vadd.f32 0.0, %v353
    %v355 = vpop.f32.mrb[0].mxu0
    %v356 = vadd.f32 0.0, %v355
    %v357 = vpop.f32.mrb[0].mxu0
    %v358 = vadd.f32 0.0, %v357
    %359 = vmatprep.mubr.bf16.mxu0 0
    %360 = vmatmul.mubr.bf16.gmra.mrb[0].mxu0 %v245
    %v361 = vpop.f32.mrb[0].mxu0
    %v362 = vadd.f32 0.0, %v361
    %v363 = vpop.f32.mrb[0].mxu0
    %v364 = vadd.f32 0.0, %v363
    %v365 = vpop.f32.mrb[0].mxu0
    %v366 = vadd.f32 0.0, %v365
    %v367 = vpop.f32.mrb[0].mxu0
    %v368 = vadd.f32 0.0, %v367
    %369 = vmatprep.mubr.bf16.mxu0 0
    %370 = vmatmul.mubr.bf16.gmra.mrb[0].mxu0 %v248
    %v371 = vpop.f32.mrb[0].mxu0
    %v372 = vadd.f32 0.0, %v371
    %v373 = vpop.f32.mrb[0].mxu0
    %v374 = vadd.f32 0.0, %v373
    %v375 = vpop.f32.mrb[0].mxu0
    %v376 = vadd.f32 0.0, %v375
    %v377 = vpop.f32.mrb[0].mxu0
    %v378 = vadd.f32 0.0, %v377
    %379 = vmatprep.mubr.bf16.mxu0 0
    %380 = vmatmul.mubr.bf16.gmra.mrb[0].mxu0 %v251
    %v381 = vpop.f32.mrb[0].mxu0
    %v382 = vadd.f32 0.0, %v381
    %v383 = vpop.f32.mrb[0].mxu0
    %v384 = vadd.f32 0.0, %v383
    %v385 = vpop.f32.mrb[0].mxu0
    %v386 = vadd.f32 0.0, %v385
    %v387 = vpop.f32.mrb[0].mxu0
    %v388 = vadd.f32 0.0, %v387
    %389 = vmatprep.mubr.bf16.mxu0 0
    %390 = vmatmul.mubr.bf16.gmra.mrb[0].mxu0 %v254
    %v391 = vpop.f32.mrb[0].mxu0
    %v392 = vadd.f32 0.0, %v391
    %v393 = vpop.f32.mrb[0].mxu0
    %v394 = vadd.f32 0.0, %v393
    %v395 = vpop.f32.mrb[0].mxu0
    %v396 = vadd.f32 0.0, %v395
    %v397 = vpop.f32.mrb[0].mxu0
    %v398 = vadd.f32 0.0, %v397
    %399 = vmatprep.mubr.bf16.mxu0 0
    %400 = vmatmul.mubr.bf16.gmra.mrb[0].mxu0 %v257
    %v401 = vpop.f32.mrb[0].mxu0
    %v402 = vadd.f32 0.0, %v401
    %v403 = vpop.f32.mrb[0].mxu0
    %v404 = vadd.f32 0.0, %v403
    %v405 = vpop.f32.mrb[0].mxu0
    %v406 = vadd.f32 0.0, %v405
    %v407 = vpop.f32.mrb[0].mxu0
    %v408 = vadd.f32 0.0, %v407
    %409 = vmatprep.mubr.bf16.mxu0 0
    %410 = vmatmul.mubr.bf16.gmra.mrb[0].mxu0 %v260
    %v411 = vpop.f32.mrb[0].mxu0
    %v412 = vadd.f32 0.0, %v411
    %v413 = vpop.f32.mrb[0].mxu0
    %v414 = vadd.f32 0.0, %v413
    %v415 = vpop.f32.mrb[0].mxu0
    %v416 = vadd.f32 0.0, %v415
    %v417 = vpop.f32.mrb[0].mxu0
    %v418 = vadd.f32 0.0, %v417
    %419 = vmatprep.mubr.bf16.mxu0 0
    %420 = vmatmul.mubr.bf16.gmra.mrb[0].mxu0 %v263
    %v421 = vpop.f32.mrb[0].mxu0
    %v422 = vadd.f32 0.0, %v421
    %v423 = vpop.f32.mrb[0].mxu0
    %v424 = vadd.f32 0.0, %v423
    %v425 = vpop.f32.mrb[0].mxu0
    %v426 = vadd.f32 0.0, %v425
    %v427 = vpop.f32.mrb[0].mxu0
    %v428 = vadd.f32 0.0, %v427
    %429 = vmatprep.mubr.bf16.mxu0 0
    %430 = vmatmul.mubr.bf16.gmra.mrb[0].mxu0 %v266
    %v431 = vpop.f32.mrb[0].mxu0
    %v432 = vadd.f32 0.0, %v431
    %v433 = vpop.f32.mrb[0].mxu0
    %v434 = vadd.f32 0.0, %v433
    %v435 = vpop.f32.mrb[0].mxu0
    %v436 = vadd.f32 0.0, %v435
    %v437 = vpop.f32.mrb[0].mxu0
    %v438 = vadd.f32 0.0, %v437
    %439 = vmatprep.mubr.bf16.mxu0 0
    %440 = vmatmul.mubr.bf16.gmra.mrb[0].mxu0 %v269
    %v441 = vpop.f32.mrb[0].mxu0
    %v442 = vadd.f32 0.0, %v441
    %v443 = vpop.f32.mrb[0].mxu0
    %v444 = vadd.f32 0.0, %v443
    %v445 = vpop.f32.mrb[0].mxu0
    %v446 = vadd.f32 0.0, %v445
    %v447 = vpop.f32.mrb[0].mxu0
    %v448 = vadd.f32 0.0, %v447
    %449 = vmatprep.mubr.bf16.mxu0 0
    %450 = vmatmul.mubr.bf16.gmra.mrb[0].mxu0 %v272
    %v451 = vpop.f32.mrb[0].mxu0
    %v452 = vadd.f32 0.0, %v451
    %v453 = vpop.f32.mrb[0].mxu0
    %v454 = vadd.f32 0.0, %v453
    %v455 = vpop.f32.mrb[0].mxu0
    %v456 = vadd.f32 0.0, %v455
    %v457 = vpop.f32.mrb[0].mxu0
    %v458 = vadd.f32 0.0, %v457
    %459 = vmatprep.mubr.bf16.mxu0 0
    %460 = vmatmul.mubr.bf16.gmra.mrb[0].mxu0 %v275
    %v461 = vpop.f32.mrb[0].mxu0
    %v462 = vadd.f32 0.0, %v461
    %v463 = vpop.f32.mrb[0].mxu0
    %v464 = vadd.f32 0.0, %v463
    %v465 = vpop.f32.mrb[0].mxu0
    %v466 = vadd.f32 0.0, %v465
    %v467 = vpop.f32.mrb[0].mxu0
    %v468 = vadd.f32 0.0, %v467
    %469 = vdwg.mxu0
    %470 = vmatprep.subr.bf16.mxu0 %v207
    %471 = vmatpush1.bf16.msra.mxu0 %v206
    %472 = vmatprep.subr.bf16.mxu0 %v211
    %473 = vmatpush1.bf16.msra.mxu0 %v210
    %474 = vmatprep.subr.bf16.mxu0 %v215
    %475 = vmatpush1.bf16.msra.mxu0 %v214
    %476 = vmatprep.subr.bf16.mxu0 0
    %477 = vmatpush1.bf16.msra.mxu0 0
    %478 = vmatprep.subr.bf16.mxu0 0
    %479 = vmatpush1.bf16.msra.mxu0 0
    %480 = vmatprep.subr.bf16.mxu0 0
    %481 = vmatpush1.bf16.msra.mxu0 0
    %482 = vmatprep.subr.bf16.mxu0 0
    %483 = vmatpush1.bf16.msra.mxu0 0
    %484 = vmatprep.subr.bf16.mxu0 0
    %485 = vmatpush1.bf16.msra.mxu0 0
    %486 = vmatprep.subr.bf16.mxu0 0
    %487 = vmatpush1.bf16.msra.mxu0 0
    %488 = vmatprep.subr.bf16.mxu0 0
    %489 = vmatpush1.bf16.msra.mxu0 0
    %490 = vmatprep.subr.bf16.mxu0 0
    %491 = vmatpush1.bf16.msra.mxu0 0
    %492 = vmatprep.subr.bf16.mxu0 0
    %493 = vmatpush1.bf16.msra.mxu0 0
    %494 = vmatprep.subr.bf16.mxu0 0
    %495 = vmatpush1.bf16.msra.mxu0 0
    %496 = vmatprep.subr.bf16.mxu0 0
    %497 = vmatpush1.bf16.msra.mxu0 0
    %498 = vmatprep.subr.bf16.mxu0 0
    %499 = vmatpush1.bf16.msra.mxu0 0
    %500 = vmatprep.subr.bf16.mxu0 0
    %501 = vmatpush1.bf16.msra.mxu0 0
    %502 = vmatprep.mubr.bf16.mxu0 0
    %503 = vmatmul.mubr.bf16.gmra.mrb[0].mxu0 %v230
    %v504 = vpop.f32.mrb[0].mxu0
    %v505 = vadd.f32 0.0, %v504
    %v506 = vpop.f32.mrb[0].mxu0
    %v507 = vadd.f32 0.0, %v506
    %v508 = vpop.f32.mrb[0].mxu0
    %v509 = vadd.f32 0.0, %v508
    %v510 = vpop.f32.mrb[0].mxu0
    %v511 = vadd.f32 0.0, %v510
    %512 = vmatprep.mubr.bf16.mxu0 0
    %513 = vmatmul.mubr.bf16.gmra.mrb[0].mxu0 %v233
    %v514 = vpop.f32.mrb[0].mxu0
    %v515 = vadd.f32 0.0, %v514
    %v516 = vpop.f32.mrb[0].mxu0
    %v517 = vadd.f32 0.0, %v516
    %v518 = vpop.f32.mrb[0].mxu0
    %v519 = vadd.f32 0.0, %v518
    %v520 = vpop.f32.mrb[0].mxu0
    %v521 = vadd.f32 0.0, %v520
    %522 = vmatprep.mubr.bf16.mxu0 0
    %523 = vmatmul.mubr.bf16.gmra.mrb[0].mxu0 %v236
    %v524 = vpop.f32.mrb[0].mxu0
    %v525 = vadd.f32 0.0, %v524
    %v526 = vpop.f32.mrb[0].mxu0
    %v527 = vadd.f32 0.0, %v526
    %v528 = vpop.f32.mrb[0].mxu0
    %v529 = vadd.f32 0.0, %v528
    %v530 = vpop.f32.mrb[0].mxu0
    %v531 = vadd.f32 0.0, %v530
    %532 = vmatprep.mubr.bf16.mxu0 0
    %533 = vmatmul.mubr.bf16.gmra.mrb[0].mxu0 %v239
    %v534 = vpop.f32.mrb[0].mxu0
    %v535 = vadd.f32 0.0, %v534
    %v536 = vpop.f32.mrb[0].mxu0
    %v537 = vadd.f32 0.0, %v536
    %v538 = vpop.f32.mrb[0].mxu0
    %v539 = vadd.f32 0.0, %v538
    %v540 = vpop.f32.mrb[0].mxu0
    %v541 = vadd.f32 0.0, %v540
    %542 = vmatprep.mubr.bf16.mxu0 0
    %543 = vmatmul.mubr.bf16.gmra.mrb[0].mxu0 %v242
    %v544 = vpop.f32.mrb[0].mxu0
    %v545 = vadd.f32 0.0, %v544
    %v546 = vpop.f32.mrb[0].mxu0
    %v547 = vadd.f32 0.0, %v546
    %v548 = vpop.f32.mrb[0].mxu0
    %v549 = vadd.f32 0.0, %v548
    %v550 = vpop.f32.mrb[0].mxu0
    %v551 = vadd.f32 0.0, %v550
    %552 = vmatprep.mubr.bf16.mxu0 0
    %553 = vmatmul.mubr.bf16.gmra.mrb[0].mxu0 %v245
    %v554 = vpop.f32.mrb[0].mxu0
    %v555 = vadd.f32 0.0, %v554
    %v556 = vpop.f32.mrb[0].mxu0
    %v557 = vadd.f32 0.0, %v556
    %v558 = vpop.f32.mrb[0].mxu0
    %v559 = vadd.f32 0.0, %v558
    %v560 = vpop.f32.mrb[0].mxu0
    %v561 = vadd.f32 0.0, %v560
    %562 = vmatprep.mubr.bf16.mxu0 0
    %563 = vmatmul.mubr.bf16.gmra.mrb[0].mxu0 %v248
    %v564 = vpop.f32.mrb[0].mxu0
    %v565 = vadd.f32 0.0, %v564
    %v566 = vpop.f32.mrb[0].mxu0
    %v567 = vadd.f32 0.0, %v566
    %v568 = vpop.f32.mrb[0].mxu0
    %v569 = vadd.f32 0.0, %v568
    %v570 = vpop.f32.mrb[0].mxu0
    %v571 = vadd.f32 0.0, %v570
    %572 = vmatprep.mubr.bf16.mxu0 0
    %573 = vmatmul.mubr.bf16.gmra.mrb[0].mxu0 %v251
    %v574 = vpop.f32.mrb[0].mxu0
    %v575 = vadd.f32 0.0, %v574
    %v576 = vpop.f32.mrb[0].mxu0
    %v577 = vadd.f32 0.0, %v576
    %v578 = vpop.f32.mrb[0].mxu0
    %v579 = vadd.f32 0.0, %v578
    %v580 = vpop.f32.mrb[0].mxu0
    %v581 = vadd.f32 0.0, %v580
    %582 = vmatprep.mubr.bf16.mxu0 0
    %583 = vmatmul.mubr.bf16.gmra.mrb[0].mxu0 %v254
    %v584 = vpop.f32.mrb[0].mxu0
    %v585 = vadd.f32 0.0, %v584
    %v586 = vpop.f32.mrb[0].mxu0
    %v587 = vadd.f32 0.0, %v586
    %v588 = vpop.f32.mrb[0].mxu0
    %v589 = vadd.f32 0.0, %v588
    %v590 = vpop.f32.mrb[0].mxu0
    %v591 = vadd.f32 0.0, %v590
    %592 = vmatprep.mubr.bf16.mxu0 0
    %593 = vmatmul.mubr.bf16.gmra.mrb[0].mxu0 %v257
    %v594 = vpop.f32.mrb[0].mxu0
    %v595 = vadd.f32 0.0, %v594
    %v596 = vpop.f32.mrb[0].mxu0
    %v597 = vadd.f32 0.0, %v596
    %v598 = vpop.f32.mrb[0].mxu0
    %v599 = vadd.f32 0.0, %v598
    %v600 = vpop.f32.mrb[0].mxu0
    %v601 = vadd.f32 0.0, %v600
    %602 = vmatprep.mubr.bf16.mxu0 0
    %603 = vmatmul.mubr.bf16.gmra.mrb[0].mxu0 %v260
    %v604 = vpop.f32.mrb[0].mxu0
    %v605 = vadd.f32 0.0, %v604
    %v606 = vpop.f32.mrb[0].mxu0
    %v607 = vadd.f32 0.0, %v606
    %v608 = vpop.f32.mrb[0].mxu0
    %v609 = vadd.f32 0.0, %v608
    %v610 = vpop.f32.mrb[0].mxu0
    %v611 = vadd.f32 0.0, %v610
    %612 = vmatprep.mubr.bf16.mxu0 0
    %613 = vmatmul.mubr.bf16.gmra.mrb[0].mxu0 %v263
    %v614 = vpop.f32.mrb[0].mxu0
    %v615 = vadd.f32 0.0, %v614
    %v616 = vpop.f32.mrb[0].mxu0
    %v617 = vadd.f32 0.0, %v616
    %v618 = vpop.f32.mrb[0].mxu0
    %v619 = vadd.f32 0.0, %v618
    %v620 = vpop.f32.mrb[0].mxu0
    %v621 = vadd.f32 0.0, %v620
    %622 = vmatprep.mubr.bf16.mxu0 0
    %623 = vmatmul.mubr.bf16.gmra.mrb[0].mxu0 %v266
    %v624 = vpop.f32.mrb[0].mxu0
    %v625 = vadd.f32 0.0, %v624
    %v626 = vpop.f32.mrb[0].mxu0
    %v627 = vadd.f32 0.0, %v626
    %v628 = vpop.f32.mrb[0].mxu0
    %v629 = vadd.f32 0.0, %v628
    %v630 = vpop.f32.mrb[0].mxu0
    %v631 = vadd.f32 0.0, %v630
    %632 = vmatprep.mubr.bf16.mxu0 0
    %633 = vmatmul.mubr.bf16.gmra.mrb[0].mxu0 %v269
    %v634 = vpop.f32.mrb[0].mxu0
    %v635 = vadd.f32 0.0, %v634
    %v636 = vpop.f32.mrb[0].mxu0
    %v637 = vadd.f32 0.0, %v636
    %v638 = vpop.f32.mrb[0].mxu0
    %v639 = vadd.f32 0.0, %v638
    %v640 = vpop.f32.mrb[0].mxu0
    %v641 = vadd.f32 0.0, %v640
    %642 = vmatprep.mubr.bf16.mxu0 0
    %643 = vmatmul.mubr.bf16.gmra.mrb[0].mxu0 %v272
    %v644 = vpop.f32.mrb[0].mxu0
    %v645 = vadd.f32 0.0, %v644
    %v646 = vpop.f32.mrb[0].mxu0
    %v647 = vadd.f32 0.0, %v646
    %v648 = vpop.f32.mrb[0].mxu0
    %v649 = vadd.f32 0.0, %v648
    %v650 = vpop.f32.mrb[0].mxu0
    %v651 = vadd.f32 0.0, %v650
    %652 = vmatprep.mubr.bf16.mxu0 0
    %653 = vmatmul.mubr.bf16.gmra.mrb[0].mxu0 %v275
    %v654 = vpop.f32.mrb[0].mxu0
    %v655 = vadd.f32 0.0, %v654
    %v656 = vpop.f32.mrb[0].mxu0
    %v657 = vadd.f32 0.0, %v656
    %v658 = vpop.f32.mrb[0].mxu0
    %v659 = vadd.f32 0.0, %v658
    %v660 = vpop.f32.mrb[0].mxu0
    %v661 = vadd.f32 0.0, %v660
    %662 = vdwg.mxu0
    %v663 = vmax.f32 %v312, 0.0
    %v664 = vmax.f32 %v314, 0.0
    %v665 = vmax.f32 %v505, 0.0
    %v666 = vmax.f32 %v507, 0.0
    %v667 = vmax.f32 %v316, 0.0
    %v668 = vmax.f32 %v318, 0.0
    %v669 = vmax.f32 %v509, 0.0
    %v670 = vmax.f32 %v511, 0.0
    %v671 = vmax.f32 %v322, 0.0
    %v672 = vmax.f32 %v324, 0.0
    %v673 = vmax.f32 %v515, 0.0
    %v674 = vmax.f32 %v517, 0.0
    %v675 = vmax.f32 %v326, 0.0
    %v676 = vmax.f32 %v328, 0.0
    %v677 = vmax.f32 %v519, 0.0
    %v678 = vmax.f32 %v521, 0.0
    %v679 = vmax.f32 %v332, 0.0
    %v680 = vmax.f32 %v334, 0.0
    %v681 = vmax.f32 %v525, 0.0
    %v682 = vmax.f32 %v527, 0.0
    %v683 = vmax.f32 %v336, 0.0
    %v684 = vmax.f32 %v338, 0.0
    %v685 = vmax.f32 %v529, 0.0
    %v686 = vmax.f32 %v531, 0.0
    %v687 = vmax.f32 %v342, 0.0
    %v688 = vmax.f32 %v344, 0.0
    %v689 = vmax.f32 %v535, 0.0
    %v690 = vmax.f32 %v537, 0.0
    %v691 = vmax.f32 %v346, 0.0
    %v692 = vmax.f32 %v348, 0.0
    %v693 = vmax.f32 %v539, 0.0
    %v694 = vmax.f32 %v541, 0.0
    %v695 = vmax.f32 %v352, 0.0
    %v696 = vmax.f32 %v354, 0.0
    %v697 = vmax.f32 %v545, 0.0
    %v698 = vmax.f32 %v547, 0.0
    %v699 = vmax.f32 %v356, 0.0
    %v700 = vmax.f32 %v358, 0.0
    %v701 = vmax.f32 %v549, 0.0
    %v702 = vmax.f32 %v551, 0.0
    %v703 = vmax.f32 %v362, 0.0
    %v704 = vmax.f32 %v364, 0.0
    %v705 = vmax.f32 %v555, 0.0
    %v706 = vmax.f32 %v557, 0.0
    %v707 = vmax.f32 %v366, 0.0
    %v708 = vmax.f32 %v368, 0.0
    %v709 = vmax.f32 %v559, 0.0
    %v710 = vmax.f32 %v561, 0.0
    %v711 = vmax.f32 %v372, 0.0
    %v712 = vmax.f32 %v374, 0.0
    %v713 = vmax.f32 %v565, 0.0
    %v714 = vmax.f32 %v567, 0.0
    %v715 = vmax.f32 %v376, 0.0
    %v716 = vmax.f32 %v378, 0.0
    %v717 = vmax.f32 %v569, 0.0
    %v718 = vmax.f32 %v571, 0.0
    %v719 = vmax.f32 %v382, 0.0
    %v720 = vmax.f32 %v384, 0.0
    %v721 = vmax.f32 %v575, 0.0
    %v722 = vmax.f32 %v577, 0.0
    %v723 = vmax.f32 %v386, 0.0
    %v724 = vmax.f32 %v388, 0.0
    %v725 = vmax.f32 %v579, 0.0
    %v726 = vmax.f32 %v581, 0.0
    %v727 = vmax.f32 %v392, 0.0
    %v728 = vmax.f32 %v394, 0.0
    %v729 = vmax.f32 %v585, 0.0
    %v730 = vmax.f32 %v587, 0.0
    %v731 = vmax.f32 %v396, 0.0
    %v732 = vmax.f32 %v398, 0.0
    %v733 = vmax.f32 %v589, 0.0
    %v734 = vmax.f32 %v591, 0.0
    %v735 = vmax.f32 %v402, 0.0
    %v736 = vmax.f32 %v404, 0.0
    %v737 = vmax.f32 %v595, 0.0
    %v738 = vmax.f32 %v597, 0.0
    %v739 = vmax.f32 %v406, 0.0
    %v740 = vmax.f32 %v408, 0.0
    %v741 = vmax.f32 %v599, 0.0
    %v742 = vmax.f32 %v601, 0.0
    %v743 = vmax.f32 %v412, 0.0
    %v744 = vmax.f32 %v414, 0.0
    %v745 = vmax.f32 %v605, 0.0
    %v746 = vmax.f32 %v607, 0.0
    %v747 = vmax.f32 %v416, 0.0
    %v748 = vmax.f32 %v418, 0.0
    %v749 = vmax.f32 %v609, 0.0
    %v750 = vmax.f32 %v611, 0.0
    %v751 = vmax.f32 %v422, 0.0
    %v752 = vmax.f32 %v424, 0.0
    %v753 = vmax.f32 %v615, 0.0
    %v754 = vmax.f32 %v617, 0.0
    %v755 = vmax.f32 %v426, 0.0
    %v756 = vmax.f32 %v428, 0.0
    %v757 = vmax.f32 %v619, 0.0
    %v758 = vmax.f32 %v621, 0.0
    %v759 = vmax.f32 %v432, 0.0
    %v760 = vmax.f32 %v434, 0.0
    %v761 = vmax.f32 %v625, 0.0
    %v762 = vmax.f32 %v627, 0.0
    %v763 = vmax.f32 %v436, 0.0
    %v764 = vmax.f32 %v438, 0.0
    %v765 = vmax.f32 %v629, 0.0
    %v766 = vmax.f32 %v631, 0.0
    %v767 = vmax.f32 %v442, 0.0
    %v768 = vmax.f32 %v444, 0.0
    %v769 = vmax.f32 %v635, 0.0
    %v770 = vmax.f32 %v637, 0.0
    %v771 = vmax.f32 %v446, 0.0
    %v772 = vmax.f32 %v448, 0.0
    %v773 = vmax.f32 %v639, 0.0
    %v774 = vmax.f32 %v641, 0.0
    %v775 = vmax.f32 %v452, 0.0
    %v776 = vmax.f32 %v454, 0.0
    %v777 = vmax.f32 %v645, 0.0
    %v778 = vmax.f32 %v647, 0.0
    %v779 = vmax.f32 %v456, 0.0
    %v780 = vmax.f32 %v458, 0.0
    %v781 = vmax.f32 %v649, 0.0
    %v782 = vmax.f32 %v651, 0.0
    %v783 = vmax.f32 %v462, 0.0
    %v784 = vmax.f32 %v464, 0.0
    %v785 = vmax.f32 %v655, 0.0
    %v786 = vmax.f32 %v657, 0.0
    %v787 = vmax.f32 %v466, 0.0
    %v788 = vmax.f32 %v468, 0.0
    %v789 = vmax.f32 %v659, 0.0
    %v790 = vmax.f32 %v661, 0.0
    %v791 = vpack.c.bf16 %v667, %v663
    %v792 = vpack.c.bf16 %v668, %v664
    %v793 = vpack.c.bf16 %v669, %v665
    %v794 = vpack.c.bf16 %v670, %v666
    %v795 = vpack.c.bf16 %v675, %v671
    %v796 = vpack.c.bf16 %v676, %v672
    %v797 = vpack.c.bf16 %v677, %v673
    %v798 = vpack.c.bf16 %v678, %v674
    %v799 = vpack.c.bf16 %v683, %v679
    %v800 = vpack.c.bf16 %v684, %v680
    %v801 = vpack.c.bf16 %v685, %v681
    %v802 = vpack.c.bf16 %v686, %v682
    %v803 = vpack.c.bf16 %v691, %v687
    %v804 = vpack.c.bf16 %v692, %v688
    %v805 = vpack.c.bf16 %v693, %v689
    %v806 = vpack.c.bf16 %v694, %v690
    %v807 = vpack.c.bf16 %v699, %v695
    %v808 = vpack.c.bf16 %v700, %v696
    %v809 = vpack.c.bf16 %v701, %v697
    %v810 = vpack.c.bf16 %v702, %v698
    %v811 = vpack.c.bf16 %v707, %v703
    %v812 = vpack.c.bf16 %v708, %v704
    %v813 = vpack.c.bf16 %v709, %v705
    %v814 = vpack.c.bf16 %v710, %v706
    %v815 = vpack.c.bf16 %v715, %v711
    %v816 = vpack.c.bf16 %v716, %v712
    %v817 = vpack.c.bf16 %v717, %v713
    %v818 = vpack.c.bf16 %v718, %v714
    %v819 = vpack.c.bf16 %v723, %v719
    %v820 = vpack.c.bf16 %v724, %v720
    %v821 = vpack.c.bf16 %v725, %v721
    %v822 = vpack.c.bf16 %v726, %v722
    %v823 = vpack.c.bf16 %v731, %v727
    %v824 = vpack.c.bf16 %v732, %v728
    %v825 = vpack.c.bf16 %v733, %v729
    %v826 = vpack.c.bf16 %v734, %v730
    %v827 = vpack.c.bf16 %v739, %v735
    %v828 = vpack.c.bf16 %v740, %v736
    %v829 = vpack.c.bf16 %v741, %v737
    %v830 = vpack.c.bf16 %v742, %v738
    %v831 = vpack.c.bf16 %v747, %v743
    %v832 = vpack.c.bf16 %v748, %v744
    %v833 = vpack.c.bf16 %v749, %v745
    %v834 = vpack.c.bf16 %v750, %v746
    %v835 = vpack.c.bf16 %v755, %v751
    %v836 = vpack.c.bf16 %v756, %v752
    %v837 = vpack.c.bf16 %v757, %v753
    %v838 = vpack.c.bf16 %v758, %v754
    %v839 = vpack.c.bf16 %v763, %v759
    %v840 = vpack.c.bf16 %v764, %v760
    %v841 = vpack.c.bf16 %v765, %v761
    %v842 = vpack.c.bf16 %v766, %v762
    %v843 = vpack.c.bf16 %v771, %v767
    %v844 = vpack.c.bf16 %v772, %v768
    %v845 = vpack.c.bf16 %v773, %v769
    %v846 = vpack.c.bf16 %v774, %v770
    %v847 = vpack.c.bf16 %v779, %v775
    %v848 = vpack.c.bf16 %v780, %v776
    %v849 = vpack.c.bf16 %v781, %v777
    %v850 = vpack.c.bf16 %v782, %v778
    %v851 = vpack.c.bf16 %v787, %v783
    %v852 = vpack.c.bf16 %v788, %v784
    %v853 = vpack.c.bf16 %v789, %v785
    %v854 = vpack.c.bf16 %v790, %v786
    %v855 = vld [vmem:[#allocation5] sm:$0xff]
    %v856 = vld [vmem:[#allocation5 + $0x8] sm:$0xff]
    %v857 = vld [vmem:[#allocation5 + $0x10] sm:$0xff]
    %v858 = vld [vmem:[#allocation5 + $0x18] sm:$0xff]
    %v859 = vld [vmem:[#allocation5 + $0x20] sm:$0xff]
    %v860 = vld [vmem:[#allocation5 + $0x28] sm:$0xff]
    %v861 = vld [vmem:[#allocation5 + $0x30] sm:$0xff]
    %v862 = vld [vmem:[#allocation5 + $0x38] sm:$0xff]
    %v863 = vld [vmem:[#allocation5 + $0x40] sm:$0xff]
    %v864 = vld [vmem:[#allocation5 + $0x48] sm:$0xff]
    %v865 = vld [vmem:[#allocation5 + $0x50] sm:$0xff]
    %v866 = vld [vmem:[#allocation5 + $0x58] sm:$0xff]
    %v867 = vld [vmem:[#allocation5 + $0x60] sm:$0xff]
    %v868 = vld [vmem:[#allocation5 + $0x68] sm:$0xff]
    %v869 = vld [vmem:[#allocation5 + $0x70] sm:$0xff]
    %v870 = vld [vmem:[#allocation5 + $0x78] sm:$0xff]
    %v871 = vld [vmem:[#allocation5 + $0x80] sm:$0xff]
    %v872 = vld [vmem:[#allocation5 + $0x88] sm:$0xff]
    %v873 = vld [vmem:[#allocation5 + $0x90] sm:$0xff]
    %v874 = vld [vmem:[#allocation5 + $0x98] sm:$0xff]
    %v875 = vld [vmem:[#allocation5 + $0xa0] sm:$0xff]
    %v876 = vld [vmem:[#allocation5 + $0xa8] sm:$0xff]
    %v877 = vld [vmem:[#allocation5 + $0xb0] sm:$0xff]
    %v878 = vld [vmem:[#allocation5 + $0xb8] sm:$0xff]
    %v879 = vld [vmem:[#allocation5 + $0xc0] sm:$0xff]
    %v880 = vld [vmem:[#allocation5 + $0xc8] sm:$0xff]
    %v881 = vld [vmem:[#allocation5 + $0xd0] sm:$0xff]
    %v882 = vld [vmem:[#allocation5 + $0xd8] sm:$0xff]
    %v883 = vld [vmem:[#allocation5 + $0xe0] sm:$0xff]
    %v884 = vld [vmem:[#allocation5 + $0xe8] sm:$0xff]
    %v885 = vld [vmem:[#allocation5 + $0xf0] sm:$0xff]
    %v886 = vld [vmem:[#allocation5 + $0xf8] sm:$0xff]
    %v887 = vld [vmem:[#allocation5 + $0x100] sm:$0xff]
    %v888 = vld [vmem:[#allocation5 + $0x108] sm:$0xff]
    %v889 = vld [vmem:[#allocation5 + $0x110] sm:$0xff]
    %v890 = vld [vmem:[#allocation5 + $0x118] sm:$0xff]
    %v891 = vld [vmem:[#allocation5 + $0x120] sm:$0xff]
    %v892 = vld [vmem:[#allocation5 + $0x128] sm:$0xff]
    %v893 = vld [vmem:[#allocation5 + $0x130] sm:$0xff]
    %v894 = vld [vmem:[#allocation5 + $0x138] sm:$0xff]
    %v895 = vld [vmem:[#allocation5 + $0x140] sm:$0xff]
    %v896 = vld [vmem:[#allocation5 + $0x148] sm:$0xff]
    %v897 = vld [vmem:[#allocation5 + $0x150] sm:$0xff]
    %v898 = vld [vmem:[#allocation5 + $0x158] sm:$0xff]
    %v899 = vld [vmem:[#allocation5 + $0x160] sm:$0xff]
    %v900 = vld [vmem:[#allocation5 + $0x168] sm:$0xff]
    %v901 = vld [vmem:[#allocation5 + $0x170] sm:$0xff]
    %v902 = vld [vmem:[#allocation5 + $0x178] sm:$0xff]
    %v903 = vld [vmem:[#allocation5 + $0x180] sm:$0xff]
    %v904 = vld [vmem:[#allocation5 + $0x188] sm:$0xff]
    %v905 = vld [vmem:[#allocation5 + $0x190] sm:$0xff]
    %v906 = vld [vmem:[#allocation5 + $0x198] sm:$0xff]
    %v907 = vld [vmem:[#allocation5 + $0x1a0] sm:$0xff]
    %v908 = vld [vmem:[#allocation5 + $0x1a8] sm:$0xff]
    %v909 = vld [vmem:[#allocation5 + $0x1b0] sm:$0xff]
    %v910 = vld [vmem:[#allocation5 + $0x1b8] sm:$0xff]
    %v911 = vld [vmem:[#allocation5 + $0x1c0] sm:$0xff]
    %v912 = vld [vmem:[#allocation5 + $0x1c8] sm:$0xff]
    %v913 = vld [vmem:[#allocation5 + $0x1d0] sm:$0xff]
    %v914 = vld [vmem:[#allocation5 + $0x1d8] sm:$0xff]
    %v915 = vld [vmem:[#allocation5 + $0x1e0] sm:$0xff]
    %v916 = vld [vmem:[#allocation5 + $0x1e8] sm:$0xff]
    %v917 = vld [vmem:[#allocation5 + $0x1f0] sm:$0xff]
    %v918 = vld [vmem:[#allocation5 + $0x1f8] sm:$0xff]
    %v919 = vld [vmem:[#allocation5 + $0x200] sm:$0xff]
    %v920 = vld [vmem:[#allocation5 + $0x208] sm:$0xff]
    %v921 = vld [vmem:[#allocation5 + $0x210] sm:$0xff]
    %v922 = vld [vmem:[#allocation5 + $0x218] sm:$0xff]
    %v923 = vld [vmem:[#allocation5 + $0x220] sm:$0xff]
    %v924 = vld [vmem:[#allocation5 + $0x228] sm:$0xff]
    %v925 = vld [vmem:[#allocation5 + $0x230] sm:$0xff]
    %v926 = vld [vmem:[#allocation5 + $0x238] sm:$0xff]
    %v927 = vld [vmem:[#allocation5 + $0x240] sm:$0xff]
    %v928 = vld [vmem:[#allocation5 + $0x248] sm:$0xff]
    %v929 = vld [vmem:[#allocation5 + $0x250] sm:$0xff]
    %v930 = vld [vmem:[#allocation5 + $0x258] sm:$0xff]
    %v931 = vld [vmem:[#allocation5 + $0x260] sm:$0xff]
    %v932 = vld [vmem:[#allocation5 + $0x268] sm:$0xff]
    %v933 = vld [vmem:[#allocation5 + $0x270] sm:$0xff]
    %v934 = vld [vmem:[#allocation5 + $0x278] sm:$0xff]
    %v935 = vld [vmem:[#allocation5 + $0x280] sm:$0xff]
    %v936 = vld [vmem:[#allocation5 + $0x288] sm:$0xff]
    %v937 = vld [vmem:[#allocation5 + $0x290] sm:$0xff]
    %v938 = vld [vmem:[#allocation5 + $0x298] sm:$0xff]
    %v939 = vld [vmem:[#allocation5 + $0x2a0] sm:$0xff]
    %v940 = vld [vmem:[#allocation5 + $0x2a8] sm:$0xff]
    %v941 = vld [vmem:[#allocation5 + $0x2b0] sm:$0xff]
    %v942 = vld [vmem:[#allocation5 + $0x2b8] sm:$0xff]
    %v943 = vld [vmem:[#allocation5 + $0x2c0] sm:$0xff]
    %v944 = vld [vmem:[#allocation5 + $0x2c8] sm:$0xff]
    %v945 = vld [vmem:[#allocation5 + $0x2d0] sm:$0xff]
    %v946 = vld [vmem:[#allocation5 + $0x2d8] sm:$0xff]
    %v947 = vld [vmem:[#allocation5 + $0x2e0] sm:$0xff]
    %v948 = vld [vmem:[#allocation5 + $0x2e8] sm:$0xff]
    %v949 = vld [vmem:[#allocation5 + $0x2f0] sm:$0xff]
    %v950 = vld [vmem:[#allocation5 + $0x2f8] sm:$0xff]
    %v951 = vld [vmem:[#allocation5 + $0x300] sm:$0xff]
    %v952 = vld [vmem:[#allocation5 + $0x308] sm:$0xff]
    %v953 = vld [vmem:[#allocation5 + $0x310] sm:$0xff]
    %v954 = vld [vmem:[#allocation5 + $0x318] sm:$0xff]
    %v955 = vld [vmem:[#allocation5 + $0x320] sm:$0xff]
    %v956 = vld [vmem:[#allocation5 + $0x328] sm:$0xff]
    %v957 = vld [vmem:[#allocation5 + $0x330] sm:$0xff]
    %v958 = vld [vmem:[#allocation5 + $0x338] sm:$0xff]
    %v959 = vld [vmem:[#allocation5 + $0x340] sm:$0xff]
    %v960 = vld [vmem:[#allocation5 + $0x348] sm:$0xff]
    %v961 = vld [vmem:[#allocation5 + $0x350] sm:$0xff]
    %v962 = vld [vmem:[#allocation5 + $0x358] sm:$0xff]
    %v963 = vld [vmem:[#allocation5 + $0x360] sm:$0xff]
    %v964 = vld [vmem:[#allocation5 + $0x368] sm:$0xff]
    %v965 = vld [vmem:[#allocation5 + $0x370] sm:$0xff]
    %v966 = vld [vmem:[#allocation5 + $0x378] sm:$0xff]
    %v967 = vld [vmem:[#allocation5 + $0x380] sm:$0xff]
    %v968 = vld [vmem:[#allocation5 + $0x388] sm:$0xff]
    %v969 = vld [vmem:[#allocation5 + $0x390] sm:$0xff]
    %v970 = vld [vmem:[#allocation5 + $0x398] sm:$0xff]
    %v971 = vld [vmem:[#allocation5 + $0x3a0] sm:$0xff]
    %v972 = vld [vmem:[#allocation5 + $0x3a8] sm:$0xff]
    %v973 = vld [vmem:[#allocation5 + $0x3b0] sm:$0xff]
    %v974 = vld [vmem:[#allocation5 + $0x3b8] sm:$0xff]
    %v975 = vld [vmem:[#allocation5 + $0x3c0] sm:$0xff]
    %v976 = vld [vmem:[#allocation5 + $0x3c8] sm:$0xff]
    %v977 = vld [vmem:[#allocation5 + $0x3d0] sm:$0xff]
    %v978 = vld [vmem:[#allocation5 + $0x3d8] sm:$0xff]
    %v979 = vld [vmem:[#allocation5 + $0x3e0] sm:$0xff]
    %v980 = vld [vmem:[#allocation5 + $0x3e8] sm:$0xff]
    %v981 = vld [vmem:[#allocation5 + $0x3f0] sm:$0xff]
    %v982 = vld [vmem:[#allocation5 + $0x3f8] sm:$0xff]
    %v983 = vld [vmem:[#allocation5 + $0x400] sm:$0xff]
    %v984 = vld [vmem:[#allocation5 + $0x408] sm:$0xff]
    %v985 = vld [vmem:[#allocation5 + $0x410] sm:$0xff]
    %v986 = vld [vmem:[#allocation5 + $0x418] sm:$0xff]
    %v987 = vld [vmem:[#allocation5 + $0x420] sm:$0xff]
    %v988 = vld [vmem:[#allocation5 + $0x428] sm:$0xff]
    %v989 = vld [vmem:[#allocation5 + $0x430] sm:$0xff]
    %v990 = vld [vmem:[#allocation5 + $0x438] sm:$0xff]
    %v991 = vld [vmem:[#allocation5 + $0x440] sm:$0xff]
    %v992 = vld [vmem:[#allocation5 + $0x448] sm:$0xff]
    %v993 = vld [vmem:[#allocation5 + $0x450] sm:$0xff]
    %v994 = vld [vmem:[#allocation5 + $0x458] sm:$0xff]
    %v995 = vld [vmem:[#allocation5 + $0x460] sm:$0xff]
    %v996 = vld [vmem:[#allocation5 + $0x468] sm:$0xff]
    %v997 = vld [vmem:[#allocation5 + $0x470] sm:$0xff]
    %v998 = vld [vmem:[#allocation5 + $0x478] sm:$0xff]
    %v999 = vld [vmem:[#allocation5 + $0x480] sm:$0xff]
    %v1000 = vld [vmem:[#allocation5 + $0x488] sm:$0xff]
    %v1001 = vld [vmem:[#allocation5 + $0x490] sm:$0xff]
    %v1002 = vld [vmem:[#allocation5 + $0x498] sm:$0xff]
    %v1003 = vld [vmem:[#allocation5 + $0x4a0] sm:$0xff]
    %v1004 = vld [vmem:[#allocation5 + $0x4a8] sm:$0xff]
    %v1005 = vld [vmem:[#allocation5 + $0x4b0] sm:$0xff]
    %v1006 = vld [vmem:[#allocation5 + $0x4b8] sm:$0xff]
    %v1007 = vld [vmem:[#allocation5 + $0x4c0] sm:$0xff]
    %v1008 = vld [vmem:[#allocation5 + $0x4c8] sm:$0xff]
    %v1009 = vld [vmem:[#allocation5 + $0x4d0] sm:$0xff]
    %v1010 = vld [vmem:[#allocation5 + $0x4d8] sm:$0xff]
    %v1011 = vld [vmem:[#allocation5 + $0x4e0] sm:$0xff]
    %v1012 = vld [vmem:[#allocation5 + $0x4e8] sm:$0xff]
    %v1013 = vld [vmem:[#allocation5 + $0x4f0] sm:$0xff]
    %v1014 = vld [vmem:[#allocation5 + $0x4f8] sm:$0xff]
    %v1015 = vld [vmem:[#allocation5 + $0x500] sm:$0xff]
    %v1016 = vld [vmem:[#allocation5 + $0x508] sm:$0xff]
    %v1017 = vld [vmem:[#allocation5 + $0x510] sm:$0xff]
    %v1018 = vld [vmem:[#allocation5 + $0x518] sm:$0xff]
    %v1019 = vld [vmem:[#allocation5 + $0x520] sm:$0xff]
    %v1020 = vld [vmem:[#allocation5 + $0x528] sm:$0xff]
    %v1021 = vld [vmem:[#allocation5 + $0x530] sm:$0xff]
    %v1022 = vld [vmem:[#allocation5 + $0x538] sm:$0xff]
    %v1023 = vld [vmem:[#allocation5 + $0x540] sm:$0xff]
    %v1024 = vld [vmem:[#allocation5 + $0x548] sm:$0xff]
    %v1025 = vld [vmem:[#allocation5 + $0x550] sm:$0xff]
    %v1026 = vld [vmem:[#allocation5 + $0x558] sm:$0xff]
    %v1027 = vld [vmem:[#allocation5 + $0x560] sm:$0xff]
    %v1028 = vld [vmem:[#allocation5 + $0x568] sm:$0xff]
    %v1029 = vld [vmem:[#allocation5 + $0x570] sm:$0xff]
    %v1030 = vld [vmem:[#allocation5 + $0x578] sm:$0xff]
    %v1031 = vld [vmem:[#allocation5 + $0x580] sm:$0xff]
    %v1032 = vld [vmem:[#allocation5 + $0x588] sm:$0xff]
    %v1033 = vld [vmem:[#allocation5 + $0x590] sm:$0xff]
    %v1034 = vld [vmem:[#allocation5 + $0x598] sm:$0xff]
    %v1035 = vld [vmem:[#allocation5 + $0x5a0] sm:$0xff]
    %v1036 = vld [vmem:[#allocation5 + $0x5a8] sm:$0xff]
    %v1037 = vld [vmem:[#allocation5 + $0x5b0] sm:$0xff]
    %v1038 = vld [vmem:[#allocation5 + $0x5b8] sm:$0xff]
    %v1039 = vld [vmem:[#allocation5 + $0x5c0] sm:$0xff]
    %v1040 = vld [vmem:[#allocation5 + $0x5c8] sm:$0xff]
    %v1041 = vld [vmem:[#allocation5 + $0x5d0] sm:$0xff]
    %v1042 = vld [vmem:[#allocation5 + $0x5d8] sm:$0xff]
    %v1043 = vld [vmem:[#allocation5 + $0x5e0] sm:$0xff]
    %v1044 = vld [vmem:[#allocation5 + $0x5e8] sm:$0xff]
    %v1045 = vld [vmem:[#allocation5 + $0x5f0] sm:$0xff]
    %v1046 = vld [vmem:[#allocation5 + $0x5f8] sm:$0xff]
    %v1047 = vld [vmem:[#allocation5 + $0x600] sm:$0xff]
    %v1048 = vld [vmem:[#allocation5 + $0x608] sm:$0xff]
    %v1049 = vld [vmem:[#allocation5 + $0x610] sm:$0xff]
    %v1050 = vld [vmem:[#allocation5 + $0x618] sm:$0xff]
    %v1051 = vld [vmem:[#allocation5 + $0x620] sm:$0xff]
    %v1052 = vld [vmem:[#allocation5 + $0x628] sm:$0xff]
    %v1053 = vld [vmem:[#allocation5 + $0x630] sm:$0xff]
    %v1054 = vld [vmem:[#allocation5 + $0x638] sm:$0xff]
    %v1055 = vld [vmem:[#allocation5 + $0x640] sm:$0xff]
    %v1056 = vld [vmem:[#allocation5 + $0x648] sm:$0xff]
    %v1057 = vld [vmem:[#allocation5 + $0x650] sm:$0xff]
    %v1058 = vld [vmem:[#allocation5 + $0x658] sm:$0xff]
    %v1059 = vld [vmem:[#allocation5 + $0x660] sm:$0xff]
    %v1060 = vld [vmem:[#allocation5 + $0x668] sm:$0xff]
    %v1061 = vld [vmem:[#allocation5 + $0x670] sm:$0xff]
    %v1062 = vld [vmem:[#allocation5 + $0x678] sm:$0xff]
    %v1063 = vld [vmem:[#allocation5 + $0x680] sm:$0xff]
    %v1064 = vld [vmem:[#allocation5 + $0x688] sm:$0xff]
    %v1065 = vld [vmem:[#allocation5 + $0x690] sm:$0xff]
    %v1066 = vld [vmem:[#allocation5 + $0x698] sm:$0xff]
    %v1067 = vld [vmem:[#allocation5 + $0x6a0] sm:$0xff]
    %v1068 = vld [vmem:[#allocation5 + $0x6a8] sm:$0xff]
    %v1069 = vld [vmem:[#allocation5 + $0x6b0] sm:$0xff]
    %v1070 = vld [vmem:[#allocation5 + $0x6b8] sm:$0xff]
    %v1071 = vld [vmem:[#allocation5 + $0x6c0] sm:$0xff]
    %v1072 = vld [vmem:[#allocation5 + $0x6c8] sm:$0xff]
    %v1073 = vld [vmem:[#allocation5 + $0x6d0] sm:$0xff]
    %v1074 = vld [vmem:[#allocation5 + $0x6d8] sm:$0xff]
    %v1075 = vld [vmem:[#allocation5 + $0x6e0] sm:$0xff]
    %v1076 = vld [vmem:[#allocation5 + $0x6e8] sm:$0xff]
    %v1077 = vld [vmem:[#allocation5 + $0x6f0] sm:$0xff]
    %v1078 = vld [vmem:[#allocation5 + $0x6f8] sm:$0xff]
    %v1079 = vld [vmem:[#allocation5 + $0x700] sm:$0xff]
    %v1080 = vld [vmem:[#allocation5 + $0x708] sm:$0xff]
    %v1081 = vld [vmem:[#allocation5 + $0x710] sm:$0xff]
    %v1082 = vld [vmem:[#allocation5 + $0x718] sm:$0xff]
    %v1083 = vld [vmem:[#allocation5 + $0x720] sm:$0xff]
    %v1084 = vld [vmem:[#allocation5 + $0x728] sm:$0xff]
    %v1085 = vld [vmem:[#allocation5 + $0x730] sm:$0xff]
    %v1086 = vld [vmem:[#allocation5 + $0x738] sm:$0xff]
    %v1087 = vld [vmem:[#allocation5 + $0x740] sm:$0xff]
    %v1088 = vld [vmem:[#allocation5 + $0x748] sm:$0xff]
    %v1089 = vld [vmem:[#allocation5 + $0x750] sm:$0xff]
    %v1090 = vld [vmem:[#allocation5 + $0x758] sm:$0xff]
    %v1091 = vld [vmem:[#allocation5 + $0x760] sm:$0xff]
    %v1092 = vld [vmem:[#allocation5 + $0x768] sm:$0xff]
    %v1093 = vld [vmem:[#allocation5 + $0x770] sm:$0xff]
    %v1094 = vld [vmem:[#allocation5 + $0x778] sm:$0xff]
    %v1095 = vld [vmem:[#allocation5 + $0x780] sm:$0xff]
    %v1096 = vld [vmem:[#allocation5 + $0x788] sm:$0xff]
    %v1097 = vld [vmem:[#allocation5 + $0x790] sm:$0xff]
    %v1098 = vld [vmem:[#allocation5 + $0x798] sm:$0xff]
    %v1099 = vld [vmem:[#allocation5 + $0x7a0] sm:$0xff]
    %v1100 = vld [vmem:[#allocation5 + $0x7a8] sm:$0xff]
    %v1101 = vld [vmem:[#allocation5 + $0x7b0] sm:$0xff]
    %v1102 = vld [vmem:[#allocation5 + $0x7b8] sm:$0xff]
    %v1103 = vld [vmem:[#allocation5 + $0x7c0] sm:$0xff]
    %v1104 = vld [vmem:[#allocation5 + $0x7c8] sm:$0xff]
    %v1105 = vld [vmem:[#allocation5 + $0x7d0] sm:$0xff]
    %v1106 = vld [vmem:[#allocation5 + $0x7d8] sm:$0xff]
    %v1107 = vld [vmem:[#allocation5 + $0x7e0] sm:$0xff]
    %v1108 = vld [vmem:[#allocation5 + $0x7e8] sm:$0xff]
    %v1109 = vld [vmem:[#allocation5 + $0x7f0] sm:$0xff]
    %v1110 = vld [vmem:[#allocation5 + $0x7f8] sm:$0xff]
    %v1111 = vld [vmem:[#allocation5 + $0x800] sm:$0xff]
    %v1112 = vld [vmem:[#allocation5 + $0x808] sm:$0xff]
    %v1113 = vld [vmem:[#allocation5 + $0x810] sm:$0xff]
    %v1114 = vld [vmem:[#allocation5 + $0x818] sm:$0xff]
    %v1115 = vld [vmem:[#allocation5 + $0x820] sm:$0xff]
    %v1116 = vld [vmem:[#allocation5 + $0x828] sm:$0xff]
    %v1117 = vld [vmem:[#allocation5 + $0x830] sm:$0xff]
    %v1118 = vld [vmem:[#allocation5 + $0x838] sm:$0xff]
    %v1119 = vld [vmem:[#allocation5 + $0x840] sm:$0xff]
    %v1120 = vld [vmem:[#allocation5 + $0x848] sm:$0xff]
    %v1121 = vld [vmem:[#allocation5 + $0x850] sm:$0xff]
    %v1122 = vld [vmem:[#allocation5 + $0x858] sm:$0xff]
    %v1123 = vld [vmem:[#allocation5 + $0x860] sm:$0xff]
    %v1124 = vld [vmem:[#allocation5 + $0x868] sm:$0xff]
    %v1125 = vld [vmem:[#allocation5 + $0x870] sm:$0xff]
    %v1126 = vld [vmem:[#allocation5 + $0x878] sm:$0xff]
    %v1127 = vld [vmem:[#allocation5 + $0x880] sm:$0xff]
    %v1128 = vld [vmem:[#allocation5 + $0x888] sm:$0xff]
    %v1129 = vld [vmem:[#allocation5 + $0x890] sm:$0xff]
    %v1130 = vld [vmem:[#allocation5 + $0x898] sm:$0xff]
    %v1131 = vld [vmem:[#allocation5 + $0x8a0] sm:$0xff]
    %v1132 = vld [vmem:[#allocation5 + $0x8a8] sm:$0xff]
    %v1133 = vld [vmem:[#allocation5 + $0x8b0] sm:$0xff]
    %v1134 = vld [vmem:[#allocation5 + $0x8b8] sm:$0xff]
    %v1135 = vld [vmem:[#allocation5 + $0x8c0] sm:$0xff]
    %v1136 = vld [vmem:[#allocation5 + $0x8c8] sm:$0xff]
    %v1137 = vld [vmem:[#allocation5 + $0x8d0] sm:$0xff]
    %v1138 = vld [vmem:[#allocation5 + $0x8d8] sm:$0xff]
    %v1139 = vld [vmem:[#allocation5 + $0x8e0] sm:$0xff]
    %v1140 = vld [vmem:[#allocation5 + $0x8e8] sm:$0xff]
    %v1141 = vld [vmem:[#allocation5 + $0x8f0] sm:$0xff]
    %v1142 = vld [vmem:[#allocation5 + $0x8f8] sm:$0xff]
    %v1143 = vld [vmem:[#allocation5 + $0x900] sm:$0xff]
    %v1144 = vld [vmem:[#allocation5 + $0x908] sm:$0xff]
    %v1145 = vld [vmem:[#allocation5 + $0x910] sm:$0xff]
    %v1146 = vld [vmem:[#allocation5 + $0x918] sm:$0xff]
    %v1147 = vld [vmem:[#allocation5 + $0x920] sm:$0xff]
    %v1148 = vld [vmem:[#allocation5 + $0x928] sm:$0xff]
    %v1149 = vld [vmem:[#allocation5 + $0x930] sm:$0xff]
    %v1150 = vld [vmem:[#allocation5 + $0x938] sm:$0xff]
    %v1151 = vld [vmem:[#allocation5 + $0x940] sm:$0xff]
    %v1152 = vld [vmem:[#allocation5 + $0x948] sm:$0xff]
    %v1153 = vld [vmem:[#allocation5 + $0x950] sm:$0xff]
    %v1154 = vld [vmem:[#allocation5 + $0x958] sm:$0xff]
    %v1155 = vld [vmem:[#allocation5 + $0x960] sm:$0xff]
    %v1156 = vld [vmem:[#allocation5 + $0x968] sm:$0xff]
    %v1157 = vld [vmem:[#allocation5 + $0x970] sm:$0xff]
    %v1158 = vld [vmem:[#allocation5 + $0x978] sm:$0xff]
    %v1159 = vld [vmem:[#allocation5 + $0x980] sm:$0xff]
    %v1160 = vld [vmem:[#allocation5 + $0x988] sm:$0xff]
    %v1161 = vld [vmem:[#allocation5 + $0x990] sm:$0xff]
    %v1162 = vld [vmem:[#allocation5 + $0x998] sm:$0xff]
    %v1163 = vld [vmem:[#allocation5 + $0x9a0] sm:$0xff]
    %v1164 = vld [vmem:[#allocation5 + $0x9a8] sm:$0xff]
    %v1165 = vld [vmem:[#allocation5 + $0x9b0] sm:$0xff]
    %v1166 = vld [vmem:[#allocation5 + $0x9b8] sm:$0xff]
    %v1167 = vld [vmem:[#allocation5 + $0x9c0] sm:$0xff]
    %v1168 = vld [vmem:[#allocation5 + $0x9c8] sm:$0xff]
    %v1169 = vld [vmem:[#allocation5 + $0x9d0] sm:$0xff]
    %v1170 = vld [vmem:[#allocation5 + $0x9d8] sm:$0xff]
    %v1171 = vld [vmem:[#allocation5 + $0x9e0] sm:$0xff]
    %v1172 = vld [vmem:[#allocation5 + $0x9e8] sm:$0xff]
    %v1173 = vld [vmem:[#allocation5 + $0x9f0] sm:$0xff]
    %v1174 = vld [vmem:[#allocation5 + $0x9f8] sm:$0xff]
    %v1175 = vld [vmem:[#allocation5 + $0xa00] sm:$0xff]
    %v1176 = vld [vmem:[#allocation5 + $0xa08] sm:$0xff]
    %v1177 = vld [vmem:[#allocation5 + $0xa10] sm:$0xff]
    %v1178 = vld [vmem:[#allocation5 + $0xa18] sm:$0xff]
    %v1179 = vld [vmem:[#allocation5 + $0xa20] sm:$0xff]
    %v1180 = vld [vmem:[#allocation5 + $0xa28] sm:$0xff]
    %v1181 = vld [vmem:[#allocation5 + $0xa30] sm:$0xff]
    %v1182 = vld [vmem:[#allocation5 + $0xa38] sm:$0xff]
    %v1183 = vld [vmem:[#allocation5 + $0xa40] sm:$0xff]
    %v1184 = vld [vmem:[#allocation5 + $0xa48] sm:$0xff]
    %v1185 = vld [vmem:[#allocation5 + $0xa50] sm:$0xff]
    %v1186 = vld [vmem:[#allocation5 + $0xa58] sm:$0xff]
    %v1187 = vld [vmem:[#allocation5 + $0xa60] sm:$0xff]
    %v1188 = vld [vmem:[#allocation5 + $0xa68] sm:$0xff]
    %v1189 = vld [vmem:[#allocation5 + $0xa70] sm:$0xff]
    %v1190 = vld [vmem:[#allocation5 + $0xa78] sm:$0xff]
    %v1191 = vld [vmem:[#allocation5 + $0xa80] sm:$0xff]
    %v1192 = vld [vmem:[#allocation5 + $0xa88] sm:$0xff]
    %v1193 = vld [vmem:[#allocation5 + $0xa90] sm:$0xff]
    %v1194 = vld [vmem:[#allocation5 + $0xa98] sm:$0xff]
    %v1195 = vld [vmem:[#allocation5 + $0xaa0] sm:$0xff]
    %v1196 = vld [vmem:[#allocation5 + $0xaa8] sm:$0xff]
    %v1197 = vld [vmem:[#allocation5 + $0xab0] sm:$0xff]
    %v1198 = vld [vmem:[#allocation5 + $0xab8] sm:$0xff]
    %v1199 = vld [vmem:[#allocation5 + $0xac0] sm:$0xff]
    %v1200 = vld [vmem:[#allocation5 + $0xac8] sm:$0xff]
    %v1201 = vld [vmem:[#allocation5 + $0xad0] sm:$0xff]
    %v1202 = vld [vmem:[#allocation5 + $0xad8] sm:$0xff]
    %v1203 = vld [vmem:[#allocation5 + $0xae0] sm:$0xff]
    %v1204 = vld [vmem:[#allocation5 + $0xae8] sm:$0xff]
    %v1205 = vld [vmem:[#allocation5 + $0xaf0] sm:$0xff]
    %v1206 = vld [vmem:[#allocation5 + $0xaf8] sm:$0xff]
    %v1207 = vld [vmem:[#allocation5 + $0xb00] sm:$0xff]
    %v1208 = vld [vmem:[#allocation5 + $0xb08] sm:$0xff]
    %v1209 = vld [vmem:[#allocation5 + $0xb10] sm:$0xff]
    %v1210 = vld [vmem:[#allocation5 + $0xb18] sm:$0xff]
    %v1211 = vld [vmem:[#allocation5 + $0xb20] sm:$0xff]
    %v1212 = vld [vmem:[#allocation5 + $0xb28] sm:$0xff]
    %v1213 = vld [vmem:[#allocation5 + $0xb30] sm:$0xff]
    %v1214 = vld [vmem:[#allocation5 + $0xb38] sm:$0xff]
    %v1215 = vld [vmem:[#allocation5 + $0xb40] sm:$0xff]
    %v1216 = vld [vmem:[#allocation5 + $0xb48] sm:$0xff]
    %v1217 = vld [vmem:[#allocation5 + $0xb50] sm:$0xff]
    %v1218 = vld [vmem:[#allocation5 + $0xb58] sm:$0xff]
    %v1219 = vld [vmem:[#allocation5 + $0xb60] sm:$0xff]
    %v1220 = vld [vmem:[#allocation5 + $0xb68] sm:$0xff]
    %v1221 = vld [vmem:[#allocation5 + $0xb70] sm:$0xff]
    %v1222 = vld [vmem:[#allocation5 + $0xb78] sm:$0xff]
    %v1223 = vld [vmem:[#allocation5 + $0xb80] sm:$0xff]
    %v1224 = vld [vmem:[#allocation5 + $0xb88] sm:$0xff]
    %v1225 = vld [vmem:[#allocation5 + $0xb90] sm:$0xff]
    %v1226 = vld [vmem:[#allocation5 + $0xb98] sm:$0xff]
    %v1227 = vld [vmem:[#allocation5 + $0xba0] sm:$0xff]
    %v1228 = vld [vmem:[#allocation5 + $0xba8] sm:$0xff]
    %v1229 = vld [vmem:[#allocation5 + $0xbb0] sm:$0xff]
    %v1230 = vld [vmem:[#allocation5 + $0xbb8] sm:$0xff]
    %v1231 = vld [vmem:[#allocation5 + $0xbc0] sm:$0xff]
    %v1232 = vld [vmem:[#allocation5 + $0xbc8] sm:$0xff]
    %v1233 = vld [vmem:[#allocation5 + $0xbd0] sm:$0xff]
    %v1234 = vld [vmem:[#allocation5 + $0xbd8] sm:$0xff]
    %v1235 = vld [vmem:[#allocation5 + $0xbe0] sm:$0xff]
    %v1236 = vld [vmem:[#allocation5 + $0xbe8] sm:$0xff]
    %v1237 = vld [vmem:[#allocation5 + $0xbf0] sm:$0xff]
    %v1238 = vld [vmem:[#allocation5 + $0xbf8] sm:$0xff]
    %v1239 = vld [vmem:[#allocation5 + $0xc00] sm:$0xff]
    %v1240 = vld [vmem:[#allocation5 + $0xc08] sm:$0xff]
    %v1241 = vld [vmem:[#allocation5 + $0xc10] sm:$0xff]
    %v1242 = vld [vmem:[#allocation5 + $0xc18] sm:$0xff]
    %v1243 = vld [vmem:[#allocation5 + $0xc20] sm:$0xff]
    %v1244 = vld [vmem:[#allocation5 + $0xc28] sm:$0xff]
    %v1245 = vld [vmem:[#allocation5 + $0xc30] sm:$0xff]
    %v1246 = vld [vmem:[#allocation5 + $0xc38] sm:$0xff]
    %v1247 = vld [vmem:[#allocation5 + $0xc40] sm:$0xff]
    %v1248 = vld [vmem:[#allocation5 + $0xc48] sm:$0xff]
    %v1249 = vld [vmem:[#allocation5 + $0xc50] sm:$0xff]
    %v1250 = vld [vmem:[#allocation5 + $0xc58] sm:$0xff]
    %v1251 = vld [vmem:[#allocation5 + $0xc60] sm:$0xff]
    %v1252 = vld [vmem:[#allocation5 + $0xc68] sm:$0xff]
    %v1253 = vld [vmem:[#allocation5 + $0xc70] sm:$0xff]
    %v1254 = vld [vmem:[#allocation5 + $0xc78] sm:$0xff]
    %v1255 = vld [vmem:[#allocation5 + $0xc80] sm:$0xff]
    %v1256 = vld [vmem:[#allocation5 + $0xc88] sm:$0xff]
    %v1257 = vld [vmem:[#allocation5 + $0xc90] sm:$0xff]
    %v1258 = vld [vmem:[#allocation5 + $0xc98] sm:$0xff]
    %v1259 = vld [vmem:[#allocation5 + $0xca0] sm:$0xff]
    %v1260 = vld [vmem:[#allocation5 + $0xca8] sm:$0xff]
    %v1261 = vld [vmem:[#allocation5 + $0xcb0] sm:$0xff]
    %v1262 = vld [vmem:[#allocation5 + $0xcb8] sm:$0xff]
    %v1263 = vld [vmem:[#allocation5 + $0xcc0] sm:$0xff]
    %v1264 = vld [vmem:[#allocation5 + $0xcc8] sm:$0xff]
    %v1265 = vld [vmem:[#allocation5 + $0xcd0] sm:$0xff]
    %v1266 = vld [vmem:[#allocation5 + $0xcd8] sm:$0xff]
    %v1267 = vld [vmem:[#allocation5 + $0xce0] sm:$0xff]
    %v1268 = vld [vmem:[#allocation5 + $0xce8] sm:$0xff]
    %v1269 = vld [vmem:[#allocation5 + $0xcf0] sm:$0xff]
    %v1270 = vld [vmem:[#allocation5 + $0xcf8] sm:$0xff]
    %v1271 = vld [vmem:[#allocation5 + $0xd00] sm:$0xff]
    %v1272 = vld [vmem:[#allocation5 + $0xd08] sm:$0xff]
    %v1273 = vld [vmem:[#allocation5 + $0xd10] sm:$0xff]
    %v1274 = vld [vmem:[#allocation5 + $0xd18] sm:$0xff]
    %v1275 = vld [vmem:[#allocation5 + $0xd20] sm:$0xff]
    %v1276 = vld [vmem:[#allocation5 + $0xd28] sm:$0xff]
    %v1277 = vld [vmem:[#allocation5 + $0xd30] sm:$0xff]
    %v1278 = vld [vmem:[#allocation5 + $0xd38] sm:$0xff]
    %v1279 = vld [vmem:[#allocation5 + $0xd40] sm:$0xff]
    %v1280 = vld [vmem:[#allocation5 + $0xd48] sm:$0xff]
    %v1281 = vld [vmem:[#allocation5 + $0xd50] sm:$0xff]
    %v1282 = vld [vmem:[#allocation5 + $0xd58] sm:$0xff]
    %v1283 = vld [vmem:[#allocation5 + $0xd60] sm:$0xff]
    %v1284 = vld [vmem:[#allocation5 + $0xd68] sm:$0xff]
    %v1285 = vld [vmem:[#allocation5 + $0xd70] sm:$0xff]
    %v1286 = vld [vmem:[#allocation5 + $0xd78] sm:$0xff]
    %v1287 = vld [vmem:[#allocation5 + $0xd80] sm:$0xff]
    %v1288 = vld [vmem:[#allocation5 + $0xd88] sm:$0xff]
    %v1289 = vld [vmem:[#allocation5 + $0xd90] sm:$0xff]
    %v1290 = vld [vmem:[#allocation5 + $0xd98] sm:$0xff]
    %v1291 = vld [vmem:[#allocation5 + $0xda0] sm:$0xff]
    %v1292 = vld [vmem:[#allocation5 + $0xda8] sm:$0xff]
    %v1293 = vld [vmem:[#allocation5 + $0xdb0] sm:$0xff]
    %v1294 = vld [vmem:[#allocation5 + $0xdb8] sm:$0xff]
    %v1295 = vld [vmem:[#allocation5 + $0xdc0] sm:$0xff]
    %v1296 = vld [vmem:[#allocation5 + $0xdc8] sm:$0xff]
    %v1297 = vld [vmem:[#allocation5 + $0xdd0] sm:$0xff]
    %v1298 = vld [vmem:[#allocation5 + $0xdd8] sm:$0xff]
    %v1299 = vld [vmem:[#allocation5 + $0xde0] sm:$0xff]
    %v1300 = vld [vmem:[#allocation5 + $0xde8] sm:$0xff]
    %v1301 = vld [vmem:[#allocation5 + $0xdf0] sm:$0xff]
    %v1302 = vld [vmem:[#allocation5 + $0xdf8] sm:$0xff]
    %v1303 = vld [vmem:[#allocation5 + $0xe00] sm:$0xff]
    %v1304 = vld [vmem:[#allocation5 + $0xe08] sm:$0xff]
    %v1305 = vld [vmem:[#allocation5 + $0xe10] sm:$0xff]
    %v1306 = vld [vmem:[#allocation5 + $0xe18] sm:$0xff]
    %v1307 = vld [vmem:[#allocation5 + $0xe20] sm:$0xff]
    %v1308 = vld [vmem:[#allocation5 + $0xe28] sm:$0xff]
    %v1309 = vld [vmem:[#allocation5 + $0xe30] sm:$0xff]
    %v1310 = vld [vmem:[#allocation5 + $0xe38] sm:$0xff]
    %v1311 = vld [vmem:[#allocation5 + $0xe40] sm:$0xff]
    %v1312 = vld [vmem:[#allocation5 + $0xe48] sm:$0xff]
    %v1313 = vld [vmem:[#allocation5 + $0xe50] sm:$0xff]
    %v1314 = vld [vmem:[#allocation5 + $0xe58] sm:$0xff]
    %v1315 = vld [vmem:[#allocation5 + $0xe60] sm:$0xff]
    %v1316 = vld [vmem:[#allocation5 + $0xe68] sm:$0xff]
    %v1317 = vld [vmem:[#allocation5 + $0xe70] sm:$0xff]
    %v1318 = vld [vmem:[#allocation5 + $0xe78] sm:$0xff]
    %v1319 = vld [vmem:[#allocation5 + $0xe80] sm:$0xff]
    %v1320 = vld [vmem:[#allocation5 + $0xe88] sm:$0xff]
    %v1321 = vld [vmem:[#allocation5 + $0xe90] sm:$0xff]
    %v1322 = vld [vmem:[#allocation5 + $0xe98] sm:$0xff]
    %v1323 = vld [vmem:[#allocation5 + $0xea0] sm:$0xff]
    %v1324 = vld [vmem:[#allocation5 + $0xea8] sm:$0xff]
    %v1325 = vld [vmem:[#allocation5 + $0xeb0] sm:$0xff]
    %v1326 = vld [vmem:[#allocation5 + $0xeb8] sm:$0xff]
    %v1327 = vld [vmem:[#allocation5 + $0xec0] sm:$0xff]
    %v1328 = vld [vmem:[#allocation5 + $0xec8] sm:$0xff]
    %v1329 = vld [vmem:[#allocation5 + $0xed0] sm:$0xff]
    %v1330 = vld [vmem:[#allocation5 + $0xed8] sm:$0xff]
    %v1331 = vld [vmem:[#allocation5 + $0xee0] sm:$0xff]
    %v1332 = vld [vmem:[#allocation5 + $0xee8] sm:$0xff]
    %v1333 = vld [vmem:[#allocation5 + $0xef0] sm:$0xff]
    %v1334 = vld [vmem:[#allocation5 + $0xef8] sm:$0xff]
    %v1335 = vld [vmem:[#allocation5 + $0xf00] sm:$0xff]
    %v1336 = vld [vmem:[#allocation5 + $0xf08] sm:$0xff]
    %v1337 = vld [vmem:[#allocation5 + $0xf10] sm:$0xff]
    %v1338 = vld [vmem:[#allocation5 + $0xf18] sm:$0xff]
    %v1339 = vld [vmem:[#allocation5 + $0xf20] sm:$0xff]
    %v1340 = vld [vmem:[#allocation5 + $0xf28] sm:$0xff]
    %v1341 = vld [vmem:[#allocation5 + $0xf30] sm:$0xff]
    %v1342 = vld [vmem:[#allocation5 + $0xf38] sm:$0xff]
    %v1343 = vld [vmem:[#allocation5 + $0xf40] sm:$0xff]
    %v1344 = vld [vmem:[#allocation5 + $0xf48] sm:$0xff]
    %v1345 = vld [vmem:[#allocation5 + $0xf50] sm:$0xff]
    %v1346 = vld [vmem:[#allocation5 + $0xf58] sm:$0xff]
    %v1347 = vld [vmem:[#allocation5 + $0xf60] sm:$0xff]
    %v1348 = vld [vmem:[#allocation5 + $0xf68] sm:$0xff]
    %v1349 = vld [vmem:[#allocation5 + $0xf70] sm:$0xff]
    %v1350 = vld [vmem:[#allocation5 + $0xf78] sm:$0xff]
    %v1351 = vld [vmem:[#allocation5 + $0xf80] sm:$0xff]
    %v1352 = vld [vmem:[#allocation5 + $0xf88] sm:$0xff]
    %v1353 = vld [vmem:[#allocation5 + $0xf90] sm:$0xff]
    %v1354 = vld [vmem:[#allocation5 + $0xf98] sm:$0xff]
    %v1355 = vld [vmem:[#allocation5 + $0xfa0] sm:$0xff]
    %v1356 = vld [vmem:[#allocation5 + $0xfa8] sm:$0xff]
    %v1357 = vld [vmem:[#allocation5 + $0xfb0] sm:$0xff]
    %v1358 = vld [vmem:[#allocation5 + $0xfb8] sm:$0xff]
    %v1359 = vld [vmem:[#allocation5 + $0xfc0] sm:$0xff]
    %v1360 = vld [vmem:[#allocation5 + $0xfc8] sm:$0xff]
    %v1361 = vld [vmem:[#allocation5 + $0xfd0] sm:$0xff]
    %v1362 = vld [vmem:[#allocation5 + $0xfd8] sm:$0xff]
    %v1363 = vld [vmem:[#allocation5 + $0xfe0] sm:$0xff]
    %v1364 = vld [vmem:[#allocation5 + $0xfe8] sm:$0xff]
    %v1365 = vld [vmem:[#allocation5 + $0xff0] sm:$0xff]
    %v1366 = vld [vmem:[#allocation5 + $0xff8] sm:$0xff]
    %v1879 = vunpack.c.l.b16 %v855
    %v1880 = vunpack.c.h.b16 %v855
    %v1881 = vunpack.c.l.b16 %v856
    %v1882 = vunpack.c.h.b16 %v856
    %v1883 = vunpack.c.l.b16 %v857
    %v1884 = vunpack.c.h.b16 %v857
    %v1885 = vunpack.c.l.b16 %v858
    %v1886 = vunpack.c.h.b16 %v858
    %v1887 = vunpack.c.l.b16 %v859
    %v1888 = vunpack.c.h.b16 %v859
    %v1889 = vunpack.c.l.b16 %v860
    %v1890 = vunpack.c.h.b16 %v860
    %v1891 = vunpack.c.l.b16 %v861
    %v1892 = vunpack.c.h.b16 %v861
    %v1893 = vunpack.c.l.b16 %v862
    %v1894 = vunpack.c.h.b16 %v862
    %v1895 = vunpack.c.l.b16 %v863
    %v1896 = vunpack.c.h.b16 %v863
    %v1897 = vunpack.c.l.b16 %v864
    %v1898 = vunpack.c.h.b16 %v864
    %v1899 = vunpack.c.l.b16 %v865
    %v1900 = vunpack.c.h.b16 %v865
    %v1901 = vunpack.c.l.b16 %v866
    %v1902 = vunpack.c.h.b16 %v866
    %v1903 = vunpack.c.l.b16 %v867
    %v1904 = vunpack.c.h.b16 %v867
    %v1905 = vunpack.c.l.b16 %v868
    %v1906 = vunpack.c.h.b16 %v868
    %v1907 = vunpack.c.l.b16 %v869
    %v1908 = vunpack.c.h.b16 %v869
    %v1909 = vunpack.c.l.b16 %v870
    %v1910 = vunpack.c.h.b16 %v870
    %v1911 = vunpack.c.l.b16 %v871
    %v1912 = vunpack.c.h.b16 %v871
    %v1913 = vunpack.c.l.b16 %v872
    %v1914 = vunpack.c.h.b16 %v872
    %v1915 = vunpack.c.l.b16 %v873
    %v1916 = vunpack.c.h.b16 %v873
    %v1917 = vunpack.c.l.b16 %v874
    %v1918 = vunpack.c.h.b16 %v874
    %v1919 = vunpack.c.l.b16 %v875
    %v1920 = vunpack.c.h.b16 %v875
    %v1921 = vunpack.c.l.b16 %v876
    %v1922 = vunpack.c.h.b16 %v876
    %v1923 = vunpack.c.l.b16 %v877
    %v1924 = vunpack.c.h.b16 %v877
    %v1925 = vunpack.c.l.b16 %v878
    %v1926 = vunpack.c.h.b16 %v878
    %v1927 = vunpack.c.l.b16 %v879
    %v1928 = vunpack.c.h.b16 %v879
    %v1929 = vunpack.c.l.b16 %v880
    %v1930 = vunpack.c.h.b16 %v880
    %v1931 = vunpack.c.l.b16 %v881
    %v1932 = vunpack.c.h.b16 %v881
    %v1933 = vunpack.c.l.b16 %v882
    %v1934 = vunpack.c.h.b16 %v882
    %v1935 = vunpack.c.l.b16 %v883
    %v1936 = vunpack.c.h.b16 %v883
    %v1937 = vunpack.c.l.b16 %v884
    %v1938 = vunpack.c.h.b16 %v884
    %v1939 = vunpack.c.l.b16 %v885
    %v1940 = vunpack.c.h.b16 %v885
    %v1941 = vunpack.c.l.b16 %v886
    %v1942 = vunpack.c.h.b16 %v886
    %v1943 = vunpack.c.l.b16 %v887
    %v1944 = vunpack.c.h.b16 %v887
    %v1945 = vunpack.c.l.b16 %v888
    %v1946 = vunpack.c.h.b16 %v888
    %v1947 = vunpack.c.l.b16 %v889
    %v1948 = vunpack.c.h.b16 %v889
    %v1949 = vunpack.c.l.b16 %v890
    %v1950 = vunpack.c.h.b16 %v890
    %v1951 = vunpack.c.l.b16 %v891
    %v1952 = vunpack.c.h.b16 %v891
    %v1953 = vunpack.c.l.b16 %v892
    %v1954 = vunpack.c.h.b16 %v892
    %v1955 = vunpack.c.l.b16 %v893
    %v1956 = vunpack.c.h.b16 %v893
    %v1957 = vunpack.c.l.b16 %v894
    %v1958 = vunpack.c.h.b16 %v894
    %v1959 = vunpack.c.l.b16 %v895
    %v1960 = vunpack.c.h.b16 %v895
    %v1961 = vunpack.c.l.b16 %v896
    %v1962 = vunpack.c.h.b16 %v896
    %v1963 = vunpack.c.l.b16 %v897
    %v1964 = vunpack.c.h.b16 %v897
    %v1965 = vunpack.c.l.b16 %v898
    %v1966 = vunpack.c.h.b16 %v898
    %v1967 = vunpack.c.l.b16 %v899
    %v1968 = vunpack.c.h.b16 %v899
    %v1969 = vunpack.c.l.b16 %v900
    %v1970 = vunpack.c.h.b16 %v900
    %v1971 = vunpack.c.l.b16 %v901
    %v1972 = vunpack.c.h.b16 %v901
    %v1973 = vunpack.c.l.b16 %v902
    %v1974 = vunpack.c.h.b16 %v902
    %v1975 = vunpack.c.l.b16 %v903
    %v1976 = vunpack.c.h.b16 %v903
    %v1977 = vunpack.c.l.b16 %v904
    %v1978 = vunpack.c.h.b16 %v904
    %v1979 = vunpack.c.l.b16 %v905
    %v1980 = vunpack.c.h.b16 %v905
    %v1981 = vunpack.c.l.b16 %v906
    %v1982 = vunpack.c.h.b16 %v906
    %v1983 = vunpack.c.l.b16 %v907
    %v1984 = vunpack.c.h.b16 %v907
    %v1985 = vunpack.c.l.b16 %v908
    %v1986 = vunpack.c.h.b16 %v908
    %v1987 = vunpack.c.l.b16 %v909
    %v1988 = vunpack.c.h.b16 %v909
    %v1989 = vunpack.c.l.b16 %v910
    %v1990 = vunpack.c.h.b16 %v910
    %v1991 = vunpack.c.l.b16 %v911
    %v1992 = vunpack.c.h.b16 %v911
    %v1993 = vunpack.c.l.b16 %v912
    %v1994 = vunpack.c.h.b16 %v912
    %v1995 = vunpack.c.l.b16 %v913
    %v1996 = vunpack.c.h.b16 %v913
    %v1997 = vunpack.c.l.b16 %v914
    %v1998 = vunpack.c.h.b16 %v914
    %v1999 = vunpack.c.l.b16 %v915
    %v2000 = vunpack.c.h.b16 %v915
    %v2001 = vunpack.c.l.b16 %v916
    %v2002 = vunpack.c.h.b16 %v916
    %v2003 = vunpack.c.l.b16 %v917
    %v2004 = vunpack.c.h.b16 %v917
    %v2005 = vunpack.c.l.b16 %v918
    %v2006 = vunpack.c.h.b16 %v918
    %v2007 = vunpack.c.l.b16 %v919
    %v2008 = vunpack.c.h.b16 %v919
    %v2009 = vunpack.c.l.b16 %v920
    %v2010 = vunpack.c.h.b16 %v920
    %v2011 = vunpack.c.l.b16 %v921
    %v2012 = vunpack.c.h.b16 %v921
    %v2013 = vunpack.c.l.b16 %v922
    %v2014 = vunpack.c.h.b16 %v922
    %v2015 = vunpack.c.l.b16 %v923
    %v2016 = vunpack.c.h.b16 %v923
    %v2017 = vunpack.c.l.b16 %v924
    %v2018 = vunpack.c.h.b16 %v924
    %v2019 = vunpack.c.l.b16 %v925
    %v2020 = vunpack.c.h.b16 %v925
    %v2021 = vunpack.c.l.b16 %v926
    %v2022 = vunpack.c.h.b16 %v926
    %v2023 = vunpack.c.l.b16 %v927
    %v2024 = vunpack.c.h.b16 %v927
    %v2025 = vunpack.c.l.b16 %v928
    %v2026 = vunpack.c.h.b16 %v928
    %v2027 = vunpack.c.l.b16 %v929
    %v2028 = vunpack.c.h.b16 %v929
    %v2029 = vunpack.c.l.b16 %v930
    %v2030 = vunpack.c.h.b16 %v930
    %v2031 = vunpack.c.l.b16 %v931
    %v2032 = vunpack.c.h.b16 %v931
    %v2033 = vunpack.c.l.b16 %v932
    %v2034 = vunpack.c.h.b16 %v932
    %v2035 = vunpack.c.l.b16 %v933
    %v2036 = vunpack.c.h.b16 %v933
    %v2037 = vunpack.c.l.b16 %v934
    %v2038 = vunpack.c.h.b16 %v934
    %v2039 = vunpack.c.l.b16 %v935
    %v2040 = vunpack.c.h.b16 %v935
    %v2041 = vunpack.c.l.b16 %v936
    %v2042 = vunpack.c.h.b16 %v936
    %v2043 = vunpack.c.l.b16 %v937
    %v2044 = vunpack.c.h.b16 %v937
    %v2045 = vunpack.c.l.b16 %v938
    %v2046 = vunpack.c.h.b16 %v938
    %v2047 = vunpack.c.l.b16 %v939
    %v2048 = vunpack.c.h.b16 %v939
    %v2049 = vunpack.c.l.b16 %v940
    %v2050 = vunpack.c.h.b16 %v940
    %v2051 = vunpack.c.l.b16 %v941
    %v2052 = vunpack.c.h.b16 %v941
    %v2053 = vunpack.c.l.b16 %v942
    %v2054 = vunpack.c.h.b16 %v942
    %v2055 = vunpack.c.l.b16 %v943
    %v2056 = vunpack.c.h.b16 %v943
    %v2057 = vunpack.c.l.b16 %v944
    %v2058 = vunpack.c.h.b16 %v944
    %v2059 = vunpack.c.l.b16 %v945
    %v2060 = vunpack.c.h.b16 %v945
    %v2061 = vunpack.c.l.b16 %v946
    %v2062 = vunpack.c.h.b16 %v946
    %v2063 = vunpack.c.l.b16 %v947
    %v2064 = vunpack.c.h.b16 %v947
    %v2065 = vunpack.c.l.b16 %v948
    %v2066 = vunpack.c.h.b16 %v948
    %v2067 = vunpack.c.l.b16 %v949
    %v2068 = vunpack.c.h.b16 %v949
    %v2069 = vunpack.c.l.b16 %v950
    %v2070 = vunpack.c.h.b16 %v950
    %v2071 = vunpack.c.l.b16 %v951
    %v2072 = vunpack.c.h.b16 %v951
    %v2073 = vunpack.c.l.b16 %v952
    %v2074 = vunpack.c.h.b16 %v952
    %v2075 = vunpack.c.l.b16 %v953
    %v2076 = vunpack.c.h.b16 %v953
    %v2077 = vunpack.c.l.b16 %v954
    %v2078 = vunpack.c.h.b16 %v954
    %v2079 = vunpack.c.l.b16 %v955
    %v2080 = vunpack.c.h.b16 %v955
    %v2081 = vunpack.c.l.b16 %v956
    %v2082 = vunpack.c.h.b16 %v956
    %v2083 = vunpack.c.l.b16 %v957
    %v2084 = vunpack.c.h.b16 %v957
    %v2085 = vunpack.c.l.b16 %v958
    %v2086 = vunpack.c.h.b16 %v958
    %v2087 = vunpack.c.l.b16 %v959
    %v2088 = vunpack.c.h.b16 %v959
    %v2089 = vunpack.c.l.b16 %v960
    %v2090 = vunpack.c.h.b16 %v960
    %v2091 = vunpack.c.l.b16 %v961
    %v2092 = vunpack.c.h.b16 %v961
    %v2093 = vunpack.c.l.b16 %v962
    %v2094 = vunpack.c.h.b16 %v962
    %v2095 = vunpack.c.l.b16 %v963
    %v2096 = vunpack.c.h.b16 %v963
    %v2097 = vunpack.c.l.b16 %v964
    %v2098 = vunpack.c.h.b16 %v964
    %v2099 = vunpack.c.l.b16 %v965
    %v2100 = vunpack.c.h.b16 %v965
    %v2101 = vunpack.c.l.b16 %v966
    %v2102 = vunpack.c.h.b16 %v966
    %v2103 = vunpack.c.l.b16 %v967
    %v2104 = vunpack.c.h.b16 %v967
    %v2105 = vunpack.c.l.b16 %v968
    %v2106 = vunpack.c.h.b16 %v968
    %v2107 = vunpack.c.l.b16 %v969
    %v2108 = vunpack.c.h.b16 %v969
    %v2109 = vunpack.c.l.b16 %v970
    %v2110 = vunpack.c.h.b16 %v970
    %v2111 = vunpack.c.l.b16 %v971
    %v2112 = vunpack.c.h.b16 %v971
    %v2113 = vunpack.c.l.b16 %v972
    %v2114 = vunpack.c.h.b16 %v972
    %v2115 = vunpack.c.l.b16 %v973
    %v2116 = vunpack.c.h.b16 %v973
    %v2117 = vunpack.c.l.b16 %v974
    %v2118 = vunpack.c.h.b16 %v974
    %v2119 = vunpack.c.l.b16 %v975
    %v2120 = vunpack.c.h.b16 %v975
    %v2121 = vunpack.c.l.b16 %v976
    %v2122 = vunpack.c.h.b16 %v976
    %v2123 = vunpack.c.l.b16 %v977
    %v2124 = vunpack.c.h.b16 %v977
    %v2125 = vunpack.c.l.b16 %v978
    %v2126 = vunpack.c.h.b16 %v978
    %v2127 = vunpack.c.l.b16 %v979
    %v2128 = vunpack.c.h.b16 %v979
    %v2129 = vunpack.c.l.b16 %v980
    %v2130 = vunpack.c.h.b16 %v980
    %v2131 = vunpack.c.l.b16 %v981
    %v2132 = vunpack.c.h.b16 %v981
    %v2133 = vunpack.c.l.b16 %v982
    %v2134 = vunpack.c.h.b16 %v982
    %v2135 = vunpack.c.l.b16 %v983
    %v2136 = vunpack.c.h.b16 %v983
    %v2137 = vunpack.c.l.b16 %v984
    %v2138 = vunpack.c.h.b16 %v984
    %v2139 = vunpack.c.l.b16 %v985
    %v2140 = vunpack.c.h.b16 %v985
    %v2141 = vunpack.c.l.b16 %v986
    %v2142 = vunpack.c.h.b16 %v986
    %v2143 = vunpack.c.l.b16 %v987
    %v2144 = vunpack.c.h.b16 %v987
    %v2145 = vunpack.c.l.b16 %v988
    %v2146 = vunpack.c.h.b16 %v988
    %v2147 = vunpack.c.l.b16 %v989
    %v2148 = vunpack.c.h.b16 %v989
    %v2149 = vunpack.c.l.b16 %v990
    %v2150 = vunpack.c.h.b16 %v990
    %v2151 = vunpack.c.l.b16 %v991
    %v2152 = vunpack.c.h.b16 %v991
    %v2153 = vunpack.c.l.b16 %v992
    %v2154 = vunpack.c.h.b16 %v992
    %v2155 = vunpack.c.l.b16 %v993
    %v2156 = vunpack.c.h.b16 %v993
    %v2157 = vunpack.c.l.b16 %v994
    %v2158 = vunpack.c.h.b16 %v994
    %v2159 = vunpack.c.l.b16 %v995
    %v2160 = vunpack.c.h.b16 %v995
    %v2161 = vunpack.c.l.b16 %v996
    %v2162 = vunpack.c.h.b16 %v996
    %v2163 = vunpack.c.l.b16 %v997
    %v2164 = vunpack.c.h.b16 %v997
    %v2165 = vunpack.c.l.b16 %v998
    %v2166 = vunpack.c.h.b16 %v998
    %v2167 = vunpack.c.l.b16 %v999
    %v2168 = vunpack.c.h.b16 %v999
    %v2169 = vunpack.c.l.b16 %v1000
    %v2170 = vunpack.c.h.b16 %v1000
    %v2171 = vunpack.c.l.b16 %v1001
    %v2172 = vunpack.c.h.b16 %v1001
    %v2173 = vunpack.c.l.b16 %v1002
    %v2174 = vunpack.c.h.b16 %v1002
    %v2175 = vunpack.c.l.b16 %v1003
    %v2176 = vunpack.c.h.b16 %v1003
    %v2177 = vunpack.c.l.b16 %v1004
    %v2178 = vunpack.c.h.b16 %v1004
    %v2179 = vunpack.c.l.b16 %v1005
    %v2180 = vunpack.c.h.b16 %v1005
    %v2181 = vunpack.c.l.b16 %v1006
    %v2182 = vunpack.c.h.b16 %v1006
    %v2183 = vunpack.c.l.b16 %v1007
    %v2184 = vunpack.c.h.b16 %v1007
    %v2185 = vunpack.c.l.b16 %v1008
    %v2186 = vunpack.c.h.b16 %v1008
    %v2187 = vunpack.c.l.b16 %v1009
    %v2188 = vunpack.c.h.b16 %v1009
    %v2189 = vunpack.c.l.b16 %v1010
    %v2190 = vunpack.c.h.b16 %v1010
    %v2191 = vunpack.c.l.b16 %v1011
    %v2192 = vunpack.c.h.b16 %v1011
    %v2193 = vunpack.c.l.b16 %v1012
    %v2194 = vunpack.c.h.b16 %v1012
    %v2195 = vunpack.c.l.b16 %v1013
    %v2196 = vunpack.c.h.b16 %v1013
    %v2197 = vunpack.c.l.b16 %v1014
    %v2198 = vunpack.c.h.b16 %v1014
    %v2199 = vunpack.c.l.b16 %v1015
    %v2200 = vunpack.c.h.b16 %v1015
    %v2201 = vunpack.c.l.b16 %v1016
    %v2202 = vunpack.c.h.b16 %v1016
    %v2203 = vunpack.c.l.b16 %v1017
    %v2204 = vunpack.c.h.b16 %v1017
    %v2205 = vunpack.c.l.b16 %v1018
    %v2206 = vunpack.c.h.b16 %v1018
    %v2207 = vunpack.c.l.b16 %v1019
    %v2208 = vunpack.c.h.b16 %v1019
    %v2209 = vunpack.c.l.b16 %v1020
    %v2210 = vunpack.c.h.b16 %v1020
    %v2211 = vunpack.c.l.b16 %v1021
    %v2212 = vunpack.c.h.b16 %v1021
    %v2213 = vunpack.c.l.b16 %v1022
    %v2214 = vunpack.c.h.b16 %v1022
    %v2215 = vunpack.c.l.b16 %v1023
    %v2216 = vunpack.c.h.b16 %v1023
    %v2217 = vunpack.c.l.b16 %v1024
    %v2218 = vunpack.c.h.b16 %v1024
    %v2219 = vunpack.c.l.b16 %v1025
    %v2220 = vunpack.c.h.b16 %v1025
    %v2221 = vunpack.c.l.b16 %v1026
    %v2222 = vunpack.c.h.b16 %v1026
    %v2223 = vunpack.c.l.b16 %v1027
    %v2224 = vunpack.c.h.b16 %v1027
    %v2225 = vunpack.c.l.b16 %v1028
    %v2226 = vunpack.c.h.b16 %v1028
    %v2227 = vunpack.c.l.b16 %v1029
    %v2228 = vunpack.c.h.b16 %v1029
    %v2229 = vunpack.c.l.b16 %v1030
    %v2230 = vunpack.c.h.b16 %v1030
    %v2231 = vunpack.c.l.b16 %v1031
    %v2232 = vunpack.c.h.b16 %v1031
    %v2233 = vunpack.c.l.b16 %v1032
    %v2234 = vunpack.c.h.b16 %v1032
    %v2235 = vunpack.c.l.b16 %v1033
    %v2236 = vunpack.c.h.b16 %v1033
    %v2237 = vunpack.c.l.b16 %v1034
    %v2238 = vunpack.c.h.b16 %v1034
    %v2239 = vunpack.c.l.b16 %v1035
    %v2240 = vunpack.c.h.b16 %v1035
    %v2241 = vunpack.c.l.b16 %v1036
    %v2242 = vunpack.c.h.b16 %v1036
    %v2243 = vunpack.c.l.b16 %v1037
    %v2244 = vunpack.c.h.b16 %v1037
    %v2245 = vunpack.c.l.b16 %v1038
    %v2246 = vunpack.c.h.b16 %v1038
    %v2247 = vunpack.c.l.b16 %v1039
    %v2248 = vunpack.c.h.b16 %v1039
    %v2249 = vunpack.c.l.b16 %v1040
    %v2250 = vunpack.c.h.b16 %v1040
    %v2251 = vunpack.c.l.b16 %v1041
    %v2252 = vunpack.c.h.b16 %v1041
    %v2253 = vunpack.c.l.b16 %v1042
    %v2254 = vunpack.c.h.b16 %v1042
    %v2255 = vunpack.c.l.b16 %v1043
    %v2256 = vunpack.c.h.b16 %v1043
    %v2257 = vunpack.c.l.b16 %v1044
    %v2258 = vunpack.c.h.b16 %v1044
    %v2259 = vunpack.c.l.b16 %v1045
    %v2260 = vunpack.c.h.b16 %v1045
    %v2261 = vunpack.c.l.b16 %v1046
    %v2262 = vunpack.c.h.b16 %v1046
    %v2263 = vunpack.c.l.b16 %v1047
    %v2264 = vunpack.c.h.b16 %v1047
    %v2265 = vunpack.c.l.b16 %v1048
    %v2266 = vunpack.c.h.b16 %v1048
    %v2267 = vunpack.c.l.b16 %v1049
    %v2268 = vunpack.c.h.b16 %v1049
    %v2269 = vunpack.c.l.b16 %v1050
    %v2270 = vunpack.c.h.b16 %v1050
    %v2271 = vunpack.c.l.b16 %v1051
    %v2272 = vunpack.c.h.b16 %v1051
    %v2273 = vunpack.c.l.b16 %v1052
    %v2274 = vunpack.c.h.b16 %v1052
    %v2275 = vunpack.c.l.b16 %v1053
    %v2276 = vunpack.c.h.b16 %v1053
    %v2277 = vunpack.c.l.b16 %v1054
    %v2278 = vunpack.c.h.b16 %v1054
    %v2279 = vunpack.c.l.b16 %v1055
    %v2280 = vunpack.c.h.b16 %v1055
    %v2281 = vunpack.c.l.b16 %v1056
    %v2282 = vunpack.c.h.b16 %v1056
    %v2283 = vunpack.c.l.b16 %v1057
    %v2284 = vunpack.c.h.b16 %v1057
    %v2285 = vunpack.c.l.b16 %v1058
    %v2286 = vunpack.c.h.b16 %v1058
    %v2287 = vunpack.c.l.b16 %v1059
    %v2288 = vunpack.c.h.b16 %v1059
    %v2289 = vunpack.c.l.b16 %v1060
    %v2290 = vunpack.c.h.b16 %v1060
    %v2291 = vunpack.c.l.b16 %v1061
    %v2292 = vunpack.c.h.b16 %v1061
    %v2293 = vunpack.c.l.b16 %v1062
    %v2294 = vunpack.c.h.b16 %v1062
    %v2295 = vunpack.c.l.b16 %v1063
    %v2296 = vunpack.c.h.b16 %v1063
    %v2297 = vunpack.c.l.b16 %v1064
    %v2298 = vunpack.c.h.b16 %v1064
    %v2299 = vunpack.c.l.b16 %v1065
    %v2300 = vunpack.c.h.b16 %v1065
    %v2301 = vunpack.c.l.b16 %v1066
    %v2302 = vunpack.c.h.b16 %v1066
    %v2303 = vunpack.c.l.b16 %v1067
    %v2304 = vunpack.c.h.b16 %v1067
    %v2305 = vunpack.c.l.b16 %v1068
    %v2306 = vunpack.c.h.b16 %v1068
    %v2307 = vunpack.c.l.b16 %v1069
    %v2308 = vunpack.c.h.b16 %v1069
    %v2309 = vunpack.c.l.b16 %v1070
    %v2310 = vunpack.c.h.b16 %v1070
    %v2311 = vunpack.c.l.b16 %v1071
    %v2312 = vunpack.c.h.b16 %v1071
    %v2313 = vunpack.c.l.b16 %v1072
    %v2314 = vunpack.c.h.b16 %v1072
    %v2315 = vunpack.c.l.b16 %v1073
    %v2316 = vunpack.c.h.b16 %v1073
    %v2317 = vunpack.c.l.b16 %v1074
    %v2318 = vunpack.c.h.b16 %v1074
    %v2319 = vunpack.c.l.b16 %v1075
    %v2320 = vunpack.c.h.b16 %v1075
    %v2321 = vunpack.c.l.b16 %v1076
    %v2322 = vunpack.c.h.b16 %v1076
    %v2323 = vunpack.c.l.b16 %v1077
    %v2324 = vunpack.c.h.b16 %v1077
    %v2325 = vunpack.c.l.b16 %v1078
    %v2326 = vunpack.c.h.b16 %v1078
    %v2327 = vunpack.c.l.b16 %v1079
    %v2328 = vunpack.c.h.b16 %v1079
    %v2329 = vunpack.c.l.b16 %v1080
    %v2330 = vunpack.c.h.b16 %v1080
    %v2331 = vunpack.c.l.b16 %v1081
    %v2332 = vunpack.c.h.b16 %v1081
    %v2333 = vunpack.c.l.b16 %v1082
    %v2334 = vunpack.c.h.b16 %v1082
    %v2335 = vunpack.c.l.b16 %v1083
    %v2336 = vunpack.c.h.b16 %v1083
    %v2337 = vunpack.c.l.b16 %v1084
    %v2338 = vunpack.c.h.b16 %v1084
    %v2339 = vunpack.c.l.b16 %v1085
    %v2340 = vunpack.c.h.b16 %v1085
    %v2341 = vunpack.c.l.b16 %v1086
    %v2342 = vunpack.c.h.b16 %v1086
    %v2343 = vunpack.c.l.b16 %v1087
    %v2344 = vunpack.c.h.b16 %v1087
    %v2345 = vunpack.c.l.b16 %v1088
    %v2346 = vunpack.c.h.b16 %v1088
    %v2347 = vunpack.c.l.b16 %v1089
    %v2348 = vunpack.c.h.b16 %v1089
    %v2349 = vunpack.c.l.b16 %v1090
    %v2350 = vunpack.c.h.b16 %v1090
    %v2351 = vunpack.c.l.b16 %v1091
    %v2352 = vunpack.c.h.b16 %v1091
    %v2353 = vunpack.c.l.b16 %v1092
    %v2354 = vunpack.c.h.b16 %v1092
    %v2355 = vunpack.c.l.b16 %v1093
    %v2356 = vunpack.c.h.b16 %v1093
    %v2357 = vunpack.c.l.b16 %v1094
    %v2358 = vunpack.c.h.b16 %v1094
    %v2359 = vunpack.c.l.b16 %v1095
    %v2360 = vunpack.c.h.b16 %v1095
    %v2361 = vunpack.c.l.b16 %v1096
    %v2362 = vunpack.c.h.b16 %v1096
    %v2363 = vunpack.c.l.b16 %v1097
    %v2364 = vunpack.c.h.b16 %v1097
    %v2365 = vunpack.c.l.b16 %v1098
    %v2366 = vunpack.c.h.b16 %v1098
    %v2367 = vunpack.c.l.b16 %v1099
    %v2368 = vunpack.c.h.b16 %v1099
    %v2369 = vunpack.c.l.b16 %v1100
    %v2370 = vunpack.c.h.b16 %v1100
    %v2371 = vunpack.c.l.b16 %v1101
    %v2372 = vunpack.c.h.b16 %v1101
    %v2373 = vunpack.c.l.b16 %v1102
    %v2374 = vunpack.c.h.b16 %v1102
    %v2375 = vunpack.c.l.b16 %v1103
    %v2376 = vunpack.c.h.b16 %v1103
    %v2377 = vunpack.c.l.b16 %v1104
    %v2378 = vunpack.c.h.b16 %v1104
    %v2379 = vunpack.c.l.b16 %v1105
    %v2380 = vunpack.c.h.b16 %v1105
    %v2381 = vunpack.c.l.b16 %v1106
    %v2382 = vunpack.c.h.b16 %v1106
    %v2383 = vunpack.c.l.b16 %v1107
    %v2384 = vunpack.c.h.b16 %v1107
    %v2385 = vunpack.c.l.b16 %v1108
    %v2386 = vunpack.c.h.b16 %v1108
    %v2387 = vunpack.c.l.b16 %v1109
    %v2388 = vunpack.c.h.b16 %v1109
    %v2389 = vunpack.c.l.b16 %v1110
    %v2390 = vunpack.c.h.b16 %v1110
    %v2391 = vunpack.c.l.b16 %v1111
    %v2392 = vunpack.c.h.b16 %v1111
    %v2393 = vunpack.c.l.b16 %v1112
    %v2394 = vunpack.c.h.b16 %v1112
    %v2395 = vunpack.c.l.b16 %v1113
    %v2396 = vunpack.c.h.b16 %v1113
    %v2397 = vunpack.c.l.b16 %v1114
    %v2398 = vunpack.c.h.b16 %v1114
    %v2399 = vunpack.c.l.b16 %v1115
    %v2400 = vunpack.c.h.b16 %v1115
    %v2401 = vunpack.c.l.b16 %v1116
    %v2402 = vunpack.c.h.b16 %v1116
    %v2403 = vunpack.c.l.b16 %v1117
    %v2404 = vunpack.c.h.b16 %v1117
    %v2405 = vunpack.c.l.b16 %v1118
    %v2406 = vunpack.c.h.b16 %v1118
    %v2407 = vunpack.c.l.b16 %v1119
    %v2408 = vunpack.c.h.b16 %v1119
    %v2409 = vunpack.c.l.b16 %v1120
    %v2410 = vunpack.c.h.b16 %v1120
    %v2411 = vunpack.c.l.b16 %v1121
    %v2412 = vunpack.c.h.b16 %v1121
    %v2413 = vunpack.c.l.b16 %v1122
    %v2414 = vunpack.c.h.b16 %v1122
    %v2415 = vunpack.c.l.b16 %v1123
    %v2416 = vunpack.c.h.b16 %v1123
    %v2417 = vunpack.c.l.b16 %v1124
    %v2418 = vunpack.c.h.b16 %v1124
    %v2419 = vunpack.c.l.b16 %v1125
    %v2420 = vunpack.c.h.b16 %v1125
    %v2421 = vunpack.c.l.b16 %v1126
    %v2422 = vunpack.c.h.b16 %v1126
    %v2423 = vunpack.c.l.b16 %v1127
    %v2424 = vunpack.c.h.b16 %v1127
    %v2425 = vunpack.c.l.b16 %v1128
    %v2426 = vunpack.c.h.b16 %v1128
    %v2427 = vunpack.c.l.b16 %v1129
    %v2428 = vunpack.c.h.b16 %v1129
    %v2429 = vunpack.c.l.b16 %v1130
    %v2430 = vunpack.c.h.b16 %v1130
    %v2431 = vunpack.c.l.b16 %v1131
    %v2432 = vunpack.c.h.b16 %v1131
    %v2433 = vunpack.c.l.b16 %v1132
    %v2434 = vunpack.c.h.b16 %v1132
    %v2435 = vunpack.c.l.b16 %v1133
    %v2436 = vunpack.c.h.b16 %v1133
    %v2437 = vunpack.c.l.b16 %v1134
    %v2438 = vunpack.c.h.b16 %v1134
    %v2439 = vunpack.c.l.b16 %v1135
    %v2440 = vunpack.c.h.b16 %v1135
    %v2441 = vunpack.c.l.b16 %v1136
    %v2442 = vunpack.c.h.b16 %v1136
    %v2443 = vunpack.c.l.b16 %v1137
    %v2444 = vunpack.c.h.b16 %v1137
    %v2445 = vunpack.c.l.b16 %v1138
    %v2446 = vunpack.c.h.b16 %v1138
    %v2447 = vunpack.c.l.b16 %v1139
    %v2448 = vunpack.c.h.b16 %v1139
    %v2449 = vunpack.c.l.b16 %v1140
    %v2450 = vunpack.c.h.b16 %v1140
    %v2451 = vunpack.c.l.b16 %v1141
    %v2452 = vunpack.c.h.b16 %v1141
    %v2453 = vunpack.c.l.b16 %v1142
    %v2454 = vunpack.c.h.b16 %v1142
    %v2455 = vunpack.c.l.b16 %v1143
    %v2456 = vunpack.c.h.b16 %v1143
    %v2457 = vunpack.c.l.b16 %v1144
    %v2458 = vunpack.c.h.b16 %v1144
    %v2459 = vunpack.c.l.b16 %v1145
    %v2460 = vunpack.c.h.b16 %v1145
    %v2461 = vunpack.c.l.b16 %v1146
    %v2462 = vunpack.c.h.b16 %v1146
    %v2463 = vunpack.c.l.b16 %v1147
    %v2464 = vunpack.c.h.b16 %v1147
    %v2465 = vunpack.c.l.b16 %v1148
    %v2466 = vunpack.c.h.b16 %v1148
    %v2467 = vunpack.c.l.b16 %v1149
    %v2468 = vunpack.c.h.b16 %v1149
    %v2469 = vunpack.c.l.b16 %v1150
    %v2470 = vunpack.c.h.b16 %v1150
    %v2471 = vunpack.c.l.b16 %v1151
    %v2472 = vunpack.c.h.b16 %v1151
    %v2473 = vunpack.c.l.b16 %v1152
    %v2474 = vunpack.c.h.b16 %v1152
    %v2475 = vunpack.c.l.b16 %v1153
    %v2476 = vunpack.c.h.b16 %v1153
    %v2477 = vunpack.c.l.b16 %v1154
    %v2478 = vunpack.c.h.b16 %v1154
    %v2479 = vunpack.c.l.b16 %v1155
    %v2480 = vunpack.c.h.b16 %v1155
    %v2481 = vunpack.c.l.b16 %v1156
    %v2482 = vunpack.c.h.b16 %v1156
    %v2483 = vunpack.c.l.b16 %v1157
    %v2484 = vunpack.c.h.b16 %v1157
    %v2485 = vunpack.c.l.b16 %v1158
    %v2486 = vunpack.c.h.b16 %v1158
    %v2487 = vunpack.c.l.b16 %v1159
    %v2488 = vunpack.c.h.b16 %v1159
    %v2489 = vunpack.c.l.b16 %v1160
    %v2490 = vunpack.c.h.b16 %v1160
    %v2491 = vunpack.c.l.b16 %v1161
    %v2492 = vunpack.c.h.b16 %v1161
    %v2493 = vunpack.c.l.b16 %v1162
    %v2494 = vunpack.c.h.b16 %v1162
    %v2495 = vunpack.c.l.b16 %v1163
    %v2496 = vunpack.c.h.b16 %v1163
    %v2497 = vunpack.c.l.b16 %v1164
    %v2498 = vunpack.c.h.b16 %v1164
    %v2499 = vunpack.c.l.b16 %v1165
    %v2500 = vunpack.c.h.b16 %v1165
    %v2501 = vunpack.c.l.b16 %v1166
    %v2502 = vunpack.c.h.b16 %v1166
    %v2503 = vunpack.c.l.b16 %v1167
    %v2504 = vunpack.c.h.b16 %v1167
    %v2505 = vunpack.c.l.b16 %v1168
    %v2506 = vunpack.c.h.b16 %v1168
    %v2507 = vunpack.c.l.b16 %v1169
    %v2508 = vunpack.c.h.b16 %v1169
    %v2509 = vunpack.c.l.b16 %v1170
    %v2510 = vunpack.c.h.b16 %v1170
    %v2511 = vunpack.c.l.b16 %v1171
    %v2512 = vunpack.c.h.b16 %v1171
    %v2513 = vunpack.c.l.b16 %v1172
    %v2514 = vunpack.c.h.b16 %v1172
    %v2515 = vunpack.c.l.b16 %v1173
    %v2516 = vunpack.c.h.b16 %v1173
    %v2517 = vunpack.c.l.b16 %v1174
    %v2518 = vunpack.c.h.b16 %v1174
    %v2519 = vunpack.c.l.b16 %v1175
    %v2520 = vunpack.c.h.b16 %v1175
    %v2521 = vunpack.c.l.b16 %v1176
    %v2522 = vunpack.c.h.b16 %v1176
    %v2523 = vunpack.c.l.b16 %v1177
    %v2524 = vunpack.c.h.b16 %v1177
    %v2525 = vunpack.c.l.b16 %v1178
    %v2526 = vunpack.c.h.b16 %v1178
    %v2527 = vunpack.c.l.b16 %v1179
    %v2528 = vunpack.c.h.b16 %v1179
    %v2529 = vunpack.c.l.b16 %v1180
    %v2530 = vunpack.c.h.b16 %v1180
    %v2531 = vunpack.c.l.b16 %v1181
    %v2532 = vunpack.c.h.b16 %v1181
    %v2533 = vunpack.c.l.b16 %v1182
    %v2534 = vunpack.c.h.b16 %v1182
    %v2535 = vunpack.c.l.b16 %v1183
    %v2536 = vunpack.c.h.b16 %v1183
    %v2537 = vunpack.c.l.b16 %v1184
    %v2538 = vunpack.c.h.b16 %v1184
    %v2539 = vunpack.c.l.b16 %v1185
    %v2540 = vunpack.c.h.b16 %v1185
    %v2541 = vunpack.c.l.b16 %v1186
    %v2542 = vunpack.c.h.b16 %v1186
    %v2543 = vunpack.c.l.b16 %v1187
    %v2544 = vunpack.c.h.b16 %v1187
    %v2545 = vunpack.c.l.b16 %v1188
    %v2546 = vunpack.c.h.b16 %v1188
    %v2547 = vunpack.c.l.b16 %v1189
    %v2548 = vunpack.c.h.b16 %v1189
    %v2549 = vunpack.c.l.b16 %v1190
    %v2550 = vunpack.c.h.b16 %v1190
    %v2551 = vunpack.c.l.b16 %v1191
    %v2552 = vunpack.c.h.b16 %v1191
    %v2553 = vunpack.c.l.b16 %v1192
    %v2554 = vunpack.c.h.b16 %v1192
    %v2555 = vunpack.c.l.b16 %v1193
    %v2556 = vunpack.c.h.b16 %v1193
    %v2557 = vunpack.c.l.b16 %v1194
    %v2558 = vunpack.c.h.b16 %v1194
    %v2559 = vunpack.c.l.b16 %v1195
    %v2560 = vunpack.c.h.b16 %v1195
    %v2561 = vunpack.c.l.b16 %v1196
    %v2562 = vunpack.c.h.b16 %v1196
    %v2563 = vunpack.c.l.b16 %v1197
    %v2564 = vunpack.c.h.b16 %v1197
    %v2565 = vunpack.c.l.b16 %v1198
    %v2566 = vunpack.c.h.b16 %v1198
    %v2567 = vunpack.c.l.b16 %v1199
    %v2568 = vunpack.c.h.b16 %v1199
    %v2569 = vunpack.c.l.b16 %v1200
    %v2570 = vunpack.c.h.b16 %v1200
    %v2571 = vunpack.c.l.b16 %v1201
    %v2572 = vunpack.c.h.b16 %v1201
    %v2573 = vunpack.c.l.b16 %v1202
    %v2574 = vunpack.c.h.b16 %v1202
    %v2575 = vunpack.c.l.b16 %v1203
    %v2576 = vunpack.c.h.b16 %v1203
    %v2577 = vunpack.c.l.b16 %v1204
    %v2578 = vunpack.c.h.b16 %v1204
    %v2579 = vunpack.c.l.b16 %v1205
    %v2580 = vunpack.c.h.b16 %v1205
    %v2581 = vunpack.c.l.b16 %v1206
    %v2582 = vunpack.c.h.b16 %v1206
    %v2583 = vunpack.c.l.b16 %v1207
    %v2584 = vunpack.c.h.b16 %v1207
    %v2585 = vunpack.c.l.b16 %v1208
    %v2586 = vunpack.c.h.b16 %v1208
    %v2587 = vunpack.c.l.b16 %v1209
    %v2588 = vunpack.c.h.b16 %v1209
    %v2589 = vunpack.c.l.b16 %v1210
    %v2590 = vunpack.c.h.b16 %v1210
    %v2591 = vunpack.c.l.b16 %v1211
    %v2592 = vunpack.c.h.b16 %v1211
    %v2593 = vunpack.c.l.b16 %v1212
    %v2594 = vunpack.c.h.b16 %v1212
    %v2595 = vunpack.c.l.b16 %v1213
    %v2596 = vunpack.c.h.b16 %v1213
    %v2597 = vunpack.c.l.b16 %v1214
    %v2598 = vunpack.c.h.b16 %v1214
    %v2599 = vunpack.c.l.b16 %v1215
    %v2600 = vunpack.c.h.b16 %v1215
    %v2601 = vunpack.c.l.b16 %v1216
    %v2602 = vunpack.c.h.b16 %v1216
    %v2603 = vunpack.c.l.b16 %v1217
    %v2604 = vunpack.c.h.b16 %v1217
    %v2605 = vunpack.c.l.b16 %v1218
    %v2606 = vunpack.c.h.b16 %v1218
    %v2607 = vunpack.c.l.b16 %v1219
    %v2608 = vunpack.c.h.b16 %v1219
    %v2609 = vunpack.c.l.b16 %v1220
    %v2610 = vunpack.c.h.b16 %v1220
    %v2611 = vunpack.c.l.b16 %v1221
    %v2612 = vunpack.c.h.b16 %v1221
    %v2613 = vunpack.c.l.b16 %v1222
    %v2614 = vunpack.c.h.b16 %v1222
    %v2615 = vunpack.c.l.b16 %v1223
    %v2616 = vunpack.c.h.b16 %v1223
    %v2617 = vunpack.c.l.b16 %v1224
    %v2618 = vunpack.c.h.b16 %v1224
    %v2619 = vunpack.c.l.b16 %v1225
    %v2620 = vunpack.c.h.b16 %v1225
    %v2621 = vunpack.c.l.b16 %v1226
    %v2622 = vunpack.c.h.b16 %v1226
    %v2623 = vunpack.c.l.b16 %v1227
    %v2624 = vunpack.c.h.b16 %v1227
    %v2625 = vunpack.c.l.b16 %v1228
    %v2626 = vunpack.c.h.b16 %v1228
    %v2627 = vunpack.c.l.b16 %v1229
    %v2628 = vunpack.c.h.b16 %v1229
    %v2629 = vunpack.c.l.b16 %v1230
    %v2630 = vunpack.c.h.b16 %v1230
    %v2631 = vunpack.c.l.b16 %v1231
    %v2632 = vunpack.c.h.b16 %v1231
    %v2633 = vunpack.c.l.b16 %v1232
    %v2634 = vunpack.c.h.b16 %v1232
    %v2635 = vunpack.c.l.b16 %v1233
    %v2636 = vunpack.c.h.b16 %v1233
    %v2637 = vunpack.c.l.b16 %v1234
    %v2638 = vunpack.c.h.b16 %v1234
    %v2639 = vunpack.c.l.b16 %v1235
    %v2640 = vunpack.c.h.b16 %v1235
    %v2641 = vunpack.c.l.b16 %v1236
    %v2642 = vunpack.c.h.b16 %v1236
    %v2643 = vunpack.c.l.b16 %v1237
    %v2644 = vunpack.c.h.b16 %v1237
    %v2645 = vunpack.c.l.b16 %v1238
    %v2646 = vunpack.c.h.b16 %v1238
    %v2647 = vunpack.c.l.b16 %v1239
    %v2648 = vunpack.c.h.b16 %v1239
    %v2649 = vunpack.c.l.b16 %v1240
    %v2650 = vunpack.c.h.b16 %v1240
    %v2651 = vunpack.c.l.b16 %v1241
    %v2652 = vunpack.c.h.b16 %v1241
    %v2653 = vunpack.c.l.b16 %v1242
    %v2654 = vunpack.c.h.b16 %v1242
    %v2655 = vunpack.c.l.b16 %v1243
    %v2656 = vunpack.c.h.b16 %v1243
    %v2657 = vunpack.c.l.b16 %v1244
    %v2658 = vunpack.c.h.b16 %v1244
    %v2659 = vunpack.c.l.b16 %v1245
    %v2660 = vunpack.c.h.b16 %v1245
    %v2661 = vunpack.c.l.b16 %v1246
    %v2662 = vunpack.c.h.b16 %v1246
    %v2663 = vunpack.c.l.b16 %v1247
    %v2664 = vunpack.c.h.b16 %v1247
    %v2665 = vunpack.c.l.b16 %v1248
    %v2666 = vunpack.c.h.b16 %v1248
    %v2667 = vunpack.c.l.b16 %v1249
    %v2668 = vunpack.c.h.b16 %v1249
    %v2669 = vunpack.c.l.b16 %v1250
    %v2670 = vunpack.c.h.b16 %v1250
    %v2671 = vunpack.c.l.b16 %v1251
    %v2672 = vunpack.c.h.b16 %v1251
    %v2673 = vunpack.c.l.b16 %v1252
    %v2674 = vunpack.c.h.b16 %v1252
    %v2675 = vunpack.c.l.b16 %v1253
    %v2676 = vunpack.c.h.b16 %v1253
    %v2677 = vunpack.c.l.b16 %v1254
    %v2678 = vunpack.c.h.b16 %v1254
    %v2679 = vunpack.c.l.b16 %v1255
    %v2680 = vunpack.c.h.b16 %v1255
    %v2681 = vunpack.c.l.b16 %v1256
    %v2682 = vunpack.c.h.b16 %v1256
    %v2683 = vunpack.c.l.b16 %v1257
    %v2684 = vunpack.c.h.b16 %v1257
    %v2685 = vunpack.c.l.b16 %v1258
    %v2686 = vunpack.c.h.b16 %v1258
    %v2687 = vunpack.c.l.b16 %v1259
    %v2688 = vunpack.c.h.b16 %v1259
    %v2689 = vunpack.c.l.b16 %v1260
    %v2690 = vunpack.c.h.b16 %v1260
    %v2691 = vunpack.c.l.b16 %v1261
    %v2692 = vunpack.c.h.b16 %v1261
    %v2693 = vunpack.c.l.b16 %v1262
    %v2694 = vunpack.c.h.b16 %v1262
    %v2695 = vunpack.c.l.b16 %v1263
    %v2696 = vunpack.c.h.b16 %v1263
    %v2697 = vunpack.c.l.b16 %v1264
    %v2698 = vunpack.c.h.b16 %v1264
    %v2699 = vunpack.c.l.b16 %v1265
    %v2700 = vunpack.c.h.b16 %v1265
    %v2701 = vunpack.c.l.b16 %v1266
    %v2702 = vunpack.c.h.b16 %v1266
    %v2703 = vunpack.c.l.b16 %v1267
    %v2704 = vunpack.c.h.b16 %v1267
    %v2705 = vunpack.c.l.b16 %v1268
    %v2706 = vunpack.c.h.b16 %v1268
    %v2707 = vunpack.c.l.b16 %v1269
    %v2708 = vunpack.c.h.b16 %v1269
    %v2709 = vunpack.c.l.b16 %v1270
    %v2710 = vunpack.c.h.b16 %v1270
    %v2711 = vunpack.c.l.b16 %v1271
    %v2712 = vunpack.c.h.b16 %v1271
    %v2713 = vunpack.c.l.b16 %v1272
    %v2714 = vunpack.c.h.b16 %v1272
    %v2715 = vunpack.c.l.b16 %v1273
    %v2716 = vunpack.c.h.b16 %v1273
    %v2717 = vunpack.c.l.b16 %v1274
    %v2718 = vunpack.c.h.b16 %v1274
    %v2719 = vunpack.c.l.b16 %v1275
    %v2720 = vunpack.c.h.b16 %v1275
    %v2721 = vunpack.c.l.b16 %v1276
    %v2722 = vunpack.c.h.b16 %v1276
    %v2723 = vunpack.c.l.b16 %v1277
    %v2724 = vunpack.c.h.b16 %v1277
    %v2725 = vunpack.c.l.b16 %v1278
    %v2726 = vunpack.c.h.b16 %v1278
    %v2727 = vunpack.c.l.b16 %v1279
    %v2728 = vunpack.c.h.b16 %v1279
    %v2729 = vunpack.c.l.b16 %v1280
    %v2730 = vunpack.c.h.b16 %v1280
    %v2731 = vunpack.c.l.b16 %v1281
    %v2732 = vunpack.c.h.b16 %v1281
    %v2733 = vunpack.c.l.b16 %v1282
    %v2734 = vunpack.c.h.b16 %v1282
    %v2735 = vunpack.c.l.b16 %v1283
    %v2736 = vunpack.c.h.b16 %v1283
    %v2737 = vunpack.c.l.b16 %v1284
    %v2738 = vunpack.c.h.b16 %v1284
    %v2739 = vunpack.c.l.b16 %v1285
    %v2740 = vunpack.c.h.b16 %v1285
    %v2741 = vunpack.c.l.b16 %v1286
    %v2742 = vunpack.c.h.b16 %v1286
    %v2743 = vunpack.c.l.b16 %v1287
    %v2744 = vunpack.c.h.b16 %v1287
    %v2745 = vunpack.c.l.b16 %v1288
    %v2746 = vunpack.c.h.b16 %v1288
    %v2747 = vunpack.c.l.b16 %v1289
    %v2748 = vunpack.c.h.b16 %v1289
    %v2749 = vunpack.c.l.b16 %v1290
    %v2750 = vunpack.c.h.b16 %v1290
    %v2751 = vunpack.c.l.b16 %v1291
    %v2752 = vunpack.c.h.b16 %v1291
    %v2753 = vunpack.c.l.b16 %v1292
    %v2754 = vunpack.c.h.b16 %v1292
    %v2755 = vunpack.c.l.b16 %v1293
    %v2756 = vunpack.c.h.b16 %v1293
    %v2757 = vunpack.c.l.b16 %v1294
    %v2758 = vunpack.c.h.b16 %v1294
    %v2759 = vunpack.c.l.b16 %v1295
    %v2760 = vunpack.c.h.b16 %v1295
    %v2761 = vunpack.c.l.b16 %v1296
    %v2762 = vunpack.c.h.b16 %v1296
    %v2763 = vunpack.c.l.b16 %v1297
    %v2764 = vunpack.c.h.b16 %v1297
    %v2765 = vunpack.c.l.b16 %v1298
    %v2766 = vunpack.c.h.b16 %v1298
    %v2767 = vunpack.c.l.b16 %v1299
    %v2768 = vunpack.c.h.b16 %v1299
    %v2769 = vunpack.c.l.b16 %v1300
    %v2770 = vunpack.c.h.b16 %v1300
    %v2771 = vunpack.c.l.b16 %v1301
    %v2772 = vunpack.c.h.b16 %v1301
    %v2773 = vunpack.c.l.b16 %v1302
    %v2774 = vunpack.c.h.b16 %v1302
    %v2775 = vunpack.c.l.b16 %v1303
    %v2776 = vunpack.c.h.b16 %v1303
    %v2777 = vunpack.c.l.b16 %v1304
    %v2778 = vunpack.c.h.b16 %v1304
    %v2779 = vunpack.c.l.b16 %v1305
    %v2780 = vunpack.c.h.b16 %v1305
    %v2781 = vunpack.c.l.b16 %v1306
    %v2782 = vunpack.c.h.b16 %v1306
    %v2783 = vunpack.c.l.b16 %v1307
    %v2784 = vunpack.c.h.b16 %v1307
    %v2785 = vunpack.c.l.b16 %v1308
    %v2786 = vunpack.c.h.b16 %v1308
    %v2787 = vunpack.c.l.b16 %v1309
    %v2788 = vunpack.c.h.b16 %v1309
    %v2789 = vunpack.c.l.b16 %v1310
    %v2790 = vunpack.c.h.b16 %v1310
    %v2791 = vunpack.c.l.b16 %v1311
    %v2792 = vunpack.c.h.b16 %v1311
    %v2793 = vunpack.c.l.b16 %v1312
    %v2794 = vunpack.c.h.b16 %v1312
    %v2795 = vunpack.c.l.b16 %v1313
    %v2796 = vunpack.c.h.b16 %v1313
    %v2797 = vunpack.c.l.b16 %v1314
    %v2798 = vunpack.c.h.b16 %v1314
    %v2799 = vunpack.c.l.b16 %v1315
    %v2800 = vunpack.c.h.b16 %v1315
    %v2801 = vunpack.c.l.b16 %v1316
    %v2802 = vunpack.c.h.b16 %v1316
    %v2803 = vunpack.c.l.b16 %v1317
    %v2804 = vunpack.c.h.b16 %v1317
    %v2805 = vunpack.c.l.b16 %v1318
    %v2806 = vunpack.c.h.b16 %v1318
    %v2807 = vunpack.c.l.b16 %v1319
    %v2808 = vunpack.c.h.b16 %v1319
    %v2809 = vunpack.c.l.b16 %v1320
    %v2810 = vunpack.c.h.b16 %v1320
    %v2811 = vunpack.c.l.b16 %v1321
    %v2812 = vunpack.c.h.b16 %v1321
    %v2813 = vunpack.c.l.b16 %v1322
    %v2814 = vunpack.c.h.b16 %v1322
    %v2815 = vunpack.c.l.b16 %v1323
    %v2816 = vunpack.c.h.b16 %v1323
    %v2817 = vunpack.c.l.b16 %v1324
    %v2818 = vunpack.c.h.b16 %v1324
    %v2819 = vunpack.c.l.b16 %v1325
    %v2820 = vunpack.c.h.b16 %v1325
    %v2821 = vunpack.c.l.b16 %v1326
    %v2822 = vunpack.c.h.b16 %v1326
    %v2823 = vunpack.c.l.b16 %v1327
    %v2824 = vunpack.c.h.b16 %v1327
    %v2825 = vunpack.c.l.b16 %v1328
    %v2826 = vunpack.c.h.b16 %v1328
    %v2827 = vunpack.c.l.b16 %v1329
    %v2828 = vunpack.c.h.b16 %v1329
    %v2829 = vunpack.c.l.b16 %v1330
    %v2830 = vunpack.c.h.b16 %v1330
    %v2831 = vunpack.c.l.b16 %v1331
    %v2832 = vunpack.c.h.b16 %v1331
    %v2833 = vunpack.c.l.b16 %v1332
    %v2834 = vunpack.c.h.b16 %v1332
    %v2835 = vunpack.c.l.b16 %v1333
    %v2836 = vunpack.c.h.b16 %v1333
    %v2837 = vunpack.c.l.b16 %v1334
    %v2838 = vunpack.c.h.b16 %v1334
    %v2839 = vunpack.c.l.b16 %v1335
    %v2840 = vunpack.c.h.b16 %v1335
    %v2841 = vunpack.c.l.b16 %v1336
    %v2842 = vunpack.c.h.b16 %v1336
    %v2843 = vunpack.c.l.b16 %v1337
    %v2844 = vunpack.c.h.b16 %v1337
    %v2845 = vunpack.c.l.b16 %v1338
    %v2846 = vunpack.c.h.b16 %v1338
    %v2847 = vunpack.c.l.b16 %v1339
    %v2848 = vunpack.c.h.b16 %v1339
    %v2849 = vunpack.c.l.b16 %v1340
    %v2850 = vunpack.c.h.b16 %v1340
    %v2851 = vunpack.c.l.b16 %v1341
    %v2852 = vunpack.c.h.b16 %v1341
    %v2853 = vunpack.c.l.b16 %v1342
    %v2854 = vunpack.c.h.b16 %v1342
    %v2855 = vunpack.c.l.b16 %v1343
    %v2856 = vunpack.c.h.b16 %v1343
    %v2857 = vunpack.c.l.b16 %v1344
    %v2858 = vunpack.c.h.b16 %v1344
    %v2859 = vunpack.c.l.b16 %v1345
    %v2860 = vunpack.c.h.b16 %v1345
    %v2861 = vunpack.c.l.b16 %v1346
    %v2862 = vunpack.c.h.b16 %v1346
    %v2863 = vunpack.c.l.b16 %v1347
    %v2864 = vunpack.c.h.b16 %v1347
    %v2865 = vunpack.c.l.b16 %v1348
    %v2866 = vunpack.c.h.b16 %v1348
    %v2867 = vunpack.c.l.b16 %v1349
    %v2868 = vunpack.c.h.b16 %v1349
    %v2869 = vunpack.c.l.b16 %v1350
    %v2870 = vunpack.c.h.b16 %v1350
    %v2871 = vunpack.c.l.b16 %v1351
    %v2872 = vunpack.c.h.b16 %v1351
    %v2873 = vunpack.c.l.b16 %v1352
    %v2874 = vunpack.c.h.b16 %v1352
    %v2875 = vunpack.c.l.b16 %v1353
    %v2876 = vunpack.c.h.b16 %v1353
    %v2877 = vunpack.c.l.b16 %v1354
    %v2878 = vunpack.c.h.b16 %v1354
    %v2879 = vunpack.c.l.b16 %v1355
    %v2880 = vunpack.c.h.b16 %v1355
    %v2881 = vunpack.c.l.b16 %v1356
    %v2882 = vunpack.c.h.b16 %v1356
    %v2883 = vunpack.c.l.b16 %v1357
    %v2884 = vunpack.c.h.b16 %v1357
    %v2885 = vunpack.c.l.b16 %v1358
    %v2886 = vunpack.c.h.b16 %v1358
    %v2887 = vunpack.c.l.b16 %v1359
    %v2888 = vunpack.c.h.b16 %v1359
    %v2889 = vunpack.c.l.b16 %v1360
    %v2890 = vunpack.c.h.b16 %v1360
    %v2891 = vunpack.c.l.b16 %v1361
    %v2892 = vunpack.c.h.b16 %v1361
    %v2893 = vunpack.c.l.b16 %v1362
    %v2894 = vunpack.c.h.b16 %v1362
    %v2895 = vunpack.c.l.b16 %v1363
    %v2896 = vunpack.c.h.b16 %v1363
    %v2897 = vunpack.c.l.b16 %v1364
    %v2898 = vunpack.c.h.b16 %v1364
    %v2899 = vunpack.c.l.b16 %v1365
    %v2900 = vunpack.c.h.b16 %v1365
    %v2901 = vunpack.c.l.b16 %v1366
    %v2902 = vunpack.c.h.b16 %v1366
    %v2903 = vpack.c.b16 %v1895, %v1879
    %v2904 = vpack.c.b16 %v1896, %v1880
    %v2905 = vpack.c.b16 %v1897, %v1881
    %v2906 = vpack.c.b16 %v1898, %v1882
    %v2907 = vpack.c.b16 %v1899, %v1883
    %v2908 = vpack.c.b16 %v1900, %v1884
    %v2909 = vpack.c.b16 %v1901, %v1885
    %v2910 = vpack.c.b16 %v1902, %v1886
    %v2911 = vpack.c.b16 %v1903, %v1887
    %v2912 = vpack.c.b16 %v1904, %v1888
    %v2913 = vpack.c.b16 %v1905, %v1889
    %v2914 = vpack.c.b16 %v1906, %v1890
    %v2915 = vpack.c.b16 %v1907, %v1891
    %v2916 = vpack.c.b16 %v1908, %v1892
    %v2917 = vpack.c.b16 %v1909, %v1893
    %v2918 = vpack.c.b16 %v1910, %v1894
    %v2919 = vpack.c.b16 %v1927, %v1911
    %v2920 = vpack.c.b16 %v1928, %v1912
    %v2921 = vpack.c.b16 %v1929, %v1913
    %v2922 = vpack.c.b16 %v1930, %v1914
    %v2923 = vpack.c.b16 %v1931, %v1915
    %v2924 = vpack.c.b16 %v1932, %v1916
    %v2925 = vpack.c.b16 %v1933, %v1917
    %v2926 = vpack.c.b16 %v1934, %v1918
    %v2927 = vpack.c.b16 %v1935, %v1919
    %v2928 = vpack.c.b16 %v1936, %v1920
    %v2929 = vpack.c.b16 %v1937, %v1921
    %v2930 = vpack.c.b16 %v1938, %v1922
    %v2931 = vpack.c.b16 %v1939, %v1923
    %v2932 = vpack.c.b16 %v1940, %v1924
    %v2933 = vpack.c.b16 %v1941, %v1925
    %v2934 = vpack.c.b16 %v1942, %v1926
    %v2935 = vpack.c.b16 %v1959, %v1943
    %v2936 = vpack.c.b16 %v1960, %v1944
    %v2937 = vpack.c.b16 %v1961, %v1945
    %v2938 = vpack.c.b16 %v1962, %v1946
    %v2939 = vpack.c.b16 %v1963, %v1947
    %v2940 = vpack.c.b16 %v1964, %v1948
    %v2941 = vpack.c.b16 %v1965, %v1949
    %v2942 = vpack.c.b16 %v1966, %v1950
    %v2943 = vpack.c.b16 %v1967, %v1951
    %v2944 = vpack.c.b16 %v1968, %v1952
    %v2945 = vpack.c.b16 %v1969, %v1953
    %v2946 = vpack.c.b16 %v1970, %v1954
    %v2947 = vpack.c.b16 %v1971, %v1955
    %v2948 = vpack.c.b16 %v1972, %v1956
    %v2949 = vpack.c.b16 %v1973, %v1957
    %v2950 = vpack.c.b16 %v1974, %v1958
    %v2951 = vpack.c.b16 %v1991, %v1975
    %v2952 = vpack.c.b16 %v1992, %v1976
    %v2953 = vpack.c.b16 %v1993, %v1977
    %v2954 = vpack.c.b16 %v1994, %v1978
    %v2955 = vpack.c.b16 %v1995, %v1979
    %v2956 = vpack.c.b16 %v1996, %v1980
    %v2957 = vpack.c.b16 %v1997, %v1981
    %v2958 = vpack.c.b16 %v1998, %v1982
    %v2959 = vpack.c.b16 %v1999, %v1983
    %v2960 = vpack.c.b16 %v2000, %v1984
    %v2961 = vpack.c.b16 %v2001, %v1985
    %v2962 = vpack.c.b16 %v2002, %v1986
    %v2963 = vpack.c.b16 %v2003, %v1987
    %v2964 = vpack.c.b16 %v2004, %v1988
    %v2965 = vpack.c.b16 %v2005, %v1989
    %v2966 = vpack.c.b16 %v2006, %v1990
    %v2967 = vpack.c.b16 %v2023, %v2007
    %v2968 = vpack.c.b16 %v2024, %v2008
    %v2969 = vpack.c.b16 %v2025, %v2009
    %v2970 = vpack.c.b16 %v2026, %v2010
    %v2971 = vpack.c.b16 %v2027, %v2011
    %v2972 = vpack.c.b16 %v2028, %v2012
    %v2973 = vpack.c.b16 %v2029, %v2013
    %v2974 = vpack.c.b16 %v2030, %v2014
    %v2975 = vpack.c.b16 %v2031, %v2015
    %v2976 = vpack.c.b16 %v2032, %v2016
    %v2977 = vpack.c.b16 %v2033, %v2017
    %v2978 = vpack.c.b16 %v2034, %v2018
    %v2979 = vpack.c.b16 %v2035, %v2019
    %v2980 = vpack.c.b16 %v2036, %v2020
    %v2981 = vpack.c.b16 %v2037, %v2021
    %v2982 = vpack.c.b16 %v2038, %v2022
    %v2983 = vpack.c.b16 %v2055, %v2039
    %v2984 = vpack.c.b16 %v2056, %v2040
    %v2985 = vpack.c.b16 %v2057, %v2041
    %v2986 = vpack.c.b16 %v2058, %v2042
    %v2987 = vpack.c.b16 %v2059, %v2043
    %v2988 = vpack.c.b16 %v2060, %v2044
    %v2989 = vpack.c.b16 %v2061, %v2045
    %v2990 = vpack.c.b16 %v2062, %v2046
    %v2991 = vpack.c.b16 %v2063, %v2047
    %v2992 = vpack.c.b16 %v2064, %v2048
    %v2993 = vpack.c.b16 %v2065, %v2049
    %v2994 = vpack.c.b16 %v2066, %v2050
    %v2995 = vpack.c.b16 %v2067, %v2051
    %v2996 = vpack.c.b16 %v2068, %v2052
    %v2997 = vpack.c.b16 %v2069, %v2053
    %v2998 = vpack.c.b16 %v2070, %v2054
    %v2999 = vpack.c.b16 %v2087, %v2071
    %v3000 = vpack.c.b16 %v2088, %v2072
    %v3001 = vpack.c.b16 %v2089, %v2073
    %v3002 = vpack.c.b16 %v2090, %v2074
    %v3003 = vpack.c.b16 %v2091, %v2075
    %v3004 = vpack.c.b16 %v2092, %v2076
    %v3005 = vpack.c.b16 %v2093, %v2077
    %v3006 = vpack.c.b16 %v2094, %v2078
    %v3007 = vpack.c.b16 %v2095, %v2079
    %v3008 = vpack.c.b16 %v2096, %v2080
    %v3009 = vpack.c.b16 %v2097, %v2081
    %v3010 = vpack.c.b16 %v2098, %v2082
    %v3011 = vpack.c.b16 %v2099, %v2083
    %v3012 = vpack.c.b16 %v2100, %v2084
    %v3013 = vpack.c.b16 %v2101, %v2085
    %v3014 = vpack.c.b16 %v2102, %v2086
    %v3015 = vpack.c.b16 %v2119, %v2103
    %v3016 = vpack.c.b16 %v2120, %v2104
    %v3017 = vpack.c.b16 %v2121, %v2105
    %v3018 = vpack.c.b16 %v2122, %v2106
    %v3019 = vpack.c.b16 %v2123, %v2107
    %v3020 = vpack.c.b16 %v2124, %v2108
    %v3021 = vpack.c.b16 %v2125, %v2109
    %v3022 = vpack.c.b16 %v2126, %v2110
    %v3023 = vpack.c.b16 %v2127, %v2111
    %v3024 = vpack.c.b16 %v2128, %v2112
    %v3025 = vpack.c.b16 %v2129, %v2113
    %v3026 = vpack.c.b16 %v2130, %v2114
    %v3027 = vpack.c.b16 %v2131, %v2115
    %v3028 = vpack.c.b16 %v2132, %v2116
    %v3029 = vpack.c.b16 %v2133, %v2117
    %v3030 = vpack.c.b16 %v2134, %v2118
    %v3031 = vpack.c.b16 %v2151, %v2135
    %v3032 = vpack.c.b16 %v2152, %v2136
    %v3033 = vpack.c.b16 %v2153, %v2137
    %v3034 = vpack.c.b16 %v2154, %v2138
    %v3035 = vpack.c.b16 %v2155, %v2139
    %v3036 = vpack.c.b16 %v2156, %v2140
    %v3037 = vpack.c.b16 %v2157, %v2141
    %v3038 = vpack.c.b16 %v2158, %v2142
    %v3039 = vpack.c.b16 %v2159, %v2143
    %v3040 = vpack.c.b16 %v2160, %v2144
    %v3041 = vpack.c.b16 %v2161, %v2145
    %v3042 = vpack.c.b16 %v2162, %v2146
    %v3043 = vpack.c.b16 %v2163, %v2147
    %v3044 = vpack.c.b16 %v2164, %v2148
    %v3045 = vpack.c.b16 %v2165, %v2149
    %v3046 = vpack.c.b16 %v2166, %v2150
    %v3047 = vpack.c.b16 %v2183, %v2167
    %v3048 = vpack.c.b16 %v2184, %v2168
    %v3049 = vpack.c.b16 %v2185, %v2169
    %v3050 = vpack.c.b16 %v2186, %v2170
    %v3051 = vpack.c.b16 %v2187, %v2171
    %v3052 = vpack.c.b16 %v2188, %v2172
    %v3053 = vpack.c.b16 %v2189, %v2173
    %v3054 = vpack.c.b16 %v2190, %v2174
    %v3055 = vpack.c.b16 %v2191, %v2175
    %v3056 = vpack.c.b16 %v2192, %v2176
    %v3057 = vpack.c.b16 %v2193, %v2177
    %v3058 = vpack.c.b16 %v2194, %v2178
    %v3059 = vpack.c.b16 %v2195, %v2179
    %v3060 = vpack.c.b16 %v2196, %v2180
    %v3061 = vpack.c.b16 %v2197, %v2181
    %v3062 = vpack.c.b16 %v2198, %v2182
    %v3063 = vpack.c.b16 %v2215, %v2199
    %v3064 = vpack.c.b16 %v2216, %v2200
    %v3065 = vpack.c.b16 %v2217, %v2201
    %v3066 = vpack.c.b16 %v2218, %v2202
    %v3067 = vpack.c.b16 %v2219, %v2203
    %v3068 = vpack.c.b16 %v2220, %v2204
    %v3069 = vpack.c.b16 %v2221, %v2205
    %v3070 = vpack.c.b16 %v2222, %v2206
    %v3071 = vpack.c.b16 %v2223, %v2207
    %v3072 = vpack.c.b16 %v2224, %v2208
    %v3073 = vpack.c.b16 %v2225, %v2209
    %v3074 = vpack.c.b16 %v2226, %v2210
    %v3075 = vpack.c.b16 %v2227, %v2211
    %v3076 = vpack.c.b16 %v2228, %v2212
    %v3077 = vpack.c.b16 %v2229, %v2213
    %v3078 = vpack.c.b16 %v2230, %v2214
    %v3079 = vpack.c.b16 %v2247, %v2231
    %v3080 = vpack.c.b16 %v2248, %v2232
    %v3081 = vpack.c.b16 %v2249, %v2233
    %v3082 = vpack.c.b16 %v2250, %v2234
    %v3083 = vpack.c.b16 %v2251, %v2235
    %v3084 = vpack.c.b16 %v2252, %v2236
    %v3085 = vpack.c.b16 %v2253, %v2237
    %v3086 = vpack.c.b16 %v2254, %v2238
    %v3087 = vpack.c.b16 %v2255, %v2239
    %v3088 = vpack.c.b16 %v2256, %v2240
    %v3089 = vpack.c.b16 %v2257, %v2241
    %v3090 = vpack.c.b16 %v2258, %v2242
    %v3091 = vpack.c.b16 %v2259, %v2243
    %v3092 = vpack.c.b16 %v2260, %v2244
    %v3093 = vpack.c.b16 %v2261, %v2245
    %v3094 = vpack.c.b16 %v2262, %v2246
    %v3095 = vpack.c.b16 %v2279, %v2263
    %v3096 = vpack.c.b16 %v2280, %v2264
    %v3097 = vpack.c.b16 %v2281, %v2265
    %v3098 = vpack.c.b16 %v2282, %v2266
    %v3099 = vpack.c.b16 %v2283, %v2267
    %v3100 = vpack.c.b16 %v2284, %v2268
    %v3101 = vpack.c.b16 %v2285, %v2269
    %v3102 = vpack.c.b16 %v2286, %v2270
    %v3103 = vpack.c.b16 %v2287, %v2271
    %v3104 = vpack.c.b16 %v2288, %v2272
    %v3105 = vpack.c.b16 %v2289, %v2273
    %v3106 = vpack.c.b16 %v2290, %v2274
    %v3107 = vpack.c.b16 %v2291, %v2275
    %v3108 = vpack.c.b16 %v2292, %v2276
    %v3109 = vpack.c.b16 %v2293, %v2277
    %v3110 = vpack.c.b16 %v2294, %v2278
    %v3111 = vpack.c.b16 %v2311, %v2295
    %v3112 = vpack.c.b16 %v2312, %v2296
    %v3113 = vpack.c.b16 %v2313, %v2297
    %v3114 = vpack.c.b16 %v2314, %v2298
    %v3115 = vpack.c.b16 %v2315, %v2299
    %v3116 = vpack.c.b16 %v2316, %v2300
    %v3117 = vpack.c.b16 %v2317, %v2301
    %v3118 = vpack.c.b16 %v2318, %v2302
    %v3119 = vpack.c.b16 %v2319, %v2303
    %v3120 = vpack.c.b16 %v2320, %v2304
    %v3121 = vpack.c.b16 %v2321, %v2305
    %v3122 = vpack.c.b16 %v2322, %v2306
    %v3123 = vpack.c.b16 %v2323, %v2307
    %v3124 = vpack.c.b16 %v2324, %v2308
    %v3125 = vpack.c.b16 %v2325, %v2309
    %v3126 = vpack.c.b16 %v2326, %v2310
    %v3127 = vpack.c.b16 %v2343, %v2327
    %v3128 = vpack.c.b16 %v2344, %v2328
    %v3129 = vpack.c.b16 %v2345, %v2329
    %v3130 = vpack.c.b16 %v2346, %v2330
    %v3131 = vpack.c.b16 %v2347, %v2331
    %v3132 = vpack.c.b16 %v2348, %v2332
    %v3133 = vpack.c.b16 %v2349, %v2333
    %v3134 = vpack.c.b16 %v2350, %v2334
    %v3135 = vpack.c.b16 %v2351, %v2335
    %v3136 = vpack.c.b16 %v2352, %v2336
    %v3137 = vpack.c.b16 %v2353, %v2337
    %v3138 = vpack.c.b16 %v2354, %v2338
    %v3139 = vpack.c.b16 %v2355, %v2339
    %v3140 = vpack.c.b16 %v2356, %v2340
    %v3141 = vpack.c.b16 %v2357, %v2341
    %v3142 = vpack.c.b16 %v2358, %v2342
    %v3143 = vpack.c.b16 %v2375, %v2359
    %v3144 = vpack.c.b16 %v2376, %v2360
    %v3145 = vpack.c.b16 %v2377, %v2361
    %v3146 = vpack.c.b16 %v2378, %v2362
    %v3147 = vpack.c.b16 %v2379, %v2363
    %v3148 = vpack.c.b16 %v2380, %v2364
    %v3149 = vpack.c.b16 %v2381, %v2365
    %v3150 = vpack.c.b16 %v2382, %v2366
    %v3151 = vpack.c.b16 %v2383, %v2367
    %v3152 = vpack.c.b16 %v2384, %v2368
    %v3153 = vpack.c.b16 %v2385, %v2369
    %v3154 = vpack.c.b16 %v2386, %v2370
    %v3155 = vpack.c.b16 %v2387, %v2371
    %v3156 = vpack.c.b16 %v2388, %v2372
    %v3157 = vpack.c.b16 %v2389, %v2373
    %v3158 = vpack.c.b16 %v2390, %v2374
    %v3159 = vpack.c.b16 %v2407, %v2391
    %v3160 = vpack.c.b16 %v2408, %v2392
    %v3161 = vpack.c.b16 %v2409, %v2393
    %v3162 = vpack.c.b16 %v2410, %v2394
    %v3163 = vpack.c.b16 %v2411, %v2395
    %v3164 = vpack.c.b16 %v2412, %v2396
    %v3165 = vpack.c.b16 %v2413, %v2397
    %v3166 = vpack.c.b16 %v2414, %v2398
    %v3167 = vpack.c.b16 %v2415, %v2399
    %v3168 = vpack.c.b16 %v2416, %v2400
    %v3169 = vpack.c.b16 %v2417, %v2401
    %v3170 = vpack.c.b16 %v2418, %v2402
    %v3171 = vpack.c.b16 %v2419, %v2403
    %v3172 = vpack.c.b16 %v2420, %v2404
    %v3173 = vpack.c.b16 %v2421, %v2405
    %v3174 = vpack.c.b16 %v2422, %v2406
    %v3175 = vpack.c.b16 %v2439, %v2423
    %v3176 = vpack.c.b16 %v2440, %v2424
    %v3177 = vpack.c.b16 %v2441, %v2425
    %v3178 = vpack.c.b16 %v2442, %v2426
    %v3179 = vpack.c.b16 %v2443, %v2427
    %v3180 = vpack.c.b16 %v2444, %v2428
    %v3181 = vpack.c.b16 %v2445, %v2429
    %v3182 = vpack.c.b16 %v2446, %v2430
    %v3183 = vpack.c.b16 %v2447, %v2431
    %v3184 = vpack.c.b16 %v2448, %v2432
    %v3185 = vpack.c.b16 %v2449, %v2433
    %v3186 = vpack.c.b16 %v2450, %v2434
    %v3187 = vpack.c.b16 %v2451, %v2435
    %v3188 = vpack.c.b16 %v2452, %v2436
    %v3189 = vpack.c.b16 %v2453, %v2437
    %v3190 = vpack.c.b16 %v2454, %v2438
    %v3191 = vpack.c.b16 %v2471, %v2455
    %v3192 = vpack.c.b16 %v2472, %v2456
    %v3193 = vpack.c.b16 %v2473, %v2457
    %v3194 = vpack.c.b16 %v2474, %v2458
    %v3195 = vpack.c.b16 %v2475, %v2459
    %v3196 = vpack.c.b16 %v2476, %v2460
    %v3197 = vpack.c.b16 %v2477, %v2461
    %v3198 = vpack.c.b16 %v2478, %v2462
    %v3199 = vpack.c.b16 %v2479, %v2463
    %v3200 = vpack.c.b16 %v2480, %v2464
    %v3201 = vpack.c.b16 %v2481, %v2465
    %v3202 = vpack.c.b16 %v2482, %v2466
    %v3203 = vpack.c.b16 %v2483, %v2467
    %v3204 = vpack.c.b16 %v2484, %v2468
    %v3205 = vpack.c.b16 %v2485, %v2469
    %v3206 = vpack.c.b16 %v2486, %v2470
    %v3207 = vpack.c.b16 %v2503, %v2487
    %v3208 = vpack.c.b16 %v2504, %v2488
    %v3209 = vpack.c.b16 %v2505, %v2489
    %v3210 = vpack.c.b16 %v2506, %v2490
    %v3211 = vpack.c.b16 %v2507, %v2491
    %v3212 = vpack.c.b16 %v2508, %v2492
    %v3213 = vpack.c.b16 %v2509, %v2493
    %v3214 = vpack.c.b16 %v2510, %v2494
    %v3215 = vpack.c.b16 %v2511, %v2495
    %v3216 = vpack.c.b16 %v2512, %v2496
    %v3217 = vpack.c.b16 %v2513, %v2497
    %v3218 = vpack.c.b16 %v2514, %v2498
    %v3219 = vpack.c.b16 %v2515, %v2499
    %v3220 = vpack.c.b16 %v2516, %v2500
    %v3221 = vpack.c.b16 %v2517, %v2501
    %v3222 = vpack.c.b16 %v2518, %v2502
    %v3223 = vpack.c.b16 %v2535, %v2519
    %v3224 = vpack.c.b16 %v2536, %v2520
    %v3225 = vpack.c.b16 %v2537, %v2521
    %v3226 = vpack.c.b16 %v2538, %v2522
    %v3227 = vpack.c.b16 %v2539, %v2523
    %v3228 = vpack.c.b16 %v2540, %v2524
    %v3229 = vpack.c.b16 %v2541, %v2525
    %v3230 = vpack.c.b16 %v2542, %v2526
    %v3231 = vpack.c.b16 %v2543, %v2527
    %v3232 = vpack.c.b16 %v2544, %v2528
    %v3233 = vpack.c.b16 %v2545, %v2529
    %v3234 = vpack.c.b16 %v2546, %v2530
    %v3235 = vpack.c.b16 %v2547, %v2531
    %v3236 = vpack.c.b16 %v2548, %v2532
    %v3237 = vpack.c.b16 %v2549, %v2533
    %v3238 = vpack.c.b16 %v2550, %v2534
    %v3239 = vpack.c.b16 %v2567, %v2551
    %v3240 = vpack.c.b16 %v2568, %v2552
    %v3241 = vpack.c.b16 %v2569, %v2553
    %v3242 = vpack.c.b16 %v2570, %v2554
    %v3243 = vpack.c.b16 %v2571, %v2555
    %v3244 = vpack.c.b16 %v2572, %v2556
    %v3245 = vpack.c.b16 %v2573, %v2557
    %v3246 = vpack.c.b16 %v2574, %v2558
    %v3247 = vpack.c.b16 %v2575, %v2559
    %v3248 = vpack.c.b16 %v2576, %v2560
    %v3249 = vpack.c.b16 %v2577, %v2561
    %v3250 = vpack.c.b16 %v2578, %v2562
    %v3251 = vpack.c.b16 %v2579, %v2563
    %v3252 = vpack.c.b16 %v2580, %v2564
    %v3253 = vpack.c.b16 %v2581, %v2565
    %v3254 = vpack.c.b16 %v2582, %v2566
    %v3255 = vpack.c.b16 %v2599, %v2583
    %v3256 = vpack.c.b16 %v2600, %v2584
    %v3257 = vpack.c.b16 %v2601, %v2585
    %v3258 = vpack.c.b16 %v2602, %v2586
    %v3259 = vpack.c.b16 %v2603, %v2587
    %v3260 = vpack.c.b16 %v2604, %v2588
    %v3261 = vpack.c.b16 %v2605, %v2589
    %v3262 = vpack.c.b16 %v2606, %v2590
    %v3263 = vpack.c.b16 %v2607, %v2591
    %v3264 = vpack.c.b16 %v2608, %v2592
    %v3265 = vpack.c.b16 %v2609, %v2593
    %v3266 = vpack.c.b16 %v2610, %v2594
    %v3267 = vpack.c.b16 %v2611, %v2595
    %v3268 = vpack.c.b16 %v2612, %v2596
    %v3269 = vpack.c.b16 %v2613, %v2597
    %v3270 = vpack.c.b16 %v2614, %v2598
    %v3271 = vpack.c.b16 %v2631, %v2615
    %v3272 = vpack.c.b16 %v2632, %v2616
    %v3273 = vpack.c.b16 %v2633, %v2617
    %v3274 = vpack.c.b16 %v2634, %v2618
    %v3275 = vpack.c.b16 %v2635, %v2619
    %v3276 = vpack.c.b16 %v2636, %v2620
    %v3277 = vpack.c.b16 %v2637, %v2621
    %v3278 = vpack.c.b16 %v2638, %v2622
    %v3279 = vpack.c.b16 %v2639, %v2623
    %v3280 = vpack.c.b16 %v2640, %v2624
    %v3281 = vpack.c.b16 %v2641, %v2625
    %v3282 = vpack.c.b16 %v2642, %v2626
    %v3283 = vpack.c.b16 %v2643, %v2627
    %v3284 = vpack.c.b16 %v2644, %v2628
    %v3285 = vpack.c.b16 %v2645, %v2629
    %v3286 = vpack.c.b16 %v2646, %v2630
    %v3287 = vpack.c.b16 %v2663, %v2647
    %v3288 = vpack.c.b16 %v2664, %v2648
    %v3289 = vpack.c.b16 %v2665, %v2649
    %v3290 = vpack.c.b16 %v2666, %v2650
    %v3291 = vpack.c.b16 %v2667, %v2651
    %v3292 = vpack.c.b16 %v2668, %v2652
    %v3293 = vpack.c.b16 %v2669, %v2653
    %v3294 = vpack.c.b16 %v2670, %v2654
    %v3295 = vpack.c.b16 %v2671, %v2655
    %v3296 = vpack.c.b16 %v2672, %v2656
    %v3297 = vpack.c.b16 %v2673, %v2657
    %v3298 = vpack.c.b16 %v2674, %v2658
    %v3299 = vpack.c.b16 %v2675, %v2659
    %v3300 = vpack.c.b16 %v2676, %v2660
    %v3301 = vpack.c.b16 %v2677, %v2661
    %v3302 = vpack.c.b16 %v2678, %v2662
    %v3303 = vpack.c.b16 %v2695, %v2679
    %v3304 = vpack.c.b16 %v2696, %v2680
    %v3305 = vpack.c.b16 %v2697, %v2681
    %v3306 = vpack.c.b16 %v2698, %v2682
    %v3307 = vpack.c.b16 %v2699, %v2683
    %v3308 = vpack.c.b16 %v2700, %v2684
    %v3309 = vpack.c.b16 %v2701, %v2685
    %v3310 = vpack.c.b16 %v2702, %v2686
    %v3311 = vpack.c.b16 %v2703, %v2687
    %v3312 = vpack.c.b16 %v2704, %v2688
    %v3313 = vpack.c.b16 %v2705, %v2689
    %v3314 = vpack.c.b16 %v2706, %v2690
    %v3315 = vpack.c.b16 %v2707, %v2691
    %v3316 = vpack.c.b16 %v2708, %v2692
    %v3317 = vpack.c.b16 %v2709, %v2693
    %v3318 = vpack.c.b16 %v2710, %v2694
    %v3319 = vpack.c.b16 %v2727, %v2711
    %v3320 = vpack.c.b16 %v2728, %v2712
    %v3321 = vpack.c.b16 %v2729, %v2713
    %v3322 = vpack.c.b16 %v2730, %v2714
    %v3323 = vpack.c.b16 %v2731, %v2715
    %v3324 = vpack.c.b16 %v2732, %v2716
    %v3325 = vpack.c.b16 %v2733, %v2717
    %v3326 = vpack.c.b16 %v2734, %v2718
    %v3327 = vpack.c.b16 %v2735, %v2719
    %v3328 = vpack.c.b16 %v2736, %v2720
    %v3329 = vpack.c.b16 %v2737, %v2721
    %v3330 = vpack.c.b16 %v2738, %v2722
    %v3331 = vpack.c.b16 %v2739, %v2723
    %v3332 = vpack.c.b16 %v2740, %v2724
    %v3333 = vpack.c.b16 %v2741, %v2725
    %v3334 = vpack.c.b16 %v2742, %v2726
    %v3335 = vpack.c.b16 %v2759, %v2743
    %v3336 = vpack.c.b16 %v2760, %v2744
    %v3337 = vpack.c.b16 %v2761, %v2745
    %v3338 = vpack.c.b16 %v2762, %v2746
    %v3339 = vpack.c.b16 %v2763, %v2747
    %v3340 = vpack.c.b16 %v2764, %v2748
    %v3341 = vpack.c.b16 %v2765, %v2749
    %v3342 = vpack.c.b16 %v2766, %v2750
    %v3343 = vpack.c.b16 %v2767, %v2751
    %v3344 = vpack.c.b16 %v2768, %v2752
    %v3345 = vpack.c.b16 %v2769, %v2753
    %v3346 = vpack.c.b16 %v2770, %v2754
    %v3347 = vpack.c.b16 %v2771, %v2755
    %v3348 = vpack.c.b16 %v2772, %v2756
    %v3349 = vpack.c.b16 %v2773, %v2757
    %v3350 = vpack.c.b16 %v2774, %v2758
    %v3351 = vpack.c.b16 %v2791, %v2775
    %v3352 = vpack.c.b16 %v2792, %v2776
    %v3353 = vpack.c.b16 %v2793, %v2777
    %v3354 = vpack.c.b16 %v2794, %v2778
    %v3355 = vpack.c.b16 %v2795, %v2779
    %v3356 = vpack.c.b16 %v2796, %v2780
    %v3357 = vpack.c.b16 %v2797, %v2781
    %v3358 = vpack.c.b16 %v2798, %v2782
    %v3359 = vpack.c.b16 %v2799, %v2783
    %v3360 = vpack.c.b16 %v2800, %v2784
    %v3361 = vpack.c.b16 %v2801, %v2785
    %v3362 = vpack.c.b16 %v2802, %v2786
    %v3363 = vpack.c.b16 %v2803, %v2787
    %v3364 = vpack.c.b16 %v2804, %v2788
    %v3365 = vpack.c.b16 %v2805, %v2789
    %v3366 = vpack.c.b16 %v2806, %v2790
    %v3367 = vpack.c.b16 %v2823, %v2807
    %v3368 = vpack.c.b16 %v2824, %v2808
    %v3369 = vpack.c.b16 %v2825, %v2809
    %v3370 = vpack.c.b16 %v2826, %v2810
    %v3371 = vpack.c.b16 %v2827, %v2811
    %v3372 = vpack.c.b16 %v2828, %v2812
    %v3373 = vpack.c.b16 %v2829, %v2813
    %v3374 = vpack.c.b16 %v2830, %v2814
    %v3375 = vpack.c.b16 %v2831, %v2815
    %v3376 = vpack.c.b16 %v2832, %v2816
    %v3377 = vpack.c.b16 %v2833, %v2817
    %v3378 = vpack.c.b16 %v2834, %v2818
    %v3379 = vpack.c.b16 %v2835, %v2819
    %v3380 = vpack.c.b16 %v2836, %v2820
    %v3381 = vpack.c.b16 %v2837, %v2821
    %v3382 = vpack.c.b16 %v2838, %v2822
    %v3383 = vpack.c.b16 %v2855, %v2839
    %v3384 = vpack.c.b16 %v2856, %v2840
    %v3385 = vpack.c.b16 %v2857, %v2841
    %v3386 = vpack.c.b16 %v2858, %v2842
    %v3387 = vpack.c.b16 %v2859, %v2843
    %v3388 = vpack.c.b16 %v2860, %v2844
    %v3389 = vpack.c.b16 %v2861, %v2845
    %v3390 = vpack.c.b16 %v2862, %v2846
    %v3391 = vpack.c.b16 %v2863, %v2847
    %v3392 = vpack.c.b16 %v2864, %v2848
    %v3393 = vpack.c.b16 %v2865, %v2849
    %v3394 = vpack.c.b16 %v2866, %v2850
    %v3395 = vpack.c.b16 %v2867, %v2851
    %v3396 = vpack.c.b16 %v2868, %v2852
    %v3397 = vpack.c.b16 %v2869, %v2853
    %v3398 = vpack.c.b16 %v2870, %v2854
    %v3399 = vpack.c.b16 %v2887, %v2871
    %v3400 = vpack.c.b16 %v2888, %v2872
    %v3401 = vpack.c.b16 %v2889, %v2873
    %v3402 = vpack.c.b16 %v2890, %v2874
    %v3403 = vpack.c.b16 %v2891, %v2875
    %v3404 = vpack.c.b16 %v2892, %v2876
    %v3405 = vpack.c.b16 %v2893, %v2877
    %v3406 = vpack.c.b16 %v2894, %v2878
    %v3407 = vpack.c.b16 %v2895, %v2879
    %v3408 = vpack.c.b16 %v2896, %v2880
    %v3409 = vpack.c.b16 %v2897, %v2881
    %v3410 = vpack.c.b16 %v2898, %v2882
    %v3411 = vpack.c.b16 %v2899, %v2883
    %v3412 = vpack.c.b16 %v2900, %v2884
    %v3413 = vpack.c.b16 %v2901, %v2885
    %v3414 = vpack.c.b16 %v2902, %v2886
    %3927 = vmatprep.subr.bf16.mxu0 %v2904
    %3928 = vmatpush1.bf16.msra.mxu0 %v2903
    %3929 = vmatprep.subr.bf16.mxu0 %v2920
    %3930 = vmatpush1.bf16.msra.mxu0 %v2919
    %3931 = vmatprep.subr.bf16.mxu0 %v2936
    %3932 = vmatpush1.bf16.msra.mxu0 %v2935
    %3933 = vmatprep.subr.bf16.mxu0 %v2952
    %3934 = vmatpush1.bf16.msra.mxu0 %v2951
    %3935 = vmatprep.subr.bf16.mxu0 %v2968
    %3936 = vmatpush1.bf16.msra.mxu0 %v2967
    %3937 = vmatprep.subr.bf16.mxu0 %v2984
    %3938 = vmatpush1.bf16.msra.mxu0 %v2983
    %3939 = vmatprep.subr.bf16.mxu0 %v3000
    %3940 = vmatpush1.bf16.msra.mxu0 %v2999
    %3941 = vmatprep.subr.bf16.mxu0 %v3016
    %3942 = vmatpush1.bf16.msra.mxu0 %v3015
    %3943 = vmatprep.subr.bf16.mxu0 %v3032
    %3944 = vmatpush1.bf16.msra.mxu0 %v3031
    %3945 = vmatprep.subr.bf16.mxu0 %v3048
    %3946 = vmatpush1.bf16.msra.mxu0 %v3047
    %3947 = vmatprep.subr.bf16.mxu0 %v3064
    %3948 = vmatpush1.bf16.msra.mxu0 %v3063
    %3949 = vmatprep.subr.bf16.mxu0 %v3080
    %3950 = vmatpush1.bf16.msra.mxu0 %v3079
    %3951 = vmatprep.subr.bf16.mxu0 %v3096
    %3952 = vmatpush1.bf16.msra.mxu0 %v3095
    %3953 = vmatprep.subr.bf16.mxu0 %v3112
    %3954 = vmatpush1.bf16.msra.mxu0 %v3111
    %3955 = vmatprep.subr.bf16.mxu0 %v3128
    %3956 = vmatpush1.bf16.msra.mxu0 %v3127
    %3957 = vmatprep.subr.bf16.mxu0 %v3144
    %3958 = vmatpush1.bf16.msra.mxu0 %v3143
    %3959 = vmatprep.mubr.bf16.mxu0 %v792
    %3960 = vmatmul.mubr.bf16.gmra.mrb[0].mxu0 %v791
    %v3961 = vpop.f32.mrb[0].mxu0
    %v3962 = vadd.f32 0.0, %v3961
    %v3963 = vpop.f32.mrb[0].mxu0
    %v3964 = vadd.f32 0.0, %v3963
    %v3965 = vpop.f32.mrb[0].mxu0
    %v3966 = vadd.f32 0.0, %v3965
    %v3967 = vpop.f32.mrb[0].mxu0
    %v3968 = vadd.f32 0.0, %v3967
    %3969 = vmatprep.mubr.bf16.mxu0 %v796
    %3970 = vmatmul.mubr.bf16.gmra.mrb[0].mxu0 %v795
    %v3971 = vpop.f32.mrb[0].mxu0
    %v3972 = vadd.f32 0.0, %v3971
    %v3973 = vpop.f32.mrb[0].mxu0
    %v3974 = vadd.f32 0.0, %v3973
    %v3975 = vpop.f32.mrb[0].mxu0
    %v3976 = vadd.f32 0.0, %v3975
    %v3977 = vpop.f32.mrb[0].mxu0
    %v3978 = vadd.f32 0.0, %v3977
    %3979 = vmatprep.mubr.bf16.mxu0 %v800
    %3980 = vmatmul.mubr.bf16.gmra.mrb[0].mxu0 %v799
    %v3981 = vpop.f32.mrb[0].mxu0
    %v3982 = vadd.f32 0.0, %v3981
    %v3983 = vpop.f32.mrb[0].mxu0
    %v3984 = vadd.f32 0.0, %v3983
    %v3985 = vpop.f32.mrb[0].mxu0
    %v3986 = vadd.f32 0.0, %v3985
    %v3987 = vpop.f32.mrb[0].mxu0
    %v3988 = vadd.f32 0.0, %v3987
    %3989 = vmatprep.mubr.bf16.mxu0 %v804
    %3990 = vmatmul.mubr.bf16.gmra.mrb[0].mxu0 %v803
    %v3991 = vpop.f32.mrb[0].mxu0
    %v3992 = vadd.f32 0.0, %v3991
    %v3993 = vpop.f32.mrb[0].mxu0
    %v3994 = vadd.f32 0.0, %v3993
    %v3995 = vpop.f32.mrb[0].mxu0
    %v3996 = vadd.f32 0.0, %v3995
    %v3997 = vpop.f32.mrb[0].mxu0
    %v3998 = vadd.f32 0.0, %v3997
    %3999 = vmatprep.mubr.bf16.mxu0 %v808
    %4000 = vmatmul.mubr.bf16.gmra.mrb[0].mxu0 %v807
    %v4001 = vpop.f32.mrb[0].mxu0
    %v4002 = vadd.f32 0.0, %v4001
    %v4003 = vpop.f32.mrb[0].mxu0
    %v4004 = vadd.f32 0.0, %v4003
    %v4005 = vpop.f32.mrb[0].mxu0
    %v4006 = vadd.f32 0.0, %v4005
    %v4007 = vpop.f32.mrb[0].mxu0
    %v4008 = vadd.f32 0.0, %v4007
    %4009 = vmatprep.mubr.bf16.mxu0 %v812
    %4010 = vmatmul.mubr.bf16.gmra.mrb[0].mxu0 %v811
    %v4011 = vpop.f32.mrb[0].mxu0
    %v4012 = vadd.f32 0.0, %v4011
    %v4013 = vpop.f32.mrb[0].mxu0
    %v4014 = vadd.f32 0.0, %v4013
    %v4015 = vpop.f32.mrb[0].mxu0
    %v4016 = vadd.f32 0.0, %v4015
    %v4017 = vpop.f32.mrb[0].mxu0
    %v4018 = vadd.f32 0.0, %v4017
    %4019 = vmatprep.mubr.bf16.mxu0 %v816
    %4020 = vmatmul.mubr.bf16.gmra.mrb[0].mxu0 %v815
    %v4021 = vpop.f32.mrb[0].mxu0
    %v4022 = vadd.f32 0.0, %v4021
    %v4023 = vpop.f32.mrb[0].mxu0
    %v4024 = vadd.f32 0.0, %v4023
    %v4025 = vpop.f32.mrb[0].mxu0
    %v4026 = vadd.f32 0.0, %v4025
    %v4027 = vpop.f32.mrb[0].mxu0
    %v4028 = vadd.f32 0.0, %v4027
    %4029 = vmatprep.mubr.bf16.mxu0 %v820
    %4030 = vmatmul.mubr.bf16.gmra.mrb[0].mxu0 %v819
    %v4031 = vpop.f32.mrb[0].mxu0
    %v4032 = vadd.f32 0.0, %v4031
    %v4033 = vpop.f32.mrb[0].mxu0
    %v4034 = vadd.f32 0.0, %v4033
    %v4035 = vpop.f32.mrb[0].mxu0
    %v4036 = vadd.f32 0.0, %v4035
    %v4037 = vpop.f32.mrb[0].mxu0
    %v4038 = vadd.f32 0.0, %v4037
    %4039 = vmatprep.mubr.bf16.mxu0 %v824
    %4040 = vmatmul.mubr.bf16.gmra.mrb[0].mxu0 %v823
    %v4041 = vpop.f32.mrb[0].mxu0
    %v4042 = vadd.f32 0.0, %v4041
    %v4043 = vpop.f32.mrb[0].mxu0
    %v4044 = vadd.f32 0.0, %v4043
    %v4045 = vpop.f32.mrb[0].mxu0
    %v4046 = vadd.f32 0.0, %v4045
    %v4047 = vpop.f32.mrb[0].mxu0
    %v4048 = vadd.f32 0.0, %v4047
    %4049 = vmatprep.mubr.bf16.mxu0 %v828
    %4050 = vmatmul.mubr.bf16.gmra.mrb[0].mxu0 %v827
    %v4051 = vpop.f32.mrb[0].mxu0
    %v4052 = vadd.f32 0.0, %v4051
    %v4053 = vpop.f32.mrb[0].mxu0
    %v4054 = vadd.f32 0.0, %v4053
    %v4055 = vpop.f32.mrb[0].mxu0
    %v4056 = vadd.f32 0.0, %v4055
    %v4057 = vpop.f32.mrb[0].mxu0
    %v4058 = vadd.f32 0.0, %v4057
    %4059 = vmatprep.mubr.bf16.mxu0 %v832
    %4060 = vmatmul.mubr.bf16.gmra.mrb[0].mxu0 %v831
    %v4061 = vpop.f32.mrb[0].mxu0
    %v4062 = vadd.f32 0.0, %v4061
    %v4063 = vpop.f32.mrb[0].mxu0
    %v4064 = vadd.f32 0.0, %v4063
    %v4065 = vpop.f32.mrb[0].mxu0
    %v4066 = vadd.f32 0.0, %v4065
    %v4067 = vpop.f32.mrb[0].mxu0
    %v4068 = vadd.f32 0.0, %v4067
    %4069 = vmatprep.mubr.bf16.mxu0 %v836
    %4070 = vmatmul.mubr.bf16.gmra.mrb[0].mxu0 %v835
    %v4071 = vpop.f32.mrb[0].mxu0
    %v4072 = vadd.f32 0.0, %v4071
    %v4073 = vpop.f32.mrb[0].mxu0
    %v4074 = vadd.f32 0.0, %v4073
    %v4075 = vpop.f32.mrb[0].mxu0
    %v4076 = vadd.f32 0.0, %v4075
    %v4077 = vpop.f32.mrb[0].mxu0
    %v4078 = vadd.f32 0.0, %v4077
    %4079 = vmatprep.mubr.bf16.mxu0 %v840
    %4080 = vmatmul.mubr.bf16.gmra.mrb[0].mxu0 %v839
    %v4081 = vpop.f32.mrb[0].mxu0
    %v4082 = vadd.f32 0.0, %v4081
    %v4083 = vpop.f32.mrb[0].mxu0
    %v4084 = vadd.f32 0.0, %v4083
    %v4085 = vpop.f32.mrb[0].mxu0
    %v4086 = vadd.f32 0.0, %v4085
    %v4087 = vpop.f32.mrb[0].mxu0
    %v4088 = vadd.f32 0.0, %v4087
    %4089 = vmatprep.mubr.bf16.mxu0 %v844
    %4090 = vmatmul.mubr.bf16.gmra.mrb[0].mxu0 %v843
    %v4091 = vpop.f32.mrb[0].mxu0
    %v4092 = vadd.f32 0.0, %v4091
    %v4093 = vpop.f32.mrb[0].mxu0
    %v4094 = vadd.f32 0.0, %v4093
    %v4095 = vpop.f32.mrb[0].mxu0
    %v4096 = vadd.f32 0.0, %v4095
    %v4097 = vpop.f32.mrb[0].mxu0
    %v4098 = vadd.f32 0.0, %v4097
    %4099 = vmatprep.mubr.bf16.mxu0 %v848
    %4100 = vmatmul.mubr.bf16.gmra.mrb[0].mxu0 %v847
    %v4101 = vpop.f32.mrb[0].mxu0
    %v4102 = vadd.f32 0.0, %v4101
    %v4103 = vpop.f32.mrb[0].mxu0
    %v4104 = vadd.f32 0.0, %v4103
    %v4105 = vpop.f32.mrb[0].mxu0
    %v4106 = vadd.f32 0.0, %v4105
    %v4107 = vpop.f32.mrb[0].mxu0
    %v4108 = vadd.f32 0.0, %v4107
    %4109 = vmatprep.mubr.bf16.mxu0 %v852
    %4110 = vmatmul.mubr.bf16.gmra.mrb[0].mxu0 %v851
    %v4111 = vpop.f32.mrb[0].mxu0
    %v4112 = vadd.f32 0.0, %v4111
    %v4113 = vpop.f32.mrb[0].mxu0
    %v4114 = vadd.f32 0.0, %v4113
    %v4115 = vpop.f32.mrb[0].mxu0
    %v4116 = vadd.f32 0.0, %v4115
    %v4117 = vpop.f32.mrb[0].mxu0
    %v4118 = vadd.f32 0.0, %v4117
    %4119 = vdwg.mxu0
    %4120 = vmatprep.subr.bf16.mxu0 %v3160
    %4121 = vmatpush1.bf16.msra.mxu0 %v3159
    %4122 = vmatprep.subr.bf16.mxu0 %v3176
    %4123 = vmatpush1.bf16.msra.mxu0 %v3175
    %4124 = vmatprep.subr.bf16.mxu0 %v3192
    %4125 = vmatpush1.bf16.msra.mxu0 %v3191
    %4126 = vmatprep.subr.bf16.mxu0 %v3208
    %4127 = vmatpush1.bf16.msra.mxu0 %v3207
    %4128 = vmatprep.subr.bf16.mxu0 %v3224
    %4129 = vmatpush1.bf16.msra.mxu0 %v3223
    %4130 = vmatprep.subr.bf16.mxu0 %v3240
    %4131 = vmatpush1.bf16.msra.mxu0 %v3239
    %4132 = vmatprep.subr.bf16.mxu0 %v3256
    %4133 = vmatpush1.bf16.msra.mxu0 %v3255
    %4134 = vmatprep.subr.bf16.mxu0 %v3272
    %4135 = vmatpush1.bf16.msra.mxu0 %v3271
    %4136 = vmatprep.subr.bf16.mxu0 %v3288
    %4137 = vmatpush1.bf16.msra.mxu0 %v3287
    %4138 = vmatprep.subr.bf16.mxu0 %v3304
    %4139 = vmatpush1.bf16.msra.mxu0 %v3303
    %4140 = vmatprep.subr.bf16.mxu0 %v3320
    %4141 = vmatpush1.bf16.msra.mxu0 %v3319
    %4142 = vmatprep.subr.bf16.mxu0 %v3336
    %4143 = vmatpush1.bf16.msra.mxu0 %v3335
    %4144 = vmatprep.subr.bf16.mxu0 %v3352
    %4145 = vmatpush1.bf16.msra.mxu0 %v3351
    %4146 = vmatprep.subr.bf16.mxu0 %v3368
    %4147 = vmatpush1.bf16.msra.mxu0 %v3367
    %4148 = vmatprep.subr.bf16.mxu0 %v3384
    %4149 = vmatpush1.bf16.msra.mxu0 %v3383
    %4150 = vmatprep.subr.bf16.mxu0 %v3400
    %4151 = vmatpush1.bf16.msra.mxu0 %v3399
    %4152 = vmatprep.mubr.bf16.mxu0 %v794
    %4153 = vmatmul.mubr.bf16.gmra.mrb[0].mxu0 %v793
    %v4154 = vpop.f32.mrb[0].mxu0
    %v4155 = vadd.f32 %v3962, %v4154
    %v4156 = vpop.f32.mrb[0].mxu0
    %v4157 = vadd.f32 %v3964, %v4156
    %v4158 = vpop.f32.mrb[0].mxu0
    %v4159 = vadd.f32 %v3966, %v4158
    %v4160 = vpop.f32.mrb[0].mxu0
    %v4161 = vadd.f32 %v3968, %v4160
    %4162 = vmatprep.mubr.bf16.mxu0 %v798
    %4163 = vmatmul.mubr.bf16.gmra.mrb[0].mxu0 %v797
    %v4164 = vpop.f32.mrb[0].mxu0
    %v4165 = vadd.f32 %v3972, %v4164
    %v4166 = vpop.f32.mrb[0].mxu0
    %v4167 = vadd.f32 %v3974, %v4166
    %v4168 = vpop.f32.mrb[0].mxu0
    %v4169 = vadd.f32 %v3976, %v4168
    %v4170 = vpop.f32.mrb[0].mxu0
    %v4171 = vadd.f32 %v3978, %v4170
    %4172 = vmatprep.mubr.bf16.mxu0 %v802
    %4173 = vmatmul.mubr.bf16.gmra.mrb[0].mxu0 %v801
    %v4174 = vpop.f32.mrb[0].mxu0
    %v4175 = vadd.f32 %v3982, %v4174
    %v4176 = vpop.f32.mrb[0].mxu0
    %v4177 = vadd.f32 %v3984, %v4176
    %v4178 = vpop.f32.mrb[0].mxu0
    %v4179 = vadd.f32 %v3986, %v4178
    %v4180 = vpop.f32.mrb[0].mxu0
    %v4181 = vadd.f32 %v3988, %v4180
    %4182 = vmatprep.mubr.bf16.mxu0 %v806
    %4183 = vmatmul.mubr.bf16.gmra.mrb[0].mxu0 %v805
    %v4184 = vpop.f32.mrb[0].mxu0
    %v4185 = vadd.f32 %v3992, %v4184
    %v4186 = vpop.f32.mrb[0].mxu0
    %v4187 = vadd.f32 %v3994, %v4186
    %v4188 = vpop.f32.mrb[0].mxu0
    %v4189 = vadd.f32 %v3996, %v4188
    %v4190 = vpop.f32.mrb[0].mxu0
    %v4191 = vadd.f32 %v3998, %v4190
    %4192 = vmatprep.mubr.bf16.mxu0 %v810
    %4193 = vmatmul.mubr.bf16.gmra.mrb[0].mxu0 %v809
    %v4194 = vpop.f32.mrb[0].mxu0
    %v4195 = vadd.f32 %v4002, %v4194
    %v4196 = vpop.f32.mrb[0].mxu0
    %v4197 = vadd.f32 %v4004, %v4196
    %v4198 = vpop.f32.mrb[0].mxu0
    %v4199 = vadd.f32 %v4006, %v4198
    %v4200 = vpop.f32.mrb[0].mxu0
    %v4201 = vadd.f32 %v4008, %v4200
    %4202 = vmatprep.mubr.bf16.mxu0 %v814
    %4203 = vmatmul.mubr.bf16.gmra.mrb[0].mxu0 %v813
    %v4204 = vpop.f32.mrb[0].mxu0
    %v4205 = vadd.f32 %v4012, %v4204
    %v4206 = vpop.f32.mrb[0].mxu0
    %v4207 = vadd.f32 %v4014, %v4206
    %v4208 = vpop.f32.mrb[0].mxu0
    %v4209 = vadd.f32 %v4016, %v4208
    %v4210 = vpop.f32.mrb[0].mxu0
    %v4211 = vadd.f32 %v4018, %v4210
    %4212 = vmatprep.mubr.bf16.mxu0 %v818
    %4213 = vmatmul.mubr.bf16.gmra.mrb[0].mxu0 %v817
    %v4214 = vpop.f32.mrb[0].mxu0
    %v4215 = vadd.f32 %v4022, %v4214
    %v4216 = vpop.f32.mrb[0].mxu0
    %v4217 = vadd.f32 %v4024, %v4216
    %v4218 = vpop.f32.mrb[0].mxu0
    %v4219 = vadd.f32 %v4026, %v4218
    %v4220 = vpop.f32.mrb[0].mxu0
    %v4221 = vadd.f32 %v4028, %v4220
    %4222 = vmatprep.mubr.bf16.mxu0 %v822
    %4223 = vmatmul.mubr.bf16.gmra.mrb[0].mxu0 %v821
    %v4224 = vpop.f32.mrb[0].mxu0
    %v4225 = vadd.f32 %v4032, %v4224
    %v4226 = vpop.f32.mrb[0].mxu0
    %v4227 = vadd.f32 %v4034, %v4226
    %v4228 = vpop.f32.mrb[0].mxu0
    %v4229 = vadd.f32 %v4036, %v4228
    %v4230 = vpop.f32.mrb[0].mxu0
    %v4231 = vadd.f32 %v4038, %v4230
    %4232 = vmatprep.mubr.bf16.mxu0 %v826
    %4233 = vmatmul.mubr.bf16.gmra.mrb[0].mxu0 %v825
    %v4234 = vpop.f32.mrb[0].mxu0
    %v4235 = vadd.f32 %v4042, %v4234
    %v4236 = vpop.f32.mrb[0].mxu0
    %v4237 = vadd.f32 %v4044, %v4236
    %v4238 = vpop.f32.mrb[0].mxu0
    %v4239 = vadd.f32 %v4046, %v4238
    %v4240 = vpop.f32.mrb[0].mxu0
    %v4241 = vadd.f32 %v4048, %v4240
    %4242 = vmatprep.mubr.bf16.mxu0 %v830
    %4243 = vmatmul.mubr.bf16.gmra.mrb[0].mxu0 %v829
    %v4244 = vpop.f32.mrb[0].mxu0
    %v4245 = vadd.f32 %v4052, %v4244
    %v4246 = vpop.f32.mrb[0].mxu0
    %v4247 = vadd.f32 %v4054, %v4246
    %v4248 = vpop.f32.mrb[0].mxu0
    %v4249 = vadd.f32 %v4056, %v4248
    %v4250 = vpop.f32.mrb[0].mxu0
    %v4251 = vadd.f32 %v4058, %v4250
    %4252 = vmatprep.mubr.bf16.mxu0 %v834
    %4253 = vmatmul.mubr.bf16.gmra.mrb[0].mxu0 %v833
    %v4254 = vpop.f32.mrb[0].mxu0
    %v4255 = vadd.f32 %v4062, %v4254
    %v4256 = vpop.f32.mrb[0].mxu0
    %v4257 = vadd.f32 %v4064, %v4256
    %v4258 = vpop.f32.mrb[0].mxu0
    %v4259 = vadd.f32 %v4066, %v4258
    %v4260 = vpop.f32.mrb[0].mxu0
    %v4261 = vadd.f32 %v4068, %v4260
    %4262 = vmatprep.mubr.bf16.mxu0 %v838
    %4263 = vmatmul.mubr.bf16.gmra.mrb[0].mxu0 %v837
    %v4264 = vpop.f32.mrb[0].mxu0
    %v4265 = vadd.f32 %v4072, %v4264
    %v4266 = vpop.f32.mrb[0].mxu0
    %v4267 = vadd.f32 %v4074, %v4266
    %v4268 = vpop.f32.mrb[0].mxu0
    %v4269 = vadd.f32 %v4076, %v4268
    %v4270 = vpop.f32.mrb[0].mxu0
    %v4271 = vadd.f32 %v4078, %v4270
    %4272 = vmatprep.mubr.bf16.mxu0 %v842
    %4273 = vmatmul.mubr.bf16.gmra.mrb[0].mxu0 %v841
    %v4274 = vpop.f32.mrb[0].mxu0
    %v4275 = vadd.f32 %v4082, %v4274
    %v4276 = vpop.f32.mrb[0].mxu0
    %v4277 = vadd.f32 %v4084, %v4276
    %v4278 = vpop.f32.mrb[0].mxu0
    %v4279 = vadd.f32 %v4086, %v4278
    %v4280 = vpop.f32.mrb[0].mxu0
    %v4281 = vadd.f32 %v4088, %v4280
    %4282 = vmatprep.mubr.bf16.mxu0 %v846
    %4283 = vmatmul.mubr.bf16.gmra.mrb[0].mxu0 %v845
    %v4284 = vpop.f32.mrb[0].mxu0
    %v4285 = vadd.f32 %v4092, %v4284
    %v4286 = vpop.f32.mrb[0].mxu0
    %v4287 = vadd.f32 %v4094, %v4286
    %v4288 = vpop.f32.mrb[0].mxu0
    %v4289 = vadd.f32 %v4096, %v4288
    %v4290 = vpop.f32.mrb[0].mxu0
    %v4291 = vadd.f32 %v4098, %v4290
    %4292 = vmatprep.mubr.bf16.mxu0 %v850
    %4293 = vmatmul.mubr.bf16.gmra.mrb[0].mxu0 %v849
    %v4294 = vpop.f32.mrb[0].mxu0
    %v4295 = vadd.f32 %v4102, %v4294
    %v4296 = vpop.f32.mrb[0].mxu0
    %v4297 = vadd.f32 %v4104, %v4296
    %v4298 = vpop.f32.mrb[0].mxu0
    %v4299 = vadd.f32 %v4106, %v4298
    %v4300 = vpop.f32.mrb[0].mxu0
    %v4301 = vadd.f32 %v4108, %v4300
    %4302 = vmatprep.mubr.bf16.mxu0 %v854
    %4303 = vmatmul.mubr.bf16.gmra.mrb[0].mxu0 %v853
    %v4304 = vpop.f32.mrb[0].mxu0
    %v4305 = vadd.f32 %v4112, %v4304
    %v4306 = vpop.f32.mrb[0].mxu0
    %v4307 = vadd.f32 %v4114, %v4306
    %v4308 = vpop.f32.mrb[0].mxu0
    %v4309 = vadd.f32 %v4116, %v4308
    %v4310 = vpop.f32.mrb[0].mxu0
    %v4311 = vadd.f32 %v4118, %v4310
    %4312 = vdwg.mxu0
    %4313 = vmatprep.subr.bf16.mxu0 %v2906
    %4314 = vmatpush1.bf16.msra.mxu0 %v2905
    %4315 = vmatprep.subr.bf16.mxu0 %v2922
    %4316 = vmatpush1.bf16.msra.mxu0 %v2921
    %4317 = vmatprep.subr.bf16.mxu0 %v2938
    %4318 = vmatpush1.bf16.msra.mxu0 %v2937
    %4319 = vmatprep.subr.bf16.mxu0 %v2954
    %4320 = vmatpush1.bf16.msra.mxu0 %v2953
    %4321 = vmatprep.subr.bf16.mxu0 %v2970
    %4322 = vmatpush1.bf16.msra.mxu0 %v2969
    %4323 = vmatprep.subr.bf16.mxu0 %v2986
    %4324 = vmatpush1.bf16.msra.mxu0 %v2985
    %4325 = vmatprep.subr.bf16.mxu0 %v3002
    %4326 = vmatpush1.bf16.msra.mxu0 %v3001
    %4327 = vmatprep.subr.bf16.mxu0 %v3018
    %4328 = vmatpush1.bf16.msra.mxu0 %v3017
    %4329 = vmatprep.subr.bf16.mxu0 %v3034
    %4330 = vmatpush1.bf16.msra.mxu0 %v3033
    %4331 = vmatprep.subr.bf16.mxu0 %v3050
    %4332 = vmatpush1.bf16.msra.mxu0 %v3049
    %4333 = vmatprep.subr.bf16.mxu0 %v3066
    %4334 = vmatpush1.bf16.msra.mxu0 %v3065
    %4335 = vmatprep.subr.bf16.mxu0 %v3082
    %4336 = vmatpush1.bf16.msra.mxu0 %v3081
    %4337 = vmatprep.subr.bf16.mxu0 %v3098
    %4338 = vmatpush1.bf16.msra.mxu0 %v3097
    %4339 = vmatprep.subr.bf16.mxu0 %v3114
    %4340 = vmatpush1.bf16.msra.mxu0 %v3113
    %4341 = vmatprep.subr.bf16.mxu0 %v3130
    %4342 = vmatpush1.bf16.msra.mxu0 %v3129
    %4343 = vmatprep.subr.bf16.mxu0 %v3146
    %4344 = vmatpush1.bf16.msra.mxu0 %v3145
    %4345 = vmatprep.mubr.bf16.mxu0 %v792
    %4346 = vmatmul.mubr.bf16.gmra.mrb[0].mxu0 %v791
    %v4347 = vpop.f32.mrb[0].mxu0
    %v4348 = vadd.f32 0.0, %v4347
    %v4349 = vpop.f32.mrb[0].mxu0
    %v4350 = vadd.f32 0.0, %v4349
    %v4351 = vpop.f32.mrb[0].mxu0
    %v4352 = vadd.f32 0.0, %v4351
    %v4353 = vpop.f32.mrb[0].mxu0
    %v4354 = vadd.f32 0.0, %v4353
    %4355 = vmatprep.mubr.bf16.mxu0 %v796
    %4356 = vmatmul.mubr.bf16.gmra.mrb[0].mxu0 %v795
    %v4357 = vpop.f32.mrb[0].mxu0
    %v4358 = vadd.f32 0.0, %v4357
    %v4359 = vpop.f32.mrb[0].mxu0
    %v4360 = vadd.f32 0.0, %v4359
    %v4361 = vpop.f32.mrb[0].mxu0
    %v4362 = vadd.f32 0.0, %v4361
    %v4363 = vpop.f32.mrb[0].mxu0
    %v4364 = vadd.f32 0.0, %v4363
    %4365 = vmatprep.mubr.bf16.mxu0 %v800
    %4366 = vmatmul.mubr.bf16.gmra.mrb[0].mxu0 %v799
    %v4367 = vpop.f32.mrb[0].mxu0
    %v4368 = vadd.f32 0.0, %v4367
    %v4369 = vpop.f32.mrb[0].mxu0
    %v4370 = vadd.f32 0.0, %v4369
    %v4371 = vpop.f32.mrb[0].mxu0
    %v4372 = vadd.f32 0.0, %v4371
    %v4373 = vpop.f32.mrb[0].mxu0
    %v4374 = vadd.f32 0.0, %v4373
    %4375 = vmatprep.mubr.bf16.mxu0 %v804
    %4376 = vmatmul.mubr.bf16.gmra.mrb[0].mxu0 %v803
    %v4377 = vpop.f32.mrb[0].mxu0
    %v4378 = vadd.f32 0.0, %v4377
    %v4379 = vpop.f32.mrb[0].mxu0
    %v4380 = vadd.f32 0.0, %v4379
    %v4381 = vpop.f32.mrb[0].mxu0
    %v4382 = vadd.f32 0.0, %v4381
    %v4383 = vpop.f32.mrb[0].mxu0
    %v4384 = vadd.f32 0.0, %v4383
    %4385 = vmatprep.mubr.bf16.mxu0 %v808
    %4386 = vmatmul.mubr.bf16.gmra.mrb[0].mxu0 %v807
    %v4387 = vpop.f32.mrb[0].mxu0
    %v4388 = vadd.f32 0.0, %v4387
    %v4389 = vpop.f32.mrb[0].mxu0
    %v4390 = vadd.f32 0.0, %v4389
    %v4391 = vpop.f32.mrb[0].mxu0
    %v4392 = vadd.f32 0.0, %v4391
    %v4393 = vpop.f32.mrb[0].mxu0
    %v4394 = vadd.f32 0.0, %v4393
    %4395 = vmatprep.mubr.bf16.mxu0 %v812
    %4396 = vmatmul.mubr.bf16.gmra.mrb[0].mxu0 %v811
    %v4397 = vpop.f32.mrb[0].mxu0
    %v4398 = vadd.f32 0.0, %v4397
    %v4399 = vpop.f32.mrb[0].mxu0
    %v4400 = vadd.f32 0.0, %v4399
    %v4401 = vpop.f32.mrb[0].mxu0
    %v4402 = vadd.f32 0.0, %v4401
    %v4403 = vpop.f32.mrb[0].mxu0
    %v4404 = vadd.f32 0.0, %v4403
    %4405 = vmatprep.mubr.bf16.mxu0 %v816
    %4406 = vmatmul.mubr.bf16.gmra.mrb[0].mxu0 %v815
    %v4407 = vpop.f32.mrb[0].mxu0
    %v4408 = vadd.f32 0.0, %v4407
    %v4409 = vpop.f32.mrb[0].mxu0
    %v4410 = vadd.f32 0.0, %v4409
    %v4411 = vpop.f32.mrb[0].mxu0
    %v4412 = vadd.f32 0.0, %v4411
    %v4413 = vpop.f32.mrb[0].mxu0
    %v4414 = vadd.f32 0.0, %v4413
    %4415 = vmatprep.mubr.bf16.mxu0 %v820
    %4416 = vmatmul.mubr.bf16.gmra.mrb[0].mxu0 %v819
    %v4417 = vpop.f32.mrb[0].mxu0
    %v4418 = vadd.f32 0.0, %v4417
    %v4419 = vpop.f32.mrb[0].mxu0
    %v4420 = vadd.f32 0.0, %v4419
    %v4421 = vpop.f32.mrb[0].mxu0
    %v4422 = vadd.f32 0.0, %v4421
    %v4423 = vpop.f32.mrb[0].mxu0
    %v4424 = vadd.f32 0.0, %v4423
    %4425 = vmatprep.mubr.bf16.mxu0 %v824
    %4426 = vmatmul.mubr.bf16.gmra.mrb[0].mxu0 %v823
    %v4427 = vpop.f32.mrb[0].mxu0
    %v4428 = vadd.f32 0.0, %v4427
    %v4429 = vpop.f32.mrb[0].mxu0
    %v4430 = vadd.f32 0.0, %v4429
    %v4431 = vpop.f32.mrb[0].mxu0
    %v4432 = vadd.f32 0.0, %v4431
    %v4433 = vpop.f32.mrb[0].mxu0
    %v4434 = vadd.f32 0.0, %v4433
    %4435 = vmatprep.mubr.bf16.mxu0 %v828
    %4436 = vmatmul.mubr.bf16.gmra.mrb[0].mxu0 %v827
    %v4437 = vpop.f32.mrb[0].mxu0
    %v4438 = vadd.f32 0.0, %v4437
    %v4439 = vpop.f32.mrb[0].mxu0
    %v4440 = vadd.f32 0.0, %v4439
    %v4441 = vpop.f32.mrb[0].mxu0
    %v4442 = vadd.f32 0.0, %v4441
    %v4443 = vpop.f32.mrb[0].mxu0
    %v4444 = vadd.f32 0.0, %v4443
    %4445 = vmatprep.mubr.bf16.mxu0 %v832
    %4446 = vmatmul.mubr.bf16.gmra.mrb[0].mxu0 %v831
    %v4447 = vpop.f32.mrb[0].mxu0
    %v4448 = vadd.f32 0.0, %v4447
    %v4449 = vpop.f32.mrb[0].mxu0
    %v4450 = vadd.f32 0.0, %v4449
    %v4451 = vpop.f32.mrb[0].mxu0
    %v4452 = vadd.f32 0.0, %v4451
    %v4453 = vpop.f32.mrb[0].mxu0
    %v4454 = vadd.f32 0.0, %v4453
    %4455 = vmatprep.mubr.bf16.mxu0 %v836
    %4456 = vmatmul.mubr.bf16.gmra.mrb[0].mxu0 %v835
    %v4457 = vpop.f32.mrb[0].mxu0
    %v4458 = vadd.f32 0.0, %v4457
    %v4459 = vpop.f32.mrb[0].mxu0
    %v4460 = vadd.f32 0.0, %v4459
    %v4461 = vpop.f32.mrb[0].mxu0
    %v4462 = vadd.f32 0.0, %v4461
    %v4463 = vpop.f32.mrb[0].mxu0
    %v4464 = vadd.f32 0.0, %v4463
    %4465 = vmatprep.mubr.bf16.mxu0 %v840
    %4466 = vmatmul.mubr.bf16.gmra.mrb[0].mxu0 %v839
    %v4467 = vpop.f32.mrb[0].mxu0
    %v4468 = vadd.f32 0.0, %v4467
    %v4469 = vpop.f32.mrb[0].mxu0
    %v4470 = vadd.f32 0.0, %v4469
    %v4471 = vpop.f32.mrb[0].mxu0
    %v4472 = vadd.f32 0.0, %v4471
    %v4473 = vpop.f32.mrb[0].mxu0
    %v4474 = vadd.f32 0.0, %v4473
    %4475 = vmatprep.mubr.bf16.mxu0 %v844
    %4476 = vmatmul.mubr.bf16.gmra.mrb[0].mxu0 %v843
    %v4477 = vpop.f32.mrb[0].mxu0
    %v4478 = vadd.f32 0.0, %v4477
    %v4479 = vpop.f32.mrb[0].mxu0
    %v4480 = vadd.f32 0.0, %v4479
    %v4481 = vpop.f32.mrb[0].mxu0
    %v4482 = vadd.f32 0.0, %v4481
    %v4483 = vpop.f32.mrb[0].mxu0
    %v4484 = vadd.f32 0.0, %v4483
    %4485 = vmatprep.mubr.bf16.mxu0 %v848
    %4486 = vmatmul.mubr.bf16.gmra.mrb[0].mxu0 %v847
    %v4487 = vpop.f32.mrb[0].mxu0
    %v4488 = vadd.f32 0.0, %v4487
    %v4489 = vpop.f32.mrb[0].mxu0
    %v4490 = vadd.f32 0.0, %v4489
    %v4491 = vpop.f32.mrb[0].mxu0
    %v4492 = vadd.f32 0.0, %v4491
    %v4493 = vpop.f32.mrb[0].mxu0
    %v4494 = vadd.f32 0.0, %v4493
    %4495 = vmatprep.mubr.bf16.mxu0 %v852
    %4496 = vmatmul.mubr.bf16.gmra.mrb[0].mxu0 %v851
    %v4497 = vpop.f32.mrb[0].mxu0
    %v4498 = vadd.f32 0.0, %v4497
    %v4499 = vpop.f32.mrb[0].mxu0
    %v4500 = vadd.f32 0.0, %v4499
    %v4501 = vpop.f32.mrb[0].mxu0
    %v4502 = vadd.f32 0.0, %v4501
    %v4503 = vpop.f32.mrb[0].mxu0
    %v4504 = vadd.f32 0.0, %v4503
    %4505 = vdwg.mxu0
    %4506 = vmatprep.subr.bf16.mxu0 %v3162
    %4507 = vmatpush1.bf16.msra.mxu0 %v3161
    %4508 = vmatprep.subr.bf16.mxu0 %v3178
    %4509 = vmatpush1.bf16.msra.mxu0 %v3177
    %4510 = vmatprep.subr.bf16.mxu0 %v3194
    %4511 = vmatpush1.bf16.msra.mxu0 %v3193
    %4512 = vmatprep.subr.bf16.mxu0 %v3210
    %4513 = vmatpush1.bf16.msra.mxu0 %v3209
    %4514 = vmatprep.subr.bf16.mxu0 %v3226
    %4515 = vmatpush1.bf16.msra.mxu0 %v3225
    %4516 = vmatprep.subr.bf16.mxu0 %v3242
    %4517 = vmatpush1.bf16.msra.mxu0 %v3241
    %4518 = vmatprep.subr.bf16.mxu0 %v3258
    %4519 = vmatpush1.bf16.msra.mxu0 %v3257
    %4520 = vmatprep.subr.bf16.mxu0 %v3274
    %4521 = vmatpush1.bf16.msra.mxu0 %v3273
    %4522 = vmatprep.subr.bf16.mxu0 %v3290
    %4523 = vmatpush1.bf16.msra.mxu0 %v3289
    %4524 = vmatprep.subr.bf16.mxu0 %v3306
    %4525 = vmatpush1.bf16.msra.mxu0 %v3305
    %4526 = vmatprep.subr.bf16.mxu0 %v3322
    %4527 = vmatpush1.bf16.msra.mxu0 %v3321
    %4528 = vmatprep.subr.bf16.mxu0 %v3338
    %4529 = vmatpush1.bf16.msra.mxu0 %v3337
    %4530 = vmatprep.subr.bf16.mxu0 %v3354
    %4531 = vmatpush1.bf16.msra.mxu0 %v3353
    %4532 = vmatprep.subr.bf16.mxu0 %v3370
    %4533 = vmatpush1.bf16.msra.mxu0 %v3369
    %4534 = vmatprep.subr.bf16.mxu0 %v3386
    %4535 = vmatpush1.bf16.msra.mxu0 %v3385
    %4536 = vmatprep.subr.bf16.mxu0 %v3402
    %4537 = vmatpush1.bf16.msra.mxu0 %v3401
    %4538 = vmatprep.mubr.bf16.mxu0 %v794
    %4539 = vmatmul.mubr.bf16.gmra.mrb[0].mxu0 %v793
    %v4540 = vpop.f32.mrb[0].mxu0
    %v4541 = vadd.f32 %v4348, %v4540
    %v4542 = vpop.f32.mrb[0].mxu0
    %v4543 = vadd.f32 %v4350, %v4542
    %v4544 = vpop.f32.mrb[0].mxu0
    %v4545 = vadd.f32 %v4352, %v4544
    %v4546 = vpop.f32.mrb[0].mxu0
    %v4547 = vadd.f32 %v4354, %v4546
    %4548 = vmatprep.mubr.bf16.mxu0 %v798
    %4549 = vmatmul.mubr.bf16.gmra.mrb[0].mxu0 %v797
    %v4550 = vpop.f32.mrb[0].mxu0
    %v4551 = vadd.f32 %v4358, %v4550
    %v4552 = vpop.f32.mrb[0].mxu0
    %v4553 = vadd.f32 %v4360, %v4552
    %v4554 = vpop.f32.mrb[0].mxu0
    %v4555 = vadd.f32 %v4362, %v4554
    %v4556 = vpop.f32.mrb[0].mxu0
    %v4557 = vadd.f32 %v4364, %v4556
    %4558 = vmatprep.mubr.bf16.mxu0 %v802
    %4559 = vmatmul.mubr.bf16.gmra.mrb[0].mxu0 %v801
    %v4560 = vpop.f32.mrb[0].mxu0
    %v4561 = vadd.f32 %v4368, %v4560
    %v4562 = vpop.f32.mrb[0].mxu0
    %v4563 = vadd.f32 %v4370, %v4562
    %v4564 = vpop.f32.mrb[0].mxu0
    %v4565 = vadd.f32 %v4372, %v4564
    %v4566 = vpop.f32.mrb[0].mxu0
    %v4567 = vadd.f32 %v4374, %v4566
    %4568 = vmatprep.mubr.bf16.mxu0 %v806
    %4569 = vmatmul.mubr.bf16.gmra.mrb[0].mxu0 %v805
    %v4570 = vpop.f32.mrb[0].mxu0
    %v4571 = vadd.f32 %v4378, %v4570
    %v4572 = vpop.f32.mrb[0].mxu0
    %v4573 = vadd.f32 %v4380, %v4572
    %v4574 = vpop.f32.mrb[0].mxu0
    %v4575 = vadd.f32 %v4382, %v4574
    %v4576 = vpop.f32.mrb[0].mxu0
    %v4577 = vadd.f32 %v4384, %v4576
    %4578 = vmatprep.mubr.bf16.mxu0 %v810
    %4579 = vmatmul.mubr.bf16.gmra.mrb[0].mxu0 %v809
    %v4580 = vpop.f32.mrb[0].mxu0
    %v4581 = vadd.f32 %v4388, %v4580
    %v4582 = vpop.f32.mrb[0].mxu0
    %v4583 = vadd.f32 %v4390, %v4582
    %v4584 = vpop.f32.mrb[0].mxu0
    %v4585 = vadd.f32 %v4392, %v4584
    %v4586 = vpop.f32.mrb[0].mxu0
    %v4587 = vadd.f32 %v4394, %v4586
    %4588 = vmatprep.mubr.bf16.mxu0 %v814
    %4589 = vmatmul.mubr.bf16.gmra.mrb[0].mxu0 %v813
    %v4590 = vpop.f32.mrb[0].mxu0
    %v4591 = vadd.f32 %v4398, %v4590
    %v4592 = vpop.f32.mrb[0].mxu0
    %v4593 = vadd.f32 %v4400, %v4592
    %v4594 = vpop.f32.mrb[0].mxu0
    %v4595 = vadd.f32 %v4402, %v4594
    %v4596 = vpop.f32.mrb[0].mxu0
    %v4597 = vadd.f32 %v4404, %v4596
    %4598 = vmatprep.mubr.bf16.mxu0 %v818
    %4599 = vmatmul.mubr.bf16.gmra.mrb[0].mxu0 %v817
    %v4600 = vpop.f32.mrb[0].mxu0
    %v4601 = vadd.f32 %v4408, %v4600
    %v4602 = vpop.f32.mrb[0].mxu0
    %v4603 = vadd.f32 %v4410, %v4602
    %v4604 = vpop.f32.mrb[0].mxu0
    %v4605 = vadd.f32 %v4412, %v4604
    %v4606 = vpop.f32.mrb[0].mxu0
    %v4607 = vadd.f32 %v4414, %v4606
    %4608 = vmatprep.mubr.bf16.mxu0 %v822
    %4609 = vmatmul.mubr.bf16.gmra.mrb[0].mxu0 %v821
    %v4610 = vpop.f32.mrb[0].mxu0
    %v4611 = vadd.f32 %v4418, %v4610
    %v4612 = vpop.f32.mrb[0].mxu0
    %v4613 = vadd.f32 %v4420, %v4612
    %v4614 = vpop.f32.mrb[0].mxu0
    %v4615 = vadd.f32 %v4422, %v4614
    %v4616 = vpop.f32.mrb[0].mxu0
    %v4617 = vadd.f32 %v4424, %v4616
    %4618 = vmatprep.mubr.bf16.mxu0 %v826
    %4619 = vmatmul.mubr.bf16.gmra.mrb[0].mxu0 %v825
    %v4620 = vpop.f32.mrb[0].mxu0
    %v4621 = vadd.f32 %v4428, %v4620
    %v4622 = vpop.f32.mrb[0].mxu0
    %v4623 = vadd.f32 %v4430, %v4622
    %v4624 = vpop.f32.mrb[0].mxu0
    %v4625 = vadd.f32 %v4432, %v4624
    %v4626 = vpop.f32.mrb[0].mxu0
    %v4627 = vadd.f32 %v4434, %v4626
    %4628 = vmatprep.mubr.bf16.mxu0 %v830
    %4629 = vmatmul.mubr.bf16.gmra.mrb[0].mxu0 %v829
    %v4630 = vpop.f32.mrb[0].mxu0
    %v4631 = vadd.f32 %v4438, %v4630
    %v4632 = vpop.f32.mrb[0].mxu0
    %v4633 = vadd.f32 %v4440, %v4632
    %v4634 = vpop.f32.mrb[0].mxu0
    %v4635 = vadd.f32 %v4442, %v4634
    %v4636 = vpop.f32.mrb[0].mxu0
    %v4637 = vadd.f32 %v4444, %v4636
    %4638 = vmatprep.mubr.bf16.mxu0 %v834
    %4639 = vmatmul.mubr.bf16.gmra.mrb[0].mxu0 %v833
    %v4640 = vpop.f32.mrb[0].mxu0
    %v4641 = vadd.f32 %v4448, %v4640
    %v4642 = vpop.f32.mrb[0].mxu0
    %v4643 = vadd.f32 %v4450, %v4642
    %v4644 = vpop.f32.mrb[0].mxu0
    %v4645 = vadd.f32 %v4452, %v4644
    %v4646 = vpop.f32.mrb[0].mxu0
    %v4647 = vadd.f32 %v4454, %v4646
    %4648 = vmatprep.mubr.bf16.mxu0 %v838
    %4649 = vmatmul.mubr.bf16.gmra.mrb[0].mxu0 %v837
    %v4650 = vpop.f32.mrb[0].mxu0
    %v4651 = vadd.f32 %v4458, %v4650
    %v4652 = vpop.f32.mrb[0].mxu0
    %v4653 = vadd.f32 %v4460, %v4652
    %v4654 = vpop.f32.mrb[0].mxu0
    %v4655 = vadd.f32 %v4462, %v4654
    %v4656 = vpop.f32.mrb[0].mxu0
    %v4657 = vadd.f32 %v4464, %v4656
    %4658 = vmatprep.mubr.bf16.mxu0 %v842
    %4659 = vmatmul.mubr.bf16.gmra.mrb[0].mxu0 %v841
    %v4660 = vpop.f32.mrb[0].mxu0
    %v4661 = vadd.f32 %v4468, %v4660
    %v4662 = vpop.f32.mrb[0].mxu0
    %v4663 = vadd.f32 %v4470, %v4662
    %v4664 = vpop.f32.mrb[0].mxu0
    %v4665 = vadd.f32 %v4472, %v4664
    %v4666 = vpop.f32.mrb[0].mxu0
    %v4667 = vadd.f32 %v4474, %v4666
    %4668 = vmatprep.mubr.bf16.mxu0 %v846
    %4669 = vmatmul.mubr.bf16.gmra.mrb[0].mxu0 %v845
    %v4670 = vpop.f32.mrb[0].mxu0
    %v4671 = vadd.f32 %v4478, %v4670
    %v4672 = vpop.f32.mrb[0].mxu0
    %v4673 = vadd.f32 %v4480, %v4672
    %v4674 = vpop.f32.mrb[0].mxu0
    %v4675 = vadd.f32 %v4482, %v4674
    %v4676 = vpop.f32.mrb[0].mxu0
    %v4677 = vadd.f32 %v4484, %v4676
    %4678 = vmatprep.mubr.bf16.mxu0 %v850
    %4679 = vmatmul.mubr.bf16.gmra.mrb[0].mxu0 %v849
    %v4680 = vpop.f32.mrb[0].mxu0
    %v4681 = vadd.f32 %v4488, %v4680
    %v4682 = vpop.f32.mrb[0].mxu0
    %v4683 = vadd.f32 %v4490, %v4682
    %v4684 = vpop.f32.mrb[0].mxu0
    %v4685 = vadd.f32 %v4492, %v4684
    %v4686 = vpop.f32.mrb[0].mxu0
    %v4687 = vadd.f32 %v4494, %v4686
    %4688 = vmatprep.mubr.bf16.mxu0 %v854
    %4689 = vmatmul.mubr.bf16.gmra.mrb[0].mxu0 %v853
    %v4690 = vpop.f32.mrb[0].mxu0
    %v4691 = vadd.f32 %v4498, %v4690
    %v4692 = vpop.f32.mrb[0].mxu0
    %v4693 = vadd.f32 %v4500, %v4692
    %v4694 = vpop.f32.mrb[0].mxu0
    %v4695 = vadd.f32 %v4502, %v4694
    %v4696 = vpop.f32.mrb[0].mxu0
    %v4697 = vadd.f32 %v4504, %v4696
    %4698 = vdwg.mxu0
    %4699 = vmatprep.subr.bf16.mxu0 %v2908
    %4700 = vmatpush1.bf16.msra.mxu0 %v2907
    %4701 = vmatprep.subr.bf16.mxu0 %v2924
    %4702 = vmatpush1.bf16.msra.mxu0 %v2923
    %4703 = vmatprep.subr.bf16.mxu0 %v2940
    %4704 = vmatpush1.bf16.msra.mxu0 %v2939
    %4705 = vmatprep.subr.bf16.mxu0 %v2956
    %4706 = vmatpush1.bf16.msra.mxu0 %v2955
    %4707 = vmatprep.subr.bf16.mxu0 %v2972
    %4708 = vmatpush1.bf16.msra.mxu0 %v2971
    %4709 = vmatprep.subr.bf16.mxu0 %v2988
    %4710 = vmatpush1.bf16.msra.mxu0 %v2987
    %4711 = vmatprep.subr.bf16.mxu0 %v3004
    %4712 = vmatpush1.bf16.msra.mxu0 %v3003
    %4713 = vmatprep.subr.bf16.mxu0 %v3020
    %4714 = vmatpush1.bf16.msra.mxu0 %v3019
    %4715 = vmatprep.subr.bf16.mxu0 %v3036
    %4716 = vmatpush1.bf16.msra.mxu0 %v3035
    %4717 = vmatprep.subr.bf16.mxu0 %v3052
    %4718 = vmatpush1.bf16.msra.mxu0 %v3051
    %4719 = vmatprep.subr.bf16.mxu0 %v3068
    %4720 = vmatpush1.bf16.msra.mxu0 %v3067
    %4721 = vmatprep.subr.bf16.mxu0 %v3084
    %4722 = vmatpush1.bf16.msra.mxu0 %v3083
    %4723 = vmatprep.subr.bf16.mxu0 %v3100
    %4724 = vmatpush1.bf16.msra.mxu0 %v3099
    %4725 = vmatprep.subr.bf16.mxu0 %v3116
    %4726 = vmatpush1.bf16.msra.mxu0 %v3115
    %4727 = vmatprep.subr.bf16.mxu0 %v3132
    %4728 = vmatpush1.bf16.msra.mxu0 %v3131
    %4729 = vmatprep.subr.bf16.mxu0 %v3148
    %4730 = vmatpush1.bf16.msra.mxu0 %v3147
    %4731 = vmatprep.mubr.bf16.mxu0 %v792
    %4732 = vmatmul.mubr.bf16.gmra.mrb[0].mxu0 %v791
    %v4733 = vpop.f32.mrb[0].mxu0
    %v4734 = vadd.f32 0.0, %v4733
    %v4735 = vpop.f32.mrb[0].mxu0
    %v4736 = vadd.f32 0.0, %v4735
    %v4737 = vpop.f32.mrb[0].mxu0
    %v4738 = vadd.f32 0.0, %v4737
    %v4739 = vpop.f32.mrb[0].mxu0
    %v4740 = vadd.f32 0.0, %v4739
    %4741 = vmatprep.mubr.bf16.mxu0 %v796
    %4742 = vmatmul.mubr.bf16.gmra.mrb[0].mxu0 %v795
    %v4743 = vpop.f32.mrb[0].mxu0
    %v4744 = vadd.f32 0.0, %v4743
    %v4745 = vpop.f32.mrb[0].mxu0
    %v4746 = vadd.f32 0.0, %v4745
    %v4747 = vpop.f32.mrb[0].mxu0
    %v4748 = vadd.f32 0.0, %v4747
    %v4749 = vpop.f32.mrb[0].mxu0
    %v4750 = vadd.f32 0.0, %v4749
    %4751 = vmatprep.mubr.bf16.mxu0 %v800
    %4752 = vmatmul.mubr.bf16.gmra.mrb[0].mxu0 %v799
    %v4753 = vpop.f32.mrb[0].mxu0
    %v4754 = vadd.f32 0.0, %v4753
    %v4755 = vpop.f32.mrb[0].mxu0
    %v4756 = vadd.f32 0.0, %v4755
    %v4757 = vpop.f32.mrb[0].mxu0
    %v4758 = vadd.f32 0.0, %v4757
    %v4759 = vpop.f32.mrb[0].mxu0
    %v4760 = vadd.f32 0.0, %v4759
    %4761 = vmatprep.mubr.bf16.mxu0 %v804
    %4762 = vmatmul.mubr.bf16.gmra.mrb[0].mxu0 %v803
    %v4763 = vpop.f32.mrb[0].mxu0
    %v4764 = vadd.f32 0.0, %v4763
    %v4765 = vpop.f32.mrb[0].mxu0
    %v4766 = vadd.f32 0.0, %v4765
    %v4767 = vpop.f32.mrb[0].mxu0
    %v4768 = vadd.f32 0.0, %v4767
    %v4769 = vpop.f32.mrb[0].mxu0
    %v4770 = vadd.f32 0.0, %v4769
    %4771 = vmatprep.mubr.bf16.mxu0 %v808
    %4772 = vmatmul.mubr.bf16.gmra.mrb[0].mxu0 %v807
    %v4773 = vpop.f32.mrb[0].mxu0
    %v4774 = vadd.f32 0.0, %v4773
    %v4775 = vpop.f32.mrb[0].mxu0
    %v4776 = vadd.f32 0.0, %v4775
    %v4777 = vpop.f32.mrb[0].mxu0
    %v4778 = vadd.f32 0.0, %v4777
    %v4779 = vpop.f32.mrb[0].mxu0
    %v4780 = vadd.f32 0.0, %v4779
    %4781 = vmatprep.mubr.bf16.mxu0 %v812
    %4782 = vmatmul.mubr.bf16.gmra.mrb[0].mxu0 %v811
    %v4783 = vpop.f32.mrb[0].mxu0
    %v4784 = vadd.f32 0.0, %v4783
    %v4785 = vpop.f32.mrb[0].mxu0
    %v4786 = vadd.f32 0.0, %v4785
    %v4787 = vpop.f32.mrb[0].mxu0
    %v4788 = vadd.f32 0.0, %v4787
    %v4789 = vpop.f32.mrb[0].mxu0
    %v4790 = vadd.f32 0.0, %v4789
    %4791 = vmatprep.mubr.bf16.mxu0 %v816
    %4792 = vmatmul.mubr.bf16.gmra.mrb[0].mxu0 %v815
    %v4793 = vpop.f32.mrb[0].mxu0
    %v4794 = vadd.f32 0.0, %v4793
    %v4795 = vpop.f32.mrb[0].mxu0
    %v4796 = vadd.f32 0.0, %v4795
    %v4797 = vpop.f32.mrb[0].mxu0
    %v4798 = vadd.f32 0.0, %v4797
    %v4799 = vpop.f32.mrb[0].mxu0
    %v4800 = vadd.f32 0.0, %v4799
    %4801 = vmatprep.mubr.bf16.mxu0 %v820
    %4802 = vmatmul.mubr.bf16.gmra.mrb[0].mxu0 %v819
    %v4803 = vpop.f32.mrb[0].mxu0
    %v4804 = vadd.f32 0.0, %v4803
    %v4805 = vpop.f32.mrb[0].mxu0
    %v4806 = vadd.f32 0.0, %v4805
    %v4807 = vpop.f32.mrb[0].mxu0
    %v4808 = vadd.f32 0.0, %v4807
    %v4809 = vpop.f32.mrb[0].mxu0
    %v4810 = vadd.f32 0.0, %v4809
    %4811 = vmatprep.mubr.bf16.mxu0 %v824
    %4812 = vmatmul.mubr.bf16.gmra.mrb[0].mxu0 %v823
    %v4813 = vpop.f32.mrb[0].mxu0
    %v4814 = vadd.f32 0.0, %v4813
    %v4815 = vpop.f32.mrb[0].mxu0
    %v4816 = vadd.f32 0.0, %v4815
    %v4817 = vpop.f32.mrb[0].mxu0
    %v4818 = vadd.f32 0.0, %v4817
    %v4819 = vpop.f32.mrb[0].mxu0
    %v4820 = vadd.f32 0.0, %v4819
    %4821 = vmatprep.mubr.bf16.mxu0 %v828
    %4822 = vmatmul.mubr.bf16.gmra.mrb[0].mxu0 %v827
    %v4823 = vpop.f32.mrb[0].mxu0
    %v4824 = vadd.f32 0.0, %v4823
    %v4825 = vpop.f32.mrb[0].mxu0
    %v4826 = vadd.f32 0.0, %v4825
    %v4827 = vpop.f32.mrb[0].mxu0
    %v4828 = vadd.f32 0.0, %v4827
    %v4829 = vpop.f32.mrb[0].mxu0
    %v4830 = vadd.f32 0.0, %v4829
    %4831 = vmatprep.mubr.bf16.mxu0 %v832
    %4832 = vmatmul.mubr.bf16.gmra.mrb[0].mxu0 %v831
    %v4833 = vpop.f32.mrb[0].mxu0
    %v4834 = vadd.f32 0.0, %v4833
    %v4835 = vpop.f32.mrb[0].mxu0
    %v4836 = vadd.f32 0.0, %v4835
    %v4837 = vpop.f32.mrb[0].mxu0
    %v4838 = vadd.f32 0.0, %v4837
    %v4839 = vpop.f32.mrb[0].mxu0
    %v4840 = vadd.f32 0.0, %v4839
    %4841 = vmatprep.mubr.bf16.mxu0 %v836
    %4842 = vmatmul.mubr.bf16.gmra.mrb[0].mxu0 %v835
    %v4843 = vpop.f32.mrb[0].mxu0
    %v4844 = vadd.f32 0.0, %v4843
    %v4845 = vpop.f32.mrb[0].mxu0
    %v4846 = vadd.f32 0.0, %v4845
    %v4847 = vpop.f32.mrb[0].mxu0
    %v4848 = vadd.f32 0.0, %v4847
    %v4849 = vpop.f32.mrb[0].mxu0
    %v4850 = vadd.f32 0.0, %v4849
    %4851 = vmatprep.mubr.bf16.mxu0 %v840
    %4852 = vmatmul.mubr.bf16.gmra.mrb[0].mxu0 %v839
    %v4853 = vpop.f32.mrb[0].mxu0
    %v4854 = vadd.f32 0.0, %v4853
    %v4855 = vpop.f32.mrb[0].mxu0
    %v4856 = vadd.f32 0.0, %v4855
    %v4857 = vpop.f32.mrb[0].mxu0
    %v4858 = vadd.f32 0.0, %v4857
    %v4859 = vpop.f32.mrb[0].mxu0
    %v4860 = vadd.f32 0.0, %v4859
    %4861 = vmatprep.mubr.bf16.mxu0 %v844
    %4862 = vmatmul.mubr.bf16.gmra.mrb[0].mxu0 %v843
    %v4863 = vpop.f32.mrb[0].mxu0
    %v4864 = vadd.f32 0.0, %v4863
    %v4865 = vpop.f32.mrb[0].mxu0
    %v4866 = vadd.f32 0.0, %v4865
    %v4867 = vpop.f32.mrb[0].mxu0
    %v4868 = vadd.f32 0.0, %v4867
    %v4869 = vpop.f32.mrb[0].mxu0
    %v4870 = vadd.f32 0.0, %v4869
    %4871 = vmatprep.mubr.bf16.mxu0 %v848
    %4872 = vmatmul.mubr.bf16.gmra.mrb[0].mxu0 %v847
    %v4873 = vpop.f32.mrb[0].mxu0
    %v4874 = vadd.f32 0.0, %v4873
    %v4875 = vpop.f32.mrb[0].mxu0
    %v4876 = vadd.f32 0.0, %v4875
    %v4877 = vpop.f32.mrb[0].mxu0
    %v4878 = vadd.f32 0.0, %v4877
    %v4879 = vpop.f32.mrb[0].mxu0
    %v4880 = vadd.f32 0.0, %v4879
    %4881 = vmatprep.mubr.bf16.mxu0 %v852
    %4882 = vmatmul.mubr.bf16.gmra.mrb[0].mxu0 %v851
    %v4883 = vpop.f32.mrb[0].mxu0
    %v4884 = vadd.f32 0.0, %v4883
    %v4885 = vpop.f32.mrb[0].mxu0
    %v4886 = vadd.f32 0.0, %v4885
    %v4887 = vpop.f32.mrb[0].mxu0
    %v4888 = vadd.f32 0.0, %v4887
    %v4889 = vpop.f32.mrb[0].mxu0
    %v4890 = vadd.f32 0.0, %v4889
    %4891 = vdwg.mxu0
    %4892 = vmatprep.subr.bf16.mxu0 %v3164
    %4893 = vmatpush1.bf16.msra.mxu0 %v3163
    %4894 = vmatprep.subr.bf16.mxu0 %v3180
    %4895 = vmatpush1.bf16.msra.mxu0 %v3179
    %4896 = vmatprep.subr.bf16.mxu0 %v3196
    %4897 = vmatpush1.bf16.msra.mxu0 %v3195
    %4898 = vmatprep.subr.bf16.mxu0 %v3212
    %4899 = vmatpush1.bf16.msra.mxu0 %v3211
    %4900 = vmatprep.subr.bf16.mxu0 %v3228
    %4901 = vmatpush1.bf16.msra.mxu0 %v3227
    %4902 = vmatprep.subr.bf16.mxu0 %v3244
    %4903 = vmatpush1.bf16.msra.mxu0 %v3243
    %4904 = vmatprep.subr.bf16.mxu0 %v3260
    %4905 = vmatpush1.bf16.msra.mxu0 %v3259
    %4906 = vmatprep.subr.bf16.mxu0 %v3276
    %4907 = vmatpush1.bf16.msra.mxu0 %v3275
    %4908 = vmatprep.subr.bf16.mxu0 %v3292
    %4909 = vmatpush1.bf16.msra.mxu0 %v3291
    %4910 = vmatprep.subr.bf16.mxu0 %v3308
    %4911 = vmatpush1.bf16.msra.mxu0 %v3307
    %4912 = vmatprep.subr.bf16.mxu0 %v3324
    %4913 = vmatpush1.bf16.msra.mxu0 %v3323
    %4914 = vmatprep.subr.bf16.mxu0 %v3340
    %4915 = vmatpush1.bf16.msra.mxu0 %v3339
    %4916 = vmatprep.subr.bf16.mxu0 %v3356
    %4917 = vmatpush1.bf16.msra.mxu0 %v3355
    %4918 = vmatprep.subr.bf16.mxu0 %v3372
    %4919 = vmatpush1.bf16.msra.mxu0 %v3371
    %4920 = vmatprep.subr.bf16.mxu0 %v3388
    %4921 = vmatpush1.bf16.msra.mxu0 %v3387
    %4922 = vmatprep.subr.bf16.mxu0 %v3404
    %4923 = vmatpush1.bf16.msra.mxu0 %v3403
    %4924 = vmatprep.mubr.bf16.mxu0 %v794
    %4925 = vmatmul.mubr.bf16.gmra.mrb[0].mxu0 %v793
    %v4926 = vpop.f32.mrb[0].mxu0
    %v4927 = vadd.f32 %v4734, %v4926
    %v4928 = vpop.f32.mrb[0].mxu0
    %v4929 = vadd.f32 %v4736, %v4928
    %v4930 = vpop.f32.mrb[0].mxu0
    %v4931 = vadd.f32 %v4738, %v4930
    %v4932 = vpop.f32.mrb[0].mxu0
    %v4933 = vadd.f32 %v4740, %v4932
    %4934 = vmatprep.mubr.bf16.mxu0 %v798
    %4935 = vmatmul.mubr.bf16.gmra.mrb[0].mxu0 %v797
    %v4936 = vpop.f32.mrb[0].mxu0
    %v4937 = vadd.f32 %v4744, %v4936
    %v4938 = vpop.f32.mrb[0].mxu0
    %v4939 = vadd.f32 %v4746, %v4938
    %v4940 = vpop.f32.mrb[0].mxu0
    %v4941 = vadd.f32 %v4748, %v4940
    %v4942 = vpop.f32.mrb[0].mxu0
    %v4943 = vadd.f32 %v4750, %v4942
    %4944 = vmatprep.mubr.bf16.mxu0 %v802
    %4945 = vmatmul.mubr.bf16.gmra.mrb[0].mxu0 %v801
    %v4946 = vpop.f32.mrb[0].mxu0
    %v4947 = vadd.f32 %v4754, %v4946
    %v4948 = vpop.f32.mrb[0].mxu0
    %v4949 = vadd.f32 %v4756, %v4948
    %v4950 = vpop.f32.mrb[0].mxu0
    %v4951 = vadd.f32 %v4758, %v4950
    %v4952 = vpop.f32.mrb[0].mxu0
    %v4953 = vadd.f32 %v4760, %v4952
    %4954 = vmatprep.mubr.bf16.mxu0 %v806
    %4955 = vmatmul.mubr.bf16.gmra.mrb[0].mxu0 %v805
    %v4956 = vpop.f32.mrb[0].mxu0
    %v4957 = vadd.f32 %v4764, %v4956
    %v4958 = vpop.f32.mrb[0].mxu0
    %v4959 = vadd.f32 %v4766, %v4958
    %v4960 = vpop.f32.mrb[0].mxu0
    %v4961 = vadd.f32 %v4768, %v4960
    %v4962 = vpop.f32.mrb[0].mxu0
    %v4963 = vadd.f32 %v4770, %v4962
    %4964 = vmatprep.mubr.bf16.mxu0 %v810
    %4965 = vmatmul.mubr.bf16.gmra.mrb[0].mxu0 %v809
    %v4966 = vpop.f32.mrb[0].mxu0
    %v4967 = vadd.f32 %v4774, %v4966
    %v4968 = vpop.f32.mrb[0].mxu0
    %v4969 = vadd.f32 %v4776, %v4968
    %v4970 = vpop.f32.mrb[0].mxu0
    %v4971 = vadd.f32 %v4778, %v4970
    %v4972 = vpop.f32.mrb[0].mxu0
    %v4973 = vadd.f32 %v4780, %v4972
    %4974 = vmatprep.mubr.bf16.mxu0 %v814
    %4975 = vmatmul.mubr.bf16.gmra.mrb[0].mxu0 %v813
    %v4976 = vpop.f32.mrb[0].mxu0
    %v4977 = vadd.f32 %v4784, %v4976
    %v4978 = vpop.f32.mrb[0].mxu0
    %v4979 = vadd.f32 %v4786, %v4978
    %v4980 = vpop.f32.mrb[0].mxu0
    %v4981 = vadd.f32 %v4788, %v4980
    %v4982 = vpop.f32.mrb[0].mxu0
    %v4983 = vadd.f32 %v4790, %v4982
    %4984 = vmatprep.mubr.bf16.mxu0 %v818
    %4985 = vmatmul.mubr.bf16.gmra.mrb[0].mxu0 %v817
    %v4986 = vpop.f32.mrb[0].mxu0
    %v4987 = vadd.f32 %v4794, %v4986
    %v4988 = vpop.f32.mrb[0].mxu0
    %v4989 = vadd.f32 %v4796, %v4988
    %v4990 = vpop.f32.mrb[0].mxu0
    %v4991 = vadd.f32 %v4798, %v4990
    %v4992 = vpop.f32.mrb[0].mxu0
    %v4993 = vadd.f32 %v4800, %v4992
    %4994 = vmatprep.mubr.bf16.mxu0 %v822
    %4995 = vmatmul.mubr.bf16.gmra.mrb[0].mxu0 %v821
    %v4996 = vpop.f32.mrb[0].mxu0
    %v4997 = vadd.f32 %v4804, %v4996
    %v4998 = vpop.f32.mrb[0].mxu0
    %v4999 = vadd.f32 %v4806, %v4998
    %v5000 = vpop.f32.mrb[0].mxu0
    %v5001 = vadd.f32 %v4808, %v5000
    %v5002 = vpop.f32.mrb[0].mxu0
    %v5003 = vadd.f32 %v4810, %v5002
    %5004 = vmatprep.mubr.bf16.mxu0 %v826
    %5005 = vmatmul.mubr.bf16.gmra.mrb[0].mxu0 %v825
    %v5006 = vpop.f32.mrb[0].mxu0
    %v5007 = vadd.f32 %v4814, %v5006
    %v5008 = vpop.f32.mrb[0].mxu0
    %v5009 = vadd.f32 %v4816, %v5008
    %v5010 = vpop.f32.mrb[0].mxu0
    %v5011 = vadd.f32 %v4818, %v5010
    %v5012 = vpop.f32.mrb[0].mxu0
    %v5013 = vadd.f32 %v4820, %v5012
    %5014 = vmatprep.mubr.bf16.mxu0 %v830
    %5015 = vmatmul.mubr.bf16.gmra.mrb[0].mxu0 %v829
    %v5016 = vpop.f32.mrb[0].mxu0
    %v5017 = vadd.f32 %v4824, %v5016
    %v5018 = vpop.f32.mrb[0].mxu0
    %v5019 = vadd.f32 %v4826, %v5018
    %v5020 = vpop.f32.mrb[0].mxu0
    %v5021 = vadd.f32 %v4828, %v5020
    %v5022 = vpop.f32.mrb[0].mxu0
    %v5023 = vadd.f32 %v4830, %v5022
    %5024 = vmatprep.mubr.bf16.mxu0 %v834
    %5025 = vmatmul.mubr.bf16.gmra.mrb[0].mxu0 %v833
    %v5026 = vpop.f32.mrb[0].mxu0
    %v5027 = vadd.f32 %v4834, %v5026
    %v5028 = vpop.f32.mrb[0].mxu0
    %v5029 = vadd.f32 %v4836, %v5028
    %v5030 = vpop.f32.mrb[0].mxu0
    %v5031 = vadd.f32 %v4838, %v5030
    %v5032 = vpop.f32.mrb[0].mxu0
    %v5033 = vadd.f32 %v4840, %v5032
    %5034 = vmatprep.mubr.bf16.mxu0 %v838
    %5035 = vmatmul.mubr.bf16.gmra.mrb[0].mxu0 %v837
    %v5036 = vpop.f32.mrb[0].mxu0
    %v5037 = vadd.f32 %v4844, %v5036
    %v5038 = vpop.f32.mrb[0].mxu0
    %v5039 = vadd.f32 %v4846, %v5038
    %v5040 = vpop.f32.mrb[0].mxu0
    %v5041 = vadd.f32 %v4848, %v5040
    %v5042 = vpop.f32.mrb[0].mxu0
    %v5043 = vadd.f32 %v4850, %v5042
    %5044 = vmatprep.mubr.bf16.mxu0 %v842
    %5045 = vmatmul.mubr.bf16.gmra.mrb[0].mxu0 %v841
    %v5046 = vpop.f32.mrb[0].mxu0
    %v5047 = vadd.f32 %v4854, %v5046
    %v5048 = vpop.f32.mrb[0].mxu0
    %v5049 = vadd.f32 %v4856, %v5048
    %v5050 = vpop.f32.mrb[0].mxu0
    %v5051 = vadd.f32 %v4858, %v5050
    %v5052 = vpop.f32.mrb[0].mxu0
    %v5053 = vadd.f32 %v4860, %v5052
    %5054 = vmatprep.mubr.bf16.mxu0 %v846
    %5055 = vmatmul.mubr.bf16.gmra.mrb[0].mxu0 %v845
    %v5056 = vpop.f32.mrb[0].mxu0
    %v5057 = vadd.f32 %v4864, %v5056
    %v5058 = vpop.f32.mrb[0].mxu0
    %v5059 = vadd.f32 %v4866, %v5058
    %v5060 = vpop.f32.mrb[0].mxu0
    %v5061 = vadd.f32 %v4868, %v5060
    %v5062 = vpop.f32.mrb[0].mxu0
    %v5063 = vadd.f32 %v4870, %v5062
    %5064 = vmatprep.mubr.bf16.mxu0 %v850
    %5065 = vmatmul.mubr.bf16.gmra.mrb[0].mxu0 %v849
    %v5066 = vpop.f32.mrb[0].mxu0
    %v5067 = vadd.f32 %v4874, %v5066
    %v5068 = vpop.f32.mrb[0].mxu0
    %v5069 = vadd.f32 %v4876, %v5068
    %v5070 = vpop.f32.mrb[0].mxu0
    %v5071 = vadd.f32 %v4878, %v5070
    %v5072 = vpop.f32.mrb[0].mxu0
    %v5073 = vadd.f32 %v4880, %v5072
    %5074 = vmatprep.mubr.bf16.mxu0 %v854
    %5075 = vmatmul.mubr.bf16.gmra.mrb[0].mxu0 %v853
    %v5076 = vpop.f32.mrb[0].mxu0
    %v5077 = vadd.f32 %v4884, %v5076
    %v5078 = vpop.f32.mrb[0].mxu0
    %v5079 = vadd.f32 %v4886, %v5078
    %v5080 = vpop.f32.mrb[0].mxu0
    %v5081 = vadd.f32 %v4888, %v5080
    %v5082 = vpop.f32.mrb[0].mxu0
    %v5083 = vadd.f32 %v4890, %v5082
    %5084 = vdwg.mxu0
    %5085 = vmatprep.subr.bf16.mxu0 %v2910
    %5086 = vmatpush1.bf16.msra.mxu0 %v2909
    %5087 = vmatprep.subr.bf16.mxu0 %v2926
    %5088 = vmatpush1.bf16.msra.mxu0 %v2925
    %5089 = vmatprep.subr.bf16.mxu0 %v2942
    %5090 = vmatpush1.bf16.msra.mxu0 %v2941
    %5091 = vmatprep.subr.bf16.mxu0 %v2958
    %5092 = vmatpush1.bf16.msra.mxu0 %v2957
    %5093 = vmatprep.subr.bf16.mxu0 %v2974
    %5094 = vmatpush1.bf16.msra.mxu0 %v2973
    %5095 = vmatprep.subr.bf16.mxu0 %v2990
    %5096 = vmatpush1.bf16.msra.mxu0 %v2989
    %5097 = vmatprep.subr.bf16.mxu0 %v3006
    %5098 = vmatpush1.bf16.msra.mxu0 %v3005
    %5099 = vmatprep.subr.bf16.mxu0 %v3022
    %5100 = vmatpush1.bf16.msra.mxu0 %v3021
    %5101 = vmatprep.subr.bf16.mxu0 %v3038
    %5102 = vmatpush1.bf16.msra.mxu0 %v3037
    %5103 = vmatprep.subr.bf16.mxu0 %v3054
    %5104 = vmatpush1.bf16.msra.mxu0 %v3053
    %5105 = vmatprep.subr.bf16.mxu0 %v3070
    %5106 = vmatpush1.bf16.msra.mxu0 %v3069
    %5107 = vmatprep.subr.bf16.mxu0 %v3086
    %5108 = vmatpush1.bf16.msra.mxu0 %v3085
    %5109 = vmatprep.subr.bf16.mxu0 %v3102
    %5110 = vmatpush1.bf16.msra.mxu0 %v3101
    %5111 = vmatprep.subr.bf16.mxu0 %v3118
    %5112 = vmatpush1.bf16.msra.mxu0 %v3117
    %5113 = vmatprep.subr.bf16.mxu0 %v3134
    %5114 = vmatpush1.bf16.msra.mxu0 %v3133
    %5115 = vmatprep.subr.bf16.mxu0 %v3150
    %5116 = vmatpush1.bf16.msra.mxu0 %v3149
    %5117 = vmatprep.mubr.bf16.mxu0 %v792
    %5118 = vmatmul.mubr.bf16.gmra.mrb[0].mxu0 %v791
    %v5119 = vpop.f32.mrb[0].mxu0
    %v5120 = vadd.f32 0.0, %v5119
    %v5121 = vpop.f32.mrb[0].mxu0
    %v5122 = vadd.f32 0.0, %v5121
    %v5123 = vpop.f32.mrb[0].mxu0
    %v5124 = vadd.f32 0.0, %v5123
    %v5125 = vpop.f32.mrb[0].mxu0
    %v5126 = vadd.f32 0.0, %v5125
    %5127 = vmatprep.mubr.bf16.mxu0 %v796
    %5128 = vmatmul.mubr.bf16.gmra.mrb[0].mxu0 %v795
    %v5129 = vpop.f32.mrb[0].mxu0
    %v5130 = vadd.f32 0.0, %v5129
    %v5131 = vpop.f32.mrb[0].mxu0
    %v5132 = vadd.f32 0.0, %v5131
    %v5133 = vpop.f32.mrb[0].mxu0
    %v5134 = vadd.f32 0.0, %v5133
    %v5135 = vpop.f32.mrb[0].mxu0
    %v5136 = vadd.f32 0.0, %v5135
    %5137 = vmatprep.mubr.bf16.mxu0 %v800
    %5138 = vmatmul.mubr.bf16.gmra.mrb[0].mxu0 %v799
    %v5139 = vpop.f32.mrb[0].mxu0
    %v5140 = vadd.f32 0.0, %v5139
    %v5141 = vpop.f32.mrb[0].mxu0
    %v5142 = vadd.f32 0.0, %v5141
    %v5143 = vpop.f32.mrb[0].mxu0
    %v5144 = vadd.f32 0.0, %v5143
    %v5145 = vpop.f32.mrb[0].mxu0
    %v5146 = vadd.f32 0.0, %v5145
    %5147 = vmatprep.mubr.bf16.mxu0 %v804
    %5148 = vmatmul.mubr.bf16.gmra.mrb[0].mxu0 %v803
    %v5149 = vpop.f32.mrb[0].mxu0
    %v5150 = vadd.f32 0.0, %v5149
    %v5151 = vpop.f32.mrb[0].mxu0
    %v5152 = vadd.f32 0.0, %v5151
    %v5153 = vpop.f32.mrb[0].mxu0
    %v5154 = vadd.f32 0.0, %v5153
    %v5155 = vpop.f32.mrb[0].mxu0
    %v5156 = vadd.f32 0.0, %v5155
    %5157 = vmatprep.mubr.bf16.mxu0 %v808
    %5158 = vmatmul.mubr.bf16.gmra.mrb[0].mxu0 %v807
    %v5159 = vpop.f32.mrb[0].mxu0
    %v5160 = vadd.f32 0.0, %v5159
    %v5161 = vpop.f32.mrb[0].mxu0
    %v5162 = vadd.f32 0.0, %v5161
    %v5163 = vpop.f32.mrb[0].mxu0
    %v5164 = vadd.f32 0.0, %v5163
    %v5165 = vpop.f32.mrb[0].mxu0
    %v5166 = vadd.f32 0.0, %v5165
    %5167 = vmatprep.mubr.bf16.mxu0 %v812
    %5168 = vmatmul.mubr.bf16.gmra.mrb[0].mxu0 %v811
    %v5169 = vpop.f32.mrb[0].mxu0
    %v5170 = vadd.f32 0.0, %v5169
    %v5171 = vpop.f32.mrb[0].mxu0
    %v5172 = vadd.f32 0.0, %v5171
    %v5173 = vpop.f32.mrb[0].mxu0
    %v5174 = vadd.f32 0.0, %v5173
    %v5175 = vpop.f32.mrb[0].mxu0
    %v5176 = vadd.f32 0.0, %v5175
    %5177 = vmatprep.mubr.bf16.mxu0 %v816
    %5178 = vmatmul.mubr.bf16.gmra.mrb[0].mxu0 %v815
    %v5179 = vpop.f32.mrb[0].mxu0
    %v5180 = vadd.f32 0.0, %v5179
    %v5181 = vpop.f32.mrb[0].mxu0
    %v5182 = vadd.f32 0.0, %v5181
    %v5183 = vpop.f32.mrb[0].mxu0
    %v5184 = vadd.f32 0.0, %v5183
    %v5185 = vpop.f32.mrb[0].mxu0
    %v5186 = vadd.f32 0.0, %v5185
    %5187 = vmatprep.mubr.bf16.mxu0 %v820
    %5188 = vmatmul.mubr.bf16.gmra.mrb[0].mxu0 %v819
    %v5189 = vpop.f32.mrb[0].mxu0
    %v5190 = vadd.f32 0.0, %v5189
    %v5191 = vpop.f32.mrb[0].mxu0
    %v5192 = vadd.f32 0.0, %v5191
    %v5193 = vpop.f32.mrb[0].mxu0
    %v5194 = vadd.f32 0.0, %v5193
    %v5195 = vpop.f32.mrb[0].mxu0
    %v5196 = vadd.f32 0.0, %v5195
    %5197 = vmatprep.mubr.bf16.mxu0 %v824
    %5198 = vmatmul.mubr.bf16.gmra.mrb[0].mxu0 %v823
    %v5199 = vpop.f32.mrb[0].mxu0
    %v5200 = vadd.f32 0.0, %v5199
    %v5201 = vpop.f32.mrb[0].mxu0
    %v5202 = vadd.f32 0.0, %v5201
    %v5203 = vpop.f32.mrb[0].mxu0
    %v5204 = vadd.f32 0.0, %v5203
    %v5205 = vpop.f32.mrb[0].mxu0
    %v5206 = vadd.f32 0.0, %v5205
    %5207 = vmatprep.mubr.bf16.mxu0 %v828
    %5208 = vmatmul.mubr.bf16.gmra.mrb[0].mxu0 %v827
    %v5209 = vpop.f32.mrb[0].mxu0
    %v5210 = vadd.f32 0.0, %v5209
    %v5211 = vpop.f32.mrb[0].mxu0
    %v5212 = vadd.f32 0.0, %v5211
    %v5213 = vpop.f32.mrb[0].mxu0
    %v5214 = vadd.f32 0.0, %v5213
    %v5215 = vpop.f32.mrb[0].mxu0
    %v5216 = vadd.f32 0.0, %v5215
    %5217 = vmatprep.mubr.bf16.mxu0 %v832
    %5218 = vmatmul.mubr.bf16.gmra.mrb[0].mxu0 %v831
    %v5219 = vpop.f32.mrb[0].mxu0
    %v5220 = vadd.f32 0.0, %v5219
    %v5221 = vpop.f32.mrb[0].mxu0
    %v5222 = vadd.f32 0.0, %v5221
    %v5223 = vpop.f32.mrb[0].mxu0
    %v5224 = vadd.f32 0.0, %v5223
    %v5225 = vpop.f32.mrb[0].mxu0
    %v5226 = vadd.f32 0.0, %v5225
    %5227 = vmatprep.mubr.bf16.mxu0 %v836
    %5228 = vmatmul.mubr.bf16.gmra.mrb[0].mxu0 %v835
    %v5229 = vpop.f32.mrb[0].mxu0
    %v5230 = vadd.f32 0.0, %v5229
    %v5231 = vpop.f32.mrb[0].mxu0
    %v5232 = vadd.f32 0.0, %v5231
    %v5233 = vpop.f32.mrb[0].mxu0
    %v5234 = vadd.f32 0.0, %v5233
    %v5235 = vpop.f32.mrb[0].mxu0
    %v5236 = vadd.f32 0.0, %v5235
    %5237 = vmatprep.mubr.bf16.mxu0 %v840
    %5238 = vmatmul.mubr.bf16.gmra.mrb[0].mxu0 %v839
    %v5239 = vpop.f32.mrb[0].mxu0
    %v5240 = vadd.f32 0.0, %v5239
    %v5241 = vpop.f32.mrb[0].mxu0
    %v5242 = vadd.f32 0.0, %v5241
    %v5243 = vpop.f32.mrb[0].mxu0
    %v5244 = vadd.f32 0.0, %v5243
    %v5245 = vpop.f32.mrb[0].mxu0
    %v5246 = vadd.f32 0.0, %v5245
    %5247 = vmatprep.mubr.bf16.mxu0 %v844
    %5248 = vmatmul.mubr.bf16.gmra.mrb[0].mxu0 %v843
    %v5249 = vpop.f32.mrb[0].mxu0
    %v5250 = vadd.f32 0.0, %v5249
    %v5251 = vpop.f32.mrb[0].mxu0
    %v5252 = vadd.f32 0.0, %v5251
    %v5253 = vpop.f32.mrb[0].mxu0
    %v5254 = vadd.f32 0.0, %v5253
    %v5255 = vpop.f32.mrb[0].mxu0
    %v5256 = vadd.f32 0.0, %v5255
    %5257 = vmatprep.mubr.bf16.mxu0 %v848
    %5258 = vmatmul.mubr.bf16.gmra.mrb[0].mxu0 %v847
    %v5259 = vpop.f32.mrb[0].mxu0
    %v5260 = vadd.f32 0.0, %v5259
    %v5261 = vpop.f32.mrb[0].mxu0
    %v5262 = vadd.f32 0.0, %v5261
    %v5263 = vpop.f32.mrb[0].mxu0
    %v5264 = vadd.f32 0.0, %v5263
    %v5265 = vpop.f32.mrb[0].mxu0
    %v5266 = vadd.f32 0.0, %v5265
    %5267 = vmatprep.mubr.bf16.mxu0 %v852
    %5268 = vmatmul.mubr.bf16.gmra.mrb[0].mxu0 %v851
    %v5269 = vpop.f32.mrb[0].mxu0
    %v5270 = vadd.f32 0.0, %v5269
    %v5271 = vpop.f32.mrb[0].mxu0
    %v5272 = vadd.f32 0.0, %v5271
    %v5273 = vpop.f32.mrb[0].mxu0
    %v5274 = vadd.f32 0.0, %v5273
    %v5275 = vpop.f32.mrb[0].mxu0
    %v5276 = vadd.f32 0.0, %v5275
    %5277 = vdwg.mxu0
    %5278 = vmatprep.subr.bf16.mxu0 %v3166
    %5279 = vmatpush1.bf16.msra.mxu0 %v3165
    %5280 = vmatprep.subr.bf16.mxu0 %v3182
    %5281 = vmatpush1.bf16.msra.mxu0 %v3181
    %5282 = vmatprep.subr.bf16.mxu0 %v3198
    %5283 = vmatpush1.bf16.msra.mxu0 %v3197
    %5284 = vmatprep.subr.bf16.mxu0 %v3214
    %5285 = vmatpush1.bf16.msra.mxu0 %v3213
    %5286 = vmatprep.subr.bf16.mxu0 %v3230
    %5287 = vmatpush1.bf16.msra.mxu0 %v3229
    %5288 = vmatprep.subr.bf16.mxu0 %v3246
    %5289 = vmatpush1.bf16.msra.mxu0 %v3245
    %5290 = vmatprep.subr.bf16.mxu0 %v3262
    %5291 = vmatpush1.bf16.msra.mxu0 %v3261
    %5292 = vmatprep.subr.bf16.mxu0 %v3278
    %5293 = vmatpush1.bf16.msra.mxu0 %v3277
    %5294 = vmatprep.subr.bf16.mxu0 %v3294
    %5295 = vmatpush1.bf16.msra.mxu0 %v3293
    %5296 = vmatprep.subr.bf16.mxu0 %v3310
    %5297 = vmatpush1.bf16.msra.mxu0 %v3309
    %5298 = vmatprep.subr.bf16.mxu0 %v3326
    %5299 = vmatpush1.bf16.msra.mxu0 %v3325
    %5300 = vmatprep.subr.bf16.mxu0 %v3342
    %5301 = vmatpush1.bf16.msra.mxu0 %v3341
    %5302 = vmatprep.subr.bf16.mxu0 %v3358
    %5303 = vmatpush1.bf16.msra.mxu0 %v3357
    %5304 = vmatprep.subr.bf16.mxu0 %v3374
    %5305 = vmatpush1.bf16.msra.mxu0 %v3373
    %5306 = vmatprep.subr.bf16.mxu0 %v3390
    %5307 = vmatpush1.bf16.msra.mxu0 %v3389
    %5308 = vmatprep.subr.bf16.mxu0 %v3406
    %5309 = vmatpush1.bf16.msra.mxu0 %v3405
    %5310 = vmatprep.mubr.bf16.mxu0 %v794
    %5311 = vmatmul.mubr.bf16.gmra.mrb[0].mxu0 %v793
    %v5312 = vpop.f32.mrb[0].mxu0
    %v5313 = vadd.f32 %v5120, %v5312
    %v5314 = vpop.f32.mrb[0].mxu0
    %v5315 = vadd.f32 %v5122, %v5314
    %v5316 = vpop.f32.mrb[0].mxu0
    %v5317 = vadd.f32 %v5124, %v5316
    %v5318 = vpop.f32.mrb[0].mxu0
    %v5319 = vadd.f32 %v5126, %v5318
    %5320 = vmatprep.mubr.bf16.mxu0 %v798
    %5321 = vmatmul.mubr.bf16.gmra.mrb[0].mxu0 %v797
    %v5322 = vpop.f32.mrb[0].mxu0
    %v5323 = vadd.f32 %v5130, %v5322
    %v5324 = vpop.f32.mrb[0].mxu0
    %v5325 = vadd.f32 %v5132, %v5324
    %v5326 = vpop.f32.mrb[0].mxu0
    %v5327 = vadd.f32 %v5134, %v5326
    %v5328 = vpop.f32.mrb[0].mxu0
    %v5329 = vadd.f32 %v5136, %v5328
    %5330 = vmatprep.mubr.bf16.mxu0 %v802
    %5331 = vmatmul.mubr.bf16.gmra.mrb[0].mxu0 %v801
    %v5332 = vpop.f32.mrb[0].mxu0
    %v5333 = vadd.f32 %v5140, %v5332
    %v5334 = vpop.f32.mrb[0].mxu0
    %v5335 = vadd.f32 %v5142, %v5334
    %v5336 = vpop.f32.mrb[0].mxu0
    %v5337 = vadd.f32 %v5144, %v5336
    %v5338 = vpop.f32.mrb[0].mxu0
    %v5339 = vadd.f32 %v5146, %v5338
    %5340 = vmatprep.mubr.bf16.mxu0 %v806
    %5341 = vmatmul.mubr.bf16.gmra.mrb[0].mxu0 %v805
    %v5342 = vpop.f32.mrb[0].mxu0
    %v5343 = vadd.f32 %v5150, %v5342
    %v5344 = vpop.f32.mrb[0].mxu0
    %v5345 = vadd.f32 %v5152, %v5344
    %v5346 = vpop.f32.mrb[0].mxu0
    %v5347 = vadd.f32 %v5154, %v5346
    %v5348 = vpop.f32.mrb[0].mxu0
    %v5349 = vadd.f32 %v5156, %v5348
    %5350 = vmatprep.mubr.bf16.mxu0 %v810
    %5351 = vmatmul.mubr.bf16.gmra.mrb[0].mxu0 %v809
    %v5352 = vpop.f32.mrb[0].mxu0
    %v5353 = vadd.f32 %v5160, %v5352
    %v5354 = vpop.f32.mrb[0].mxu0
    %v5355 = vadd.f32 %v5162, %v5354
    %v5356 = vpop.f32.mrb[0].mxu0
    %v5357 = vadd.f32 %v5164, %v5356
    %v5358 = vpop.f32.mrb[0].mxu0
    %v5359 = vadd.f32 %v5166, %v5358
    %5360 = vmatprep.mubr.bf16.mxu0 %v814
    %5361 = vmatmul.mubr.bf16.gmra.mrb[0].mxu0 %v813
    %v5362 = vpop.f32.mrb[0].mxu0
    %v5363 = vadd.f32 %v5170, %v5362
    %v5364 = vpop.f32.mrb[0].mxu0
    %v5365 = vadd.f32 %v5172, %v5364
    %v5366 = vpop.f32.mrb[0].mxu0
    %v5367 = vadd.f32 %v5174, %v5366
    %v5368 = vpop.f32.mrb[0].mxu0
    %v5369 = vadd.f32 %v5176, %v5368
    %5370 = vmatprep.mubr.bf16.mxu0 %v818
    %5371 = vmatmul.mubr.bf16.gmra.mrb[0].mxu0 %v817
    %v5372 = vpop.f32.mrb[0].mxu0
    %v5373 = vadd.f32 %v5180, %v5372
    %v5374 = vpop.f32.mrb[0].mxu0
    %v5375 = vadd.f32 %v5182, %v5374
    %v5376 = vpop.f32.mrb[0].mxu0
    %v5377 = vadd.f32 %v5184, %v5376
    %v5378 = vpop.f32.mrb[0].mxu0
    %v5379 = vadd.f32 %v5186, %v5378
    %5380 = vmatprep.mubr.bf16.mxu0 %v822
    %5381 = vmatmul.mubr.bf16.gmra.mrb[0].mxu0 %v821
    %v5382 = vpop.f32.mrb[0].mxu0
    %v5383 = vadd.f32 %v5190, %v5382
    %v5384 = vpop.f32.mrb[0].mxu0
    %v5385 = vadd.f32 %v5192, %v5384
    %v5386 = vpop.f32.mrb[0].mxu0
    %v5387 = vadd.f32 %v5194, %v5386
    %v5388 = vpop.f32.mrb[0].mxu0
    %v5389 = vadd.f32 %v5196, %v5388
    %5390 = vmatprep.mubr.bf16.mxu0 %v826
    %5391 = vmatmul.mubr.bf16.gmra.mrb[0].mxu0 %v825
    %v5392 = vpop.f32.mrb[0].mxu0
    %v5393 = vadd.f32 %v5200, %v5392
    %v5394 = vpop.f32.mrb[0].mxu0
    %v5395 = vadd.f32 %v5202, %v5394
    %v5396 = vpop.f32.mrb[0].mxu0
    %v5397 = vadd.f32 %v5204, %v5396
    %v5398 = vpop.f32.mrb[0].mxu0
    %v5399 = vadd.f32 %v5206, %v5398
    %5400 = vmatprep.mubr.bf16.mxu0 %v830
    %5401 = vmatmul.mubr.bf16.gmra.mrb[0].mxu0 %v829
    %v5402 = vpop.f32.mrb[0].mxu0
    %v5403 = vadd.f32 %v5210, %v5402
    %v5404 = vpop.f32.mrb[0].mxu0
    %v5405 = vadd.f32 %v5212, %v5404
    %v5406 = vpop.f32.mrb[0].mxu0
    %v5407 = vadd.f32 %v5214, %v5406
    %v5408 = vpop.f32.mrb[0].mxu0
    %v5409 = vadd.f32 %v5216, %v5408
    %5410 = vmatprep.mubr.bf16.mxu0 %v834
    %5411 = vmatmul.mubr.bf16.gmra.mrb[0].mxu0 %v833
    %v5412 = vpop.f32.mrb[0].mxu0
    %v5413 = vadd.f32 %v5220, %v5412
    %v5414 = vpop.f32.mrb[0].mxu0
    %v5415 = vadd.f32 %v5222, %v5414
    %v5416 = vpop.f32.mrb[0].mxu0
    %v5417 = vadd.f32 %v5224, %v5416
    %v5418 = vpop.f32.mrb[0].mxu0
    %v5419 = vadd.f32 %v5226, %v5418
    %5420 = vmatprep.mubr.bf16.mxu0 %v838
    %5421 = vmatmul.mubr.bf16.gmra.mrb[0].mxu0 %v837
    %v5422 = vpop.f32.mrb[0].mxu0
    %v5423 = vadd.f32 %v5230, %v5422
    %v5424 = vpop.f32.mrb[0].mxu0
    %v5425 = vadd.f32 %v5232, %v5424
    %v5426 = vpop.f32.mrb[0].mxu0
    %v5427 = vadd.f32 %v5234, %v5426
    %v5428 = vpop.f32.mrb[0].mxu0
    %v5429 = vadd.f32 %v5236, %v5428
    %5430 = vmatprep.mubr.bf16.mxu0 %v842
    %5431 = vmatmul.mubr.bf16.gmra.mrb[0].mxu0 %v841
    %v5432 = vpop.f32.mrb[0].mxu0
    %v5433 = vadd.f32 %v5240, %v5432
    %v5434 = vpop.f32.mrb[0].mxu0
    %v5435 = vadd.f32 %v5242, %v5434
    %v5436 = vpop.f32.mrb[0].mxu0
    %v5437 = vadd.f32 %v5244, %v5436
    %v5438 = vpop.f32.mrb[0].mxu0
    %v5439 = vadd.f32 %v5246, %v5438
    %5440 = vmatprep.mubr.bf16.mxu0 %v846
    %5441 = vmatmul.mubr.bf16.gmra.mrb[0].mxu0 %v845
    %v5442 = vpop.f32.mrb[0].mxu0
    %v5443 = vadd.f32 %v5250, %v5442
    %v5444 = vpop.f32.mrb[0].mxu0
    %v5445 = vadd.f32 %v5252, %v5444
    %v5446 = vpop.f32.mrb[0].mxu0
    %v5447 = vadd.f32 %v5254, %v5446
    %v5448 = vpop.f32.mrb[0].mxu0
    %v5449 = vadd.f32 %v5256, %v5448
    %5450 = vmatprep.mubr.bf16.mxu0 %v850
    %5451 = vmatmul.mubr.bf16.gmra.mrb[0].mxu0 %v849
    %v5452 = vpop.f32.mrb[0].mxu0
    %v5453 = vadd.f32 %v5260, %v5452
    %v5454 = vpop.f32.mrb[0].mxu0
    %v5455 = vadd.f32 %v5262, %v5454
    %v5456 = vpop.f32.mrb[0].mxu0
    %v5457 = vadd.f32 %v5264, %v5456
    %v5458 = vpop.f32.mrb[0].mxu0
    %v5459 = vadd.f32 %v5266, %v5458
    %5460 = vmatprep.mubr.bf16.mxu0 %v854
    %5461 = vmatmul.mubr.bf16.gmra.mrb[0].mxu0 %v853
    %v5462 = vpop.f32.mrb[0].mxu0
    %v5463 = vadd.f32 %v5270, %v5462
    %v5464 = vpop.f32.mrb[0].mxu0
    %v5465 = vadd.f32 %v5272, %v5464
    %v5466 = vpop.f32.mrb[0].mxu0
    %v5467 = vadd.f32 %v5274, %v5466
    %v5468 = vpop.f32.mrb[0].mxu0
    %v5469 = vadd.f32 %v5276, %v5468
    %5470 = vdwg.mxu0
    %5471 = vmatprep.subr.bf16.mxu0 %v2912
    %5472 = vmatpush1.bf16.msra.mxu0 %v2911
    %5473 = vmatprep.subr.bf16.mxu0 %v2928
    %5474 = vmatpush1.bf16.msra.mxu0 %v2927
    %5475 = vmatprep.subr.bf16.mxu0 %v2944
    %5476 = vmatpush1.bf16.msra.mxu0 %v2943
    %5477 = vmatprep.subr.bf16.mxu0 %v2960
    %5478 = vmatpush1.bf16.msra.mxu0 %v2959
    %5479 = vmatprep.subr.bf16.mxu0 %v2976
    %5480 = vmatpush1.bf16.msra.mxu0 %v2975
    %5481 = vmatprep.subr.bf16.mxu0 %v2992
    %5482 = vmatpush1.bf16.msra.mxu0 %v2991
    %5483 = vmatprep.subr.bf16.mxu0 %v3008
    %5484 = vmatpush1.bf16.msra.mxu0 %v3007
    %5485 = vmatprep.subr.bf16.mxu0 %v3024
    %5486 = vmatpush1.bf16.msra.mxu0 %v3023
    %5487 = vmatprep.subr.bf16.mxu0 %v3040
    %5488 = vmatpush1.bf16.msra.mxu0 %v3039
    %5489 = vmatprep.subr.bf16.mxu0 %v3056
    %5490 = vmatpush1.bf16.msra.mxu0 %v3055
    %5491 = vmatprep.subr.bf16.mxu0 %v3072
    %5492 = vmatpush1.bf16.msra.mxu0 %v3071
    %5493 = vmatprep.subr.bf16.mxu0 %v3088
    %5494 = vmatpush1.bf16.msra.mxu0 %v3087
    %5495 = vmatprep.subr.bf16.mxu0 %v3104
    %5496 = vmatpush1.bf16.msra.mxu0 %v3103
    %5497 = vmatprep.subr.bf16.mxu0 %v3120
    %5498 = vmatpush1.bf16.msra.mxu0 %v3119
    %5499 = vmatprep.subr.bf16.mxu0 %v3136
    %5500 = vmatpush1.bf16.msra.mxu0 %v3135
    %5501 = vmatprep.subr.bf16.mxu0 %v3152
    %5502 = vmatpush1.bf16.msra.mxu0 %v3151
    %5503 = vmatprep.mubr.bf16.mxu0 %v792
    %5504 = vmatmul.mubr.bf16.gmra.mrb[0].mxu0 %v791
    %v5505 = vpop.f32.mrb[0].mxu0
    %v5506 = vadd.f32 0.0, %v5505
    %v5507 = vpop.f32.mrb[0].mxu0
    %v5508 = vadd.f32 0.0, %v5507
    %v5509 = vpop.f32.mrb[0].mxu0
    %v5510 = vadd.f32 0.0, %v5509
    %v5511 = vpop.f32.mrb[0].mxu0
    %v5512 = vadd.f32 0.0, %v5511
    %5513 = vmatprep.mubr.bf16.mxu0 %v796
    %5514 = vmatmul.mubr.bf16.gmra.mrb[0].mxu0 %v795
    %v5515 = vpop.f32.mrb[0].mxu0
    %v5516 = vadd.f32 0.0, %v5515
    %v5517 = vpop.f32.mrb[0].mxu0
    %v5518 = vadd.f32 0.0, %v5517
    %v5519 = vpop.f32.mrb[0].mxu0
    %v5520 = vadd.f32 0.0, %v5519
    %v5521 = vpop.f32.mrb[0].mxu0
    %v5522 = vadd.f32 0.0, %v5521
    %5523 = vmatprep.mubr.bf16.mxu0 %v800
    %5524 = vmatmul.mubr.bf16.gmra.mrb[0].mxu0 %v799
    %v5525 = vpop.f32.mrb[0].mxu0
    %v5526 = vadd.f32 0.0, %v5525
    %v5527 = vpop.f32.mrb[0].mxu0
    %v5528 = vadd.f32 0.0, %v5527
    %v5529 = vpop.f32.mrb[0].mxu0
    %v5530 = vadd.f32 0.0, %v5529
    %v5531 = vpop.f32.mrb[0].mxu0
    %v5532 = vadd.f32 0.0, %v5531
    %5533 = vmatprep.mubr.bf16.mxu0 %v804
    %5534 = vmatmul.mubr.bf16.gmra.mrb[0].mxu0 %v803
    %v5535 = vpop.f32.mrb[0].mxu0
    %v5536 = vadd.f32 0.0, %v5535
    %v5537 = vpop.f32.mrb[0].mxu0
    %v5538 = vadd.f32 0.0, %v5537
    %v5539 = vpop.f32.mrb[0].mxu0
    %v5540 = vadd.f32 0.0, %v5539
    %v5541 = vpop.f32.mrb[0].mxu0
    %v5542 = vadd.f32 0.0, %v5541
    %5543 = vmatprep.mubr.bf16.mxu0 %v808
    %5544 = vmatmul.mubr.bf16.gmra.mrb[0].mxu0 %v807
    %v5545 = vpop.f32.mrb[0].mxu0
    %v5546 = vadd.f32 0.0, %v5545
    %v5547 = vpop.f32.mrb[0].mxu0
    %v5548 = vadd.f32 0.0, %v5547
    %v5549 = vpop.f32.mrb[0].mxu0
    %v5550 = vadd.f32 0.0, %v5549
    %v5551 = vpop.f32.mrb[0].mxu0
    %v5552 = vadd.f32 0.0, %v5551
    %5553 = vmatprep.mubr.bf16.mxu0 %v812
    %5554 = vmatmul.mubr.bf16.gmra.mrb[0].mxu0 %v811
    %v5555 = vpop.f32.mrb[0].mxu0
    %v5556 = vadd.f32 0.0, %v5555
    %v5557 = vpop.f32.mrb[0].mxu0
    %v5558 = vadd.f32 0.0, %v5557
    %v5559 = vpop.f32.mrb[0].mxu0
    %v5560 = vadd.f32 0.0, %v5559
    %v5561 = vpop.f32.mrb[0].mxu0
    %v5562 = vadd.f32 0.0, %v5561
    %5563 = vmatprep.mubr.bf16.mxu0 %v816
    %5564 = vmatmul.mubr.bf16.gmra.mrb[0].mxu0 %v815
    %v5565 = vpop.f32.mrb[0].mxu0
    %v5566 = vadd.f32 0.0, %v5565
    %v5567 = vpop.f32.mrb[0].mxu0
    %v5568 = vadd.f32 0.0, %v5567
    %v5569 = vpop.f32.mrb[0].mxu0
    %v5570 = vadd.f32 0.0, %v5569
    %v5571 = vpop.f32.mrb[0].mxu0
    %v5572 = vadd.f32 0.0, %v5571
    %5573 = vmatprep.mubr.bf16.mxu0 %v820
    %5574 = vmatmul.mubr.bf16.gmra.mrb[0].mxu0 %v819
    %v5575 = vpop.f32.mrb[0].mxu0
    %v5576 = vadd.f32 0.0, %v5575
    %v5577 = vpop.f32.mrb[0].mxu0
    %v5578 = vadd.f32 0.0, %v5577
    %v5579 = vpop.f32.mrb[0].mxu0
    %v5580 = vadd.f32 0.0, %v5579
    %v5581 = vpop.f32.mrb[0].mxu0
    %v5582 = vadd.f32 0.0, %v5581
    %5583 = vmatprep.mubr.bf16.mxu0 %v824
    %5584 = vmatmul.mubr.bf16.gmra.mrb[0].mxu0 %v823
    %v5585 = vpop.f32.mrb[0].mxu0
    %v5586 = vadd.f32 0.0, %v5585
    %v5587 = vpop.f32.mrb[0].mxu0
    %v5588 = vadd.f32 0.0, %v5587
    %v5589 = vpop.f32.mrb[0].mxu0
    %v5590 = vadd.f32 0.0, %v5589
    %v5591 = vpop.f32.mrb[0].mxu0
    %v5592 = vadd.f32 0.0, %v5591
    %5593 = vmatprep.mubr.bf16.mxu0 %v828
    %5594 = vmatmul.mubr.bf16.gmra.mrb[0].mxu0 %v827
    %v5595 = vpop.f32.mrb[0].mxu0
    %v5596 = vadd.f32 0.0, %v5595
    %v5597 = vpop.f32.mrb[0].mxu0
    %v5598 = vadd.f32 0.0, %v5597
    %v5599 = vpop.f32.mrb[0].mxu0
    %v5600 = vadd.f32 0.0, %v5599
    %v5601 = vpop.f32.mrb[0].mxu0
    %v5602 = vadd.f32 0.0, %v5601
    %5603 = vmatprep.mubr.bf16.mxu0 %v832
    %5604 = vmatmul.mubr.bf16.gmra.mrb[0].mxu0 %v831
    %v5605 = vpop.f32.mrb[0].mxu0
    %v5606 = vadd.f32 0.0, %v5605
    %v5607 = vpop.f32.mrb[0].mxu0
    %v5608 = vadd.f32 0.0, %v5607
    %v5609 = vpop.f32.mrb[0].mxu0
    %v5610 = vadd.f32 0.0, %v5609
    %v5611 = vpop.f32.mrb[0].mxu0
    %v5612 = vadd.f32 0.0, %v5611
    %5613 = vmatprep.mubr.bf16.mxu0 %v836
    %5614 = vmatmul.mubr.bf16.gmra.mrb[0].mxu0 %v835
    %v5615 = vpop.f32.mrb[0].mxu0
    %v5616 = vadd.f32 0.0, %v5615
    %v5617 = vpop.f32.mrb[0].mxu0
    %v5618 = vadd.f32 0.0, %v5617
    %v5619 = vpop.f32.mrb[0].mxu0
    %v5620 = vadd.f32 0.0, %v5619
    %v5621 = vpop.f32.mrb[0].mxu0
    %v5622 = vadd.f32 0.0, %v5621
    %5623 = vmatprep.mubr.bf16.mxu0 %v840
    %5624 = vmatmul.mubr.bf16.gmra.mrb[0].mxu0 %v839
    %v5625 = vpop.f32.mrb[0].mxu0
    %v5626 = vadd.f32 0.0, %v5625
    %v5627 = vpop.f32.mrb[0].mxu0
    %v5628 = vadd.f32 0.0, %v5627
    %v5629 = vpop.f32.mrb[0].mxu0
    %v5630 = vadd.f32 0.0, %v5629
    %v5631 = vpop.f32.mrb[0].mxu0
    %v5632 = vadd.f32 0.0, %v5631
    %5633 = vmatprep.mubr.bf16.mxu0 %v844
    %5634 = vmatmul.mubr.bf16.gmra.mrb[0].mxu0 %v843
    %v5635 = vpop.f32.mrb[0].mxu0
    %v5636 = vadd.f32 0.0, %v5635
    %v5637 = vpop.f32.mrb[0].mxu0
    %v5638 = vadd.f32 0.0, %v5637
    %v5639 = vpop.f32.mrb[0].mxu0
    %v5640 = vadd.f32 0.0, %v5639
    %v5641 = vpop.f32.mrb[0].mxu0
    %v5642 = vadd.f32 0.0, %v5641
    %5643 = vmatprep.mubr.bf16.mxu0 %v848
    %5644 = vmatmul.mubr.bf16.gmra.mrb[0].mxu0 %v847
    %v5645 = vpop.f32.mrb[0].mxu0
    %v5646 = vadd.f32 0.0, %v5645
    %v5647 = vpop.f32.mrb[0].mxu0
    %v5648 = vadd.f32 0.0, %v5647
    %v5649 = vpop.f32.mrb[0].mxu0
    %v5650 = vadd.f32 0.0, %v5649
    %v5651 = vpop.f32.mrb[0].mxu0
    %v5652 = vadd.f32 0.0, %v5651
    %5653 = vmatprep.mubr.bf16.mxu0 %v852
    %5654 = vmatmul.mubr.bf16.gmra.mrb[0].mxu0 %v851
    %v5655 = vpop.f32.mrb[0].mxu0
    %v5656 = vadd.f32 0.0, %v5655
    %v5657 = vpop.f32.mrb[0].mxu0
    %v5658 = vadd.f32 0.0, %v5657
    %v5659 = vpop.f32.mrb[0].mxu0
    %v5660 = vadd.f32 0.0, %v5659
    %v5661 = vpop.f32.mrb[0].mxu0
    %v5662 = vadd.f32 0.0, %v5661
    %5663 = vdwg.mxu0
    %5664 = vmatprep.subr.bf16.mxu0 %v3168
    %5665 = vmatpush1.bf16.msra.mxu0 %v3167
    %5666 = vmatprep.subr.bf16.mxu0 %v3184
    %5667 = vmatpush1.bf16.msra.mxu0 %v3183
    %5668 = vmatprep.subr.bf16.mxu0 %v3200
    %5669 = vmatpush1.bf16.msra.mxu0 %v3199
    %5670 = vmatprep.subr.bf16.mxu0 %v3216
    %5671 = vmatpush1.bf16.msra.mxu0 %v3215
    %5672 = vmatprep.subr.bf16.mxu0 %v3232
    %5673 = vmatpush1.bf16.msra.mxu0 %v3231
    %5674 = vmatprep.subr.bf16.mxu0 %v3248
    %5675 = vmatpush1.bf16.msra.mxu0 %v3247
    %5676 = vmatprep.subr.bf16.mxu0 %v3264
    %5677 = vmatpush1.bf16.msra.mxu0 %v3263
    %5678 = vmatprep.subr.bf16.mxu0 %v3280
    %5679 = vmatpush1.bf16.msra.mxu0 %v3279
    %5680 = vmatprep.subr.bf16.mxu0 %v3296
    %5681 = vmatpush1.bf16.msra.mxu0 %v3295
    %5682 = vmatprep.subr.bf16.mxu0 %v3312
    %5683 = vmatpush1.bf16.msra.mxu0 %v3311
    %5684 = vmatprep.subr.bf16.mxu0 %v3328
    %5685 = vmatpush1.bf16.msra.mxu0 %v3327
    %5686 = vmatprep.subr.bf16.mxu0 %v3344
    %5687 = vmatpush1.bf16.msra.mxu0 %v3343
    %5688 = vmatprep.subr.bf16.mxu0 %v3360
    %5689 = vmatpush1.bf16.msra.mxu0 %v3359
    %5690 = vmatprep.subr.bf16.mxu0 %v3376
    %5691 = vmatpush1.bf16.msra.mxu0 %v3375
    %5692 = vmatprep.subr.bf16.mxu0 %v3392
    %5693 = vmatpush1.bf16.msra.mxu0 %v3391
    %5694 = vmatprep.subr.bf16.mxu0 %v3408
    %5695 = vmatpush1.bf16.msra.mxu0 %v3407
    %5696 = vmatprep.mubr.bf16.mxu0 %v794
    %5697 = vmatmul.mubr.bf16.gmra.mrb[0].mxu0 %v793
    %v5698 = vpop.f32.mrb[0].mxu0
    %v5699 = vadd.f32 %v5506, %v5698
    %v5700 = vpop.f32.mrb[0].mxu0
    %v5701 = vadd.f32 %v5508, %v5700
    %v5702 = vpop.f32.mrb[0].mxu0
    %v5703 = vadd.f32 %v5510, %v5702
    %v5704 = vpop.f32.mrb[0].mxu0
    %v5705 = vadd.f32 %v5512, %v5704
    %5706 = vmatprep.mubr.bf16.mxu0 %v798
    %5707 = vmatmul.mubr.bf16.gmra.mrb[0].mxu0 %v797
    %v5708 = vpop.f32.mrb[0].mxu0
    %v5709 = vadd.f32 %v5516, %v5708
    %v5710 = vpop.f32.mrb[0].mxu0
    %v5711 = vadd.f32 %v5518, %v5710
    %v5712 = vpop.f32.mrb[0].mxu0
    %v5713 = vadd.f32 %v5520, %v5712
    %v5714 = vpop.f32.mrb[0].mxu0
    %v5715 = vadd.f32 %v5522, %v5714
    %5716 = vmatprep.mubr.bf16.mxu0 %v802
    %5717 = vmatmul.mubr.bf16.gmra.mrb[0].mxu0 %v801
    %v5718 = vpop.f32.mrb[0].mxu0
    %v5719 = vadd.f32 %v5526, %v5718
    %v5720 = vpop.f32.mrb[0].mxu0
    %v5721 = vadd.f32 %v5528, %v5720
    %v5722 = vpop.f32.mrb[0].mxu0
    %v5723 = vadd.f32 %v5530, %v5722
    %v5724 = vpop.f32.mrb[0].mxu0
    %v5725 = vadd.f32 %v5532, %v5724
    %5726 = vmatprep.mubr.bf16.mxu0 %v806
    %5727 = vmatmul.mubr.bf16.gmra.mrb[0].mxu0 %v805
    %v5728 = vpop.f32.mrb[0].mxu0
    %v5729 = vadd.f32 %v5536, %v5728
    %v5730 = vpop.f32.mrb[0].mxu0
    %v5731 = vadd.f32 %v5538, %v5730
    %v5732 = vpop.f32.mrb[0].mxu0
    %v5733 = vadd.f32 %v5540, %v5732
    %v5734 = vpop.f32.mrb[0].mxu0
    %v5735 = vadd.f32 %v5542, %v5734
    %5736 = vmatprep.mubr.bf16.mxu0 %v810
    %5737 = vmatmul.mubr.bf16.gmra.mrb[0].mxu0 %v809
    %v5738 = vpop.f32.mrb[0].mxu0
    %v5739 = vadd.f32 %v5546, %v5738
    %v5740 = vpop.f32.mrb[0].mxu0
    %v5741 = vadd.f32 %v5548, %v5740
    %v5742 = vpop.f32.mrb[0].mxu0
    %v5743 = vadd.f32 %v5550, %v5742
    %v5744 = vpop.f32.mrb[0].mxu0
    %v5745 = vadd.f32 %v5552, %v5744
    %5746 = vmatprep.mubr.bf16.mxu0 %v814
    %5747 = vmatmul.mubr.bf16.gmra.mrb[0].mxu0 %v813
    %v5748 = vpop.f32.mrb[0].mxu0
    %v5749 = vadd.f32 %v5556, %v5748
    %v5750 = vpop.f32.mrb[0].mxu0
    %v5751 = vadd.f32 %v5558, %v5750
    %v5752 = vpop.f32.mrb[0].mxu0
    %v5753 = vadd.f32 %v5560, %v5752
    %v5754 = vpop.f32.mrb[0].mxu0
    %v5755 = vadd.f32 %v5562, %v5754
    %5756 = vmatprep.mubr.bf16.mxu0 %v818
    %5757 = vmatmul.mubr.bf16.gmra.mrb[0].mxu0 %v817
    %v5758 = vpop.f32.mrb[0].mxu0
    %v5759 = vadd.f32 %v5566, %v5758
    %v5760 = vpop.f32.mrb[0].mxu0
    %v5761 = vadd.f32 %v5568, %v5760
    %v5762 = vpop.f32.mrb[0].mxu0
    %v5763 = vadd.f32 %v5570, %v5762
    %v5764 = vpop.f32.mrb[0].mxu0
    %v5765 = vadd.f32 %v5572, %v5764
    %5766 = vmatprep.mubr.bf16.mxu0 %v822
    %5767 = vmatmul.mubr.bf16.gmra.mrb[0].mxu0 %v821
    %v5768 = vpop.f32.mrb[0].mxu0
    %v5769 = vadd.f32 %v5576, %v5768
    %v5770 = vpop.f32.mrb[0].mxu0
    %v5771 = vadd.f32 %v5578, %v5770
    %v5772 = vpop.f32.mrb[0].mxu0
    %v5773 = vadd.f32 %v5580, %v5772
    %v5774 = vpop.f32.mrb[0].mxu0
    %v5775 = vadd.f32 %v5582, %v5774
    %5776 = vmatprep.mubr.bf16.mxu0 %v826
    %5777 = vmatmul.mubr.bf16.gmra.mrb[0].mxu0 %v825
    %v5778 = vpop.f32.mrb[0].mxu0
    %v5779 = vadd.f32 %v5586, %v5778
    %v5780 = vpop.f32.mrb[0].mxu0
    %v5781 = vadd.f32 %v5588, %v5780
    %v5782 = vpop.f32.mrb[0].mxu0
    %v5783 = vadd.f32 %v5590, %v5782
    %v5784 = vpop.f32.mrb[0].mxu0
    %v5785 = vadd.f32 %v5592, %v5784
    %5786 = vmatprep.mubr.bf16.mxu0 %v830
    %5787 = vmatmul.mubr.bf16.gmra.mrb[0].mxu0 %v829
    %v5788 = vpop.f32.mrb[0].mxu0
    %v5789 = vadd.f32 %v5596, %v5788
    %v5790 = vpop.f32.mrb[0].mxu0
    %v5791 = vadd.f32 %v5598, %v5790
    %v5792 = vpop.f32.mrb[0].mxu0
    %v5793 = vadd.f32 %v5600, %v5792
    %v5794 = vpop.f32.mrb[0].mxu0
    %v5795 = vadd.f32 %v5602, %v5794
    %5796 = vmatprep.mubr.bf16.mxu0 %v834
    %5797 = vmatmul.mubr.bf16.gmra.mrb[0].mxu0 %v833
    %v5798 = vpop.f32.mrb[0].mxu0
    %v5799 = vadd.f32 %v5606, %v5798
    %v5800 = vpop.f32.mrb[0].mxu0
    %v5801 = vadd.f32 %v5608, %v5800
    %v5802 = vpop.f32.mrb[0].mxu0
    %v5803 = vadd.f32 %v5610, %v5802
    %v5804 = vpop.f32.mrb[0].mxu0
    %v5805 = vadd.f32 %v5612, %v5804
    %5806 = vmatprep.mubr.bf16.mxu0 %v838
    %5807 = vmatmul.mubr.bf16.gmra.mrb[0].mxu0 %v837
    %v5808 = vpop.f32.mrb[0].mxu0
    %v5809 = vadd.f32 %v5616, %v5808
    %v5810 = vpop.f32.mrb[0].mxu0
    %v5811 = vadd.f32 %v5618, %v5810
    %v5812 = vpop.f32.mrb[0].mxu0
    %v5813 = vadd.f32 %v5620, %v5812
    %v5814 = vpop.f32.mrb[0].mxu0
    %v5815 = vadd.f32 %v5622, %v5814
    %5816 = vmatprep.mubr.bf16.mxu0 %v842
    %5817 = vmatmul.mubr.bf16.gmra.mrb[0].mxu0 %v841
    %v5818 = vpop.f32.mrb[0].mxu0
    %v5819 = vadd.f32 %v5626, %v5818
    %v5820 = vpop.f32.mrb[0].mxu0
    %v5821 = vadd.f32 %v5628, %v5820
    %v5822 = vpop.f32.mrb[0].mxu0
    %v5823 = vadd.f32 %v5630, %v5822
    %v5824 = vpop.f32.mrb[0].mxu0
    %v5825 = vadd.f32 %v5632, %v5824
    %5826 = vmatprep.mubr.bf16.mxu0 %v846
    %5827 = vmatmul.mubr.bf16.gmra.mrb[0].mxu0 %v845
    %v5828 = vpop.f32.mrb[0].mxu0
    %v5829 = vadd.f32 %v5636, %v5828
    %v5830 = vpop.f32.mrb[0].mxu0
    %v5831 = vadd.f32 %v5638, %v5830
    %v5832 = vpop.f32.mrb[0].mxu0
    %v5833 = vadd.f32 %v5640, %v5832
    %v5834 = vpop.f32.mrb[0].mxu0
    %v5835 = vadd.f32 %v5642, %v5834
    %5836 = vmatprep.mubr.bf16.mxu0 %v850
    %5837 = vmatmul.mubr.bf16.gmra.mrb[0].mxu0 %v849
    %v5838 = vpop.f32.mrb[0].mxu0
    %v5839 = vadd.f32 %v5646, %v5838
    %v5840 = vpop.f32.mrb[0].mxu0
    %v5841 = vadd.f32 %v5648, %v5840
    %v5842 = vpop.f32.mrb[0].mxu0
    %v5843 = vadd.f32 %v5650, %v5842
    %v5844 = vpop.f32.mrb[0].mxu0
    %v5845 = vadd.f32 %v5652, %v5844
    %5846 = vmatprep.mubr.bf16.mxu0 %v854
    %5847 = vmatmul.mubr.bf16.gmra.mrb[0].mxu0 %v853
    %v5848 = vpop.f32.mrb[0].mxu0
    %v5849 = vadd.f32 %v5656, %v5848
    %v5850 = vpop.f32.mrb[0].mxu0
    %v5851 = vadd.f32 %v5658, %v5850
    %v5852 = vpop.f32.mrb[0].mxu0
    %v5853 = vadd.f32 %v5660, %v5852
    %v5854 = vpop.f32.mrb[0].mxu0
    %v5855 = vadd.f32 %v5662, %v5854
    %5856 = vdwg.mxu0
    %5857 = vmatprep.subr.bf16.mxu0 %v2914
    %5858 = vmatpush1.bf16.msra.mxu0 %v2913
    %5859 = vmatprep.subr.bf16.mxu0 %v2930
    %5860 = vmatpush1.bf16.msra.mxu0 %v2929
    %5861 = vmatprep.subr.bf16.mxu0 %v2946
    %5862 = vmatpush1.bf16.msra.mxu0 %v2945
    %5863 = vmatprep.subr.bf16.mxu0 %v2962
    %5864 = vmatpush1.bf16.msra.mxu0 %v2961
    %5865 = vmatprep.subr.bf16.mxu0 %v2978
    %5866 = vmatpush1.bf16.msra.mxu0 %v2977
    %5867 = vmatprep.subr.bf16.mxu0 %v2994
    %5868 = vmatpush1.bf16.msra.mxu0 %v2993
    %5869 = vmatprep.subr.bf16.mxu0 %v3010
    %5870 = vmatpush1.bf16.msra.mxu0 %v3009
    %5871 = vmatprep.subr.bf16.mxu0 %v3026
    %5872 = vmatpush1.bf16.msra.mxu0 %v3025
    %5873 = vmatprep.subr.bf16.mxu0 %v3042
    %5874 = vmatpush1.bf16.msra.mxu0 %v3041
    %5875 = vmatprep.subr.bf16.mxu0 %v3058
    %5876 = vmatpush1.bf16.msra.mxu0 %v3057
    %5877 = vmatprep.subr.bf16.mxu0 %v3074
    %5878 = vmatpush1.bf16.msra.mxu0 %v3073
    %5879 = vmatprep.subr.bf16.mxu0 %v3090
    %5880 = vmatpush1.bf16.msra.mxu0 %v3089
    %5881 = vmatprep.subr.bf16.mxu0 %v3106
    %5882 = vmatpush1.bf16.msra.mxu0 %v3105
    %5883 = vmatprep.subr.bf16.mxu0 %v3122
    %5884 = vmatpush1.bf16.msra.mxu0 %v3121
    %5885 = vmatprep.subr.bf16.mxu0 %v3138
    %5886 = vmatpush1.bf16.msra.mxu0 %v3137
    %5887 = vmatprep.subr.bf16.mxu0 %v3154
    %5888 = vmatpush1.bf16.msra.mxu0 %v3153
    %5889 = vmatprep.mubr.bf16.mxu0 %v792
    %5890 = vmatmul.mubr.bf16.gmra.mrb[0].mxu0 %v791
    %v5891 = vpop.f32.mrb[0].mxu0
    %v5892 = vadd.f32 0.0, %v5891
    %v5893 = vpop.f32.mrb[0].mxu0
    %v5894 = vadd.f32 0.0, %v5893
    %v5895 = vpop.f32.mrb[0].mxu0
    %v5896 = vadd.f32 0.0, %v5895
    %v5897 = vpop.f32.mrb[0].mxu0
    %v5898 = vadd.f32 0.0, %v5897
    %5899 = vmatprep.mubr.bf16.mxu0 %v796
    %5900 = vmatmul.mubr.bf16.gmra.mrb[0].mxu0 %v795
    %v5901 = vpop.f32.mrb[0].mxu0
    %v5902 = vadd.f32 0.0, %v5901
    %v5903 = vpop.f32.mrb[0].mxu0
    %v5904 = vadd.f32 0.0, %v5903
    %v5905 = vpop.f32.mrb[0].mxu0
    %v5906 = vadd.f32 0.0, %v5905
    %v5907 = vpop.f32.mrb[0].mxu0
    %v5908 = vadd.f32 0.0, %v5907
    %5909 = vmatprep.mubr.bf16.mxu0 %v800
    %5910 = vmatmul.mubr.bf16.gmra.mrb[0].mxu0 %v799
    %v5911 = vpop.f32.mrb[0].mxu0
    %v5912 = vadd.f32 0.0, %v5911
    %v5913 = vpop.f32.mrb[0].mxu0
    %v5914 = vadd.f32 0.0, %v5913
    %v5915 = vpop.f32.mrb[0].mxu0
    %v5916 = vadd.f32 0.0, %v5915
    %v5917 = vpop.f32.mrb[0].mxu0
    %v5918 = vadd.f32 0.0, %v5917
    %5919 = vmatprep.mubr.bf16.mxu0 %v804
    %5920 = vmatmul.mubr.bf16.gmra.mrb[0].mxu0 %v803
    %v5921 = vpop.f32.mrb[0].mxu0
    %v5922 = vadd.f32 0.0, %v5921
    %v5923 = vpop.f32.mrb[0].mxu0
    %v5924 = vadd.f32 0.0, %v5923
    %v5925 = vpop.f32.mrb[0].mxu0
    %v5926 = vadd.f32 0.0, %v5925
    %v5927 = vpop.f32.mrb[0].mxu0
    %v5928 = vadd.f32 0.0, %v5927
    %5929 = vmatprep.mubr.bf16.mxu0 %v808
    %5930 = vmatmul.mubr.bf16.gmra.mrb[0].mxu0 %v807
    %v5931 = vpop.f32.mrb[0].mxu0
    %v5932 = vadd.f32 0.0, %v5931
    %v5933 = vpop.f32.mrb[0].mxu0
    %v5934 = vadd.f32 0.0, %v5933
    %v5935 = vpop.f32.mrb[0].mxu0
    %v5936 = vadd.f32 0.0, %v5935
    %v5937 = vpop.f32.mrb[0].mxu0
    %v5938 = vadd.f32 0.0, %v5937
    %5939 = vmatprep.mubr.bf16.mxu0 %v812
    %5940 = vmatmul.mubr.bf16.gmra.mrb[0].mxu0 %v811
    %v5941 = vpop.f32.mrb[0].mxu0
    %v5942 = vadd.f32 0.0, %v5941
    %v5943 = vpop.f32.mrb[0].mxu0
    %v5944 = vadd.f32 0.0, %v5943
    %v5945 = vpop.f32.mrb[0].mxu0
    %v5946 = vadd.f32 0.0, %v5945
    %v5947 = vpop.f32.mrb[0].mxu0
    %v5948 = vadd.f32 0.0, %v5947
    %5949 = vmatprep.mubr.bf16.mxu0 %v816
    %5950 = vmatmul.mubr.bf16.gmra.mrb[0].mxu0 %v815
    %v5951 = vpop.f32.mrb[0].mxu0
    %v5952 = vadd.f32 0.0, %v5951
    %v5953 = vpop.f32.mrb[0].mxu0
    %v5954 = vadd.f32 0.0, %v5953
    %v5955 = vpop.f32.mrb[0].mxu0
    %v5956 = vadd.f32 0.0, %v5955
    %v5957 = vpop.f32.mrb[0].mxu0
    %v5958 = vadd.f32 0.0, %v5957
    %5959 = vmatprep.mubr.bf16.mxu0 %v820
    %5960 = vmatmul.mubr.bf16.gmra.mrb[0].mxu0 %v819
    %v5961 = vpop.f32.mrb[0].mxu0
    %v5962 = vadd.f32 0.0, %v5961
    %v5963 = vpop.f32.mrb[0].mxu0
    %v5964 = vadd.f32 0.0, %v5963
    %v5965 = vpop.f32.mrb[0].mxu0
    %v5966 = vadd.f32 0.0, %v5965
    %v5967 = vpop.f32.mrb[0].mxu0
    %v5968 = vadd.f32 0.0, %v5967
    %5969 = vmatprep.mubr.bf16.mxu0 %v824
    %5970 = vmatmul.mubr.bf16.gmra.mrb[0].mxu0 %v823
    %v5971 = vpop.f32.mrb[0].mxu0
    %v5972 = vadd.f32 0.0, %v5971
    %v5973 = vpop.f32.mrb[0].mxu0
    %v5974 = vadd.f32 0.0, %v5973
    %v5975 = vpop.f32.mrb[0].mxu0
    %v5976 = vadd.f32 0.0, %v5975
    %v5977 = vpop.f32.mrb[0].mxu0
    %v5978 = vadd.f32 0.0, %v5977
    %5979 = vmatprep.mubr.bf16.mxu0 %v828
    %5980 = vmatmul.mubr.bf16.gmra.mrb[0].mxu0 %v827
    %v5981 = vpop.f32.mrb[0].mxu0
    %v5982 = vadd.f32 0.0, %v5981
    %v5983 = vpop.f32.mrb[0].mxu0
    %v5984 = vadd.f32 0.0, %v5983
    %v5985 = vpop.f32.mrb[0].mxu0
    %v5986 = vadd.f32 0.0, %v5985
    %v5987 = vpop.f32.mrb[0].mxu0
    %v5988 = vadd.f32 0.0, %v5987
    %5989 = vmatprep.mubr.bf16.mxu0 %v832
    %5990 = vmatmul.mubr.bf16.gmra.mrb[0].mxu0 %v831
    %v5991 = vpop.f32.mrb[0].mxu0
    %v5992 = vadd.f32 0.0, %v5991
    %v5993 = vpop.f32.mrb[0].mxu0
    %v5994 = vadd.f32 0.0, %v5993
    %v5995 = vpop.f32.mrb[0].mxu0
    %v5996 = vadd.f32 0.0, %v5995
    %v5997 = vpop.f32.mrb[0].mxu0
    %v5998 = vadd.f32 0.0, %v5997
    %5999 = vmatprep.mubr.bf16.mxu0 %v836
    %6000 = vmatmul.mubr.bf16.gmra.mrb[0].mxu0 %v835
    %v6001 = vpop.f32.mrb[0].mxu0
    %v6002 = vadd.f32 0.0, %v6001
    %v6003 = vpop.f32.mrb[0].mxu0
    %v6004 = vadd.f32 0.0, %v6003
    %v6005 = vpop.f32.mrb[0].mxu0
    %v6006 = vadd.f32 0.0, %v6005
    %v6007 = vpop.f32.mrb[0].mxu0
    %v6008 = vadd.f32 0.0, %v6007
    %6009 = vmatprep.mubr.bf16.mxu0 %v840
    %6010 = vmatmul.mubr.bf16.gmra.mrb[0].mxu0 %v839
    %v6011 = vpop.f32.mrb[0].mxu0
    %v6012 = vadd.f32 0.0, %v6011
    %v6013 = vpop.f32.mrb[0].mxu0
    %v6014 = vadd.f32 0.0, %v6013
    %v6015 = vpop.f32.mrb[0].mxu0
    %v6016 = vadd.f32 0.0, %v6015
    %v6017 = vpop.f32.mrb[0].mxu0
    %v6018 = vadd.f32 0.0, %v6017
    %6019 = vmatprep.mubr.bf16.mxu0 %v844
    %6020 = vmatmul.mubr.bf16.gmra.mrb[0].mxu0 %v843
    %v6021 = vpop.f32.mrb[0].mxu0
    %v6022 = vadd.f32 0.0, %v6021
    %v6023 = vpop.f32.mrb[0].mxu0
    %v6024 = vadd.f32 0.0, %v6023
    %v6025 = vpop.f32.mrb[0].mxu0
    %v6026 = vadd.f32 0.0, %v6025
    %v6027 = vpop.f32.mrb[0].mxu0
    %v6028 = vadd.f32 0.0, %v6027
    %6029 = vmatprep.mubr.bf16.mxu0 %v848
    %6030 = vmatmul.mubr.bf16.gmra.mrb[0].mxu0 %v847
    %v6031 = vpop.f32.mrb[0].mxu0
    %v6032 = vadd.f32 0.0, %v6031
    %v6033 = vpop.f32.mrb[0].mxu0
    %v6034 = vadd.f32 0.0, %v6033
    %v6035 = vpop.f32.mrb[0].mxu0
    %v6036 = vadd.f32 0.0, %v6035
    %v6037 = vpop.f32.mrb[0].mxu0
    %v6038 = vadd.f32 0.0, %v6037
    %6039 = vmatprep.mubr.bf16.mxu0 %v852
    %6040 = vmatmul.mubr.bf16.gmra.mrb[0].mxu0 %v851
    %v6041 = vpop.f32.mrb[0].mxu0
    %v6042 = vadd.f32 0.0, %v6041
    %v6043 = vpop.f32.mrb[0].mxu0
    %v6044 = vadd.f32 0.0, %v6043
    %v6045 = vpop.f32.mrb[0].mxu0
    %v6046 = vadd.f32 0.0, %v6045
    %v6047 = vpop.f32.mrb[0].mxu0
    %v6048 = vadd.f32 0.0, %v6047
    %6049 = vdwg.mxu0
    %6050 = vmatprep.subr.bf16.mxu0 %v3170
    %6051 = vmatpush1.bf16.msra.mxu0 %v3169
    %6052 = vmatprep.subr.bf16.mxu0 %v3186
    %6053 = vmatpush1.bf16.msra.mxu0 %v3185
    %6054 = vmatprep.subr.bf16.mxu0 %v3202
    %6055 = vmatpush1.bf16.msra.mxu0 %v3201
    %6056 = vmatprep.subr.bf16.mxu0 %v3218
    %6057 = vmatpush1.bf16.msra.mxu0 %v3217
    %6058 = vmatprep.subr.bf16.mxu0 %v3234
    %6059 = vmatpush1.bf16.msra.mxu0 %v3233
    %6060 = vmatprep.subr.bf16.mxu0 %v3250
    %6061 = vmatpush1.bf16.msra.mxu0 %v3249
    %6062 = vmatprep.subr.bf16.mxu0 %v3266
    %6063 = vmatpush1.bf16.msra.mxu0 %v3265
    %6064 = vmatprep.subr.bf16.mxu0 %v3282
    %6065 = vmatpush1.bf16.msra.mxu0 %v3281
    %6066 = vmatprep.subr.bf16.mxu0 %v3298
    %6067 = vmatpush1.bf16.msra.mxu0 %v3297
    %6068 = vmatprep.subr.bf16.mxu0 %v3314
    %6069 = vmatpush1.bf16.msra.mxu0 %v3313
    %6070 = vmatprep.subr.bf16.mxu0 %v3330
    %6071 = vmatpush1.bf16.msra.mxu0 %v3329
    %6072 = vmatprep.subr.bf16.mxu0 %v3346
    %6073 = vmatpush1.bf16.msra.mxu0 %v3345
    %6074 = vmatprep.subr.bf16.mxu0 %v3362
    %6075 = vmatpush1.bf16.msra.mxu0 %v3361
    %6076 = vmatprep.subr.bf16.mxu0 %v3378
    %6077 = vmatpush1.bf16.msra.mxu0 %v3377
    %6078 = vmatprep.subr.bf16.mxu0 %v3394
    %6079 = vmatpush1.bf16.msra.mxu0 %v3393
    %6080 = vmatprep.subr.bf16.mxu0 %v3410
    %6081 = vmatpush1.bf16.msra.mxu0 %v3409
    %6082 = vmatprep.mubr.bf16.mxu0 %v794
    %6083 = vmatmul.mubr.bf16.gmra.mrb[0].mxu0 %v793
    %v6084 = vpop.f32.mrb[0].mxu0
    %v6085 = vadd.f32 %v5892, %v6084
    %v6086 = vpop.f32.mrb[0].mxu0
    %v6087 = vadd.f32 %v5894, %v6086
    %v6088 = vpop.f32.mrb[0].mxu0
    %v6089 = vadd.f32 %v5896, %v6088
    %v6090 = vpop.f32.mrb[0].mxu0
    %v6091 = vadd.f32 %v5898, %v6090
    %6092 = vmatprep.mubr.bf16.mxu0 %v798
    %6093 = vmatmul.mubr.bf16.gmra.mrb[0].mxu0 %v797
    %v6094 = vpop.f32.mrb[0].mxu0
    %v6095 = vadd.f32 %v5902, %v6094
    %v6096 = vpop.f32.mrb[0].mxu0
    %v6097 = vadd.f32 %v5904, %v6096
    %v6098 = vpop.f32.mrb[0].mxu0
    %v6099 = vadd.f32 %v5906, %v6098
    %v6100 = vpop.f32.mrb[0].mxu0
    %v6101 = vadd.f32 %v5908, %v6100
    %6102 = vmatprep.mubr.bf16.mxu0 %v802
    %6103 = vmatmul.mubr.bf16.gmra.mrb[0].mxu0 %v801
    %v6104 = vpop.f32.mrb[0].mxu0
    %v6105 = vadd.f32 %v5912, %v6104
    %v6106 = vpop.f32.mrb[0].mxu0
    %v6107 = vadd.f32 %v5914, %v6106
    %v6108 = vpop.f32.mrb[0].mxu0
    %v6109 = vadd.f32 %v5916, %v6108
    %v6110 = vpop.f32.mrb[0].mxu0
    %v6111 = vadd.f32 %v5918, %v6110
    %6112 = vmatprep.mubr.bf16.mxu0 %v806
    %6113 = vmatmul.mubr.bf16.gmra.mrb[0].mxu0 %v805
    %v6114 = vpop.f32.mrb[0].mxu0
    %v6115 = vadd.f32 %v5922, %v6114
    %v6116 = vpop.f32.mrb[0].mxu0
    %v6117 = vadd.f32 %v5924, %v6116
    %v6118 = vpop.f32.mrb[0].mxu0
    %v6119 = vadd.f32 %v5926, %v6118
    %v6120 = vpop.f32.mrb[0].mxu0
    %v6121 = vadd.f32 %v5928, %v6120
    %6122 = vmatprep.mubr.bf16.mxu0 %v810
    %6123 = vmatmul.mubr.bf16.gmra.mrb[0].mxu0 %v809
    %v6124 = vpop.f32.mrb[0].mxu0
    %v6125 = vadd.f32 %v5932, %v6124
    %v6126 = vpop.f32.mrb[0].mxu0
    %v6127 = vadd.f32 %v5934, %v6126
    %v6128 = vpop.f32.mrb[0].mxu0
    %v6129 = vadd.f32 %v5936, %v6128
    %v6130 = vpop.f32.mrb[0].mxu0
    %v6131 = vadd.f32 %v5938, %v6130
    %6132 = vmatprep.mubr.bf16.mxu0 %v814
    %6133 = vmatmul.mubr.bf16.gmra.mrb[0].mxu0 %v813
    %v6134 = vpop.f32.mrb[0].mxu0
    %v6135 = vadd.f32 %v5942, %v6134
    %v6136 = vpop.f32.mrb[0].mxu0
    %v6137 = vadd.f32 %v5944, %v6136
    %v6138 = vpop.f32.mrb[0].mxu0
    %v6139 = vadd.f32 %v5946, %v6138
    %v6140 = vpop.f32.mrb[0].mxu0
    %v6141 = vadd.f32 %v5948, %v6140
    %6142 = vmatprep.mubr.bf16.mxu0 %v818
    %6143 = vmatmul.mubr.bf16.gmra.mrb[0].mxu0 %v817
    %v6144 = vpop.f32.mrb[0].mxu0
    %v6145 = vadd.f32 %v5952, %v6144
    %v6146 = vpop.f32.mrb[0].mxu0
    %v6147 = vadd.f32 %v5954, %v6146
    %v6148 = vpop.f32.mrb[0].mxu0
    %v6149 = vadd.f32 %v5956, %v6148
    %v6150 = vpop.f32.mrb[0].mxu0
    %v6151 = vadd.f32 %v5958, %v6150
    %6152 = vmatprep.mubr.bf16.mxu0 %v822
    %6153 = vmatmul.mubr.bf16.gmra.mrb[0].mxu0 %v821
    %v6154 = vpop.f32.mrb[0].mxu0
    %v6155 = vadd.f32 %v5962, %v6154
    %v6156 = vpop.f32.mrb[0].mxu0
    %v6157 = vadd.f32 %v5964, %v6156
    %v6158 = vpop.f32.mrb[0].mxu0
    %v6159 = vadd.f32 %v5966, %v6158
    %v6160 = vpop.f32.mrb[0].mxu0
    %v6161 = vadd.f32 %v5968, %v6160
    %6162 = vmatprep.mubr.bf16.mxu0 %v826
    %6163 = vmatmul.mubr.bf16.gmra.mrb[0].mxu0 %v825
    %v6164 = vpop.f32.mrb[0].mxu0
    %v6165 = vadd.f32 %v5972, %v6164
    %v6166 = vpop.f32.mrb[0].mxu0
    %v6167 = vadd.f32 %v5974, %v6166
    %v6168 = vpop.f32.mrb[0].mxu0
    %v6169 = vadd.f32 %v5976, %v6168
    %v6170 = vpop.f32.mrb[0].mxu0
    %v6171 = vadd.f32 %v5978, %v6170
    %6172 = vmatprep.mubr.bf16.mxu0 %v830
    %6173 = vmatmul.mubr.bf16.gmra.mrb[0].mxu0 %v829
    %v6174 = vpop.f32.mrb[0].mxu0
    %v6175 = vadd.f32 %v5982, %v6174
    %v6176 = vpop.f32.mrb[0].mxu0
    %v6177 = vadd.f32 %v5984, %v6176
    %v6178 = vpop.f32.mrb[0].mxu0
    %v6179 = vadd.f32 %v5986, %v6178
    %v6180 = vpop.f32.mrb[0].mxu0
    %v6181 = vadd.f32 %v5988, %v6180
    %6182 = vmatprep.mubr.bf16.mxu0 %v834
    %6183 = vmatmul.mubr.bf16.gmra.mrb[0].mxu0 %v833
    %v6184 = vpop.f32.mrb[0].mxu0
    %v6185 = vadd.f32 %v5992, %v6184
    %v6186 = vpop.f32.mrb[0].mxu0
    %v6187 = vadd.f32 %v5994, %v6186
    %v6188 = vpop.f32.mrb[0].mxu0
    %v6189 = vadd.f32 %v5996, %v6188
    %v6190 = vpop.f32.mrb[0].mxu0
    %v6191 = vadd.f32 %v5998, %v6190
    %6192 = vmatprep.mubr.bf16.mxu0 %v838
    %6193 = vmatmul.mubr.bf16.gmra.mrb[0].mxu0 %v837
    %v6194 = vpop.f32.mrb[0].mxu0
    %v6195 = vadd.f32 %v6002, %v6194
    %v6196 = vpop.f32.mrb[0].mxu0
    %v6197 = vadd.f32 %v6004, %v6196
    %v6198 = vpop.f32.mrb[0].mxu0
    %v6199 = vadd.f32 %v6006, %v6198
    %v6200 = vpop.f32.mrb[0].mxu0
    %v6201 = vadd.f32 %v6008, %v6200
    %6202 = vmatprep.mubr.bf16.mxu0 %v842
    %6203 = vmatmul.mubr.bf16.gmra.mrb[0].mxu0 %v841
    %v6204 = vpop.f32.mrb[0].mxu0
    %v6205 = vadd.f32 %v6012, %v6204
    %v6206 = vpop.f32.mrb[0].mxu0
    %v6207 = vadd.f32 %v6014, %v6206
    %v6208 = vpop.f32.mrb[0].mxu0
    %v6209 = vadd.f32 %v6016, %v6208
    %v6210 = vpop.f32.mrb[0].mxu0
    %v6211 = vadd.f32 %v6018, %v6210
    %6212 = vmatprep.mubr.bf16.mxu0 %v846
    %6213 = vmatmul.mubr.bf16.gmra.mrb[0].mxu0 %v845
    %v6214 = vpop.f32.mrb[0].mxu0
    %v6215 = vadd.f32 %v6022, %v6214
    %v6216 = vpop.f32.mrb[0].mxu0
    %v6217 = vadd.f32 %v6024, %v6216
    %v6218 = vpop.f32.mrb[0].mxu0
    %v6219 = vadd.f32 %v6026, %v6218
    %v6220 = vpop.f32.mrb[0].mxu0
    %v6221 = vadd.f32 %v6028, %v6220
    %6222 = vmatprep.mubr.bf16.mxu0 %v850
    %6223 = vmatmul.mubr.bf16.gmra.mrb[0].mxu0 %v849
    %v6224 = vpop.f32.mrb[0].mxu0
    %v6225 = vadd.f32 %v6032, %v6224
    %v6226 = vpop.f32.mrb[0].mxu0
    %v6227 = vadd.f32 %v6034, %v6226
    %v6228 = vpop.f32.mrb[0].mxu0
    %v6229 = vadd.f32 %v6036, %v6228
    %v6230 = vpop.f32.mrb[0].mxu0
    %v6231 = vadd.f32 %v6038, %v6230
    %6232 = vmatprep.mubr.bf16.mxu0 %v854
    %6233 = vmatmul.mubr.bf16.gmra.mrb[0].mxu0 %v853
    %v6234 = vpop.f32.mrb[0].mxu0
    %v6235 = vadd.f32 %v6042, %v6234
    %v6236 = vpop.f32.mrb[0].mxu0
    %v6237 = vadd.f32 %v6044, %v6236
    %v6238 = vpop.f32.mrb[0].mxu0
    %v6239 = vadd.f32 %v6046, %v6238
    %v6240 = vpop.f32.mrb[0].mxu0
    %v6241 = vadd.f32 %v6048, %v6240
    %6242 = vdwg.mxu0
    %6243 = vmatprep.subr.bf16.mxu0 %v2916
    %6244 = vmatpush1.bf16.msra.mxu0 %v2915
    %6245 = vmatprep.subr.bf16.mxu0 %v2932
    %6246 = vmatpush1.bf16.msra.mxu0 %v2931
    %6247 = vmatprep.subr.bf16.mxu0 %v2948
    %6248 = vmatpush1.bf16.msra.mxu0 %v2947
    %6249 = vmatprep.subr.bf16.mxu0 %v2964
    %6250 = vmatpush1.bf16.msra.mxu0 %v2963
    %6251 = vmatprep.subr.bf16.mxu0 %v2980
    %6252 = vmatpush1.bf16.msra.mxu0 %v2979
    %6253 = vmatprep.subr.bf16.mxu0 %v2996
    %6254 = vmatpush1.bf16.msra.mxu0 %v2995
    %6255 = vmatprep.subr.bf16.mxu0 %v3012
    %6256 = vmatpush1.bf16.msra.mxu0 %v3011
    %6257 = vmatprep.subr.bf16.mxu0 %v3028
    %6258 = vmatpush1.bf16.msra.mxu0 %v3027
    %6259 = vmatprep.subr.bf16.mxu0 %v3044
    %6260 = vmatpush1.bf16.msra.mxu0 %v3043
    %6261 = vmatprep.subr.bf16.mxu0 %v3060
    %6262 = vmatpush1.bf16.msra.mxu0 %v3059
    %6263 = vmatprep.subr.bf16.mxu0 %v3076
    %6264 = vmatpush1.bf16.msra.mxu0 %v3075
    %6265 = vmatprep.subr.bf16.mxu0 %v3092
    %6266 = vmatpush1.bf16.msra.mxu0 %v3091
    %6267 = vmatprep.subr.bf16.mxu0 %v3108
    %6268 = vmatpush1.bf16.msra.mxu0 %v3107
    %6269 = vmatprep.subr.bf16.mxu0 %v3124
    %6270 = vmatpush1.bf16.msra.mxu0 %v3123
    %6271 = vmatprep.subr.bf16.mxu0 %v3140
    %6272 = vmatpush1.bf16.msra.mxu0 %v3139
    %6273 = vmatprep.subr.bf16.mxu0 %v3156
    %6274 = vmatpush1.bf16.msra.mxu0 %v3155
    %6275 = vmatprep.mubr.bf16.mxu0 %v792
    %6276 = vmatmul.mubr.bf16.gmra.mrb[0].mxu0 %v791
    %v6277 = vpop.f32.mrb[0].mxu0
    %v6278 = vadd.f32 0.0, %v6277
    %v6279 = vpop.f32.mrb[0].mxu0
    %v6280 = vadd.f32 0.0, %v6279
    %v6281 = vpop.f32.mrb[0].mxu0
    %v6282 = vadd.f32 0.0, %v6281
    %v6283 = vpop.f32.mrb[0].mxu0
    %v6284 = vadd.f32 0.0, %v6283
    %6285 = vmatprep.mubr.bf16.mxu0 %v796
    %6286 = vmatmul.mubr.bf16.gmra.mrb[0].mxu0 %v795
    %v6287 = vpop.f32.mrb[0].mxu0
    %v6288 = vadd.f32 0.0, %v6287
    %v6289 = vpop.f32.mrb[0].mxu0
    %v6290 = vadd.f32 0.0, %v6289
    %v6291 = vpop.f32.mrb[0].mxu0
    %v6292 = vadd.f32 0.0, %v6291
    %v6293 = vpop.f32.mrb[0].mxu0
    %v6294 = vadd.f32 0.0, %v6293
    %6295 = vmatprep.mubr.bf16.mxu0 %v800
    %6296 = vmatmul.mubr.bf16.gmra.mrb[0].mxu0 %v799
    %v6297 = vpop.f32.mrb[0].mxu0
    %v6298 = vadd.f32 0.0, %v6297
    %v6299 = vpop.f32.mrb[0].mxu0
    %v6300 = vadd.f32 0.0, %v6299
    %v6301 = vpop.f32.mrb[0].mxu0
    %v6302 = vadd.f32 0.0, %v6301
    %v6303 = vpop.f32.mrb[0].mxu0
    %v6304 = vadd.f32 0.0, %v6303
    %6305 = vmatprep.mubr.bf16.mxu0 %v804
    %6306 = vmatmul.mubr.bf16.gmra.mrb[0].mxu0 %v803
    %v6307 = vpop.f32.mrb[0].mxu0
    %v6308 = vadd.f32 0.0, %v6307
    %v6309 = vpop.f32.mrb[0].mxu0
    %v6310 = vadd.f32 0.0, %v6309
    %v6311 = vpop.f32.mrb[0].mxu0
    %v6312 = vadd.f32 0.0, %v6311
    %v6313 = vpop.f32.mrb[0].mxu0
    %v6314 = vadd.f32 0.0, %v6313
    %6315 = vmatprep.mubr.bf16.mxu0 %v808
    %6316 = vmatmul.mubr.bf16.gmra.mrb[0].mxu0 %v807
    %v6317 = vpop.f32.mrb[0].mxu0
    %v6318 = vadd.f32 0.0, %v6317
    %v6319 = vpop.f32.mrb[0].mxu0
    %v6320 = vadd.f32 0.0, %v6319
    %v6321 = vpop.f32.mrb[0].mxu0
    %v6322 = vadd.f32 0.0, %v6321
    %v6323 = vpop.f32.mrb[0].mxu0
    %v6324 = vadd.f32 0.0, %v6323
    %6325 = vmatprep.mubr.bf16.mxu0 %v812
    %6326 = vmatmul.mubr.bf16.gmra.mrb[0].mxu0 %v811
    %v6327 = vpop.f32.mrb[0].mxu0
    %v6328 = vadd.f32 0.0, %v6327
    %v6329 = vpop.f32.mrb[0].mxu0
    %v6330 = vadd.f32 0.0, %v6329
    %v6331 = vpop.f32.mrb[0].mxu0
    %v6332 = vadd.f32 0.0, %v6331
    %v6333 = vpop.f32.mrb[0].mxu0
    %v6334 = vadd.f32 0.0, %v6333
    %6335 = vmatprep.mubr.bf16.mxu0 %v816
    %6336 = vmatmul.mubr.bf16.gmra.mrb[0].mxu0 %v815
    %v6337 = vpop.f32.mrb[0].mxu0
    %v6338 = vadd.f32 0.0, %v6337
    %v6339 = vpop.f32.mrb[0].mxu0
    %v6340 = vadd.f32 0.0, %v6339
    %v6341 = vpop.f32.mrb[0].mxu0
    %v6342 = vadd.f32 0.0, %v6341
    %v6343 = vpop.f32.mrb[0].mxu0
    %v6344 = vadd.f32 0.0, %v6343
    %6345 = vmatprep.mubr.bf16.mxu0 %v820
    %6346 = vmatmul.mubr.bf16.gmra.mrb[0].mxu0 %v819
    %v6347 = vpop.f32.mrb[0].mxu0
    %v6348 = vadd.f32 0.0, %v6347
    %v6349 = vpop.f32.mrb[0].mxu0
    %v6350 = vadd.f32 0.0, %v6349
    %v6351 = vpop.f32.mrb[0].mxu0
    %v6352 = vadd.f32 0.0, %v6351
    %v6353 = vpop.f32.mrb[0].mxu0
    %v6354 = vadd.f32 0.0, %v6353
    %6355 = vmatprep.mubr.bf16.mxu0 %v824
    %6356 = vmatmul.mubr.bf16.gmra.mrb[0].mxu0 %v823
    %v6357 = vpop.f32.mrb[0].mxu0
    %v6358 = vadd.f32 0.0, %v6357
    %v6359 = vpop.f32.mrb[0].mxu0
    %v6360 = vadd.f32 0.0, %v6359
    %v6361 = vpop.f32.mrb[0].mxu0
    %v6362 = vadd.f32 0.0, %v6361
    %v6363 = vpop.f32.mrb[0].mxu0
    %v6364 = vadd.f32 0.0, %v6363
    %6365 = vmatprep.mubr.bf16.mxu0 %v828
    %6366 = vmatmul.mubr.bf16.gmra.mrb[0].mxu0 %v827
    %v6367 = vpop.f32.mrb[0].mxu0
    %v6368 = vadd.f32 0.0, %v6367
    %v6369 = vpop.f32.mrb[0].mxu0
    %v6370 = vadd.f32 0.0, %v6369
    %v6371 = vpop.f32.mrb[0].mxu0
    %v6372 = vadd.f32 0.0, %v6371
    %v6373 = vpop.f32.mrb[0].mxu0
    %v6374 = vadd.f32 0.0, %v6373
    %6375 = vmatprep.mubr.bf16.mxu0 %v832
    %6376 = vmatmul.mubr.bf16.gmra.mrb[0].mxu0 %v831
    %v6377 = vpop.f32.mrb[0].mxu0
    %v6378 = vadd.f32 0.0, %v6377
    %v6379 = vpop.f32.mrb[0].mxu0
    %v6380 = vadd.f32 0.0, %v6379
    %v6381 = vpop.f32.mrb[0].mxu0
    %v6382 = vadd.f32 0.0, %v6381
    %v6383 = vpop.f32.mrb[0].mxu0
    %v6384 = vadd.f32 0.0, %v6383
    %6385 = vmatprep.mubr.bf16.mxu0 %v836
    %6386 = vmatmul.mubr.bf16.gmra.mrb[0].mxu0 %v835
    %v6387 = vpop.f32.mrb[0].mxu0
    %v6388 = vadd.f32 0.0, %v6387
    %v6389 = vpop.f32.mrb[0].mxu0
    %v6390 = vadd.f32 0.0, %v6389
    %v6391 = vpop.f32.mrb[0].mxu0
    %v6392 = vadd.f32 0.0, %v6391
    %v6393 = vpop.f32.mrb[0].mxu0
    %v6394 = vadd.f32 0.0, %v6393
    %6395 = vmatprep.mubr.bf16.mxu0 %v840
    %6396 = vmatmul.mubr.bf16.gmra.mrb[0].mxu0 %v839
    %v6397 = vpop.f32.mrb[0].mxu0
    %v6398 = vadd.f32 0.0, %v6397
    %v6399 = vpop.f32.mrb[0].mxu0
    %v6400 = vadd.f32 0.0, %v6399
    %v6401 = vpop.f32.mrb[0].mxu0
    %v6402 = vadd.f32 0.0, %v6401
    %v6403 = vpop.f32.mrb[0].mxu0
    %v6404 = vadd.f32 0.0, %v6403
    %6405 = vmatprep.mubr.bf16.mxu0 %v844
    %6406 = vmatmul.mubr.bf16.gmra.mrb[0].mxu0 %v843
    %v6407 = vpop.f32.mrb[0].mxu0
    %v6408 = vadd.f32 0.0, %v6407
    %v6409 = vpop.f32.mrb[0].mxu0
    %v6410 = vadd.f32 0.0, %v6409
    %v6411 = vpop.f32.mrb[0].mxu0
    %v6412 = vadd.f32 0.0, %v6411
    %v6413 = vpop.f32.mrb[0].mxu0
    %v6414 = vadd.f32 0.0, %v6413
    %6415 = vmatprep.mubr.bf16.mxu0 %v848
    %6416 = vmatmul.mubr.bf16.gmra.mrb[0].mxu0 %v847
    %v6417 = vpop.f32.mrb[0].mxu0
    %v6418 = vadd.f32 0.0, %v6417
    %v6419 = vpop.f32.mrb[0].mxu0
    %v6420 = vadd.f32 0.0, %v6419
    %v6421 = vpop.f32.mrb[0].mxu0
    %v6422 = vadd.f32 0.0, %v6421
    %v6423 = vpop.f32.mrb[0].mxu0
    %v6424 = vadd.f32 0.0, %v6423
    %6425 = vmatprep.mubr.bf16.mxu0 %v852
    %6426 = vmatmul.mubr.bf16.gmra.mrb[0].mxu0 %v851
    %v6427 = vpop.f32.mrb[0].mxu0
    %v6428 = vadd.f32 0.0, %v6427
    %v6429 = vpop.f32.mrb[0].mxu0
    %v6430 = vadd.f32 0.0, %v6429
    %v6431 = vpop.f32.mrb[0].mxu0
    %v6432 = vadd.f32 0.0, %v6431
    %v6433 = vpop.f32.mrb[0].mxu0
    %v6434 = vadd.f32 0.0, %v6433
    %6435 = vdwg.mxu0
    %6436 = vmatprep.subr.bf16.mxu0 %v3172
    %6437 = vmatpush1.bf16.msra.mxu0 %v3171
    %6438 = vmatprep.subr.bf16.mxu0 %v3188
    %6439 = vmatpush1.bf16.msra.mxu0 %v3187
    %6440 = vmatprep.subr.bf16.mxu0 %v3204
    %6441 = vmatpush1.bf16.msra.mxu0 %v3203
    %6442 = vmatprep.subr.bf16.mxu0 %v3220
    %6443 = vmatpush1.bf16.msra.mxu0 %v3219
    %6444 = vmatprep.subr.bf16.mxu0 %v3236
    %6445 = vmatpush1.bf16.msra.mxu0 %v3235
    %6446 = vmatprep.subr.bf16.mxu0 %v3252
    %6447 = vmatpush1.bf16.msra.mxu0 %v3251
    %6448 = vmatprep.subr.bf16.mxu0 %v3268
    %6449 = vmatpush1.bf16.msra.mxu0 %v3267
    %6450 = vmatprep.subr.bf16.mxu0 %v3284
    %6451 = vmatpush1.bf16.msra.mxu0 %v3283
    %6452 = vmatprep.subr.bf16.mxu0 %v3300
    %6453 = vmatpush1.bf16.msra.mxu0 %v3299
    %6454 = vmatprep.subr.bf16.mxu0 %v3316
    %6455 = vmatpush1.bf16.msra.mxu0 %v3315
    %6456 = vmatprep.subr.bf16.mxu0 %v3332
    %6457 = vmatpush1.bf16.msra.mxu0 %v3331
    %6458 = vmatprep.subr.bf16.mxu0 %v3348
    %6459 = vmatpush1.bf16.msra.mxu0 %v3347
    %6460 = vmatprep.subr.bf16.mxu0 %v3364
    %6461 = vmatpush1.bf16.msra.mxu0 %v3363
    %6462 = vmatprep.subr.bf16.mxu0 %v3380
    %6463 = vmatpush1.bf16.msra.mxu0 %v3379
    %6464 = vmatprep.subr.bf16.mxu0 %v3396
    %6465 = vmatpush1.bf16.msra.mxu0 %v3395
    %6466 = vmatprep.subr.bf16.mxu0 %v3412
    %6467 = vmatpush1.bf16.msra.mxu0 %v3411
    %6468 = vmatprep.mubr.bf16.mxu0 %v794
    %6469 = vmatmul.mubr.bf16.gmra.mrb[0].mxu0 %v793
    %v6470 = vpop.f32.mrb[0].mxu0
    %v6471 = vadd.f32 %v6278, %v6470
    %v6472 = vpop.f32.mrb[0].mxu0
    %v6473 = vadd.f32 %v6280, %v6472
    %v6474 = vpop.f32.mrb[0].mxu0
    %v6475 = vadd.f32 %v6282, %v6474
    %v6476 = vpop.f32.mrb[0].mxu0
    %v6477 = vadd.f32 %v6284, %v6476
    %6478 = vmatprep.mubr.bf16.mxu0 %v798
    %6479 = vmatmul.mubr.bf16.gmra.mrb[0].mxu0 %v797
    %v6480 = vpop.f32.mrb[0].mxu0
    %v6481 = vadd.f32 %v6288, %v6480
    %v6482 = vpop.f32.mrb[0].mxu0
    %v6483 = vadd.f32 %v6290, %v6482
    %v6484 = vpop.f32.mrb[0].mxu0
    %v6485 = vadd.f32 %v6292, %v6484
    %v6486 = vpop.f32.mrb[0].mxu0
    %v6487 = vadd.f32 %v6294, %v6486
    %6488 = vmatprep.mubr.bf16.mxu0 %v802
    %6489 = vmatmul.mubr.bf16.gmra.mrb[0].mxu0 %v801
    %v6490 = vpop.f32.mrb[0].mxu0
    %v6491 = vadd.f32 %v6298, %v6490
    %v6492 = vpop.f32.mrb[0].mxu0
    %v6493 = vadd.f32 %v6300, %v6492
    %v6494 = vpop.f32.mrb[0].mxu0
    %v6495 = vadd.f32 %v6302, %v6494
    %v6496 = vpop.f32.mrb[0].mxu0
    %v6497 = vadd.f32 %v6304, %v6496
    %6498 = vmatprep.mubr.bf16.mxu0 %v806
    %6499 = vmatmul.mubr.bf16.gmra.mrb[0].mxu0 %v805
    %v6500 = vpop.f32.mrb[0].mxu0
    %v6501 = vadd.f32 %v6308, %v6500
    %v6502 = vpop.f32.mrb[0].mxu0
    %v6503 = vadd.f32 %v6310, %v6502
    %v6504 = vpop.f32.mrb[0].mxu0
    %v6505 = vadd.f32 %v6312, %v6504
    %v6506 = vpop.f32.mrb[0].mxu0
    %v6507 = vadd.f32 %v6314, %v6506
    %6508 = vmatprep.mubr.bf16.mxu0 %v810
    %6509 = vmatmul.mubr.bf16.gmra.mrb[0].mxu0 %v809
    %v6510 = vpop.f32.mrb[0].mxu0
    %v6511 = vadd.f32 %v6318, %v6510
    %v6512 = vpop.f32.mrb[0].mxu0
    %v6513 = vadd.f32 %v6320, %v6512
    %v6514 = vpop.f32.mrb[0].mxu0
    %v6515 = vadd.f32 %v6322, %v6514
    %v6516 = vpop.f32.mrb[0].mxu0
    %v6517 = vadd.f32 %v6324, %v6516
    %6518 = vmatprep.mubr.bf16.mxu0 %v814
    %6519 = vmatmul.mubr.bf16.gmra.mrb[0].mxu0 %v813
    %v6520 = vpop.f32.mrb[0].mxu0
    %v6521 = vadd.f32 %v6328, %v6520
    %v6522 = vpop.f32.mrb[0].mxu0
    %v6523 = vadd.f32 %v6330, %v6522
    %v6524 = vpop.f32.mrb[0].mxu0
    %v6525 = vadd.f32 %v6332, %v6524
    %v6526 = vpop.f32.mrb[0].mxu0
    %v6527 = vadd.f32 %v6334, %v6526
    %6528 = vmatprep.mubr.bf16.mxu0 %v818
    %6529 = vmatmul.mubr.bf16.gmra.mrb[0].mxu0 %v817
    %v6530 = vpop.f32.mrb[0].mxu0
    %v6531 = vadd.f32 %v6338, %v6530
    %v6532 = vpop.f32.mrb[0].mxu0
    %v6533 = vadd.f32 %v6340, %v6532
    %v6534 = vpop.f32.mrb[0].mxu0
    %v6535 = vadd.f32 %v6342, %v6534
    %v6536 = vpop.f32.mrb[0].mxu0
    %v6537 = vadd.f32 %v6344, %v6536
    %6538 = vmatprep.mubr.bf16.mxu0 %v822
    %6539 = vmatmul.mubr.bf16.gmra.mrb[0].mxu0 %v821
    %v6540 = vpop.f32.mrb[0].mxu0
    %v6541 = vadd.f32 %v6348, %v6540
    %v6542 = vpop.f32.mrb[0].mxu0
    %v6543 = vadd.f32 %v6350, %v6542
    %v6544 = vpop.f32.mrb[0].mxu0
    %v6545 = vadd.f32 %v6352, %v6544
    %v6546 = vpop.f32.mrb[0].mxu0
    %v6547 = vadd.f32 %v6354, %v6546
    %6548 = vmatprep.mubr.bf16.mxu0 %v826
    %6549 = vmatmul.mubr.bf16.gmra.mrb[0].mxu0 %v825
    %v6550 = vpop.f32.mrb[0].mxu0
    %v6551 = vadd.f32 %v6358, %v6550
    %v6552 = vpop.f32.mrb[0].mxu0
    %v6553 = vadd.f32 %v6360, %v6552
    %v6554 = vpop.f32.mrb[0].mxu0
    %v6555 = vadd.f32 %v6362, %v6554
    %v6556 = vpop.f32.mrb[0].mxu0
    %v6557 = vadd.f32 %v6364, %v6556
    %6558 = vmatprep.mubr.bf16.mxu0 %v830
    %6559 = vmatmul.mubr.bf16.gmra.mrb[0].mxu0 %v829
    %v6560 = vpop.f32.mrb[0].mxu0
    %v6561 = vadd.f32 %v6368, %v6560
    %v6562 = vpop.f32.mrb[0].mxu0
    %v6563 = vadd.f32 %v6370, %v6562
    %v6564 = vpop.f32.mrb[0].mxu0
    %v6565 = vadd.f32 %v6372, %v6564
    %v6566 = vpop.f32.mrb[0].mxu0
    %v6567 = vadd.f32 %v6374, %v6566
    %6568 = vmatprep.mubr.bf16.mxu0 %v834
    %6569 = vmatmul.mubr.bf16.gmra.mrb[0].mxu0 %v833
    %v6570 = vpop.f32.mrb[0].mxu0
    %v6571 = vadd.f32 %v6378, %v6570
    %v6572 = vpop.f32.mrb[0].mxu0
    %v6573 = vadd.f32 %v6380, %v6572
    %v6574 = vpop.f32.mrb[0].mxu0
    %v6575 = vadd.f32 %v6382, %v6574
    %v6576 = vpop.f32.mrb[0].mxu0
    %v6577 = vadd.f32 %v6384, %v6576
    %6578 = vmatprep.mubr.bf16.mxu0 %v838
    %6579 = vmatmul.mubr.bf16.gmra.mrb[0].mxu0 %v837
    %v6580 = vpop.f32.mrb[0].mxu0
    %v6581 = vadd.f32 %v6388, %v6580
    %v6582 = vpop.f32.mrb[0].mxu0
    %v6583 = vadd.f32 %v6390, %v6582
    %v6584 = vpop.f32.mrb[0].mxu0
    %v6585 = vadd.f32 %v6392, %v6584
    %v6586 = vpop.f32.mrb[0].mxu0
    %v6587 = vadd.f32 %v6394, %v6586
    %6588 = vmatprep.mubr.bf16.mxu0 %v842
    %6589 = vmatmul.mubr.bf16.gmra.mrb[0].mxu0 %v841
    %v6590 = vpop.f32.mrb[0].mxu0
    %v6591 = vadd.f32 %v6398, %v6590
    %v6592 = vpop.f32.mrb[0].mxu0
    %v6593 = vadd.f32 %v6400, %v6592
    %v6594 = vpop.f32.mrb[0].mxu0
    %v6595 = vadd.f32 %v6402, %v6594
    %v6596 = vpop.f32.mrb[0].mxu0
    %v6597 = vadd.f32 %v6404, %v6596
    %6598 = vmatprep.mubr.bf16.mxu0 %v846
    %6599 = vmatmul.mubr.bf16.gmra.mrb[0].mxu0 %v845
    %v6600 = vpop.f32.mrb[0].mxu0
    %v6601 = vadd.f32 %v6408, %v6600
    %v6602 = vpop.f32.mrb[0].mxu0
    %v6603 = vadd.f32 %v6410, %v6602
    %v6604 = vpop.f32.mrb[0].mxu0
    %v6605 = vadd.f32 %v6412, %v6604
    %v6606 = vpop.f32.mrb[0].mxu0
    %v6607 = vadd.f32 %v6414, %v6606
    %6608 = vmatprep.mubr.bf16.mxu0 %v850
    %6609 = vmatmul.mubr.bf16.gmra.mrb[0].mxu0 %v849
    %v6610 = vpop.f32.mrb[0].mxu0
    %v6611 = vadd.f32 %v6418, %v6610
    %v6612 = vpop.f32.mrb[0].mxu0
    %v6613 = vadd.f32 %v6420, %v6612
    %v6614 = vpop.f32.mrb[0].mxu0
    %v6615 = vadd.f32 %v6422, %v6614
    %v6616 = vpop.f32.mrb[0].mxu0
    %v6617 = vadd.f32 %v6424, %v6616
    %6618 = vmatprep.mubr.bf16.mxu0 %v854
    %6619 = vmatmul.mubr.bf16.gmra.mrb[0].mxu0 %v853
    %v6620 = vpop.f32.mrb[0].mxu0
    %v6621 = vadd.f32 %v6428, %v6620
    %v6622 = vpop.f32.mrb[0].mxu0
    %v6623 = vadd.f32 %v6430, %v6622
    %v6624 = vpop.f32.mrb[0].mxu0
    %v6625 = vadd.f32 %v6432, %v6624
    %v6626 = vpop.f32.mrb[0].mxu0
    %v6627 = vadd.f32 %v6434, %v6626
    %6628 = vdwg.mxu0
    %6629 = vmatprep.subr.bf16.mxu0 %v2918
    %6630 = vmatpush1.bf16.msra.mxu0 %v2917
    %6631 = vmatprep.subr.bf16.mxu0 %v2934
    %6632 = vmatpush1.bf16.msra.mxu0 %v2933
    %6633 = vmatprep.subr.bf16.mxu0 %v2950
    %6634 = vmatpush1.bf16.msra.mxu0 %v2949
    %6635 = vmatprep.subr.bf16.mxu0 %v2966
    %6636 = vmatpush1.bf16.msra.mxu0 %v2965
    %6637 = vmatprep.subr.bf16.mxu0 %v2982
    %6638 = vmatpush1.bf16.msra.mxu0 %v2981
    %6639 = vmatprep.subr.bf16.mxu0 %v2998
    %6640 = vmatpush1.bf16.msra.mxu0 %v2997
    %6641 = vmatprep.subr.bf16.mxu0 %v3014
    %6642 = vmatpush1.bf16.msra.mxu0 %v3013
    %6643 = vmatprep.subr.bf16.mxu0 %v3030
    %6644 = vmatpush1.bf16.msra.mxu0 %v3029
    %6645 = vmatprep.subr.bf16.mxu0 %v3046
    %6646 = vmatpush1.bf16.msra.mxu0 %v3045
    %6647 = vmatprep.subr.bf16.mxu0 %v3062
    %6648 = vmatpush1.bf16.msra.mxu0 %v3061
    %6649 = vmatprep.subr.bf16.mxu0 %v3078
    %6650 = vmatpush1.bf16.msra.mxu0 %v3077
    %6651 = vmatprep.subr.bf16.mxu0 %v3094
    %6652 = vmatpush1.bf16.msra.mxu0 %v3093
    %6653 = vmatprep.subr.bf16.mxu0 %v3110
    %6654 = vmatpush1.bf16.msra.mxu0 %v3109
    %6655 = vmatprep.subr.bf16.mxu0 %v3126
    %6656 = vmatpush1.bf16.msra.mxu0 %v3125
    %6657 = vmatprep.subr.bf16.mxu0 %v3142
    %6658 = vmatpush1.bf16.msra.mxu0 %v3141
    %6659 = vmatprep.subr.bf16.mxu0 %v3158
    %6660 = vmatpush1.bf16.msra.mxu0 %v3157
    %6661 = vmatprep.mubr.bf16.mxu0 %v792
    %6662 = vmatmul.mubr.bf16.gmra.mrb[0].mxu0 %v791
    %v6663 = vpop.f32.mrb[0].mxu0
    %v6664 = vadd.f32 0.0, %v6663
    %v6665 = vpop.f32.mrb[0].mxu0
    %v6666 = vadd.f32 0.0, %v6665
    %v6667 = vpop.f32.mrb[0].mxu0
    %v6668 = vadd.f32 0.0, %v6667
    %v6669 = vpop.f32.mrb[0].mxu0
    %v6670 = vadd.f32 0.0, %v6669
    %6671 = vmatprep.mubr.bf16.mxu0 %v796
    %6672 = vmatmul.mubr.bf16.gmra.mrb[0].mxu0 %v795
    %v6673 = vpop.f32.mrb[0].mxu0
    %v6674 = vadd.f32 0.0, %v6673
    %v6675 = vpop.f32.mrb[0].mxu0
    %v6676 = vadd.f32 0.0, %v6675
    %v6677 = vpop.f32.mrb[0].mxu0
    %v6678 = vadd.f32 0.0, %v6677
    %v6679 = vpop.f32.mrb[0].mxu0
    %v6680 = vadd.f32 0.0, %v6679
    %6681 = vmatprep.mubr.bf16.mxu0 %v800
    %6682 = vmatmul.mubr.bf16.gmra.mrb[0].mxu0 %v799
    %v6683 = vpop.f32.mrb[0].mxu0
    %v6684 = vadd.f32 0.0, %v6683
    %v6685 = vpop.f32.mrb[0].mxu0
    %v6686 = vadd.f32 0.0, %v6685
    %v6687 = vpop.f32.mrb[0].mxu0
    %v6688 = vadd.f32 0.0, %v6687
    %v6689 = vpop.f32.mrb[0].mxu0
    %v6690 = vadd.f32 0.0, %v6689
    %6691 = vmatprep.mubr.bf16.mxu0 %v804
    %6692 = vmatmul.mubr.bf16.gmra.mrb[0].mxu0 %v803
    %v6693 = vpop.f32.mrb[0].mxu0
    %v6694 = vadd.f32 0.0, %v6693
    %v6695 = vpop.f32.mrb[0].mxu0
    %v6696 = vadd.f32 0.0, %v6695
    %v6697 = vpop.f32.mrb[0].mxu0
    %v6698 = vadd.f32 0.0, %v6697
    %v6699 = vpop.f32.mrb[0].mxu0
    %v6700 = vadd.f32 0.0, %v6699
    %6701 = vmatprep.mubr.bf16.mxu0 %v808
    %6702 = vmatmul.mubr.bf16.gmra.mrb[0].mxu0 %v807
    %v6703 = vpop.f32.mrb[0].mxu0
    %v6704 = vadd.f32 0.0, %v6703
    %v6705 = vpop.f32.mrb[0].mxu0
    %v6706 = vadd.f32 0.0, %v6705
    %v6707 = vpop.f32.mrb[0].mxu0
    %v6708 = vadd.f32 0.0, %v6707
    %v6709 = vpop.f32.mrb[0].mxu0
    %v6710 = vadd.f32 0.0, %v6709
    %6711 = vmatprep.mubr.bf16.mxu0 %v812
    %6712 = vmatmul.mubr.bf16.gmra.mrb[0].mxu0 %v811
    %v6713 = vpop.f32.mrb[0].mxu0
    %v6714 = vadd.f32 0.0, %v6713
    %v6715 = vpop.f32.mrb[0].mxu0
    %v6716 = vadd.f32 0.0, %v6715
    %v6717 = vpop.f32.mrb[0].mxu0
    %v6718 = vadd.f32 0.0, %v6717
    %v6719 = vpop.f32.mrb[0].mxu0
    %v6720 = vadd.f32 0.0, %v6719
    %6721 = vmatprep.mubr.bf16.mxu0 %v816
    %6722 = vmatmul.mubr.bf16.gmra.mrb[0].mxu0 %v815
    %v6723 = vpop.f32.mrb[0].mxu0
    %v6724 = vadd.f32 0.0, %v6723
    %v6725 = vpop.f32.mrb[0].mxu0
    %v6726 = vadd.f32 0.0, %v6725
    %v6727 = vpop.f32.mrb[0].mxu0
    %v6728 = vadd.f32 0.0, %v6727
    %v6729 = vpop.f32.mrb[0].mxu0
    %v6730 = vadd.f32 0.0, %v6729
    %6731 = vmatprep.mubr.bf16.mxu0 %v820
    %6732 = vmatmul.mubr.bf16.gmra.mrb[0].mxu0 %v819
    %v6733 = vpop.f32.mrb[0].mxu0
    %v6734 = vadd.f32 0.0, %v6733
    %v6735 = vpop.f32.mrb[0].mxu0
    %v6736 = vadd.f32 0.0, %v6735
    %v6737 = vpop.f32.mrb[0].mxu0
    %v6738 = vadd.f32 0.0, %v6737
    %v6739 = vpop.f32.mrb[0].mxu0
    %v6740 = vadd.f32 0.0, %v6739
    %6741 = vmatprep.mubr.bf16.mxu0 %v824
    %6742 = vmatmul.mubr.bf16.gmra.mrb[0].mxu0 %v823
    %v6743 = vpop.f32.mrb[0].mxu0
    %v6744 = vadd.f32 0.0, %v6743
    %v6745 = vpop.f32.mrb[0].mxu0
    %v6746 = vadd.f32 0.0, %v6745
    %v6747 = vpop.f32.mrb[0].mxu0
    %v6748 = vadd.f32 0.0, %v6747
    %v6749 = vpop.f32.mrb[0].mxu0
    %v6750 = vadd.f32 0.0, %v6749
    %6751 = vmatprep.mubr.bf16.mxu0 %v828
    %6752 = vmatmul.mubr.bf16.gmra.mrb[0].mxu0 %v827
    %v6753 = vpop.f32.mrb[0].mxu0
    %v6754 = vadd.f32 0.0, %v6753
    %v6755 = vpop.f32.mrb[0].mxu0
    %v6756 = vadd.f32 0.0, %v6755
    %v6757 = vpop.f32.mrb[0].mxu0
    %v6758 = vadd.f32 0.0, %v6757
    %v6759 = vpop.f32.mrb[0].mxu0
    %v6760 = vadd.f32 0.0, %v6759
    %6761 = vmatprep.mubr.bf16.mxu0 %v832
    %6762 = vmatmul.mubr.bf16.gmra.mrb[0].mxu0 %v831
    %v6763 = vpop.f32.mrb[0].mxu0
    %v6764 = vadd.f32 0.0, %v6763
    %v6765 = vpop.f32.mrb[0].mxu0
    %v6766 = vadd.f32 0.0, %v6765
    %v6767 = vpop.f32.mrb[0].mxu0
    %v6768 = vadd.f32 0.0, %v6767
    %v6769 = vpop.f32.mrb[0].mxu0
    %v6770 = vadd.f32 0.0, %v6769
    %6771 = vmatprep.mubr.bf16.mxu0 %v836
    %6772 = vmatmul.mubr.bf16.gmra.mrb[0].mxu0 %v835
    %v6773 = vpop.f32.mrb[0].mxu0
    %v6774 = vadd.f32 0.0, %v6773
    %v6775 = vpop.f32.mrb[0].mxu0
    %v6776 = vadd.f32 0.0, %v6775
    %v6777 = vpop.f32.mrb[0].mxu0
    %v6778 = vadd.f32 0.0, %v6777
    %v6779 = vpop.f32.mrb[0].mxu0
    %v6780 = vadd.f32 0.0, %v6779
    %6781 = vmatprep.mubr.bf16.mxu0 %v840
    %6782 = vmatmul.mubr.bf16.gmra.mrb[0].mxu0 %v839
    %v6783 = vpop.f32.mrb[0].mxu0
    %v6784 = vadd.f32 0.0, %v6783
    %v6785 = vpop.f32.mrb[0].mxu0
    %v6786 = vadd.f32 0.0, %v6785
    %v6787 = vpop.f32.mrb[0].mxu0
    %v6788 = vadd.f32 0.0, %v6787
    %v6789 = vpop.f32.mrb[0].mxu0
    %v6790 = vadd.f32 0.0, %v6789
    %6791 = vmatprep.mubr.bf16.mxu0 %v844
    %6792 = vmatmul.mubr.bf16.gmra.mrb[0].mxu0 %v843
    %v6793 = vpop.f32.mrb[0].mxu0
    %v6794 = vadd.f32 0.0, %v6793
    %v6795 = vpop.f32.mrb[0].mxu0
    %v6796 = vadd.f32 0.0, %v6795
    %v6797 = vpop.f32.mrb[0].mxu0
    %v6798 = vadd.f32 0.0, %v6797
    %v6799 = vpop.f32.mrb[0].mxu0
    %v6800 = vadd.f32 0.0, %v6799
    %6801 = vmatprep.mubr.bf16.mxu0 %v848
    %6802 = vmatmul.mubr.bf16.gmra.mrb[0].mxu0 %v847
    %v6803 = vpop.f32.mrb[0].mxu0
    %v6804 = vadd.f32 0.0, %v6803
    %v6805 = vpop.f32.mrb[0].mxu0
    %v6806 = vadd.f32 0.0, %v6805
    %v6807 = vpop.f32.mrb[0].mxu0
    %v6808 = vadd.f32 0.0, %v6807
    %v6809 = vpop.f32.mrb[0].mxu0
    %v6810 = vadd.f32 0.0, %v6809
    %6811 = vmatprep.mubr.bf16.mxu0 %v852
    %6812 = vmatmul.mubr.bf16.gmra.mrb[0].mxu0 %v851
    %v6813 = vpop.f32.mrb[0].mxu0
    %v6814 = vadd.f32 0.0, %v6813
    %v6815 = vpop.f32.mrb[0].mxu0
    %v6816 = vadd.f32 0.0, %v6815
    %v6817 = vpop.f32.mrb[0].mxu0
    %v6818 = vadd.f32 0.0, %v6817
    %v6819 = vpop.f32.mrb[0].mxu0
    %v6820 = vadd.f32 0.0, %v6819
    %6821 = vdwg.mxu0
    %6822 = vmatprep.subr.bf16.mxu0 %v3174
    %6823 = vmatpush1.bf16.msra.mxu0 %v3173
    %6824 = vmatprep.subr.bf16.mxu0 %v3190
    %6825 = vmatpush1.bf16.msra.mxu0 %v3189
    %6826 = vmatprep.subr.bf16.mxu0 %v3206
    %6827 = vmatpush1.bf16.msra.mxu0 %v3205
    %6828 = vmatprep.subr.bf16.mxu0 %v3222
    %6829 = vmatpush1.bf16.msra.mxu0 %v3221
    %6830 = vmatprep.subr.bf16.mxu0 %v3238
    %6831 = vmatpush1.bf16.msra.mxu0 %v3237
    %6832 = vmatprep.subr.bf16.mxu0 %v3254
    %6833 = vmatpush1.bf16.msra.mxu0 %v3253
    %6834 = vmatprep.subr.bf16.mxu0 %v3270
    %6835 = vmatpush1.bf16.msra.mxu0 %v3269
    %6836 = vmatprep.subr.bf16.mxu0 %v3286
    %6837 = vmatpush1.bf16.msra.mxu0 %v3285
    %6838 = vmatprep.subr.bf16.mxu0 %v3302
    %6839 = vmatpush1.bf16.msra.mxu0 %v3301
    %6840 = vmatprep.subr.bf16.mxu0 %v3318
    %6841 = vmatpush1.bf16.msra.mxu0 %v3317
    %6842 = vmatprep.subr.bf16.mxu0 %v3334
    %6843 = vmatpush1.bf16.msra.mxu0 %v3333
    %6844 = vmatprep.subr.bf16.mxu0 %v3350
    %6845 = vmatpush1.bf16.msra.mxu0 %v3349
    %6846 = vmatprep.subr.bf16.mxu0 %v3366
    %6847 = vmatpush1.bf16.msra.mxu0 %v3365
    %6848 = vmatprep.subr.bf16.mxu0 %v3382
    %6849 = vmatpush1.bf16.msra.mxu0 %v3381
    %6850 = vmatprep.subr.bf16.mxu0 %v3398
    %6851 = vmatpush1.bf16.msra.mxu0 %v3397
    %6852 = vmatprep.subr.bf16.mxu0 %v3414
    %6853 = vmatpush1.bf16.msra.mxu0 %v3413
    %6854 = vmatprep.mubr.bf16.mxu0 %v794
    %6855 = vmatmul.mubr.bf16.gmra.mrb[0].mxu0 %v793
    %v6856 = vpop.f32.mrb[0].mxu0
    %v6857 = vadd.f32 %v6664, %v6856
    %v6858 = vpop.f32.mrb[0].mxu0
    %v6859 = vadd.f32 %v6666, %v6858
    %v6860 = vpop.f32.mrb[0].mxu0
    %v6861 = vadd.f32 %v6668, %v6860
    %v6862 = vpop.f32.mrb[0].mxu0
    %v6863 = vadd.f32 %v6670, %v6862
    %6864 = vmatprep.mubr.bf16.mxu0 %v798
    %6865 = vmatmul.mubr.bf16.gmra.mrb[0].mxu0 %v797
    %v6866 = vpop.f32.mrb[0].mxu0
    %v6867 = vadd.f32 %v6674, %v6866
    %v6868 = vpop.f32.mrb[0].mxu0
    %v6869 = vadd.f32 %v6676, %v6868
    %v6870 = vpop.f32.mrb[0].mxu0
    %v6871 = vadd.f32 %v6678, %v6870
    %v6872 = vpop.f32.mrb[0].mxu0
    %v6873 = vadd.f32 %v6680, %v6872
    %6874 = vmatprep.mubr.bf16.mxu0 %v802
    %6875 = vmatmul.mubr.bf16.gmra.mrb[0].mxu0 %v801
    %v6876 = vpop.f32.mrb[0].mxu0
    %v6877 = vadd.f32 %v6684, %v6876
    %v6878 = vpop.f32.mrb[0].mxu0
    %v6879 = vadd.f32 %v6686, %v6878
    %v6880 = vpop.f32.mrb[0].mxu0
    %v6881 = vadd.f32 %v6688, %v6880
    %v6882 = vpop.f32.mrb[0].mxu0
    %v6883 = vadd.f32 %v6690, %v6882
    %6884 = vmatprep.mubr.bf16.mxu0 %v806
    %6885 = vmatmul.mubr.bf16.gmra.mrb[0].mxu0 %v805
    %v6886 = vpop.f32.mrb[0].mxu0
    %v6887 = vadd.f32 %v6694, %v6886
    %v6888 = vpop.f32.mrb[0].mxu0
    %v6889 = vadd.f32 %v6696, %v6888
    %v6890 = vpop.f32.mrb[0].mxu0
    %v6891 = vadd.f32 %v6698, %v6890
    %v6892 = vpop.f32.mrb[0].mxu0
    %v6893 = vadd.f32 %v6700, %v6892
    %6894 = vmatprep.mubr.bf16.mxu0 %v810
    %6895 = vmatmul.mubr.bf16.gmra.mrb[0].mxu0 %v809
    %v6896 = vpop.f32.mrb[0].mxu0
    %v6897 = vadd.f32 %v6704, %v6896
    %v6898 = vpop.f32.mrb[0].mxu0
    %v6899 = vadd.f32 %v6706, %v6898
    %v6900 = vpop.f32.mrb[0].mxu0
    %v6901 = vadd.f32 %v6708, %v6900
    %v6902 = vpop.f32.mrb[0].mxu0
    %v6903 = vadd.f32 %v6710, %v6902
    %6904 = vmatprep.mubr.bf16.mxu0 %v814
    %6905 = vmatmul.mubr.bf16.gmra.mrb[0].mxu0 %v813
    %v6906 = vpop.f32.mrb[0].mxu0
    %v6907 = vadd.f32 %v6714, %v6906
    %v6908 = vpop.f32.mrb[0].mxu0
    %v6909 = vadd.f32 %v6716, %v6908
    %v6910 = vpop.f32.mrb[0].mxu0
    %v6911 = vadd.f32 %v6718, %v6910
    %v6912 = vpop.f32.mrb[0].mxu0
    %v6913 = vadd.f32 %v6720, %v6912
    %6914 = vmatprep.mubr.bf16.mxu0 %v818
    %6915 = vmatmul.mubr.bf16.gmra.mrb[0].mxu0 %v817
    %v6916 = vpop.f32.mrb[0].mxu0
    %v6917 = vadd.f32 %v6724, %v6916
    %v6918 = vpop.f32.mrb[0].mxu0
    %v6919 = vadd.f32 %v6726, %v6918
    %v6920 = vpop.f32.mrb[0].mxu0
    %v6921 = vadd.f32 %v6728, %v6920
    %v6922 = vpop.f32.mrb[0].mxu0
    %v6923 = vadd.f32 %v6730, %v6922
    %6924 = vmatprep.mubr.bf16.mxu0 %v822
    %6925 = vmatmul.mubr.bf16.gmra.mrb[0].mxu0 %v821
    %v6926 = vpop.f32.mrb[0].mxu0
    %v6927 = vadd.f32 %v6734, %v6926
    %v6928 = vpop.f32.mrb[0].mxu0
    %v6929 = vadd.f32 %v6736, %v6928
    %v6930 = vpop.f32.mrb[0].mxu0
    %v6931 = vadd.f32 %v6738, %v6930
    %v6932 = vpop.f32.mrb[0].mxu0
    %v6933 = vadd.f32 %v6740, %v6932
    %6934 = vmatprep.mubr.bf16.mxu0 %v826
    %6935 = vmatmul.mubr.bf16.gmra.mrb[0].mxu0 %v825
    %v6936 = vpop.f32.mrb[0].mxu0
    %v6937 = vadd.f32 %v6744, %v6936
    %v6938 = vpop.f32.mrb[0].mxu0
    %v6939 = vadd.f32 %v6746, %v6938
    %v6940 = vpop.f32.mrb[0].mxu0
    %v6941 = vadd.f32 %v6748, %v6940
    %v6942 = vpop.f32.mrb[0].mxu0
    %v6943 = vadd.f32 %v6750, %v6942
    %6944 = vmatprep.mubr.bf16.mxu0 %v830
    %6945 = vmatmul.mubr.bf16.gmra.mrb[0].mxu0 %v829
    %v6946 = vpop.f32.mrb[0].mxu0
    %v6947 = vadd.f32 %v6754, %v6946
    %v6948 = vpop.f32.mrb[0].mxu0
    %v6949 = vadd.f32 %v6756, %v6948
    %v6950 = vpop.f32.mrb[0].mxu0
    %v6951 = vadd.f32 %v6758, %v6950
    %v6952 = vpop.f32.mrb[0].mxu0
    %v6953 = vadd.f32 %v6760, %v6952
    %6954 = vmatprep.mubr.bf16.mxu0 %v834
    %6955 = vmatmul.mubr.bf16.gmra.mrb[0].mxu0 %v833
    %v6956 = vpop.f32.mrb[0].mxu0
    %v6957 = vadd.f32 %v6764, %v6956
    %v6958 = vpop.f32.mrb[0].mxu0
    %v6959 = vadd.f32 %v6766, %v6958
    %v6960 = vpop.f32.mrb[0].mxu0
    %v6961 = vadd.f32 %v6768, %v6960
    %v6962 = vpop.f32.mrb[0].mxu0
    %v6963 = vadd.f32 %v6770, %v6962
    %6964 = vmatprep.mubr.bf16.mxu0 %v838
    %6965 = vmatmul.mubr.bf16.gmra.mrb[0].mxu0 %v837
    %v6966 = vpop.f32.mrb[0].mxu0
    %v6967 = vadd.f32 %v6774, %v6966
    %v6968 = vpop.f32.mrb[0].mxu0
    %v6969 = vadd.f32 %v6776, %v6968
    %v6970 = vpop.f32.mrb[0].mxu0
    %v6971 = vadd.f32 %v6778, %v6970
    %v6972 = vpop.f32.mrb[0].mxu0
    %v6973 = vadd.f32 %v6780, %v6972
    %6974 = vmatprep.mubr.bf16.mxu0 %v842
    %6975 = vmatmul.mubr.bf16.gmra.mrb[0].mxu0 %v841
    %v6976 = vpop.f32.mrb[0].mxu0
    %v6977 = vadd.f32 %v6784, %v6976
    %v6978 = vpop.f32.mrb[0].mxu0
    %v6979 = vadd.f32 %v6786, %v6978
    %v6980 = vpop.f32.mrb[0].mxu0
    %v6981 = vadd.f32 %v6788, %v6980
    %v6982 = vpop.f32.mrb[0].mxu0
    %v6983 = vadd.f32 %v6790, %v6982
    %6984 = vmatprep.mubr.bf16.mxu0 %v846
    %6985 = vmatmul.mubr.bf16.gmra.mrb[0].mxu0 %v845
    %v6986 = vpop.f32.mrb[0].mxu0
    %v6987 = vadd.f32 %v6794, %v6986
    %v6988 = vpop.f32.mrb[0].mxu0
    %v6989 = vadd.f32 %v6796, %v6988
    %v6990 = vpop.f32.mrb[0].mxu0
    %v6991 = vadd.f32 %v6798, %v6990
    %v6992 = vpop.f32.mrb[0].mxu0
    %v6993 = vadd.f32 %v6800, %v6992
    %6994 = vmatprep.mubr.bf16.mxu0 %v850
    %6995 = vmatmul.mubr.bf16.gmra.mrb[0].mxu0 %v849
    %v6996 = vpop.f32.mrb[0].mxu0
    %v6997 = vadd.f32 %v6804, %v6996
    %v6998 = vpop.f32.mrb[0].mxu0
    %v6999 = vadd.f32 %v6806, %v6998
    %v7000 = vpop.f32.mrb[0].mxu0
    %v7001 = vadd.f32 %v6808, %v7000
    %v7002 = vpop.f32.mrb[0].mxu0
    %v7003 = vadd.f32 %v6810, %v7002
    %7004 = vmatprep.mubr.bf16.mxu0 %v854
    %7005 = vmatmul.mubr.bf16.gmra.mrb[0].mxu0 %v853
    %v7006 = vpop.f32.mrb[0].mxu0
    %v7007 = vadd.f32 %v6814, %v7006
    %v7008 = vpop.f32.mrb[0].mxu0
    %v7009 = vadd.f32 %v6816, %v7008
    %v7010 = vpop.f32.mrb[0].mxu0
    %v7011 = vadd.f32 %v6818, %v7010
    %v7012 = vpop.f32.mrb[0].mxu0
    %v7013 = vadd.f32 %v6820, %v7012
    %7014 = vdwg.mxu0
    %v7015 = vmax.f32 %v4155, 0.0
    %v7016 = vmax.f32 %v4157, 0.0
    %v7017 = vmax.f32 %v4541, 0.0
    %v7018 = vmax.f32 %v4543, 0.0
    %v7019 = vmax.f32 %v4927, 0.0
    %v7020 = vmax.f32 %v4929, 0.0
    %v7021 = vmax.f32 %v5313, 0.0
    %v7022 = vmax.f32 %v5315, 0.0
    %v7023 = vmax.f32 %v5699, 0.0
    %v7024 = vmax.f32 %v5701, 0.0
    %v7025 = vmax.f32 %v6085, 0.0
    %v7026 = vmax.f32 %v6087, 0.0
    %v7027 = vmax.f32 %v6471, 0.0
    %v7028 = vmax.f32 %v6473, 0.0
    %v7029 = vmax.f32 %v6857, 0.0
    %v7030 = vmax.f32 %v6859, 0.0
    %v7031 = vmax.f32 %v4159, 0.0
    %v7032 = vmax.f32 %v4161, 0.0
    %v7033 = vmax.f32 %v4545, 0.0
    %v7034 = vmax.f32 %v4547, 0.0
    %v7035 = vmax.f32 %v4931, 0.0
    %v7036 = vmax.f32 %v4933, 0.0
    %v7037 = vmax.f32 %v5317, 0.0
    %v7038 = vmax.f32 %v5319, 0.0
    %v7039 = vmax.f32 %v5703, 0.0
    %v7040 = vmax.f32 %v5705, 0.0
    %v7041 = vmax.f32 %v6089, 0.0
    %v7042 = vmax.f32 %v6091, 0.0
    %v7043 = vmax.f32 %v6475, 0.0
    %v7044 = vmax.f32 %v6477, 0.0
    %v7045 = vmax.f32 %v6861, 0.0
    %v7046 = vmax.f32 %v6863, 0.0
    %v7047 = vmax.f32 %v4165, 0.0
    %v7048 = vmax.f32 %v4167, 0.0
    %v7049 = vmax.f32 %v4551, 0.0
    %v7050 = vmax.f32 %v4553, 0.0
    %v7051 = vmax.f32 %v4937, 0.0
    %v7052 = vmax.f32 %v4939, 0.0
    %v7053 = vmax.f32 %v5323, 0.0
    %v7054 = vmax.f32 %v5325, 0.0
    %v7055 = vmax.f32 %v5709, 0.0
    %v7056 = vmax.f32 %v5711, 0.0
    %v7057 = vmax.f32 %v6095, 0.0
    %v7058 = vmax.f32 %v6097, 0.0
    %v7059 = vmax.f32 %v6481, 0.0
    %v7060 = vmax.f32 %v6483, 0.0
    %v7061 = vmax.f32 %v6867, 0.0
    %v7062 = vmax.f32 %v6869, 0.0
    %v7063 = vmax.f32 %v4169, 0.0
    %v7064 = vmax.f32 %v4171, 0.0
    %v7065 = vmax.f32 %v4555, 0.0
    %v7066 = vmax.f32 %v4557, 0.0
    %v7067 = vmax.f32 %v4941, 0.0
    %v7068 = vmax.f32 %v4943, 0.0
    %v7069 = vmax.f32 %v5327, 0.0
    %v7070 = vmax.f32 %v5329, 0.0
    %v7071 = vmax.f32 %v5713, 0.0
    %v7072 = vmax.f32 %v5715, 0.0
    %v7073 = vmax.f32 %v6099, 0.0
    %v7074 = vmax.f32 %v6101, 0.0
    %v7075 = vmax.f32 %v6485, 0.0
    %v7076 = vmax.f32 %v6487, 0.0
    %v7077 = vmax.f32 %v6871, 0.0
    %v7078 = vmax.f32 %v6873, 0.0
    %v7079 = vmax.f32 %v4175, 0.0
    %v7080 = vmax.f32 %v4177, 0.0
    %v7081 = vmax.f32 %v4561, 0.0
    %v7082 = vmax.f32 %v4563, 0.0
    %v7083 = vmax.f32 %v4947, 0.0
    %v7084 = vmax.f32 %v4949, 0.0
    %v7085 = vmax.f32 %v5333, 0.0
    %v7086 = vmax.f32 %v5335, 0.0
    %v7087 = vmax.f32 %v5719, 0.0
    %v7088 = vmax.f32 %v5721, 0.0
    %v7089 = vmax.f32 %v6105, 0.0
    %v7090 = vmax.f32 %v6107, 0.0
    %v7091 = vmax.f32 %v6491, 0.0
    %v7092 = vmax.f32 %v6493, 0.0
    %v7093 = vmax.f32 %v6877, 0.0
    %v7094 = vmax.f32 %v6879, 0.0
    %v7095 = vmax.f32 %v4179, 0.0
    %v7096 = vmax.f32 %v4181, 0.0
    %v7097 = vmax.f32 %v4565, 0.0
    %v7098 = vmax.f32 %v4567, 0.0
    %v7099 = vmax.f32 %v4951, 0.0
    %v7100 = vmax.f32 %v4953, 0.0
    %v7101 = vmax.f32 %v5337, 0.0
    %v7102 = vmax.f32 %v5339, 0.0
    %v7103 = vmax.f32 %v5723, 0.0
    %v7104 = vmax.f32 %v5725, 0.0
    %v7105 = vmax.f32 %v6109, 0.0
    %v7106 = vmax.f32 %v6111, 0.0
    %v7107 = vmax.f32 %v6495, 0.0
    %v7108 = vmax.f32 %v6497, 0.0
    %v7109 = vmax.f32 %v6881, 0.0
    %v7110 = vmax.f32 %v6883, 0.0
    %v7111 = vmax.f32 %v4185, 0.0
    %v7112 = vmax.f32 %v4187, 0.0
    %v7113 = vmax.f32 %v4571, 0.0
    %v7114 = vmax.f32 %v4573, 0.0
    %v7115 = vmax.f32 %v4957, 0.0
    %v7116 = vmax.f32 %v4959, 0.0
    %v7117 = vmax.f32 %v5343, 0.0
    %v7118 = vmax.f32 %v5345, 0.0
    %v7119 = vmax.f32 %v5729, 0.0
    %v7120 = vmax.f32 %v5731, 0.0
    %v7121 = vmax.f32 %v6115, 0.0
    %v7122 = vmax.f32 %v6117, 0.0
    %v7123 = vmax.f32 %v6501, 0.0
    %v7124 = vmax.f32 %v6503, 0.0
    %v7125 = vmax.f32 %v6887, 0.0
    %v7126 = vmax.f32 %v6889, 0.0
    %v7127 = vmax.f32 %v4189, 0.0
    %v7128 = vmax.f32 %v4191, 0.0
    %v7129 = vmax.f32 %v4575, 0.0
    %v7130 = vmax.f32 %v4577, 0.0
    %v7131 = vmax.f32 %v4961, 0.0
    %v7132 = vmax.f32 %v4963, 0.0
    %v7133 = vmax.f32 %v5347, 0.0
    %v7134 = vmax.f32 %v5349, 0.0
    %v7135 = vmax.f32 %v5733, 0.0
    %v7136 = vmax.f32 %v5735, 0.0
    %v7137 = vmax.f32 %v6119, 0.0
    %v7138 = vmax.f32 %v6121, 0.0
    %v7139 = vmax.f32 %v6505, 0.0
    %v7140 = vmax.f32 %v6507, 0.0
    %v7141 = vmax.f32 %v6891, 0.0
    %v7142 = vmax.f32 %v6893, 0.0
    %v7143 = vmax.f32 %v4195, 0.0
    %v7144 = vmax.f32 %v4197, 0.0
    %v7145 = vmax.f32 %v4581, 0.0
    %v7146 = vmax.f32 %v4583, 0.0
    %v7147 = vmax.f32 %v4967, 0.0
    %v7148 = vmax.f32 %v4969, 0.0
    %v7149 = vmax.f32 %v5353, 0.0
    %v7150 = vmax.f32 %v5355, 0.0
    %v7151 = vmax.f32 %v5739, 0.0
    %v7152 = vmax.f32 %v5741, 0.0
    %v7153 = vmax.f32 %v6125, 0.0
    %v7154 = vmax.f32 %v6127, 0.0
    %v7155 = vmax.f32 %v6511, 0.0
    %v7156 = vmax.f32 %v6513, 0.0
    %v7157 = vmax.f32 %v6897, 0.0
    %v7158 = vmax.f32 %v6899, 0.0
    %v7159 = vmax.f32 %v4199, 0.0
    %v7160 = vmax.f32 %v4201, 0.0
    %v7161 = vmax.f32 %v4585, 0.0
    %v7162 = vmax.f32 %v4587, 0.0
    %v7163 = vmax.f32 %v4971, 0.0
    %v7164 = vmax.f32 %v4973, 0.0
    %v7165 = vmax.f32 %v5357, 0.0
    %v7166 = vmax.f32 %v5359, 0.0
    %v7167 = vmax.f32 %v5743, 0.0
    %v7168 = vmax.f32 %v5745, 0.0
    %v7169 = vmax.f32 %v6129, 0.0
    %v7170 = vmax.f32 %v6131, 0.0
    %v7171 = vmax.f32 %v6515, 0.0
    %v7172 = vmax.f32 %v6517, 0.0
    %v7173 = vmax.f32 %v6901, 0.0
    %v7174 = vmax.f32 %v6903, 0.0
    %v7175 = vmax.f32 %v4205, 0.0
    %v7176 = vmax.f32 %v4207, 0.0
    %v7177 = vmax.f32 %v4591, 0.0
    %v7178 = vmax.f32 %v4593, 0.0
    %v7179 = vmax.f32 %v4977, 0.0
    %v7180 = vmax.f32 %v4979, 0.0
    %v7181 = vmax.f32 %v5363, 0.0
    %v7182 = vmax.f32 %v5365, 0.0
    %v7183 = vmax.f32 %v5749, 0.0
    %v7184 = vmax.f32 %v5751, 0.0
    %v7185 = vmax.f32 %v6135, 0.0
    %v7186 = vmax.f32 %v6137, 0.0
    %v7187 = vmax.f32 %v6521, 0.0
    %v7188 = vmax.f32 %v6523, 0.0
    %v7189 = vmax.f32 %v6907, 0.0
    %v7190 = vmax.f32 %v6909, 0.0
    %v7191 = vmax.f32 %v4209, 0.0
    %v7192 = vmax.f32 %v4211, 0.0
    %v7193 = vmax.f32 %v4595, 0.0
    %v7194 = vmax.f32 %v4597, 0.0
    %v7195 = vmax.f32 %v4981, 0.0
    %v7196 = vmax.f32 %v4983, 0.0
    %v7197 = vmax.f32 %v5367, 0.0
    %v7198 = vmax.f32 %v5369, 0.0
    %v7199 = vmax.f32 %v5753, 0.0
    %v7200 = vmax.f32 %v5755, 0.0
    %v7201 = vmax.f32 %v6139, 0.0
    %v7202 = vmax.f32 %v6141, 0.0
    %v7203 = vmax.f32 %v6525, 0.0
    %v7204 = vmax.f32 %v6527, 0.0
    %v7205 = vmax.f32 %v6911, 0.0
    %v7206 = vmax.f32 %v6913, 0.0
    %v7207 = vmax.f32 %v4215, 0.0
    %v7208 = vmax.f32 %v4217, 0.0
    %v7209 = vmax.f32 %v4601, 0.0
    %v7210 = vmax.f32 %v4603, 0.0
    %v7211 = vmax.f32 %v4987, 0.0
    %v7212 = vmax.f32 %v4989, 0.0
    %v7213 = vmax.f32 %v5373, 0.0
    %v7214 = vmax.f32 %v5375, 0.0
    %v7215 = vmax.f32 %v5759, 0.0
    %v7216 = vmax.f32 %v5761, 0.0
    %v7217 = vmax.f32 %v6145, 0.0
    %v7218 = vmax.f32 %v6147, 0.0
    %v7219 = vmax.f32 %v6531, 0.0
    %v7220 = vmax.f32 %v6533, 0.0
    %v7221 = vmax.f32 %v6917, 0.0
    %v7222 = vmax.f32 %v6919, 0.0
    %v7223 = vmax.f32 %v4219, 0.0
    %v7224 = vmax.f32 %v4221, 0.0
    %v7225 = vmax.f32 %v4605, 0.0
    %v7226 = vmax.f32 %v4607, 0.0
    %v7227 = vmax.f32 %v4991, 0.0
    %v7228 = vmax.f32 %v4993, 0.0
    %v7229 = vmax.f32 %v5377, 0.0
    %v7230 = vmax.f32 %v5379, 0.0
    %v7231 = vmax.f32 %v5763, 0.0
    %v7232 = vmax.f32 %v5765, 0.0
    %v7233 = vmax.f32 %v6149, 0.0
    %v7234 = vmax.f32 %v6151, 0.0
    %v7235 = vmax.f32 %v6535, 0.0
    %v7236 = vmax.f32 %v6537, 0.0
    %v7237 = vmax.f32 %v6921, 0.0
    %v7238 = vmax.f32 %v6923, 0.0
    %v7239 = vmax.f32 %v4225, 0.0
    %v7240 = vmax.f32 %v4227, 0.0
    %v7241 = vmax.f32 %v4611, 0.0
    %v7242 = vmax.f32 %v4613, 0.0
    %v7243 = vmax.f32 %v4997, 0.0
    %v7244 = vmax.f32 %v4999, 0.0
    %v7245 = vmax.f32 %v5383, 0.0
    %v7246 = vmax.f32 %v5385, 0.0
    %v7247 = vmax.f32 %v5769, 0.0
    %v7248 = vmax.f32 %v5771, 0.0
    %v7249 = vmax.f32 %v6155, 0.0
    %v7250 = vmax.f32 %v6157, 0.0
    %v7251 = vmax.f32 %v6541, 0.0
    %v7252 = vmax.f32 %v6543, 0.0
    %v7253 = vmax.f32 %v6927, 0.0
    %v7254 = vmax.f32 %v6929, 0.0
    %v7255 = vmax.f32 %v4229, 0.0
    %v7256 = vmax.f32 %v4231, 0.0
    %v7257 = vmax.f32 %v4615, 0.0
    %v7258 = vmax.f32 %v4617, 0.0
    %v7259 = vmax.f32 %v5001, 0.0
    %v7260 = vmax.f32 %v5003, 0.0
    %v7261 = vmax.f32 %v5387, 0.0
    %v7262 = vmax.f32 %v5389, 0.0
    %v7263 = vmax.f32 %v5773, 0.0
    %v7264 = vmax.f32 %v5775, 0.0
    %v7265 = vmax.f32 %v6159, 0.0
    %v7266 = vmax.f32 %v6161, 0.0
    %v7267 = vmax.f32 %v6545, 0.0
    %v7268 = vmax.f32 %v6547, 0.0
    %v7269 = vmax.f32 %v6931, 0.0
    %v7270 = vmax.f32 %v6933, 0.0
    %v7271 = vmax.f32 %v4235, 0.0
    %v7272 = vmax.f32 %v4237, 0.0
    %v7273 = vmax.f32 %v4621, 0.0
    %v7274 = vmax.f32 %v4623, 0.0
    %v7275 = vmax.f32 %v5007, 0.0
    %v7276 = vmax.f32 %v5009, 0.0
    %v7277 = vmax.f32 %v5393, 0.0
    %v7278 = vmax.f32 %v5395, 0.0
    %v7279 = vmax.f32 %v5779, 0.0
    %v7280 = vmax.f32 %v5781, 0.0
    %v7281 = vmax.f32 %v6165, 0.0
    %v7282 = vmax.f32 %v6167, 0.0
    %v7283 = vmax.f32 %v6551, 0.0
    %v7284 = vmax.f32 %v6553, 0.0
    %v7285 = vmax.f32 %v6937, 0.0
    %v7286 = vmax.f32 %v6939, 0.0
    %v7287 = vmax.f32 %v4239, 0.0
    %v7288 = vmax.f32 %v4241, 0.0
    %v7289 = vmax.f32 %v4625, 0.0
    %v7290 = vmax.f32 %v4627, 0.0
    %v7291 = vmax.f32 %v5011, 0.0
    %v7292 = vmax.f32 %v5013, 0.0
    %v7293 = vmax.f32 %v5397, 0.0
    %v7294 = vmax.f32 %v5399, 0.0
    %v7295 = vmax.f32 %v5783, 0.0
    %v7296 = vmax.f32 %v5785, 0.0
    %v7297 = vmax.f32 %v6169, 0.0
    %v7298 = vmax.f32 %v6171, 0.0
    %v7299 = vmax.f32 %v6555, 0.0
    %v7300 = vmax.f32 %v6557, 0.0
    %v7301 = vmax.f32 %v6941, 0.0
    %v7302 = vmax.f32 %v6943, 0.0
    %v7303 = vmax.f32 %v4245, 0.0
    %v7304 = vmax.f32 %v4247, 0.0
    %v7305 = vmax.f32 %v4631, 0.0
    %v7306 = vmax.f32 %v4633, 0.0
    %v7307 = vmax.f32 %v5017, 0.0
    %v7308 = vmax.f32 %v5019, 0.0
    %v7309 = vmax.f32 %v5403, 0.0
    %v7310 = vmax.f32 %v5405, 0.0
    %v7311 = vmax.f32 %v5789, 0.0
    %v7312 = vmax.f32 %v5791, 0.0
    %v7313 = vmax.f32 %v6175, 0.0
    %v7314 = vmax.f32 %v6177, 0.0
    %v7315 = vmax.f32 %v6561, 0.0
    %v7316 = vmax.f32 %v6563, 0.0
    %v7317 = vmax.f32 %v6947, 0.0
    %v7318 = vmax.f32 %v6949, 0.0
    %v7319 = vmax.f32 %v4249, 0.0
    %v7320 = vmax.f32 %v4251, 0.0
    %v7321 = vmax.f32 %v4635, 0.0
    %v7322 = vmax.f32 %v4637, 0.0
    %v7323 = vmax.f32 %v5021, 0.0
    %v7324 = vmax.f32 %v5023, 0.0
    %v7325 = vmax.f32 %v5407, 0.0
    %v7326 = vmax.f32 %v5409, 0.0
    %v7327 = vmax.f32 %v5793, 0.0
    %v7328 = vmax.f32 %v5795, 0.0
    %v7329 = vmax.f32 %v6179, 0.0
    %v7330 = vmax.f32 %v6181, 0.0
    %v7331 = vmax.f32 %v6565, 0.0
    %v7332 = vmax.f32 %v6567, 0.0
    %v7333 = vmax.f32 %v6951, 0.0
    %v7334 = vmax.f32 %v6953, 0.0
    %v7335 = vmax.f32 %v4255, 0.0
    %v7336 = vmax.f32 %v4257, 0.0
    %v7337 = vmax.f32 %v4641, 0.0
    %v7338 = vmax.f32 %v4643, 0.0
    %v7339 = vmax.f32 %v5027, 0.0
    %v7340 = vmax.f32 %v5029, 0.0
    %v7341 = vmax.f32 %v5413, 0.0
    %v7342 = vmax.f32 %v5415, 0.0
    %v7343 = vmax.f32 %v5799, 0.0
    %v7344 = vmax.f32 %v5801, 0.0
    %v7345 = vmax.f32 %v6185, 0.0
    %v7346 = vmax.f32 %v6187, 0.0
    %v7347 = vmax.f32 %v6571, 0.0
    %v7348 = vmax.f32 %v6573, 0.0
    %v7349 = vmax.f32 %v6957, 0.0
    %v7350 = vmax.f32 %v6959, 0.0
    %v7351 = vmax.f32 %v4259, 0.0
    %v7352 = vmax.f32 %v4261, 0.0
    %v7353 = vmax.f32 %v4645, 0.0
    %v7354 = vmax.f32 %v4647, 0.0
    %v7355 = vmax.f32 %v5031, 0.0
    %v7356 = vmax.f32 %v5033, 0.0
    %v7357 = vmax.f32 %v5417, 0.0
    %v7358 = vmax.f32 %v5419, 0.0
    %v7359 = vmax.f32 %v5803, 0.0
    %v7360 = vmax.f32 %v5805, 0.0
    %v7361 = vmax.f32 %v6189, 0.0
    %v7362 = vmax.f32 %v6191, 0.0
    %v7363 = vmax.f32 %v6575, 0.0
    %v7364 = vmax.f32 %v6577, 0.0
    %v7365 = vmax.f32 %v6961, 0.0
    %v7366 = vmax.f32 %v6963, 0.0
    %v7367 = vmax.f32 %v4265, 0.0
    %v7368 = vmax.f32 %v4267, 0.0
    %v7369 = vmax.f32 %v4651, 0.0
    %v7370 = vmax.f32 %v4653, 0.0
    %v7371 = vmax.f32 %v5037, 0.0
    %v7372 = vmax.f32 %v5039, 0.0
    %v7373 = vmax.f32 %v5423, 0.0
    %v7374 = vmax.f32 %v5425, 0.0
    %v7375 = vmax.f32 %v5809, 0.0
    %v7376 = vmax.f32 %v5811, 0.0
    %v7377 = vmax.f32 %v6195, 0.0
    %v7378 = vmax.f32 %v6197, 0.0
    %v7379 = vmax.f32 %v6581, 0.0
    %v7380 = vmax.f32 %v6583, 0.0
    %v7381 = vmax.f32 %v6967, 0.0
    %v7382 = vmax.f32 %v6969, 0.0
    %v7383 = vmax.f32 %v4269, 0.0
    %v7384 = vmax.f32 %v4271, 0.0
    %v7385 = vmax.f32 %v4655, 0.0
    %v7386 = vmax.f32 %v4657, 0.0
    %v7387 = vmax.f32 %v5041, 0.0
    %v7388 = vmax.f32 %v5043, 0.0
    %v7389 = vmax.f32 %v5427, 0.0
    %v7390 = vmax.f32 %v5429, 0.0
    %v7391 = vmax.f32 %v5813, 0.0
    %v7392 = vmax.f32 %v5815, 0.0
    %v7393 = vmax.f32 %v6199, 0.0
    %v7394 = vmax.f32 %v6201, 0.0
    %v7395 = vmax.f32 %v6585, 0.0
    %v7396 = vmax.f32 %v6587, 0.0
    %v7397 = vmax.f32 %v6971, 0.0
    %v7398 = vmax.f32 %v6973, 0.0
    %v7399 = vmax.f32 %v4275, 0.0
    %v7400 = vmax.f32 %v4277, 0.0
    %v7401 = vmax.f32 %v4661, 0.0
    %v7402 = vmax.f32 %v4663, 0.0
    %v7403 = vmax.f32 %v5047, 0.0
    %v7404 = vmax.f32 %v5049, 0.0
    %v7405 = vmax.f32 %v5433, 0.0
    %v7406 = vmax.f32 %v5435, 0.0
    %v7407 = vmax.f32 %v5819, 0.0
    %v7408 = vmax.f32 %v5821, 0.0
    %v7409 = vmax.f32 %v6205, 0.0
    %v7410 = vmax.f32 %v6207, 0.0
    %v7411 = vmax.f32 %v6591, 0.0
    %v7412 = vmax.f32 %v6593, 0.0
    %v7413 = vmax.f32 %v6977, 0.0
    %v7414 = vmax.f32 %v6979, 0.0
    %v7415 = vmax.f32 %v4279, 0.0
    %v7416 = vmax.f32 %v4281, 0.0
    %v7417 = vmax.f32 %v4665, 0.0
    %v7418 = vmax.f32 %v4667, 0.0
    %v7419 = vmax.f32 %v5051, 0.0
    %v7420 = vmax.f32 %v5053, 0.0
    %v7421 = vmax.f32 %v5437, 0.0
    %v7422 = vmax.f32 %v5439, 0.0
    %v7423 = vmax.f32 %v5823, 0.0
    %v7424 = vmax.f32 %v5825, 0.0
    %v7425 = vmax.f32 %v6209, 0.0
    %v7426 = vmax.f32 %v6211, 0.0
    %v7427 = vmax.f32 %v6595, 0.0
    %v7428 = vmax.f32 %v6597, 0.0
    %v7429 = vmax.f32 %v6981, 0.0
    %v7430 = vmax.f32 %v6983, 0.0
    %v7431 = vmax.f32 %v4285, 0.0
    %v7432 = vmax.f32 %v4287, 0.0
    %v7433 = vmax.f32 %v4671, 0.0
    %v7434 = vmax.f32 %v4673, 0.0
    %v7435 = vmax.f32 %v5057, 0.0
    %v7436 = vmax.f32 %v5059, 0.0
    %v7437 = vmax.f32 %v5443, 0.0
    %v7438 = vmax.f32 %v5445, 0.0
    %v7439 = vmax.f32 %v5829, 0.0
    %v7440 = vmax.f32 %v5831, 0.0
    %v7441 = vmax.f32 %v6215, 0.0
    %v7442 = vmax.f32 %v6217, 0.0
    %v7443 = vmax.f32 %v6601, 0.0
    %v7444 = vmax.f32 %v6603, 0.0
    %v7445 = vmax.f32 %v6987, 0.0
    %v7446 = vmax.f32 %v6989, 0.0
    %v7447 = vmax.f32 %v4289, 0.0
    %v7448 = vmax.f32 %v4291, 0.0
    %v7449 = vmax.f32 %v4675, 0.0
    %v7450 = vmax.f32 %v4677, 0.0
    %v7451 = vmax.f32 %v5061, 0.0
    %v7452 = vmax.f32 %v5063, 0.0
    %v7453 = vmax.f32 %v5447, 0.0
    %v7454 = vmax.f32 %v5449, 0.0
    %v7455 = vmax.f32 %v5833, 0.0
    %v7456 = vmax.f32 %v5835, 0.0
    %v7457 = vmax.f32 %v6219, 0.0
    %v7458 = vmax.f32 %v6221, 0.0
    %v7459 = vmax.f32 %v6605, 0.0
    %v7460 = vmax.f32 %v6607, 0.0
    %v7461 = vmax.f32 %v6991, 0.0
    %v7462 = vmax.f32 %v6993, 0.0
    %v7463 = vmax.f32 %v4295, 0.0
    %v7464 = vmax.f32 %v4297, 0.0
    %v7465 = vmax.f32 %v4681, 0.0
    %v7466 = vmax.f32 %v4683, 0.0
    %v7467 = vmax.f32 %v5067, 0.0
    %v7468 = vmax.f32 %v5069, 0.0
    %v7469 = vmax.f32 %v5453, 0.0
    %v7470 = vmax.f32 %v5455, 0.0
    %v7471 = vmax.f32 %v5839, 0.0
    %v7472 = vmax.f32 %v5841, 0.0
    %v7473 = vmax.f32 %v6225, 0.0
    %v7474 = vmax.f32 %v6227, 0.0
    %v7475 = vmax.f32 %v6611, 0.0
    %v7476 = vmax.f32 %v6613, 0.0
    %v7477 = vmax.f32 %v6997, 0.0
    %v7478 = vmax.f32 %v6999, 0.0
    %v7479 = vmax.f32 %v4299, 0.0
    %v7480 = vmax.f32 %v4301, 0.0
    %v7481 = vmax.f32 %v4685, 0.0
    %v7482 = vmax.f32 %v4687, 0.0
    %v7483 = vmax.f32 %v5071, 0.0
    %v7484 = vmax.f32 %v5073, 0.0
    %v7485 = vmax.f32 %v5457, 0.0
    %v7486 = vmax.f32 %v5459, 0.0
    %v7487 = vmax.f32 %v5843, 0.0
    %v7488 = vmax.f32 %v5845, 0.0
    %v7489 = vmax.f32 %v6229, 0.0
    %v7490 = vmax.f32 %v6231, 0.0
    %v7491 = vmax.f32 %v6615, 0.0
    %v7492 = vmax.f32 %v6617, 0.0
    %v7493 = vmax.f32 %v7001, 0.0
    %v7494 = vmax.f32 %v7003, 0.0
    %v7495 = vmax.f32 %v4305, 0.0
    %v7496 = vmax.f32 %v4307, 0.0
    %v7497 = vmax.f32 %v4691, 0.0
    %v7498 = vmax.f32 %v4693, 0.0
    %v7499 = vmax.f32 %v5077, 0.0
    %v7500 = vmax.f32 %v5079, 0.0
    %v7501 = vmax.f32 %v5463, 0.0
    %v7502 = vmax.f32 %v5465, 0.0
    %v7503 = vmax.f32 %v5849, 0.0
    %v7504 = vmax.f32 %v5851, 0.0
    %v7505 = vmax.f32 %v6235, 0.0
    %v7506 = vmax.f32 %v6237, 0.0
    %v7507 = vmax.f32 %v6621, 0.0
    %v7508 = vmax.f32 %v6623, 0.0
    %v7509 = vmax.f32 %v7007, 0.0
    %v7510 = vmax.f32 %v7009, 0.0
    %v7511 = vmax.f32 %v4309, 0.0
    %v7512 = vmax.f32 %v4311, 0.0
    %v7513 = vmax.f32 %v4695, 0.0
    %v7514 = vmax.f32 %v4697, 0.0
    %v7515 = vmax.f32 %v5081, 0.0
    %v7516 = vmax.f32 %v5083, 0.0
    %v7517 = vmax.f32 %v5467, 0.0
    %v7518 = vmax.f32 %v5469, 0.0
    %v7519 = vmax.f32 %v5853, 0.0
    %v7520 = vmax.f32 %v5855, 0.0
    %v7521 = vmax.f32 %v6239, 0.0
    %v7522 = vmax.f32 %v6241, 0.0
    %v7523 = vmax.f32 %v6625, 0.0
    %v7524 = vmax.f32 %v6627, 0.0
    %v7525 = vmax.f32 %v7011, 0.0
    %v7526 = vmax.f32 %v7013, 0.0
    %7527 = vst [vmem:[#allocation7] sm:$0xff] %v7015
    %7528 = vst [vmem:[#allocation7 + $0x8] sm:$0xff] %v7016
    %7529 = vst [vmem:[#allocation7 + $0x10] sm:$0xff] %v7017
    %7530 = vst [vmem:[#allocation7 + $0x18] sm:$0xff] %v7018
    %7531 = vst [vmem:[#allocation7 + $0x20] sm:$0xff] %v7019
    %7532 = vst [vmem:[#allocation7 + $0x28] sm:$0xff] %v7020
    %7533 = vst [vmem:[#allocation7 + $0x30] sm:$0xff] %v7021
    %7534 = vst [vmem:[#allocation7 + $0x38] sm:$0xff] %v7022
    %7535 = vst [vmem:[#allocation7 + $0x40] sm:$0xff] %v7023
    %7536 = vst [vmem:[#allocation7 + $0x48] sm:$0xff] %v7024
    %7537 = vst [vmem:[#allocation7 + $0x50] sm:$0xff] %v7025
    %7538 = vst [vmem:[#allocation7 + $0x58] sm:$0xff] %v7026
    %7539 = vst [vmem:[#allocation7 + $0x60] sm:$0xff] %v7027
    %7540 = vst [vmem:[#allocation7 + $0x68] sm:$0xff] %v7028
    %7541 = vst [vmem:[#allocation7 + $0x70] sm:$0xff] %v7029
    %7542 = vst [vmem:[#allocation7 + $0x78] sm:$0xff] %v7030
    %7543 = vst [vmem:[#allocation7 + $0x80] sm:$0xff] %v7031
    %7544 = vst [vmem:[#allocation7 + $0x88] sm:$0xff] %v7032
    %7545 = vst [vmem:[#allocation7 + $0x90] sm:$0xff] %v7033
    %7546 = vst [vmem:[#allocation7 + $0x98] sm:$0xff] %v7034
    %7547 = vst [vmem:[#allocation7 + $0xa0] sm:$0xff] %v7035
    %7548 = vst [vmem:[#allocation7 + $0xa8] sm:$0xff] %v7036
    %7549 = vst [vmem:[#allocation7 + $0xb0] sm:$0xff] %v7037
    %7550 = vst [vmem:[#allocation7 + $0xb8] sm:$0xff] %v7038
    %7551 = vst [vmem:[#allocation7 + $0xc0] sm:$0xff] %v7039
    %7552 = vst [vmem:[#allocation7 + $0xc8] sm:$0xff] %v7040
    %7553 = vst [vmem:[#allocation7 + $0xd0] sm:$0xff] %v7041
    %7554 = vst [vmem:[#allocation7 + $0xd8] sm:$0xff] %v7042
    %7555 = vst [vmem:[#allocation7 + $0xe0] sm:$0xff] %v7043
    %7556 = vst [vmem:[#allocation7 + $0xe8] sm:$0xff] %v7044
    %7557 = vst [vmem:[#allocation7 + $0xf0] sm:$0xff] %v7045
    %7558 = vst [vmem:[#allocation7 + $0xf8] sm:$0xff] %v7046
    %7559 = vst [vmem:[#allocation7 + $0x100] sm:$0xff] %v7047
    %7560 = vst [vmem:[#allocation7 + $0x108] sm:$0xff] %v7048
    %7561 = vst [vmem:[#allocation7 + $0x110] sm:$0xff] %v7049
    %7562 = vst [vmem:[#allocation7 + $0x118] sm:$0xff] %v7050
    %7563 = vst [vmem:[#allocation7 + $0x120] sm:$0xff] %v7051
    %7564 = vst [vmem:[#allocation7 + $0x128] sm:$0xff] %v7052
    %7565 = vst [vmem:[#allocation7 + $0x130] sm:$0xff] %v7053
    %7566 = vst [vmem:[#allocation7 + $0x138] sm:$0xff] %v7054
    %7567 = vst [vmem:[#allocation7 + $0x140] sm:$0xff] %v7055
    %7568 = vst [vmem:[#allocation7 + $0x148] sm:$0xff] %v7056
    %7569 = vst [vmem:[#allocation7 + $0x150] sm:$0xff] %v7057
    %7570 = vst [vmem:[#allocation7 + $0x158] sm:$0xff] %v7058
    %7571 = vst [vmem:[#allocation7 + $0x160] sm:$0xff] %v7059
    %7572 = vst [vmem:[#allocation7 + $0x168] sm:$0xff] %v7060
    %7573 = vst [vmem:[#allocation7 + $0x170] sm:$0xff] %v7061
    %7574 = vst [vmem:[#allocation7 + $0x178] sm:$0xff] %v7062
    %7575 = vst [vmem:[#allocation7 + $0x180] sm:$0xff] %v7063
    %7576 = vst [vmem:[#allocation7 + $0x188] sm:$0xff] %v7064
    %7577 = vst [vmem:[#allocation7 + $0x190] sm:$0xff] %v7065
    %7578 = vst [vmem:[#allocation7 + $0x198] sm:$0xff] %v7066
    %7579 = vst [vmem:[#allocation7 + $0x1a0] sm:$0xff] %v7067
    %7580 = vst [vmem:[#allocation7 + $0x1a8] sm:$0xff] %v7068
    %7581 = vst [vmem:[#allocation7 + $0x1b0] sm:$0xff] %v7069
    %7582 = vst [vmem:[#allocation7 + $0x1b8] sm:$0xff] %v7070
    %7583 = vst [vmem:[#allocation7 + $0x1c0] sm:$0xff] %v7071
    %7584 = vst [vmem:[#allocation7 + $0x1c8] sm:$0xff] %v7072
    %7585 = vst [vmem:[#allocation7 + $0x1d0] sm:$0xff] %v7073
    %7586 = vst [vmem:[#allocation7 + $0x1d8] sm:$0xff] %v7074
    %7587 = vst [vmem:[#allocation7 + $0x1e0] sm:$0xff] %v7075
    %7588 = vst [vmem:[#allocation7 + $0x1e8] sm:$0xff] %v7076
    %7589 = vst [vmem:[#allocation7 + $0x1f0] sm:$0xff] %v7077
    %7590 = vst [vmem:[#allocation7 + $0x1f8] sm:$0xff] %v7078
    %7591 = vst [vmem:[#allocation7 + $0x200] sm:$0xff] %v7079
    %7592 = vst [vmem:[#allocation7 + $0x208] sm:$0xff] %v7080
    %7593 = vst [vmem:[#allocation7 + $0x210] sm:$0xff] %v7081
    %7594 = vst [vmem:[#allocation7 + $0x218] sm:$0xff] %v7082
    %7595 = vst [vmem:[#allocation7 + $0x220] sm:$0xff] %v7083
    %7596 = vst [vmem:[#allocation7 + $0x228] sm:$0xff] %v7084
    %7597 = vst [vmem:[#allocation7 + $0x230] sm:$0xff] %v7085
    %7598 = vst [vmem:[#allocation7 + $0x238] sm:$0xff] %v7086
    %7599 = vst [vmem:[#allocation7 + $0x240] sm:$0xff] %v7087
    %7600 = vst [vmem:[#allocation7 + $0x248] sm:$0xff] %v7088
    %7601 = vst [vmem:[#allocation7 + $0x250] sm:$0xff] %v7089
    %7602 = vst [vmem:[#allocation7 + $0x258] sm:$0xff] %v7090
    %7603 = vst [vmem:[#allocation7 + $0x260] sm:$0xff] %v7091
    %7604 = vst [vmem:[#allocation7 + $0x268] sm:$0xff] %v7092
    %7605 = vst [vmem:[#allocation7 + $0x270] sm:$0xff] %v7093
    %7606 = vst [vmem:[#allocation7 + $0x278] sm:$0xff] %v7094
    %7607 = vst [vmem:[#allocation7 + $0x280] sm:$0xff] %v7095
    %7608 = vst [vmem:[#allocation7 + $0x288] sm:$0xff] %v7096
    %7609 = vst [vmem:[#allocation7 + $0x290] sm:$0xff] %v7097
    %7610 = vst [vmem:[#allocation7 + $0x298] sm:$0xff] %v7098
    %7611 = vst [vmem:[#allocation7 + $0x2a0] sm:$0xff] %v7099
    %7612 = vst [vmem:[#allocation7 + $0x2a8] sm:$0xff] %v7100
    %7613 = vst [vmem:[#allocation7 + $0x2b0] sm:$0xff] %v7101
    %7614 = vst [vmem:[#allocation7 + $0x2b8] sm:$0xff] %v7102
    %7615 = vst [vmem:[#allocation7 + $0x2c0] sm:$0xff] %v7103
    %7616 = vst [vmem:[#allocation7 + $0x2c8] sm:$0xff] %v7104
    %7617 = vst [vmem:[#allocation7 + $0x2d0] sm:$0xff] %v7105
    %7618 = vst [vmem:[#allocation7 + $0x2d8] sm:$0xff] %v7106
    %7619 = vst [vmem:[#allocation7 + $0x2e0] sm:$0xff] %v7107
    %7620 = vst [vmem:[#allocation7 + $0x2e8] sm:$0xff] %v7108
    %7621 = vst [vmem:[#allocation7 + $0x2f0] sm:$0xff] %v7109
    %7622 = vst [vmem:[#allocation7 + $0x2f8] sm:$0xff] %v7110
    %7623 = vst [vmem:[#allocation7 + $0x300] sm:$0xff] %v7111
    %7624 = vst [vmem:[#allocation7 + $0x308] sm:$0xff] %v7112
    %7625 = vst [vmem:[#allocation7 + $0x310] sm:$0xff] %v7113
    %7626 = vst [vmem:[#allocation7 + $0x318] sm:$0xff] %v7114
    %7627 = vst [vmem:[#allocation7 + $0x320] sm:$0xff] %v7115
    %7628 = vst [vmem:[#allocation7 + $0x328] sm:$0xff] %v7116
    %7629 = vst [vmem:[#allocation7 + $0x330] sm:$0xff] %v7117
    %7630 = vst [vmem:[#allocation7 + $0x338] sm:$0xff] %v7118
    %7631 = vst [vmem:[#allocation7 + $0x340] sm:$0xff] %v7119
    %7632 = vst [vmem:[#allocation7 + $0x348] sm:$0xff] %v7120
    %7633 = vst [vmem:[#allocation7 + $0x350] sm:$0xff] %v7121
    %7634 = vst [vmem:[#allocation7 + $0x358] sm:$0xff] %v7122
    %7635 = vst [vmem:[#allocation7 + $0x360] sm:$0xff] %v7123
    %7636 = vst [vmem:[#allocation7 + $0x368] sm:$0xff] %v7124
    %7637 = vst [vmem:[#allocation7 + $0x370] sm:$0xff] %v7125
    %7638 = vst [vmem:[#allocation7 + $0x378] sm:$0xff] %v7126
    %7639 = vst [vmem:[#allocation7 + $0x380] sm:$0xff] %v7127
    %7640 = vst [vmem:[#allocation7 + $0x388] sm:$0xff] %v7128
    %7641 = vst [vmem:[#allocation7 + $0x390] sm:$0xff] %v7129
    %7642 = vst [vmem:[#allocation7 + $0x398] sm:$0xff] %v7130
    %7643 = vst [vmem:[#allocation7 + $0x3a0] sm:$0xff] %v7131
    %7644 = vst [vmem:[#allocation7 + $0x3a8] sm:$0xff] %v7132
    %7645 = vst [vmem:[#allocation7 + $0x3b0] sm:$0xff] %v7133
    %7646 = vst [vmem:[#allocation7 + $0x3b8] sm:$0xff] %v7134
    %7647 = vst [vmem:[#allocation7 + $0x3c0] sm:$0xff] %v7135
    %7648 = vst [vmem:[#allocation7 + $0x3c8] sm:$0xff] %v7136
    %7649 = vst [vmem:[#allocation7 + $0x3d0] sm:$0xff] %v7137
    %7650 = vst [vmem:[#allocation7 + $0x3d8] sm:$0xff] %v7138
    %7651 = vst [vmem:[#allocation7 + $0x3e0] sm:$0xff] %v7139
    %7652 = vst [vmem:[#allocation7 + $0x3e8] sm:$0xff] %v7140
    %7653 = vst [vmem:[#allocation7 + $0x3f0] sm:$0xff] %v7141
    %7654 = vst [vmem:[#allocation7 + $0x3f8] sm:$0xff] %v7142
    %7655 = vst [vmem:[#allocation7 + $0x400] sm:$0xff] %v7143
    %7656 = vst [vmem:[#allocation7 + $0x408] sm:$0xff] %v7144
    %7657 = vst [vmem:[#allocation7 + $0x410] sm:$0xff] %v7145
    %7658 = vst [vmem:[#allocation7 + $0x418] sm:$0xff] %v7146
    %7659 = vst [vmem:[#allocation7 + $0x420] sm:$0xff] %v7147
    %7660 = vst [vmem:[#allocation7 + $0x428] sm:$0xff] %v7148
    %7661 = vst [vmem:[#allocation7 + $0x430] sm:$0xff] %v7149
    %7662 = vst [vmem:[#allocation7 + $0x438] sm:$0xff] %v7150
    %7663 = vst [vmem:[#allocation7 + $0x440] sm:$0xff] %v7151
    %7664 = vst [vmem:[#allocation7 + $0x448] sm:$0xff] %v7152
    %7665 = vst [vmem:[#allocation7 + $0x450] sm:$0xff] %v7153
    %7666 = vst [vmem:[#allocation7 + $0x458] sm:$0xff] %v7154
    %7667 = vst [vmem:[#allocation7 + $0x460] sm:$0xff] %v7155
    %7668 = vst [vmem:[#allocation7 + $0x468] sm:$0xff] %v7156
    %7669 = vst [vmem:[#allocation7 + $0x470] sm:$0xff] %v7157
    %7670 = vst [vmem:[#allocation7 + $0x478] sm:$0xff] %v7158
    %7671 = vst [vmem:[#allocation7 + $0x480] sm:$0xff] %v7159
    %7672 = vst [vmem:[#allocation7 + $0x488] sm:$0xff] %v7160
    %7673 = vst [vmem:[#allocation7 + $0x490] sm:$0xff] %v7161
    %7674 = vst [vmem:[#allocation7 + $0x498] sm:$0xff] %v7162
    %7675 = vst [vmem:[#allocation7 + $0x4a0] sm:$0xff] %v7163
    %7676 = vst [vmem:[#allocation7 + $0x4a8] sm:$0xff] %v7164
    %7677 = vst [vmem:[#allocation7 + $0x4b0] sm:$0xff] %v7165
    %7678 = vst [vmem:[#allocation7 + $0x4b8] sm:$0xff] %v7166
    %7679 = vst [vmem:[#allocation7 + $0x4c0] sm:$0xff] %v7167
    %7680 = vst [vmem:[#allocation7 + $0x4c8] sm:$0xff] %v7168
    %7681 = vst [vmem:[#allocation7 + $0x4d0] sm:$0xff] %v7169
    %7682 = vst [vmem:[#allocation7 + $0x4d8] sm:$0xff] %v7170
    %7683 = vst [vmem:[#allocation7 + $0x4e0] sm:$0xff] %v7171
    %7684 = vst [vmem:[#allocation7 + $0x4e8] sm:$0xff] %v7172
    %7685 = vst [vmem:[#allocation7 + $0x4f0] sm:$0xff] %v7173
    %7686 = vst [vmem:[#allocation7 + $0x4f8] sm:$0xff] %v7174
    %7687 = vst [vmem:[#allocation7 + $0x500] sm:$0xff] %v7175
    %7688 = vst [vmem:[#allocation7 + $0x508] sm:$0xff] %v7176
    %7689 = vst [vmem:[#allocation7 + $0x510] sm:$0xff] %v7177
    %7690 = vst [vmem:[#allocation7 + $0x518] sm:$0xff] %v7178
    %7691 = vst [vmem:[#allocation7 + $0x520] sm:$0xff] %v7179
    %7692 = vst [vmem:[#allocation7 + $0x528] sm:$0xff] %v7180
    %7693 = vst [vmem:[#allocation7 + $0x530] sm:$0xff] %v7181
    %7694 = vst [vmem:[#allocation7 + $0x538] sm:$0xff] %v7182
    %7695 = vst [vmem:[#allocation7 + $0x540] sm:$0xff] %v7183
    %7696 = vst [vmem:[#allocation7 + $0x548] sm:$0xff] %v7184
    %7697 = vst [vmem:[#allocation7 + $0x550] sm:$0xff] %v7185
    %7698 = vst [vmem:[#allocation7 + $0x558] sm:$0xff] %v7186
    %7699 = vst [vmem:[#allocation7 + $0x560] sm:$0xff] %v7187
    %7700 = vst [vmem:[#allocation7 + $0x568] sm:$0xff] %v7188
    %7701 = vst [vmem:[#allocation7 + $0x570] sm:$0xff] %v7189
    %7702 = vst [vmem:[#allocation7 + $0x578] sm:$0xff] %v7190
    %7703 = vst [vmem:[#allocation7 + $0x580] sm:$0xff] %v7191
    %7704 = vst [vmem:[#allocation7 + $0x588] sm:$0xff] %v7192
    %7705 = vst [vmem:[#allocation7 + $0x590] sm:$0xff] %v7193
    %7706 = vst [vmem:[#allocation7 + $0x598] sm:$0xff] %v7194
    %7707 = vst [vmem:[#allocation7 + $0x5a0] sm:$0xff] %v7195
    %7708 = vst [vmem:[#allocation7 + $0x5a8] sm:$0xff] %v7196
    %7709 = vst [vmem:[#allocation7 + $0x5b0] sm:$0xff] %v7197
    %7710 = vst [vmem:[#allocation7 + $0x5b8] sm:$0xff] %v7198
    %7711 = vst [vmem:[#allocation7 + $0x5c0] sm:$0xff] %v7199
    %7712 = vst [vmem:[#allocation7 + $0x5c8] sm:$0xff] %v7200
    %7713 = vst [vmem:[#allocation7 + $0x5d0] sm:$0xff] %v7201
    %7714 = vst [vmem:[#allocation7 + $0x5d8] sm:$0xff] %v7202
    %7715 = vst [vmem:[#allocation7 + $0x5e0] sm:$0xff] %v7203
    %7716 = vst [vmem:[#allocation7 + $0x5e8] sm:$0xff] %v7204
    %7717 = vst [vmem:[#allocation7 + $0x5f0] sm:$0xff] %v7205
    %7718 = vst [vmem:[#allocation7 + $0x5f8] sm:$0xff] %v7206
    %7719 = vst [vmem:[#allocation7 + $0x600] sm:$0xff] %v7207
    %7720 = vst [vmem:[#allocation7 + $0x608] sm:$0xff] %v7208
    %7721 = vst [vmem:[#allocation7 + $0x610] sm:$0xff] %v7209
    %7722 = vst [vmem:[#allocation7 + $0x618] sm:$0xff] %v7210
    %7723 = vst [vmem:[#allocation7 + $0x620] sm:$0xff] %v7211
    %7724 = vst [vmem:[#allocation7 + $0x628] sm:$0xff] %v7212
    %7725 = vst [vmem:[#allocation7 + $0x630] sm:$0xff] %v7213
    %7726 = vst [vmem:[#allocation7 + $0x638] sm:$0xff] %v7214
    %7727 = vst [vmem:[#allocation7 + $0x640] sm:$0xff] %v7215
    %7728 = vst [vmem:[#allocation7 + $0x648] sm:$0xff] %v7216
    %7729 = vst [vmem:[#allocation7 + $0x650] sm:$0xff] %v7217
    %7730 = vst [vmem:[#allocation7 + $0x658] sm:$0xff] %v7218
    %7731 = vst [vmem:[#allocation7 + $0x660] sm:$0xff] %v7219
    %7732 = vst [vmem:[#allocation7 + $0x668] sm:$0xff] %v7220
    %7733 = vst [vmem:[#allocation7 + $0x670] sm:$0xff] %v7221
    %7734 = vst [vmem:[#allocation7 + $0x678] sm:$0xff] %v7222
    %7735 = vst [vmem:[#allocation7 + $0x680] sm:$0xff] %v7223
    %7736 = vst [vmem:[#allocation7 + $0x688] sm:$0xff] %v7224
    %7737 = vst [vmem:[#allocation7 + $0x690] sm:$0xff] %v7225
    %7738 = vst [vmem:[#allocation7 + $0x698] sm:$0xff] %v7226
    %7739 = vst [vmem:[#allocation7 + $0x6a0] sm:$0xff] %v7227
    %7740 = vst [vmem:[#allocation7 + $0x6a8] sm:$0xff] %v7228
    %7741 = vst [vmem:[#allocation7 + $0x6b0] sm:$0xff] %v7229
    %7742 = vst [vmem:[#allocation7 + $0x6b8] sm:$0xff] %v7230
    %7743 = vst [vmem:[#allocation7 + $0x6c0] sm:$0xff] %v7231
    %7744 = vst [vmem:[#allocation7 + $0x6c8] sm:$0xff] %v7232
    %7745 = vst [vmem:[#allocation7 + $0x6d0] sm:$0xff] %v7233
    %7746 = vst [vmem:[#allocation7 + $0x6d8] sm:$0xff] %v7234
    %7747 = vst [vmem:[#allocation7 + $0x6e0] sm:$0xff] %v7235
    %7748 = vst [vmem:[#allocation7 + $0x6e8] sm:$0xff] %v7236
    %7749 = vst [vmem:[#allocation7 + $0x6f0] sm:$0xff] %v7237
    %7750 = vst [vmem:[#allocation7 + $0x6f8] sm:$0xff] %v7238
    %7751 = vst [vmem:[#allocation7 + $0x700] sm:$0xff] %v7239
    %7752 = vst [vmem:[#allocation7 + $0x708] sm:$0xff] %v7240
    %7753 = vst [vmem:[#allocation7 + $0x710] sm:$0xff] %v7241
    %7754 = vst [vmem:[#allocation7 + $0x718] sm:$0xff] %v7242
    %7755 = vst [vmem:[#allocation7 + $0x720] sm:$0xff] %v7243
    %7756 = vst [vmem:[#allocation7 + $0x728] sm:$0xff] %v7244
    %7757 = vst [vmem:[#allocation7 + $0x730] sm:$0xff] %v7245
    %7758 = vst [vmem:[#allocation7 + $0x738] sm:$0xff] %v7246
    %7759 = vst [vmem:[#allocation7 + $0x740] sm:$0xff] %v7247
    %7760 = vst [vmem:[#allocation7 + $0x748] sm:$0xff] %v7248
    %7761 = vst [vmem:[#allocation7 + $0x750] sm:$0xff] %v7249
    %7762 = vst [vmem:[#allocation7 + $0x758] sm:$0xff] %v7250
    %7763 = vst [vmem:[#allocation7 + $0x760] sm:$0xff] %v7251
    %7764 = vst [vmem:[#allocation7 + $0x768] sm:$0xff] %v7252
    %7765 = vst [vmem:[#allocation7 + $0x770] sm:$0xff] %v7253
    %7766 = vst [vmem:[#allocation7 + $0x778] sm:$0xff] %v7254
    %7767 = vst [vmem:[#allocation7 + $0x780] sm:$0xff] %v7255
    %7768 = vst [vmem:[#allocation7 + $0x788] sm:$0xff] %v7256
    %7769 = vst [vmem:[#allocation7 + $0x790] sm:$0xff] %v7257
    %7770 = vst [vmem:[#allocation7 + $0x798] sm:$0xff] %v7258
    %7771 = vst [vmem:[#allocation7 + $0x7a0] sm:$0xff] %v7259
    %7772 = vst [vmem:[#allocation7 + $0x7a8] sm:$0xff] %v7260
    %7773 = vst [vmem:[#allocation7 + $0x7b0] sm:$0xff] %v7261
    %7774 = vst [vmem:[#allocation7 + $0x7b8] sm:$0xff] %v7262
    %7775 = vst [vmem:[#allocation7 + $0x7c0] sm:$0xff] %v7263
    %7776 = vst [vmem:[#allocation7 + $0x7c8] sm:$0xff] %v7264
    %7777 = vst [vmem:[#allocation7 + $0x7d0] sm:$0xff] %v7265
    %7778 = vst [vmem:[#allocation7 + $0x7d8] sm:$0xff] %v7266
    %7779 = vst [vmem:[#allocation7 + $0x7e0] sm:$0xff] %v7267
    %7780 = vst [vmem:[#allocation7 + $0x7e8] sm:$0xff] %v7268
    %7781 = vst [vmem:[#allocation7 + $0x7f0] sm:$0xff] %v7269
    %7782 = vst [vmem:[#allocation7 + $0x7f8] sm:$0xff] %v7270
    %7783 = vst [vmem:[#allocation7 + $0x800] sm:$0xff] %v7271
    %7784 = vst [vmem:[#allocation7 + $0x808] sm:$0xff] %v7272
    %7785 = vst [vmem:[#allocation7 + $0x810] sm:$0xff] %v7273
    %7786 = vst [vmem:[#allocation7 + $0x818] sm:$0xff] %v7274
    %7787 = vst [vmem:[#allocation7 + $0x820] sm:$0xff] %v7275
    %7788 = vst [vmem:[#allocation7 + $0x828] sm:$0xff] %v7276
    %7789 = vst [vmem:[#allocation7 + $0x830] sm:$0xff] %v7277
    %7790 = vst [vmem:[#allocation7 + $0x838] sm:$0xff] %v7278
    %7791 = vst [vmem:[#allocation7 + $0x840] sm:$0xff] %v7279
    %7792 = vst [vmem:[#allocation7 + $0x848] sm:$0xff] %v7280
    %7793 = vst [vmem:[#allocation7 + $0x850] sm:$0xff] %v7281
    %7794 = vst [vmem:[#allocation7 + $0x858] sm:$0xff] %v7282
    %7795 = vst [vmem:[#allocation7 + $0x860] sm:$0xff] %v7283
    %7796 = vst [vmem:[#allocation7 + $0x868] sm:$0xff] %v7284
    %7797 = vst [vmem:[#allocation7 + $0x870] sm:$0xff] %v7285
    %7798 = vst [vmem:[#allocation7 + $0x878] sm:$0xff] %v7286
    %7799 = vst [vmem:[#allocation7 + $0x880] sm:$0xff] %v7287
    %7800 = vst [vmem:[#allocation7 + $0x888] sm:$0xff] %v7288
    %7801 = vst [vmem:[#allocation7 + $0x890] sm:$0xff] %v7289
    %7802 = vst [vmem:[#allocation7 + $0x898] sm:$0xff] %v7290
    %7803 = vst [vmem:[#allocation7 + $0x8a0] sm:$0xff] %v7291
    %7804 = vst [vmem:[#allocation7 + $0x8a8] sm:$0xff] %v7292
    %7805 = vst [vmem:[#allocation7 + $0x8b0] sm:$0xff] %v7293
    %7806 = vst [vmem:[#allocation7 + $0x8b8] sm:$0xff] %v7294
    %7807 = vst [vmem:[#allocation7 + $0x8c0] sm:$0xff] %v7295
    %7808 = vst [vmem:[#allocation7 + $0x8c8] sm:$0xff] %v7296
    %7809 = vst [vmem:[#allocation7 + $0x8d0] sm:$0xff] %v7297
    %7810 = vst [vmem:[#allocation7 + $0x8d8] sm:$0xff] %v7298
    %7811 = vst [vmem:[#allocation7 + $0x8e0] sm:$0xff] %v7299
    %7812 = vst [vmem:[#allocation7 + $0x8e8] sm:$0xff] %v7300
    %7813 = vst [vmem:[#allocation7 + $0x8f0] sm:$0xff] %v7301
    %7814 = vst [vmem:[#allocation7 + $0x8f8] sm:$0xff] %v7302
    %7815 = vst [vmem:[#allocation7 + $0x900] sm:$0xff] %v7303
    %7816 = vst [vmem:[#allocation7 + $0x908] sm:$0xff] %v7304
    %7817 = vst [vmem:[#allocation7 + $0x910] sm:$0xff] %v7305
    %7818 = vst [vmem:[#allocation7 + $0x918] sm:$0xff] %v7306
    %7819 = vst [vmem:[#allocation7 + $0x920] sm:$0xff] %v7307
    %7820 = vst [vmem:[#allocation7 + $0x928] sm:$0xff] %v7308
    %7821 = vst [vmem:[#allocation7 + $0x930] sm:$0xff] %v7309
    %7822 = vst [vmem:[#allocation7 + $0x938] sm:$0xff] %v7310
    %7823 = vst [vmem:[#allocation7 + $0x940] sm:$0xff] %v7311
    %7824 = vst [vmem:[#allocation7 + $0x948] sm:$0xff] %v7312
    %7825 = vst [vmem:[#allocation7 + $0x950] sm:$0xff] %v7313
    %7826 = vst [vmem:[#allocation7 + $0x958] sm:$0xff] %v7314
    %7827 = vst [vmem:[#allocation7 + $0x960] sm:$0xff] %v7315
    %7828 = vst [vmem:[#allocation7 + $0x968] sm:$0xff] %v7316
    %7829 = vst [vmem:[#allocation7 + $0x970] sm:$0xff] %v7317
    %7830 = vst [vmem:[#allocation7 + $0x978] sm:$0xff] %v7318
    %7831 = vst [vmem:[#allocation7 + $0x980] sm:$0xff] %v7319
    %7832 = vst [vmem:[#allocation7 + $0x988] sm:$0xff] %v7320
    %7833 = vst [vmem:[#allocation7 + $0x990] sm:$0xff] %v7321
    %7834 = vst [vmem:[#allocation7 + $0x998] sm:$0xff] %v7322
    %7835 = vst [vmem:[#allocation7 + $0x9a0] sm:$0xff] %v7323
    %7836 = vst [vmem:[#allocation7 + $0x9a8] sm:$0xff] %v7324
    %7837 = vst [vmem:[#allocation7 + $0x9b0] sm:$0xff] %v7325
    %7838 = vst [vmem:[#allocation7 + $0x9b8] sm:$0xff] %v7326
    %7839 = vst [vmem:[#allocation7 + $0x9c0] sm:$0xff] %v7327
    %7840 = vst [vmem:[#allocation7 + $0x9c8] sm:$0xff] %v7328
    %7841 = vst [vmem:[#allocation7 + $0x9d0] sm:$0xff] %v7329
    %7842 = vst [vmem:[#allocation7 + $0x9d8] sm:$0xff] %v7330
    %7843 = vst [vmem:[#allocation7 + $0x9e0] sm:$0xff] %v7331
    %7844 = vst [vmem:[#allocation7 + $0x9e8] sm:$0xff] %v7332
    %7845 = vst [vmem:[#allocation7 + $0x9f0] sm:$0xff] %v7333
    %7846 = vst [vmem:[#allocation7 + $0x9f8] sm:$0xff] %v7334
    %7847 = vst [vmem:[#allocation7 + $0xa00] sm:$0xff] %v7335
    %7848 = vst [vmem:[#allocation7 + $0xa08] sm:$0xff] %v7336
    %7849 = vst [vmem:[#allocation7 + $0xa10] sm:$0xff] %v7337
    %7850 = vst [vmem:[#allocation7 + $0xa18] sm:$0xff] %v7338
    %7851 = vst [vmem:[#allocation7 + $0xa20] sm:$0xff] %v7339
    %7852 = vst [vmem:[#allocation7 + $0xa28] sm:$0xff] %v7340
    %7853 = vst [vmem:[#allocation7 + $0xa30] sm:$0xff] %v7341
    %7854 = vst [vmem:[#allocation7 + $0xa38] sm:$0xff] %v7342
    %7855 = vst [vmem:[#allocation7 + $0xa40] sm:$0xff] %v7343
    %7856 = vst [vmem:[#allocation7 + $0xa48] sm:$0xff] %v7344
    %7857 = vst [vmem:[#allocation7 + $0xa50] sm:$0xff] %v7345
    %7858 = vst [vmem:[#allocation7 + $0xa58] sm:$0xff] %v7346
    %7859 = vst [vmem:[#allocation7 + $0xa60] sm:$0xff] %v7347
    %7860 = vst [vmem:[#allocation7 + $0xa68] sm:$0xff] %v7348
    %7861 = vst [vmem:[#allocation7 + $0xa70] sm:$0xff] %v7349
    %7862 = vst [vmem:[#allocation7 + $0xa78] sm:$0xff] %v7350
    %7863 = vst [vmem:[#allocation7 + $0xa80] sm:$0xff] %v7351
    %7864 = vst [vmem:[#allocation7 + $0xa88] sm:$0xff] %v7352
    %7865 = vst [vmem:[#allocation7 + $0xa90] sm:$0xff] %v7353
    %7866 = vst [vmem:[#allocation7 + $0xa98] sm:$0xff] %v7354
    %7867 = vst [vmem:[#allocation7 + $0xaa0] sm:$0xff] %v7355
    %7868 = vst [vmem:[#allocation7 + $0xaa8] sm:$0xff] %v7356
    %7869 = vst [vmem:[#allocation7 + $0xab0] sm:$0xff] %v7357
    %7870 = vst [vmem:[#allocation7 + $0xab8] sm:$0xff] %v7358
    %7871 = vst [vmem:[#allocation7 + $0xac0] sm:$0xff] %v7359
    %7872 = vst [vmem:[#allocation7 + $0xac8] sm:$0xff] %v7360
    %7873 = vst [vmem:[#allocation7 + $0xad0] sm:$0xff] %v7361
    %7874 = vst [vmem:[#allocation7 + $0xad8] sm:$0xff] %v7362
    %7875 = vst [vmem:[#allocation7 + $0xae0] sm:$0xff] %v7363
    %7876 = vst [vmem:[#allocation7 + $0xae8] sm:$0xff] %v7364
    %7877 = vst [vmem:[#allocation7 + $0xaf0] sm:$0xff] %v7365
    %7878 = vst [vmem:[#allocation7 + $0xaf8] sm:$0xff] %v7366
    %7879 = vst [vmem:[#allocation7 + $0xb00] sm:$0xff] %v7367
    %7880 = vst [vmem:[#allocation7 + $0xb08] sm:$0xff] %v7368
    %7881 = vst [vmem:[#allocation7 + $0xb10] sm:$0xff] %v7369
    %7882 = vst [vmem:[#allocation7 + $0xb18] sm:$0xff] %v7370
    %7883 = vst [vmem:[#allocation7 + $0xb20] sm:$0xff] %v7371
    %7884 = vst [vmem:[#allocation7 + $0xb28] sm:$0xff] %v7372
    %7885 = vst [vmem:[#allocation7 + $0xb30] sm:$0xff] %v7373
    %7886 = vst [vmem:[#allocation7 + $0xb38] sm:$0xff] %v7374
    %7887 = vst [vmem:[#allocation7 + $0xb40] sm:$0xff] %v7375
    %7888 = vst [vmem:[#allocation7 + $0xb48] sm:$0xff] %v7376
    %7889 = vst [vmem:[#allocation7 + $0xb50] sm:$0xff] %v7377
    %7890 = vst [vmem:[#allocation7 + $0xb58] sm:$0xff] %v7378
    %7891 = vst [vmem:[#allocation7 + $0xb60] sm:$0xff] %v7379
    %7892 = vst [vmem:[#allocation7 + $0xb68] sm:$0xff] %v7380
    %7893 = vst [vmem:[#allocation7 + $0xb70] sm:$0xff] %v7381
    %7894 = vst [vmem:[#allocation7 + $0xb78] sm:$0xff] %v7382
    %7895 = vst [vmem:[#allocation7 + $0xb80] sm:$0xff] %v7383
    %7896 = vst [vmem:[#allocation7 + $0xb88] sm:$0xff] %v7384
    %7897 = vst [vmem:[#allocation7 + $0xb90] sm:$0xff] %v7385
    %7898 = vst [vmem:[#allocation7 + $0xb98] sm:$0xff] %v7386
    %7899 = vst [vmem:[#allocation7 + $0xba0] sm:$0xff] %v7387
    %7900 = vst [vmem:[#allocation7 + $0xba8] sm:$0xff] %v7388
    %7901 = vst [vmem:[#allocation7 + $0xbb0] sm:$0xff] %v7389
    %7902 = vst [vmem:[#allocation7 + $0xbb8] sm:$0xff] %v7390
    %7903 = vst [vmem:[#allocation7 + $0xbc0] sm:$0xff] %v7391
    %7904 = vst [vmem:[#allocation7 + $0xbc8] sm:$0xff] %v7392
    %7905 = vst [vmem:[#allocation7 + $0xbd0] sm:$0xff] %v7393
    %7906 = vst [vmem:[#allocation7 + $0xbd8] sm:$0xff] %v7394
    %7907 = vst [vmem:[#allocation7 + $0xbe0] sm:$0xff] %v7395
    %7908 = vst [vmem:[#allocation7 + $0xbe8] sm:$0xff] %v7396
    %7909 = vst [vmem:[#allocation7 + $0xbf0] sm:$0xff] %v7397
    %7910 = vst [vmem:[#allocation7 + $0xbf8] sm:$0xff] %v7398
    %7911 = vst [vmem:[#allocation7 + $0xc00] sm:$0xff] %v7399
    %7912 = vst [vmem:[#allocation7 + $0xc08] sm:$0xff] %v7400
    %7913 = vst [vmem:[#allocation7 + $0xc10] sm:$0xff] %v7401
    %7914 = vst [vmem:[#allocation7 + $0xc18] sm:$0xff] %v7402
    %7915 = vst [vmem:[#allocation7 + $0xc20] sm:$0xff] %v7403
    %7916 = vst [vmem:[#allocation7 + $0xc28] sm:$0xff] %v7404
    %7917 = vst [vmem:[#allocation7 + $0xc30] sm:$0xff] %v7405
    %7918 = vst [vmem:[#allocation7 + $0xc38] sm:$0xff] %v7406
    %7919 = vst [vmem:[#allocation7 + $0xc40] sm:$0xff] %v7407
    %7920 = vst [vmem:[#allocation7 + $0xc48] sm:$0xff] %v7408
    %7921 = vst [vmem:[#allocation7 + $0xc50] sm:$0xff] %v7409
    %7922 = vst [vmem:[#allocation7 + $0xc58] sm:$0xff] %v7410
    %7923 = vst [vmem:[#allocation7 + $0xc60] sm:$0xff] %v7411
    %7924 = vst [vmem:[#allocation7 + $0xc68] sm:$0xff] %v7412
    %7925 = vst [vmem:[#allocation7 + $0xc70] sm:$0xff] %v7413
    %7926 = vst [vmem:[#allocation7 + $0xc78] sm:$0xff] %v7414
    %7927 = vst [vmem:[#allocation7 + $0xc80] sm:$0xff] %v7415
    %7928 = vst [vmem:[#allocation7 + $0xc88] sm:$0xff] %v7416
    %7929 = vst [vmem:[#allocation7 + $0xc90] sm:$0xff] %v7417
    %7930 = vst [vmem:[#allocation7 + $0xc98] sm:$0xff] %v7418
    %7931 = vst [vmem:[#allocation7 + $0xca0] sm:$0xff] %v7419
    %7932 = vst [vmem:[#allocation7 + $0xca8] sm:$0xff] %v7420
    %7933 = vst [vmem:[#allocation7 + $0xcb0] sm:$0xff] %v7421
    %7934 = vst [vmem:[#allocation7 + $0xcb8] sm:$0xff] %v7422
    %7935 = vst [vmem:[#allocation7 + $0xcc0] sm:$0xff] %v7423
    %7936 = vst [vmem:[#allocation7 + $0xcc8] sm:$0xff] %v7424
    %7937 = vst [vmem:[#allocation7 + $0xcd0] sm:$0xff] %v7425
    %7938 = vst [vmem:[#allocation7 + $0xcd8] sm:$0xff] %v7426
    %7939 = vst [vmem:[#allocation7 + $0xce0] sm:$0xff] %v7427
    %7940 = vst [vmem:[#allocation7 + $0xce8] sm:$0xff] %v7428
    %7941 = vst [vmem:[#allocation7 + $0xcf0] sm:$0xff] %v7429
    %7942 = vst [vmem:[#allocation7 + $0xcf8] sm:$0xff] %v7430
    %7943 = vst [vmem:[#allocation7 + $0xd00] sm:$0xff] %v7431
    %7944 = vst [vmem:[#allocation7 + $0xd08] sm:$0xff] %v7432
    %7945 = vst [vmem:[#allocation7 + $0xd10] sm:$0xff] %v7433
    %7946 = vst [vmem:[#allocation7 + $0xd18] sm:$0xff] %v7434
    %7947 = vst [vmem:[#allocation7 + $0xd20] sm:$0xff] %v7435
    %7948 = vst [vmem:[#allocation7 + $0xd28] sm:$0xff] %v7436
    %7949 = vst [vmem:[#allocation7 + $0xd30] sm:$0xff] %v7437
    %7950 = vst [vmem:[#allocation7 + $0xd38] sm:$0xff] %v7438
    %7951 = vst [vmem:[#allocation7 + $0xd40] sm:$0xff] %v7439
    %7952 = vst [vmem:[#allocation7 + $0xd48] sm:$0xff] %v7440
    %7953 = vst [vmem:[#allocation7 + $0xd50] sm:$0xff] %v7441
    %7954 = vst [vmem:[#allocation7 + $0xd58] sm:$0xff] %v7442
    %7955 = vst [vmem:[#allocation7 + $0xd60] sm:$0xff] %v7443
    %7956 = vst [vmem:[#allocation7 + $0xd68] sm:$0xff] %v7444
    %7957 = vst [vmem:[#allocation7 + $0xd70] sm:$0xff] %v7445
    %7958 = vst [vmem:[#allocation7 + $0xd78] sm:$0xff] %v7446
    %7959 = vst [vmem:[#allocation7 + $0xd80] sm:$0xff] %v7447
    %7960 = vst [vmem:[#allocation7 + $0xd88] sm:$0xff] %v7448
    %7961 = vst [vmem:[#allocation7 + $0xd90] sm:$0xff] %v7449
    %7962 = vst [vmem:[#allocation7 + $0xd98] sm:$0xff] %v7450
    %7963 = vst [vmem:[#allocation7 + $0xda0] sm:$0xff] %v7451
    %7964 = vst [vmem:[#allocation7 + $0xda8] sm:$0xff] %v7452
    %7965 = vst [vmem:[#allocation7 + $0xdb0] sm:$0xff] %v7453
    %7966 = vst [vmem:[#allocation7 + $0xdb8] sm:$0xff] %v7454
    %7967 = vst [vmem:[#allocation7 + $0xdc0] sm:$0xff] %v7455
    %7968 = vst [vmem:[#allocation7 + $0xdc8] sm:$0xff] %v7456
    %7969 = vst [vmem:[#allocation7 + $0xdd0] sm:$0xff] %v7457
    %7970 = vst [vmem:[#allocation7 + $0xdd8] sm:$0xff] %v7458
    %7971 = vst [vmem:[#allocation7 + $0xde0] sm:$0xff] %v7459
    %7972 = vst [vmem:[#allocation7 + $0xde8] sm:$0xff] %v7460
    %7973 = vst [vmem:[#allocation7 + $0xdf0] sm:$0xff] %v7461
    %7974 = vst [vmem:[#allocation7 + $0xdf8] sm:$0xff] %v7462
    %7975 = vst [vmem:[#allocation7 + $0xe00] sm:$0xff] %v7463
    %7976 = vst [vmem:[#allocation7 + $0xe08] sm:$0xff] %v7464
    %7977 = vst [vmem:[#allocation7 + $0xe10] sm:$0xff] %v7465
    %7978 = vst [vmem:[#allocation7 + $0xe18] sm:$0xff] %v7466
    %7979 = vst [vmem:[#allocation7 + $0xe20] sm:$0xff] %v7467
    %7980 = vst [vmem:[#allocation7 + $0xe28] sm:$0xff] %v7468
    %7981 = vst [vmem:[#allocation7 + $0xe30] sm:$0xff] %v7469
    %7982 = vst [vmem:[#allocation7 + $0xe38] sm:$0xff] %v7470
    %7983 = vst [vmem:[#allocation7 + $0xe40] sm:$0xff] %v7471
    %7984 = vst [vmem:[#allocation7 + $0xe48] sm:$0xff] %v7472
    %7985 = vst [vmem:[#allocation7 + $0xe50] sm:$0xff] %v7473
    %7986 = vst [vmem:[#allocation7 + $0xe58] sm:$0xff] %v7474
    %7987 = vst [vmem:[#allocation7 + $0xe60] sm:$0xff] %v7475
    %7988 = vst [vmem:[#allocation7 + $0xe68] sm:$0xff] %v7476
    %7989 = vst [vmem:[#allocation7 + $0xe70] sm:$0xff] %v7477
    %7990 = vst [vmem:[#allocation7 + $0xe78] sm:$0xff] %v7478
    %7991 = vst [vmem:[#allocation7 + $0xe80] sm:$0xff] %v7479
    %7992 = vst [vmem:[#allocation7 + $0xe88] sm:$0xff] %v7480
    %7993 = vst [vmem:[#allocation7 + $0xe90] sm:$0xff] %v7481
    %7994 = vst [vmem:[#allocation7 + $0xe98] sm:$0xff] %v7482
    %7995 = vst [vmem:[#allocation7 + $0xea0] sm:$0xff] %v7483
    %7996 = vst [vmem:[#allocation7 + $0xea8] sm:$0xff] %v7484
    %7997 = vst [vmem:[#allocation7 + $0xeb0] sm:$0xff] %v7485
    %7998 = vst [vmem:[#allocation7 + $0xeb8] sm:$0xff] %v7486
    %7999 = vst [vmem:[#allocation7 + $0xec0] sm:$0xff] %v7487
    %8000 = vst [vmem:[#allocation7 + $0xec8] sm:$0xff] %v7488
    %8001 = vst [vmem:[#allocation7 + $0xed0] sm:$0xff] %v7489
    %8002 = vst [vmem:[#allocation7 + $0xed8] sm:$0xff] %v7490
    %8003 = vst [vmem:[#allocation7 + $0xee0] sm:$0xff] %v7491
    %8004 = vst [vmem:[#allocation7 + $0xee8] sm:$0xff] %v7492
    %8005 = vst [vmem:[#allocation7 + $0xef0] sm:$0xff] %v7493
    %8006 = vst [vmem:[#allocation7 + $0xef8] sm:$0xff] %v7494
    %8007 = vst [vmem:[#allocation7 + $0xf00] sm:$0xff] %v7495
    %8008 = vst [vmem:[#allocation7 + $0xf08] sm:$0xff] %v7496
    %8009 = vst [vmem:[#allocation7 + $0xf10] sm:$0xff] %v7497
    %8010 = vst [vmem:[#allocation7 + $0xf18] sm:$0xff] %v7498
    %8011 = vst [vmem:[#allocation7 + $0xf20] sm:$0xff] %v7499
    %8012 = vst [vmem:[#allocation7 + $0xf28] sm:$0xff] %v7500
    %8013 = vst [vmem:[#allocation7 + $0xf30] sm:$0xff] %v7501
    %8014 = vst [vmem:[#allocation7 + $0xf38] sm:$0xff] %v7502
    %8015 = vst [vmem:[#allocation7 + $0xf40] sm:$0xff] %v7503
    %8016 = vst [vmem:[#allocation7 + $0xf48] sm:$0xff] %v7504
    %8017 = vst [vmem:[#allocation7 + $0xf50] sm:$0xff] %v7505
    %8018 = vst [vmem:[#allocation7 + $0xf58] sm:$0xff] %v7506
    %8019 = vst [vmem:[#allocation7 + $0xf60] sm:$0xff] %v7507
    %8020 = vst [vmem:[#allocation7 + $0xf68] sm:$0xff] %v7508
    %8021 = vst [vmem:[#allocation7 + $0xf70] sm:$0xff] %v7509
    %8022 = vst [vmem:[#allocation7 + $0xf78] sm:$0xff] %v7510
    %8023 = vst [vmem:[#allocation7 + $0xf80] sm:$0xff] %v7511
    %8024 = vst [vmem:[#allocation7 + $0xf88] sm:$0xff] %v7512
    %8025 = vst [vmem:[#allocation7 + $0xf90] sm:$0xff] %v7513
    %8026 = vst [vmem:[#allocation7 + $0xf98] sm:$0xff] %v7514
    %8027 = vst [vmem:[#allocation7 + $0xfa0] sm:$0xff] %v7515
    %8028 = vst [vmem:[#allocation7 + $0xfa8] sm:$0xff] %v7516
    %8029 = vst [vmem:[#allocation7 + $0xfb0] sm:$0xff] %v7517
    %8030 = vst [vmem:[#allocation7 + $0xfb8] sm:$0xff] %v7518
    %8031 = vst [vmem:[#allocation7 + $0xfc0] sm:$0xff] %v7519
    %8032 = vst [vmem:[#allocation7 + $0xfc8] sm:$0xff] %v7520
    %8033 = vst [vmem:[#allocation7 + $0xfd0] sm:$0xff] %v7521
    %8034 = vst [vmem:[#allocation7 + $0xfd8] sm:$0xff] %v7522
    %8035 = vst [vmem:[#allocation7 + $0xfe0] sm:$0xff] %v7523
    %8036 = vst [vmem:[#allocation7 + $0xfe8] sm:$0xff] %v7524
    %8037 = vst [vmem:[#allocation7 + $0xff0] sm:$0xff] %v7525
    %8038 = vst [vmem:[#allocation7 + $0xff8] sm:$0xff] %v7526
    // Predicated region
    $region22: #{tpu_custom_call.1} parent=1 // pred_check
      _
    $region23: #{tpu_custom_call.1} parent=1 // pred_check_branch
      %8040 = sbr.rel (0) target = $region25
    $region24: #{tpu_custom_call.1} parent=1 // pred_region
      %s8042 = ssub.s32 65536, 65536
      %8043 = vsyncadd [#allocation4], %s8042
      %s8044 = sshll.u32 [#allocation7], 4
      %s8045 = int_to_ptr.vmem [resolvable:$true] %s8044
      %8050 = dma.vmem_to_hbm [thread:$0]  %s8045, 65536, %s3, [#allocation4], 2048, 2048, 128
    $region25: #{tpu_custom_call.1} parent=1 // pred_fallthru
      _
    // Predicated region
    $region26: #{tpu_custom_call.1} parent=1 // pred_check
      _
    $region27: #{tpu_custom_call.1} parent=1 // pred_check_branch
      %8052 = sbr.rel (0) target = $region29
    $region28: #{tpu_custom_call.1} parent=1 // pred_region
      %8053 = dma.done [#allocation4], 65536
    $region29: #{tpu_custom_call.1} parent=1 // pred_fallthru
      _
    %8054 = vsyncpa [#allocation3], 1
    %8055 = vsyncpa [#allocation6], 1
    %8056 = vsyncpa [#allocation4], 1

</llo_original>
